<compile_context>
chip_gen: v6e
topology: v6e:2x2x1
jax: 0.10.0
libtpu: 0.0.40
codegen_flags: <defaults>
</compile_context>

<pallas_src>
import functools

import jax
import jax.numpy as jnp
from jax.experimental import pallas as pl
from jax.experimental.pallas import tpu as pltpu

EPS = 1e-5

_TM_CAP = 512     # matmul rows per tile   (sized with v7x's 64 MiB VMEM in mind)
_TK_CAP = 2048    # matmul reduction tile
_TMB_CAP = 512    # BN/ReLU rows per tile


# ---------------------------------------------------------------------------
# Tile-size helper: largest tile <= cap that divides dim and is a multiple of
# `quantum` (or the full dim, which Pallas always accepts).
# ---------------------------------------------------------------------------
def _pick_tile(dim, cap, quantum):
    if dim <= cap:
        return dim
    t = (cap // quantum) * quantum
    while t >= quantum:
        if dim % t == 0:
            return t
        t -= quantum
    return dim


# ---------------------------------------------------------------------------
# Pallas kernel 1: K-tiled matmul (+bias, +optional tanh, +optional fused
# per-channel sum / sum-of-squares statistics for BatchNorm).
#   A: (P, M, K) bf16,  B: (P, K, C) bf16,  bias: (1, C) f32
#   out: (P, M, C) f32   [, stats: (2, C) f32 = column sum / sum-of-squares]
# ---------------------------------------------------------------------------
def _mm_kernel(a_ref, b_ref, bias_ref, o_ref, *rest, act, with_stats):
    if with_stats:
        stats_ref, acc_ref = rest
    else:
        (acc_ref,) = rest

    ph = pl.program_id(0)
    mi = pl.program_id(1)
    ki = pl.program_id(2)
    nk = pl.num_programs(2)

    @pl.when(ki == 0)
    def _():
        acc_ref[...] = jnp.zeros_like(acc_ref)

    if with_stats:
        @pl.when((ph == 0) & (mi == 0) & (ki == 0))
        def _():
            stats_ref[...] = jnp.zeros_like(stats_ref)

    acc_ref[...] += jnp.dot(a_ref[0], b_ref[0],
                            preferred_element_type=jnp.float32)

    @pl.when(ki == nk - 1)
    def _():
        y = acc_ref[...] + bias_ref[...]
        if act == "tanh":
            y = jnp.tanh(y)
        o_ref[0] = y.astype(o_ref.dtype)
        if with_stats:
            stats_ref[...] += jnp.concatenate(
                [jnp.sum(y, axis=0, keepdims=True),
                 jnp.sum(y * y, axis=0, keepdims=True)], axis=0)


def matmul_bias_act(a, b, bias, *, act=None, with_stats=False):
    P, M, K = a.shape
    C = b.shape[2]
    tm = _pick_tile(M, _TM_CAP, 8)
    tk = _pick_tile(K, _TK_CAP, 128)
    grid = (P, M // tm, K // tk)

    if with_stats:
        out_shape = (jax.ShapeDtypeStruct((P, M, C), jnp.float32),
                     jax.ShapeDtypeStruct((2, C), jnp.float32))
        out_specs = (pl.BlockSpec((1, tm, C), lambda p, i, k: (p, i, 0)),
                     pl.BlockSpec((2, C), lambda p, i, k: (0, 0)))
        # stats accumulate across the whole grid -> keep every axis sequential
        sem = ("arbitrary", "arbitrary", "arbitrary")
    else:
        out_shape = jax.ShapeDtypeStruct((P, M, C), jnp.float32)
        out_specs = pl.BlockSpec((1, tm, C), lambda p, i, k: (p, i, 0))
        sem = ("parallel", "parallel", "arbitrary")   # megacore sharding on v7x

    kernel = functools.partial(_mm_kernel, act=act, with_stats=with_stats)
    return pl.pallas_call(
        kernel,
        out_shape=out_shape,
        grid=grid,
        in_specs=[
            pl.BlockSpec((1, tm, tk), lambda p, i, k: (p, i, k)),
            pl.BlockSpec((1, tk, C), lambda p, i, k: (p, k, 0)),
            pl.BlockSpec((1, C), lambda p, i, k: (0, 0)),
        ],
        out_specs=out_specs,
        scratch_shapes=[pltpu.VMEM((tm, C), jnp.float32)],
        compiler_params=pltpu.CompilerParams(dimension_semantics=sem),
    )(a, b, bias)


# ---------------------------------------------------------------------------
# Pallas kernel 2: tiled BatchNorm(apply) + ReLU:  relu(y * scale + shift)
# ---------------------------------------------------------------------------
def _bn_relu_kernel(y_ref, scale_ref, shift_ref, o_ref):
    o_ref[...] = jnp.maximum(y_ref[...] * scale_ref[...] + shift_ref[...], 0.0)


def bn_relu_apply(y, scale, shift):
    M, C = y.shape
    tm = _pick_tile(M, _TMB_CAP, 8)
    return pl.pallas_call(
        _bn_relu_kernel,
        out_shape=jax.ShapeDtypeStruct((M, C), jnp.float32),
        grid=(M // tm,),
        in_specs=[
            pl.BlockSpec((tm, C), lambda i: (i, 0)),
            pl.BlockSpec((1, C), lambda i: (0, 0)),
            pl.BlockSpec((1, C), lambda i: (0, 0)),
        ],
        out_specs=pl.BlockSpec((tm, C), lambda i: (i, 0)),
        compiler_params=pltpu.CompilerParams(dimension_semantics=("parallel",)),
    )(y, scale.reshape(1, C), shift.reshape(1, C))


def _bn_scale_shift(stats, count, gamma, beta):
    mean = stats[0] / count
    var = stats[1] / count - mean * mean        # biased, as PyTorch training BN
    scale = gamma * jax.lax.rsqrt(var + EPS)
    shift = beta - mean * scale
    return scale, shift


# ---------------------------------------------------------------------------
# 4-phase decomposition of ConvTranspose2d(k=4, s=2, p=1) (XLA glue).
#   output even index 2m:  x[m]*w[1] + x[m-1]*w[3]
#   output odd  index 2m+1: x[m+1]*w[0] + x[m]*w[2]
# ---------------------------------------------------------------------------
_TAPS = ((3, 1), (2, 0))                 # [output parity][window row] -> kh/kw
_PHASES = ((0, 0), (0, 1), (1, 0), (1, 1))


def _phase_weight(w, eh, ew):
    # w: (Cin, Cout, 4, 4) -> (4*Cin, Cout), K order = (r, c, ci)
    cin, cout = w.shape[0], w.shape[1]
    rows = [w[:, :, _TAPS[eh][r], _TAPS[ew][c]] for r in range(2) for c in range(2)]
    return jnp.stack(rows, axis=0).reshape(4 * cin, cout)


def _phase_patches(x, eh, ew):
    # x: (N, H, W, Cin) -> (N*H*W, 4*Cin), K order = (r, c, ci)
    n, h, w, cin = x.shape
    pad_h = (1, 0) if eh == 0 else (0, 1)
    pad_w = (1, 0) if ew == 0 else (0, 1)
    xp = jnp.pad(x, ((0, 0), pad_h, pad_w, (0, 0)))
    taps = [xp[:, r:r + h, c:c + w, :] for r in range(2) for c in range(2)]
    return jnp.stack(taps, axis=3).reshape(n * h * w, 4 * cin)


def conv_t_s2_cols(x_nhwc, w):
    a = jnp.stack([_phase_patches(x_nhwc, eh, ew) for eh, ew in _PHASES], 0)
    b = jnp.stack([_phase_weight(w, eh, ew) for eh, ew in _PHASES], 0)
    return a.astype(jnp.bfloat16), b.astype(jnp.bfloat16)


def _assemble_phases(y_cols, n, h, w, c):
    # y_cols: (4, N*H*W, C), phase order (eh, ew)  ->  (N, 2H, 2W, C)
    y = y_cols.reshape(2, 2, n, h, w, c)
    y = y.transpose(2, 3, 0, 4, 1, 5)             # (N, H, eh, W, ew, C)
    return y.reshape(n, 2 * h, 2 * w, c)


# ---------------------------------------------------------------------------
# Generator forward (strides / paddings are static: block1 = k4 s1 p0 on 1x1,
# all remaining ConvTranspose2d layers = k4 s2 p1, as in the PyTorch module).
# ---------------------------------------------------------------------------
def generator_forward(z, params):
    """z: (N, Cz, 1, 1) NCHW -> (N, channels_img, 64, 64) NCHW."""
    n, cz = z.shape[0], z.shape[1]

    # ---- block 1: ConvT(k=4, s=1, p=0) on a 1x1 input == dense matmul ----
    blk0 = params["blocks"][0]
    w0 = blk0["w"]                                   # (Cz, C0, 4, 4)
    c0 = w0.shape[1]
    a = z.reshape(1, n, cz).astype(jnp.bfloat16)
    b = jnp.transpose(w0, (0, 2, 3, 1)).reshape(1, cz, 16 * c0).astype(jnp.bfloat16)
    y, stats = matmul_bias_act(a, b, jnp.zeros((1, 16 * c0), jnp.float32),
                               act=None, with_stats=True)
    stats = stats.reshape(2, 16, c0).sum(axis=1)     # fold spatial taps -> per-channel
    scale, shift = _bn_scale_shift(stats, n * 16, blk0["gamma"], blk0["beta"])
    x = bn_relu_apply(y.reshape(n * 16, c0), scale, shift).reshape(n, 4, 4, c0)

    # ---- blocks 2..4: ConvT(k=4, s=2, p=1, bias=False) + BN + ReLU ----
    for layer in params["blocks"][1:]:
        nb, h, w, _ = x.shape
        cout = layer["w"].shape[1]
        a, b = conv_t_s2_cols(x, layer["w"])
        y, stats = matmul_bias_act(a, b, jnp.zeros((1, cout), jnp.float32),
                                   act=None, with_stats=True)
        scale, shift = _bn_scale_shift(stats, 4 * nb * h * w,
                                       layer["gamma"], layer["beta"])
        y = bn_relu_apply(y.reshape(4 * nb * h * w, cout), scale, shift)
        x = _assemble_phases(y.reshape(4, nb * h * w, cout), nb, h, w, cout)

    # ---- final: ConvT(k=4, s=2, p=1, bias=True) + Tanh (fused in kernel) ----
    nb, h, w, _ = x.shape
    cimg = params["final_w"].shape[1]
    a, b = conv_t_s2_cols(x, params["final_w"])
    y = matmul_bias_act(a, b, params["final_b"].reshape(1, cimg),
                        act="tanh", with_stats=False)
    out = _assemble_phases(y, nb, h, w, cimg)        # (N, 2h, 2w, Cimg) NHWC
    return jnp.transpose(out, (0, 3, 1, 2))          # NCHW


# ---------------------------------------------------------------------------
# Pure-JAX f32 reference (correctness check)
# ---------------------------------------------------------------------------
def _ref_convT(x, w, b, s, p):
    k = w.shape[2]
    w_conv = jnp.transpose(w[:, :, ::-1, ::-1], (1, 0, 2, 3))   # (Cout, Cin, k, k)
    y = jax.lax.conv_general_dilated(
        x, w_conv, window_strides=(1, 1), padding=[(k - 1 - p, k - 1 - p)] * 2,
        lhs_dilation=(s, s), dimension_numbers=("NCHW", "OIHW", "NCHW"))
    if b is not None:
        y = y + b.reshape(1, -1, 1, 1)
    return y


def ref_forward(z, params):
    x = z
    cfg = [(1, 0), (2, 1), (2, 1), (2, 1)]
    for layer, (s, p) in zip(params["blocks"], cfg):
        x = _ref_convT(x, layer["w"], None, s, p)
        mean = x.mean(axis=(0, 2, 3), keepdims=True)
        var = jnp.square(x - mean).mean(axis=(0, 2, 3), keepdims=True)
        x = (x - mean) * jax.lax.rsqrt(var + EPS) \
            * layer["gamma"].reshape(1, -1, 1, 1) + layer["beta"].reshape(1, -1, 1, 1)
        x = jnp.maximum(x, 0.0)
    x = _ref_convT(x, params["final_w"], params["final_b"], 2, 1)
    return jnp.tanh(x)


# ---------------------------------------------------------------------------
# Deterministic parameter init (arrays only -> jit-friendly pytree)
# ---------------------------------------------------------------------------
def init_params(key, channels_noise, channels_img, features_g):
    fg = features_g
    block_cfg = [
        (channels_noise, fg * 16),
        (fg * 16, fg * 8),
        (fg * 8, fg * 4),
        (fg * 4, fg * 2),
    ]
    blocks = []
    for cin, cout in block_cfg:
        key, wk, gk, bk = jax.random.split(key, 4)
        blocks.append(dict(
            w=0.02 * jax.random.normal(wk, (cin, cout, 4, 4), jnp.float32),
            gamma=1.0 + 0.1 * jax.random.normal(gk, (cout,), jnp.float32),
            beta=0.1 * jax.random.normal(bk, (cout,), jnp.float32),
        ))
    key, wk, bk = jax.random.split(key, 3)
    final_w = 0.02 * jax.random.normal(wk, (fg * 2, channels_img, 4, 4), jnp.float32)
    final_b = 0.02 * jax.random.normal(bk, (channels_img,), jnp.float32)
    return dict(blocks=blocks, final_w=final_w, final_b=final_b)


if __name__ == "__main__":
    channels_noise, channels_img, features_g, batch = 8, 3, 8, 2
    key = jax.random.PRNGKey(0)
    key, zk = jax.random.split(key)
    z = jax.random.normal(zk, (batch, channels_noise, 1, 1), jnp.float32)
    params = init_params(key, channels_noise, channels_img, features_g)

    out = jax.block_until_ready(jax.jit(generator_forward)(z, params))
    assert out.shape == (batch, channels_img, 64, 64), out.shape

    ref = jax.block_until_ready(ref_forward(z, params))
    max_err = float(jnp.max(jnp.abs(out - ref)))
    # bf16 matmul inputs (f32 accumulation) -> allow bf16-scale noise vs f32 ref.
    assert max_err < 2e-2, f"mismatch vs reference: {max_err}"

    print("KERNEL_OK")
</pallas_src>

<mosaic_0001>
module attributes {stable_mosaic.version = 11 : i64} {
  func.func @_bn_relu_kernel(%arg0: i32, %arg1: memref<32x128xf32, #tpu.memory_space<vmem>>, %arg2: memref<1x128xf32, #tpu.memory_space<vmem>>, %arg3: memref<1x128xf32, #tpu.memory_space<vmem>>, %arg4: memref<32x128xf32, #tpu.memory_space<vmem>>) attributes {dimension_semantics = [#tpu.dimension_semantics<parallel>], iteration_bounds = array<i64: 1>, scalar_prefetch = 0 : i64, scratch_operands = 0 : i64, tpu.core_type = #tpu.core_type<tc>, window_params = [{transform_indices = @transform_0, window_bounds = array<i64: 32, 128>}, {pipeline_mode = #tpu.pipeline_mode<synchronous>, transform_indices = @transform_1, window_bounds = array<i64: 1, 128>}, {pipeline_mode = #tpu.pipeline_mode<synchronous>, transform_indices = @transform_2, window_bounds = array<i64: 1, 128>}, {transform_indices = @transform_3, window_bounds = array<i64: 32, 128>}]} {
    %c0 = arith.constant 0 : index
    %c0_0 = arith.constant 0 : index
    %0 = vector.load %arg1[%c0, %c0_0] : memref<32x128xf32, #tpu.memory_space<vmem>>, vector<32x128xf32>
    %c0_1 = arith.constant 0 : index
    %c0_2 = arith.constant 0 : index
    %1 = vector.load %arg2[%c0_1, %c0_2] : memref<1x128xf32, #tpu.memory_space<vmem>>, vector<1x128xf32>
    %2 = vector.broadcast %1 : vector<1x128xf32> to vector<32x128xf32>
    %3 = arith.mulf %0, %2 : vector<32x128xf32>
    %c0_3 = arith.constant 0 : index
    %c0_4 = arith.constant 0 : index
    %4 = vector.load %arg3[%c0_3, %c0_4] : memref<1x128xf32, #tpu.memory_space<vmem>>, vector<1x128xf32>
    %5 = vector.broadcast %4 : vector<1x128xf32> to vector<32x128xf32>
    %6 = arith.addf %3, %5 : vector<32x128xf32>
    %cst = arith.constant 0.000000e+00 : f32
    %7 = vector.broadcast %cst : f32 to vector<32x128xf32>
    %8 = arith.maximumf %6, %7 : vector<32x128xf32>
    %c0_5 = arith.constant 0 : index
    %c0_6 = arith.constant 0 : index
    %9 = vector.load %arg4[%c0_5, %c0_6] : memref<32x128xf32, #tpu.memory_space<vmem>>, vector<32x128xf32>
    tpu.vector_store %arg4[%c0_5, %c0_6], %8 {strides = array<i32>} : memref<32x128xf32, #tpu.memory_space<vmem>>, vector<32x128xf32>,
    return
  }
  func.func @transform_0(%arg0: i32) -> (i32, i32) {
    %c0_i32 = arith.constant 0 : i32
    %c0_i32_0 = arith.constant 0 : i32
    return %arg0, %c0_i32 : i32, i32
  }
  func.func @transform_1(%arg0: i32) -> (i32, i32) {
    %c0_i32 = arith.constant 0 : i32
    %c0_i32_0 = arith.constant 0 : i32
    %c0_i32_1 = arith.constant 0 : i32
    return %c0_i32, %c0_i32_0 : i32, i32
  }
  func.func @transform_2(%arg0: i32) -> (i32, i32) {
    %c0_i32 = arith.constant 0 : i32
    %c0_i32_0 = arith.constant 0 : i32
    %c0_i32_1 = arith.constant 0 : i32
    return %c0_i32, %c0_i32_0 : i32, i32
  }
  func.func @transform_3(%arg0: i32) -> (i32, i32) {
    %c0_i32 = arith.constant 0 : i32
    %c0_i32_0 = arith.constant 0 : i32
    return %arg0, %c0_i32 : i32, i32
  }
}

module attributes {stable_mosaic.version = 11 : i64} {
  func.func @_mm_kernel(%arg0: i32, %arg1: i32, %arg2: i32, %arg3: memref<1x2x8xbf16, #tpu.memory_space<vmem>>, %arg4: memref<1x8x2048xbf16, #tpu.memory_space<vmem>>, %arg5: memref<1x2048xf32, #tpu.memory_space<vmem>>, %arg6: memref<1x2x2048xf32, #tpu.memory_space<vmem>>, %arg7: memref<2x2048xf32, #tpu.memory_space<vmem>>, %arg8: memref<2x2048xf32, #tpu.memory_space<vmem>>) attributes {dimension_semantics = [#tpu.dimension_semantics<arbitrary>, #tpu.dimension_semantics<arbitrary>, #tpu.dimension_semantics<arbitrary>], iteration_bounds = array<i64: 1, 1, 1>, scalar_prefetch = 0 : i64, scratch_operands = 1 : i64, tpu.core_type = #tpu.core_type<tc>, window_params = [{transform_indices = @transform_0, window_bounds = array<i64: 1, 2, 8>}, {transform_indices = @transform_1, window_bounds = array<i64: 1, 8, 2048>}, {pipeline_mode = #tpu.pipeline_mode<synchronous>, transform_indices = @transform_2, window_bounds = array<i64: 1, 2048>}, {transform_indices = @transform_3, window_bounds = array<i64: 1, 2, 2048>}, {pipeline_mode = #tpu.pipeline_mode<synchronous>, transform_indices = @transform_4, window_bounds = array<i64: 2, 2048>}]} {
    %c0_i32 = arith.constant 0 : i32
    %0 = arith.cmpi eq, %arg2, %c0_i32 : i32
    %1 = arith.extui %0 : i1 to i32
    %c0_i32_0 = arith.constant 0 : i32
    %2 = arith.cmpi ne, %1, %c0_i32_0 : i32
    scf.if %2 {
      %cst_16 = arith.constant 0.000000e+00 : f32
      %21 = vector.broadcast %cst_16 : f32 to vector<2x2048xf32>
      %c0_17 = arith.constant 0 : index
      %c0_18 = arith.constant 0 : index
      %22 = vector.load %arg8[%c0_17, %c0_18] : memref<2x2048xf32, #tpu.memory_space<vmem>>, vector<2x2048xf32>
      tpu.vector_store %arg8[%c0_17, %c0_18], %21 {strides = array<i32>} : memref<2x2048xf32, #tpu.memory_space<vmem>>, vector<2x2048xf32>,
    } else {
    }
    %c0_i32_1 = arith.constant 0 : i32
    %3 = arith.cmpi eq, %arg0, %c0_i32_1 : i32
    %c0_i32_2 = arith.constant 0 : i32
    %4 = arith.cmpi eq, %arg1, %c0_i32_2 : i32
    %5 = arith.andi %3, %4 : i1
    %c0_i32_3 = arith.constant 0 : i32
    %6 = arith.cmpi eq, %arg2, %c0_i32_3 : i32
    %7 = arith.andi %5, %6 : i1
    %8 = arith.extui %7 : i1 to i32
    %c0_i32_4 = arith.constant 0 : i32
    %9 = arith.cmpi ne, %8, %c0_i32_4 : i32
    scf.if %9 {
      %cst_16 = arith.constant 0.000000e+00 : f32
      %21 = vector.broadcast %cst_16 : f32 to vector<2x2048xf32>
      %c0_17 = arith.constant 0 : index
      %c0_18 = arith.constant 0 : index
      %22 = vector.load %arg7[%c0_17, %c0_18] : memref<2x2048xf32, #tpu.memory_space<vmem>>, vector<2x2048xf32>
      tpu.vector_store %arg7[%c0_17, %c0_18], %21 {strides = array<i32>} : memref<2x2048xf32, #tpu.memory_space<vmem>>, vector<2x2048xf32>,
    } else {
    }
    %c0 = arith.constant 0 : index
    %c0_5 = arith.constant 0 : index
    %10 = vector.load %arg8[%c0, %c0_5] : memref<2x2048xf32, #tpu.memory_space<vmem>>, vector<2x2048xf32>
    %c0_6 = arith.constant 0 : index
    %c0_7 = arith.constant 0 : index
    %c0_8 = arith.constant 0 : index
    %11 = vector.load %arg3[%c0_6, %c0_7, %c0_8] : memref<1x2x8xbf16, #tpu.memory_space<vmem>>, vector<1x2x8xbf16>
    %12 = vector.shape_cast %11 : vector<1x2x8xbf16> to vector<2x8xbf16>
    %c0_9 = arith.constant 0 : index
    %c0_10 = arith.constant 0 : index
    %c0_11 = arith.constant 0 : index
    %13 = vector.load %arg4[%c0_9, %c0_10, %c0_11] : memref<1x8x2048xbf16, #tpu.memory_space<vmem>>, vector<1x8x2048xbf16>
    %14 = vector.shape_cast %13 : vector<1x8x2048xbf16> to vector<8x2048xbf16>
    %cst = arith.constant dense<0.000000e+00> : vector<2x2048xf32>
    %15 = tpu.matmul %12, %14, %cst {dimension_numbers = #tpu.dot_dimension_numbers<[1], [0], [0], [1], [0, 0, 1, 1], [], []>} : vector<2x8xbf16>, vector<8x2048xbf16>, vector<2x2048xf32> -> vector<2x2048xf32>
    %16 = arith.addf %10, %15 : vector<2x2048xf32>
    %c0_12 = arith.constant 0 : index
    %c0_13 = arith.constant 0 : index
    %17 = vector.load %arg8[%c0_12, %c0_13] : memref<2x2048xf32, #tpu.memory_space<vmem>>, vector<2x2048xf32>
    tpu.vector_store %arg8[%c0_12, %c0_13], %16 {strides = array<i32>} : memref<2x2048xf32, #tpu.memory_space<vmem>>, vector<2x2048xf32>,
    %c0_i32_14 = arith.constant 0 : i32
    %18 = arith.cmpi eq, %arg2, %c0_i32_14 : i32
    %19 = arith.extui %18 : i1 to i32
    %c0_i32_15 = arith.constant 0 : i32
    %20 = arith.cmpi ne, %19, %c0_i32_15 : i32
    scf.if %20 {
      %c0_16 = arith.constant 0 : index
      %c0_17 = arith.constant 0 : index
      %21 = vector.load %arg8[%c0_16, %c0_17] : memref<2x2048xf32, #tpu.memory_space<vmem>>, vector<2x2048xf32>
      %c0_18 = arith.constant 0 : index
      %c0_19 = arith.constant 0 : index
      %22 = vector.load %arg5[%c0_18, %c0_19] : memref<1x2048xf32, #tpu.memory_space<vmem>>, vector<1x2048xf32>
      %23 = vector.broadcast %22 : vector<1x2048xf32> to vector<2x2048xf32>
      %24 = arith.addf %21, %23 : vector<2x2048xf32>
      %c0_20 = arith.constant 0 : index
      %c0_21 = arith.constant 0 : index
      %c0_22 = arith.constant 0 : index
      %25 = vector.load %arg6[%c0_20, %c0_21, %c0_22] : memref<1x2x2048xf32, #tpu.memory_space<vmem>>, vector<1x2x2048xf32>
      %26 = vector.shape_cast %25 : vector<1x2x2048xf32> to vector<2x2048xf32>
      %27 = vector.shape_cast %24 : vector<2x2048xf32> to vector<1x2x2048xf32>
      tpu.vector_store %arg6[%c0_20, %c0_21, %c0_22], %27 {strides = array<i32>} : memref<1x2x2048xf32, #tpu.memory_space<vmem>>, vector<1x2x2048xf32>,
      %c0_23 = arith.constant 0 : index
      %c0_24 = arith.constant 0 : index
      %28 = vector.load %arg7[%c0_23, %c0_24] : memref<2x2048xf32, #tpu.memory_space<vmem>>, vector<2x2048xf32>
      %cst_25 = arith.constant dense<0.000000e+00> : vector<2048xf32>
      %29 = vector.multi_reduction <add>, %24, %cst_25 [0] : vector<2x2048xf32> to vector<2048xf32>
      %30 = vector.shape_cast %29 : vector<2048xf32> to vector<1x2048xf32>
      %31 = arith.mulf %24, %24 : vector<2x2048xf32>
      %cst_26 = arith.constant dense<0.000000e+00> : vector<2048xf32>
      %32 = vector.multi_reduction <add>, %31, %cst_26 [0] : vector<2x2048xf32> to vector<2048xf32>
      %33 = vector.shape_cast %32 : vector<2048xf32> to vector<1x2048xf32>
      %34 = tpu.concatenate %30, %33 in 0 : vector<1x2048xf32>, vector<1x2048xf32> -> vector<2x2048xf32>
      %35 = arith.addf %28, %34 : vector<2x2048xf32>
      %c0_27 = arith.constant 0 : index
      %c0_28 = arith.constant 0 : index
      %36 = vector.load %arg7[%c0_27, %c0_28] : memref<2x2048xf32, #tpu.memory_space<vmem>>, vector<2x2048xf32>
      tpu.vector_store %arg7[%c0_27, %c0_28], %35 {strides = array<i32>} : memref<2x2048xf32, #tpu.memory_space<vmem>>, vector<2x2048xf32>,
    } else {
    }
    return
  }
  func.func @transform_0(%arg0: i32, %arg1: i32, %arg2: i32) -> (i32, i32, i32) {
    %c0_i32 = arith.constant 0 : i32
    return %arg0, %arg1, %arg2 : i32, i32, i32
  }
  func.func @transform_1(%arg0: i32, %arg1: i32, %arg2: i32) -> (i32, i32, i32) {
    %c0_i32 = arith.constant 0 : i32
    %c0_i32_0 = arith.constant 0 : i32
    return %arg0, %arg2, %c0_i32 : i32, i32, i32
  }
  func.func @transform_2(%arg0: i32, %arg1: i32, %arg2: i32) -> (i32, i32) {
    %c0_i32 = arith.constant 0 : i32
    %c0_i32_0 = arith.constant 0 : i32
    %c0_i32_1 = arith.constant 0 : i32
    return %c0_i32, %c0_i32_0 : i32, i32
  }
  func.func @transform_3(%arg0: i32, %arg1: i32, %arg2: i32) -> (i32, i32, i32) {
    %c0_i32 = arith.constant 0 : i32
    %c0_i32_0 = arith.constant 0 : i32
    return %arg0, %arg1, %c0_i32 : i32, i32, i32
  }
  func.func @transform_4(%arg0: i32, %arg1: i32, %arg2: i32) -> (i32, i32) {
    %c0_i32 = arith.constant 0 : i32
    %c0_i32_0 = arith.constant 0 : i32
    %c0_i32_1 = arith.constant 0 : i32
    return %c0_i32, %c0_i32_0 : i32, i32
  }
}

module attributes {stable_mosaic.version = 11 : i64} {
  func.func @_mm_kernel(%arg0: i32, %arg1: i32, %arg2: i32, %arg3: memref<1x32x512xbf16, #tpu.memory_space<vmem>>, %arg4: memref<1x512x64xbf16, #tpu.memory_space<vmem>>, %arg5: memref<1x64xf32, #tpu.memory_space<vmem>>, %arg6: memref<1x32x64xf32, #tpu.memory_space<vmem>>, %arg7: memref<2x64xf32, #tpu.memory_space<vmem>>, %arg8: memref<32x64xf32, #tpu.memory_space<vmem>>) attributes {dimension_semantics = [#tpu.dimension_semantics<arbitrary>, #tpu.dimension_semantics<arbitrary>, #tpu.dimension_semantics<arbitrary>], iteration_bounds = array<i64: 4, 1, 1>, scalar_prefetch = 0 : i64, scratch_operands = 1 : i64, tpu.core_type = #tpu.core_type<tc>, window_params = [{transform_indices = @transform_0, window_bounds = array<i64: 1, 32, 512>}, {transform_indices = @transform_1, window_bounds = array<i64: 1, 512, 64>}, {pipeline_mode = #tpu.pipeline_mode<synchronous>, transform_indices = @transform_2, window_bounds = array<i64: 1, 64>}, {transform_indices = @transform_3, window_bounds = array<i64: 1, 32, 64>}, {pipeline_mode = #tpu.pipeline_mode<synchronous>, transform_indices = @transform_4, window_bounds = array<i64: 2, 64>}]} {
    %c0_i32 = arith.constant 0 : i32
    %0 = arith.cmpi eq, %arg2, %c0_i32 : i32
    %1 = arith.extui %0 : i1 to i32
    %c0_i32_0 = arith.constant 0 : i32
    %2 = arith.cmpi ne, %1, %c0_i32_0 : i32
    scf.if %2 {
      %cst_16 = arith.constant 0.000000e+00 : f32
      %21 = vector.broadcast %cst_16 : f32 to vector<32x64xf32>
      %c0_17 = arith.constant 0 : index
      %c0_18 = arith.constant 0 : index
      %22 = vector.load %arg8[%c0_17, %c0_18] : memref<32x64xf32, #tpu.memory_space<vmem>>, vector<32x64xf32>
      tpu.vector_store %arg8[%c0_17, %c0_18], %21 {strides = array<i32>} : memref<32x64xf32, #tpu.memory_space<vmem>>, vector<32x64xf32>,
    } else {
    }
    %c0_i32_1 = arith.constant 0 : i32
    %3 = arith.cmpi eq, %arg0, %c0_i32_1 : i32
    %c0_i32_2 = arith.constant 0 : i32
    %4 = arith.cmpi eq, %arg1, %c0_i32_2 : i32
    %5 = arith.andi %3, %4 : i1
    %c0_i32_3 = arith.constant 0 : i32
    %6 = arith.cmpi eq, %arg2, %c0_i32_3 : i32
    %7 = arith.andi %5, %6 : i1
    %8 = arith.extui %7 : i1 to i32
    %c0_i32_4 = arith.constant 0 : i32
    %9 = arith.cmpi ne, %8, %c0_i32_4 : i32
    scf.if %9 {
      %cst_16 = arith.constant 0.000000e+00 : f32
      %21 = vector.broadcast %cst_16 : f32 to vector<2x64xf32>
      %c0_17 = arith.constant 0 : index
      %c0_18 = arith.constant 0 : index
      %22 = vector.load %arg7[%c0_17, %c0_18] : memref<2x64xf32, #tpu.memory_space<vmem>>, vector<2x64xf32>
      tpu.vector_store %arg7[%c0_17, %c0_18], %21 {strides = array<i32>} : memref<2x64xf32, #tpu.memory_space<vmem>>, vector<2x64xf32>,
    } else {
    }
    %c0 = arith.constant 0 : index
    %c0_5 = arith.constant 0 : index
    %10 = vector.load %arg8[%c0, %c0_5] : memref<32x64xf32, #tpu.memory_space<vmem>>, vector<32x64xf32>
    %c0_6 = arith.constant 0 : index
    %c0_7 = arith.constant 0 : index
    %c0_8 = arith.constant 0 : index
    %11 = vector.load %arg3[%c0_6, %c0_7, %c0_8] : memref<1x32x512xbf16, #tpu.memory_space<vmem>>, vector<1x32x512xbf16>
    %12 = vector.shape_cast %11 : vector<1x32x512xbf16> to vector<32x512xbf16>
    %c0_9 = arith.constant 0 : index
    %c0_10 = arith.constant 0 : index
    %c0_11 = arith.constant 0 : index
    %13 = vector.load %arg4[%c0_9, %c0_10, %c0_11] : memref<1x512x64xbf16, #tpu.memory_space<vmem>>, vector<1x512x64xbf16>
    %14 = vector.shape_cast %13 : vector<1x512x64xbf16> to vector<512x64xbf16>
    %cst = arith.constant dense<0.000000e+00> : vector<32x64xf32>
    %15 = tpu.matmul %12, %14, %cst {dimension_numbers = #tpu.dot_dimension_numbers<[1], [0], [0], [1], [0, 0, 1, 1], [], []>} : vector<32x512xbf16>, vector<512x64xbf16>, vector<32x64xf32> -> vector<32x64xf32>
    %16 = arith.addf %10, %15 : vector<32x64xf32>
    %c0_12 = arith.constant 0 : index
    %c0_13 = arith.constant 0 : index
    %17 = vector.load %arg8[%c0_12, %c0_13] : memref<32x64xf32, #tpu.memory_space<vmem>>, vector<32x64xf32>
    tpu.vector_store %arg8[%c0_12, %c0_13], %16 {strides = array<i32>} : memref<32x64xf32, #tpu.memory_space<vmem>>, vector<32x64xf32>,
    %c0_i32_14 = arith.constant 0 : i32
    %18 = arith.cmpi eq, %arg2, %c0_i32_14 : i32
    %19 = arith.extui %18 : i1 to i32
    %c0_i32_15 = arith.constant 0 : i32
    %20 = arith.cmpi ne, %19, %c0_i32_15 : i32
    scf.if %20 {
      %c0_16 = arith.constant 0 : index
      %c0_17 = arith.constant 0 : index
      %21 = vector.load %arg8[%c0_16, %c0_17] : memref<32x64xf32, #tpu.memory_space<vmem>>, vector<32x64xf32>
      %c0_18 = arith.constant 0 : index
      %c0_19 = arith.constant 0 : index
      %22 = vector.load %arg5[%c0_18, %c0_19] : memref<1x64xf32, #tpu.memory_space<vmem>>, vector<1x64xf32>
      %23 = vector.broadcast %22 : vector<1x64xf32> to vector<32x64xf32>
      %24 = arith.addf %21, %23 : vector<32x64xf32>
      %c0_20 = arith.constant 0 : index
      %c0_21 = arith.constant 0 : index
      %c0_22 = arith.constant 0 : index
      %25 = vector.load %arg6[%c0_20, %c0_21, %c0_22] : memref<1x32x64xf32, #tpu.memory_space<vmem>>, vector<1x32x64xf32>
      %26 = vector.shape_cast %25 : vector<1x32x64xf32> to vector<32x64xf32>
      %27 = vector.shape_cast %24 : vector<32x64xf32> to vector<1x32x64xf32>
      tpu.vector_store %arg6[%c0_20, %c0_21, %c0_22], %27 {strides = array<i32>} : memref<1x32x64xf32, #tpu.memory_space<vmem>>, vector<1x32x64xf32>,
      %c0_23 = arith.constant 0 : index
      %c0_24 = arith.constant 0 : index
      %28 = vector.load %arg7[%c0_23, %c0_24] : memref<2x64xf32, #tpu.memory_space<vmem>>, vector<2x64xf32>
      %cst_25 = arith.constant dense<0.000000e+00> : vector<64xf32>
      %29 = vector.multi_reduction <add>, %24, %cst_25 [0] : vector<32x64xf32> to vector<64xf32>
      %30 = vector.shape_cast %29 : vector<64xf32> to vector<1x64xf32>
      %31 = arith.mulf %24, %24 : vector<32x64xf32>
      %cst_26 = arith.constant dense<0.000000e+00> : vector<64xf32>
      %32 = vector.multi_reduction <add>, %31, %cst_26 [0] : vector<32x64xf32> to vector<64xf32>
      %33 = vector.shape_cast %32 : vector<64xf32> to vector<1x64xf32>
      %34 = tpu.concatenate %30, %33 in 0 : vector<1x64xf32>, vector<1x64xf32> -> vector<2x64xf32>
      %35 = arith.addf %28, %34 : vector<2x64xf32>
      %c0_27 = arith.constant 0 : index
      %c0_28 = arith.constant 0 : index
      %36 = vector.load %arg7[%c0_27, %c0_28] : memref<2x64xf32, #tpu.memory_space<vmem>>, vector<2x64xf32>
      tpu.vector_store %arg7[%c0_27, %c0_28], %35 {strides = array<i32>} : memref<2x64xf32, #tpu.memory_space<vmem>>, vector<2x64xf32>,
    } else {
    }
    return
  }
  func.func @transform_0(%arg0: i32, %arg1: i32, %arg2: i32) -> (i32, i32, i32) {
    %c0_i32 = arith.constant 0 : i32
    return %arg0, %arg1, %arg2 : i32, i32, i32
  }
  func.func @transform_1(%arg0: i32, %arg1: i32, %arg2: i32) -> (i32, i32, i32) {
    %c0_i32 = arith.constant 0 : i32
    %c0_i32_0 = arith.constant 0 : i32
    return %arg0, %arg2, %c0_i32 : i32, i32, i32
  }
  func.func @transform_2(%arg0: i32, %arg1: i32, %arg2: i32) -> (i32, i32) {
    %c0_i32 = arith.constant 0 : i32
    %c0_i32_0 = arith.constant 0 : i32
    %c0_i32_1 = arith.constant 0 : i32
    return %c0_i32, %c0_i32_0 : i32, i32
  }
  func.func @transform_3(%arg0: i32, %arg1: i32, %arg2: i32) -> (i32, i32, i32) {
    %c0_i32 = arith.constant 0 : i32
    %c0_i32_0 = arith.constant 0 : i32
    return %arg0, %arg1, %c0_i32 : i32, i32, i32
  }
  func.func @transform_4(%arg0: i32, %arg1: i32, %arg2: i32) -> (i32, i32) {
    %c0_i32 = arith.constant 0 : i32
    %c0_i32_0 = arith.constant 0 : i32
    %c0_i32_1 = arith.constant 0 : i32
    return %c0_i32, %c0_i32_0 : i32, i32
  }
}

module attributes {stable_mosaic.version = 11 : i64} {
  func.func @_bn_relu_kernel(%arg0: i32, %arg1: memref<128x64xf32, #tpu.memory_space<vmem>>, %arg2: memref<1x64xf32, #tpu.memory_space<vmem>>, %arg3: memref<1x64xf32, #tpu.memory_space<vmem>>, %arg4: memref<128x64xf32, #tpu.memory_space<vmem>>) attributes {dimension_semantics = [#tpu.dimension_semantics<parallel>], iteration_bounds = array<i64: 1>, scalar_prefetch = 0 : i64, scratch_operands = 0 : i64, tpu.core_type = #tpu.core_type<tc>, window_params = [{transform_indices = @transform_0, window_bounds = array<i64: 128, 64>}, {pipeline_mode = #tpu.pipeline_mode<synchronous>, transform_indices = @transform_1, window_bounds = array<i64: 1, 64>}, {pipeline_mode = #tpu.pipeline_mode<synchronous>, transform_indices = @transform_2, window_bounds = array<i64: 1, 64>}, {transform_indices = @transform_3, window_bounds = array<i64: 128, 64>}]} {
    %c0 = arith.constant 0 : index
    %c0_0 = arith.constant 0 : index
    %0 = vector.load %arg1[%c0, %c0_0] : memref<128x64xf32, #tpu.memory_space<vmem>>, vector<128x64xf32>
    %c0_1 = arith.constant 0 : index
    %c0_2 = arith.constant 0 : index
    %1 = vector.load %arg2[%c0_1, %c0_2] : memref<1x64xf32, #tpu.memory_space<vmem>>, vector<1x64xf32>
    %2 = vector.broadcast %1 : vector<1x64xf32> to vector<128x64xf32>
    %3 = arith.mulf %0, %2 : vector<128x64xf32>
    %c0_3 = arith.constant 0 : index
    %c0_4 = arith.constant 0 : index
    %4 = vector.load %arg3[%c0_3, %c0_4] : memref<1x64xf32, #tpu.memory_space<vmem>>, vector<1x64xf32>
    %5 = vector.broadcast %4 : vector<1x64xf32> to vector<128x64xf32>
    %6 = arith.addf %3, %5 : vector<128x64xf32>
    %cst = arith.constant 0.000000e+00 : f32
    %7 = vector.broadcast %cst : f32 to vector<128x64xf32>
    %8 = arith.maximumf %6, %7 : vector<128x64xf32>
    %c0_5 = arith.constant 0 : index
    %c0_6 = arith.constant 0 : index
    %9 = vector.load %arg4[%c0_5, %c0_6] : memref<128x64xf32, #tpu.memory_space<vmem>>, vector<128x64xf32>
    tpu.vector_store %arg4[%c0_5, %c0_6], %8 {strides = array<i32>} : memref<128x64xf32, #tpu.memory_space<vmem>>, vector<128x64xf32>,
    return
  }
  func.func @transform_0(%arg0: i32) -> (i32, i32) {
    %c0_i32 = arith.constant 0 : i32
    %c0_i32_0 = arith.constant 0 : i32
    return %arg0, %c0_i32 : i32, i32
  }
  func.func @transform_1(%arg0: i32) -> (i32, i32) {
    %c0_i32 = arith.constant 0 : i32
    %c0_i32_0 = arith.constant 0 : i32
    %c0_i32_1 = arith.constant 0 : i32
    return %c0_i32, %c0_i32_0 : i32, i32
  }
  func.func @transform_2(%arg0: i32) -> (i32, i32) {
    %c0_i32 = arith.constant 0 : i32
    %c0_i32_0 = arith.constant 0 : i32
    %c0_i32_1 = arith.constant 0 : i32
    return %c0_i32, %c0_i32_0 : i32, i32
  }
  func.func @transform_3(%arg0: i32) -> (i32, i32) {
    %c0_i32 = arith.constant 0 : i32
    %c0_i32_0 = arith.constant 0 : i32
    return %arg0, %c0_i32 : i32, i32
  }
}

module attributes {stable_mosaic.version = 11 : i64} {
  func.func @_mm_kernel(%arg0: i32, %arg1: i32, %arg2: i32, %arg3: memref<1x128x256xbf16, #tpu.memory_space<vmem>>, %arg4: memref<1x256x32xbf16, #tpu.memory_space<vmem>>, %arg5: memref<1x32xf32, #tpu.memory_space<vmem>>, %arg6: memref<1x128x32xf32, #tpu.memory_space<vmem>>, %arg7: memref<2x32xf32, #tpu.memory_space<vmem>>, %arg8: memref<128x32xf32, #tpu.memory_space<vmem>>) attributes {dimension_semantics = [#tpu.dimension_semantics<arbitrary>, #tpu.dimension_semantics<arbitrary>, #tpu.dimension_semantics<arbitrary>], iteration_bounds = array<i64: 4, 1, 1>, scalar_prefetch = 0 : i64, scratch_operands = 1 : i64, tpu.core_type = #tpu.core_type<tc>, window_params = [{transform_indices = @transform_0, window_bounds = array<i64: 1, 128, 256>}, {transform_indices = @transform_1, window_bounds = array<i64: 1, 256, 32>}, {pipeline_mode = #tpu.pipeline_mode<synchronous>, transform_indices = @transform_2, window_bounds = array<i64: 1, 32>}, {transform_indices = @transform_3, window_bounds = array<i64: 1, 128, 32>}, {pipeline_mode = #tpu.pipeline_mode<synchronous>, transform_indices = @transform_4, window_bounds = array<i64: 2, 32>}]} {
    %c0_i32 = arith.constant 0 : i32
    %0 = arith.cmpi eq, %arg2, %c0_i32 : i32
    %1 = arith.extui %0 : i1 to i32
    %c0_i32_0 = arith.constant 0 : i32
    %2 = arith.cmpi ne, %1, %c0_i32_0 : i32
    scf.if %2 {
      %cst_16 = arith.constant 0.000000e+00 : f32
      %21 = vector.broadcast %cst_16 : f32 to vector<128x32xf32>
      %c0_17 = arith.constant 0 : index
      %c0_18 = arith.constant 0 : index
      %22 = vector.load %arg8[%c0_17, %c0_18] : memref<128x32xf32, #tpu.memory_space<vmem>>, vector<128x32xf32>
      tpu.vector_store %arg8[%c0_17, %c0_18], %21 {strides = array<i32>} : memref<128x32xf32, #tpu.memory_space<vmem>>, vector<128x32xf32>,
    } else {
    }
    %c0_i32_1 = arith.constant 0 : i32
    %3 = arith.cmpi eq, %arg0, %c0_i32_1 : i32
    %c0_i32_2 = arith.constant 0 : i32
    %4 = arith.cmpi eq, %arg1, %c0_i32_2 : i32
    %5 = arith.andi %3, %4 : i1
    %c0_i32_3 = arith.constant 0 : i32
    %6 = arith.cmpi eq, %arg2, %c0_i32_3 : i32
    %7 = arith.andi %5, %6 : i1
    %8 = arith.extui %7 : i1 to i32
    %c0_i32_4 = arith.constant 0 : i32
    %9 = arith.cmpi ne, %8, %c0_i32_4 : i32
    scf.if %9 {
      %cst_16 = arith.constant 0.000000e+00 : f32
      %21 = vector.broadcast %cst_16 : f32 to vector<2x32xf32>
      %c0_17 = arith.constant 0 : index
      %c0_18 = arith.constant 0 : index
      %22 = vector.load %arg7[%c0_17, %c0_18] : memref<2x32xf32, #tpu.memory_space<vmem>>, vector<2x32xf32>
      tpu.vector_store %arg7[%c0_17, %c0_18], %21 {strides = array<i32>} : memref<2x32xf32, #tpu.memory_space<vmem>>, vector<2x32xf32>,
    } else {
    }
    %c0 = arith.constant 0 : index
    %c0_5 = arith.constant 0 : index
    %10 = vector.load %arg8[%c0, %c0_5] : memref<128x32xf32, #tpu.memory_space<vmem>>, vector<128x32xf32>
    %c0_6 = arith.constant 0 : index
    %c0_7 = arith.constant 0 : index
    %c0_8 = arith.constant 0 : index
    %11 = vector.load %arg3[%c0_6, %c0_7, %c0_8] : memref<1x128x256xbf16, #tpu.memory_space<vmem>>, vector<1x128x256xbf16>
    %12 = vector.shape_cast %11 : vector<1x128x256xbf16> to vector<128x256xbf16>
    %c0_9 = arith.constant 0 : index
    %c0_10 = arith.constant 0 : index
    %c0_11 = arith.constant 0 : index
    %13 = vector.load %arg4[%c0_9, %c0_10, %c0_11] : memref<1x256x32xbf16, #tpu.memory_space<vmem>>, vector<1x256x32xbf16>
    %14 = vector.shape_cast %13 : vector<1x256x32xbf16> to vector<256x32xbf16>
    %cst = arith.constant dense<0.000000e+00> : vector<128x32xf32>
    %15 = tpu.matmul %12, %14, %cst {dimension_numbers = #tpu.dot_dimension_numbers<[1], [0], [0], [1], [0, 0, 1, 1], [], []>} : vector<128x256xbf16>, vector<256x32xbf16>, vector<128x32xf32> -> vector<128x32xf32>
    %16 = arith.addf %10, %15 : vector<128x32xf32>
    %c0_12 = arith.constant 0 : index
    %c0_13 = arith.constant 0 : index
    %17 = vector.load %arg8[%c0_12, %c0_13] : memref<128x32xf32, #tpu.memory_space<vmem>>, vector<128x32xf32>
    tpu.vector_store %arg8[%c0_12, %c0_13], %16 {strides = array<i32>} : memref<128x32xf32, #tpu.memory_space<vmem>>, vector<128x32xf32>,
    %c0_i32_14 = arith.constant 0 : i32
    %18 = arith.cmpi eq, %arg2, %c0_i32_14 : i32
    %19 = arith.extui %18 : i1 to i32
    %c0_i32_15 = arith.constant 0 : i32
    %20 = arith.cmpi ne, %19, %c0_i32_15 : i32
    scf.if %20 {
      %c0_16 = arith.constant 0 : index
      %c0_17 = arith.constant 0 : index
      %21 = vector.load %arg8[%c0_16, %c0_17] : memref<128x32xf32, #tpu.memory_space<vmem>>, vector<128x32xf32>
      %c0_18 = arith.constant 0 : index
      %c0_19 = arith.constant 0 : index
      %22 = vector.load %arg5[%c0_18, %c0_19] : memref<1x32xf32, #tpu.memory_space<vmem>>, vector<1x32xf32>
      %23 = vector.broadcast %22 : vector<1x32xf32> to vector<128x32xf32>
      %24 = arith.addf %21, %23 : vector<128x32xf32>
      %c0_20 = arith.constant 0 : index
      %c0_21 = arith.constant 0 : index
      %c0_22 = arith.constant 0 : index
      %25 = vector.load %arg6[%c0_20, %c0_21, %c0_22] : memref<1x128x32xf32, #tpu.memory_space<vmem>>, vector<1x128x32xf32>
      %26 = vector.shape_cast %25 : vector<1x128x32xf32> to vector<128x32xf32>
      %27 = vector.shape_cast %24 : vector<128x32xf32> to vector<1x128x32xf32>
      tpu.vector_store %arg6[%c0_20, %c0_21, %c0_22], %27 {strides = array<i32>} : memref<1x128x32xf32, #tpu.memory_space<vmem>>, vector<1x128x32xf32>,
      %c0_23 = arith.constant 0 : index
      %c0_24 = arith.constant 0 : index
      %28 = vector.load %arg7[%c0_23, %c0_24] : memref<2x32xf32, #tpu.memory_space<vmem>>, vector<2x32xf32>
      %cst_25 = arith.constant dense<0.000000e+00> : vector<32xf32>
      %29 = vector.multi_reduction <add>, %24, %cst_25 [0] : vector<128x32xf32> to vector<32xf32>
      %30 = vector.shape_cast %29 : vector<32xf32> to vector<1x32xf32>
      %31 = arith.mulf %24, %24 : vector<128x32xf32>
      %cst_26 = arith.constant dense<0.000000e+00> : vector<32xf32>
      %32 = vector.multi_reduction <add>, %31, %cst_26 [0] : vector<128x32xf32> to vector<32xf32>
      %33 = vector.shape_cast %32 : vector<32xf32> to vector<1x32xf32>
      %34 = tpu.concatenate %30, %33 in 0 : vector<1x32xf32>, vector<1x32xf32> -> vector<2x32xf32>
      %35 = arith.addf %28, %34 : vector<2x32xf32>
      %c0_27 = arith.constant 0 : index
      %c0_28 = arith.constant 0 : index
      %36 = vector.load %arg7[%c0_27, %c0_28] : memref<2x32xf32, #tpu.memory_space<vmem>>, vector<2x32xf32>
      tpu.vector_store %arg7[%c0_27, %c0_28], %35 {strides = array<i32>} : memref<2x32xf32, #tpu.memory_space<vmem>>, vector<2x32xf32>,
    } else {
    }
    return
  }
  func.func @transform_0(%arg0: i32, %arg1: i32, %arg2: i32) -> (i32, i32, i32) {
    %c0_i32 = arith.constant 0 : i32
    return %arg0, %arg1, %arg2 : i32, i32, i32
  }
  func.func @transform_1(%arg0: i32, %arg1: i32, %arg2: i32) -> (i32, i32, i32) {
    %c0_i32 = arith.constant 0 : i32
    %c0_i32_0 = arith.constant 0 : i32
    return %arg0, %arg2, %c0_i32 : i32, i32, i32
  }
  func.func @transform_2(%arg0: i32, %arg1: i32, %arg2: i32) -> (i32, i32) {
    %c0_i32 = arith.constant 0 : i32
    %c0_i32_0 = arith.constant 0 : i32
    %c0_i32_1 = arith.constant 0 : i32
    return %c0_i32, %c0_i32_0 : i32, i32
  }
  func.func @transform_3(%arg0: i32, %arg1: i32, %arg2: i32) -> (i32, i32, i32) {
    %c0_i32 = arith.constant 0 : i32
    %c0_i32_0 = arith.constant 0 : i32
    return %arg0, %arg1, %c0_i32 : i32, i32, i32
  }
  func.func @transform_4(%arg0: i32, %arg1: i32, %arg2: i32) -> (i32, i32) {
    %c0_i32 = arith.constant 0 : i32
    %c0_i32_0 = arith.constant 0 : i32
    %c0_i32_1 = arith.constant 0 : i32
    return %c0_i32, %c0_i32_0 : i32, i32
  }
}

module attributes {stable_mosaic.version = 11 : i64} {
  func.func @_bn_relu_kernel(%arg0: i32, %arg1: memref<512x32xf32, #tpu.memory_space<vmem>>, %arg2: memref<1x32xf32, #tpu.memory_space<vmem>>, %arg3: memref<1x32xf32, #tpu.memory_space<vmem>>, %arg4: memref<512x32xf32, #tpu.memory_space<vmem>>) attributes {dimension_semantics = [#tpu.dimension_semantics<parallel>], iteration_bounds = array<i64: 1>, scalar_prefetch = 0 : i64, scratch_operands = 0 : i64, tpu.core_type = #tpu.core_type<tc>, window_params = [{transform_indices = @transform_0, window_bounds = array<i64: 512, 32>}, {pipeline_mode = #tpu.pipeline_mode<synchronous>, transform_indices = @transform_1, window_bounds = array<i64: 1, 32>}, {pipeline_mode = #tpu.pipeline_mode<synchronous>, transform_indices = @transform_2, window_bounds = array<i64: 1, 32>}, {transform_indices = @transform_3, window_bounds = array<i64: 512, 32>}]} {
    %c0 = arith.constant 0 : index
    %c0_0 = arith.constant 0 : index
    %0 = vector.load %arg1[%c0, %c0_0] : memref<512x32xf32, #tpu.memory_space<vmem>>, vector<512x32xf32>
    %c0_1 = arith.constant 0 : index
    %c0_2 = arith.constant 0 : index
    %1 = vector.load %arg2[%c0_1, %c0_2] : memref<1x32xf32, #tpu.memory_space<vmem>>, vector<1x32xf32>
    %2 = vector.broadcast %1 : vector<1x32xf32> to vector<512x32xf32>
    %3 = arith.mulf %0, %2 : vector<512x32xf32>
    %c0_3 = arith.constant 0 : index
    %c0_4 = arith.constant 0 : index
    %4 = vector.load %arg3[%c0_3, %c0_4] : memref<1x32xf32, #tpu.memory_space<vmem>>, vector<1x32xf32>
    %5 = vector.broadcast %4 : vector<1x32xf32> to vector<512x32xf32>
    %6 = arith.addf %3, %5 : vector<512x32xf32>
    %cst = arith.constant 0.000000e+00 : f32
    %7 = vector.broadcast %cst : f32 to vector<512x32xf32>
    %8 = arith.maximumf %6, %7 : vector<512x32xf32>
    %c0_5 = arith.constant 0 : index
    %c0_6 = arith.constant 0 : index
    %9 = vector.load %arg4[%c0_5, %c0_6] : memref<512x32xf32, #tpu.memory_space<vmem>>, vector<512x32xf32>
    tpu.vector_store %arg4[%c0_5, %c0_6], %8 {strides = array<i32>} : memref<512x32xf32, #tpu.memory_space<vmem>>, vector<512x32xf32>,
    return
  }
  func.func @transform_0(%arg0: i32) -> (i32, i32) {
    %c0_i32 = arith.constant 0 : i32
    %c0_i32_0 = arith.constant 0 : i32
    return %arg0, %c0_i32 : i32, i32
  }
  func.func @transform_1(%arg0: i32) -> (i32, i32) {
    %c0_i32 = arith.constant 0 : i32
    %c0_i32_0 = arith.constant 0 : i32
    %c0_i32_1 = arith.constant 0 : i32
    return %c0_i32, %c0_i32_0 : i32, i32
  }
  func.func @transform_2(%arg0: i32) -> (i32, i32) {
    %c0_i32 = arith.constant 0 : i32
    %c0_i32_0 = arith.constant 0 : i32
    %c0_i32_1 = arith.constant 0 : i32
    return %c0_i32, %c0_i32_0 : i32, i32
  }
  func.func @transform_3(%arg0: i32) -> (i32, i32) {
    %c0_i32 = arith.constant 0 : i32
    %c0_i32_0 = arith.constant 0 : i32
    return %arg0, %c0_i32 : i32, i32
  }
}

module attributes {stable_mosaic.version = 11 : i64} {
  func.func @_mm_kernel(%arg0: i32, %arg1: i32, %arg2: i32, %arg3: memref<1x512x128xbf16, #tpu.memory_space<vmem>>, %arg4: memref<1x128x16xbf16, #tpu.memory_space<vmem>>, %arg5: memref<1x16xf32, #tpu.memory_space<vmem>>, %arg6: memref<1x512x16xf32, #tpu.memory_space<vmem>>, %arg7: memref<2x16xf32, #tpu.memory_space<vmem>>, %arg8: memref<512x16xf32, #tpu.memory_space<vmem>>) attributes {dimension_semantics = [#tpu.dimension_semantics<arbitrary>, #tpu.dimension_semantics<arbitrary>, #tpu.dimension_semantics<arbitrary>], iteration_bounds = array<i64: 4, 1, 1>, scalar_prefetch = 0 : i64, scratch_operands = 1 : i64, tpu.core_type = #tpu.core_type<tc>, window_params = [{transform_indices = @transform_0, window_bounds = array<i64: 1, 512, 128>}, {transform_indices = @transform_1, window_bounds = array<i64: 1, 128, 16>}, {pipeline_mode = #tpu.pipeline_mode<synchronous>, transform_indices = @transform_2, window_bounds = array<i64: 1, 16>}, {transform_indices = @transform_3, window_bounds = array<i64: 1, 512, 16>}, {pipeline_mode = #tpu.pipeline_mode<synchronous>, transform_indices = @transform_4, window_bounds = array<i64: 2, 16>}]} {
    %c0_i32 = arith.constant 0 : i32
    %0 = arith.cmpi eq, %arg2, %c0_i32 : i32
    %1 = arith.extui %0 : i1 to i32
    %c0_i32_0 = arith.constant 0 : i32
    %2 = arith.cmpi ne, %1, %c0_i32_0 : i32
    scf.if %2 {
      %cst_16 = arith.constant 0.000000e+00 : f32
      %21 = vector.broadcast %cst_16 : f32 to vector<512x16xf32>
      %c0_17 = arith.constant 0 : index
      %c0_18 = arith.constant 0 : index
      %22 = vector.load %arg8[%c0_17, %c0_18] : memref<512x16xf32, #tpu.memory_space<vmem>>, vector<512x16xf32>
      tpu.vector_store %arg8[%c0_17, %c0_18], %21 {strides = array<i32>} : memref<512x16xf32, #tpu.memory_space<vmem>>, vector<512x16xf32>,
    } else {
    }
    %c0_i32_1 = arith.constant 0 : i32
    %3 = arith.cmpi eq, %arg0, %c0_i32_1 : i32
    %c0_i32_2 = arith.constant 0 : i32
    %4 = arith.cmpi eq, %arg1, %c0_i32_2 : i32
    %5 = arith.andi %3, %4 : i1
    %c0_i32_3 = arith.constant 0 : i32
    %6 = arith.cmpi eq, %arg2, %c0_i32_3 : i32
    %7 = arith.andi %5, %6 : i1
    %8 = arith.extui %7 : i1 to i32
    %c0_i32_4 = arith.constant 0 : i32
    %9 = arith.cmpi ne, %8, %c0_i32_4 : i32
    scf.if %9 {
      %cst_16 = arith.constant 0.000000e+00 : f32
      %21 = vector.broadcast %cst_16 : f32 to vector<2x16xf32>
      %c0_17 = arith.constant 0 : index
      %c0_18 = arith.constant 0 : index
      %22 = vector.load %arg7[%c0_17, %c0_18] : memref<2x16xf32, #tpu.memory_space<vmem>>, vector<2x16xf32>
      tpu.vector_store %arg7[%c0_17, %c0_18], %21 {strides = array<i32>} : memref<2x16xf32, #tpu.memory_space<vmem>>, vector<2x16xf32>,
    } else {
    }
    %c0 = arith.constant 0 : index
    %c0_5 = arith.constant 0 : index
    %10 = vector.load %arg8[%c0, %c0_5] : memref<512x16xf32, #tpu.memory_space<vmem>>, vector<512x16xf32>
    %c0_6 = arith.constant 0 : index
    %c0_7 = arith.constant 0 : index
    %c0_8 = arith.constant 0 : index
    %11 = vector.load %arg3[%c0_6, %c0_7, %c0_8] : memref<1x512x128xbf16, #tpu.memory_space<vmem>>, vector<1x512x128xbf16>
    %12 = vector.shape_cast %11 : vector<1x512x128xbf16> to vector<512x128xbf16>
    %c0_9 = arith.constant 0 : index
    %c0_10 = arith.constant 0 : index
    %c0_11 = arith.constant 0 : index
    %13 = vector.load %arg4[%c0_9, %c0_10, %c0_11] : memref<1x128x16xbf16, #tpu.memory_space<vmem>>, vector<1x128x16xbf16>
    %14 = vector.shape_cast %13 : vector<1x128x16xbf16> to vector<128x16xbf16>
    %cst = arith.constant dense<0.000000e+00> : vector<512x16xf32>
    %15 = tpu.matmul %12, %14, %cst {dimension_numbers = #tpu.dot_dimension_numbers<[1], [0], [0], [1], [0, 0, 1, 1], [], []>} : vector<512x128xbf16>, vector<128x16xbf16>, vector<512x16xf32> -> vector<512x16xf32>
    %16 = arith.addf %10, %15 : vector<512x16xf32>
    %c0_12 = arith.constant 0 : index
    %c0_13 = arith.constant 0 : index
    %17 = vector.load %arg8[%c0_12, %c0_13] : memref<512x16xf32, #tpu.memory_space<vmem>>, vector<512x16xf32>
    tpu.vector_store %arg8[%c0_12, %c0_13], %16 {strides = array<i32>} : memref<512x16xf32, #tpu.memory_space<vmem>>, vector<512x16xf32>,
    %c0_i32_14 = arith.constant 0 : i32
    %18 = arith.cmpi eq, %arg2, %c0_i32_14 : i32
    %19 = arith.extui %18 : i1 to i32
    %c0_i32_15 = arith.constant 0 : i32
    %20 = arith.cmpi ne, %19, %c0_i32_15 : i32
    scf.if %20 {
      %c0_16 = arith.constant 0 : index
      %c0_17 = arith.constant 0 : index
      %21 = vector.load %arg8[%c0_16, %c0_17] : memref<512x16xf32, #tpu.memory_space<vmem>>, vector<512x16xf32>
      %c0_18 = arith.constant 0 : index
      %c0_19 = arith.constant 0 : index
      %22 = vector.load %arg5[%c0_18, %c0_19] : memref<1x16xf32, #tpu.memory_space<vmem>>, vector<1x16xf32>
      %23 = vector.broadcast %22 : vector<1x16xf32> to vector<512x16xf32>
      %24 = arith.addf %21, %23 : vector<512x16xf32>
      %c0_20 = arith.constant 0 : index
      %c0_21 = arith.constant 0 : index
      %c0_22 = arith.constant 0 : index
      %25 = vector.load %arg6[%c0_20, %c0_21, %c0_22] : memref<1x512x16xf32, #tpu.memory_space<vmem>>, vector<1x512x16xf32>
      %26 = vector.shape_cast %25 : vector<1x512x16xf32> to vector<512x16xf32>
      %27 = vector.shape_cast %24 : vector<512x16xf32> to vector<1x512x16xf32>
      tpu.vector_store %arg6[%c0_20, %c0_21, %c0_22], %27 {strides = array<i32>} : memref<1x512x16xf32, #tpu.memory_space<vmem>>, vector<1x512x16xf32>,
      %c0_23 = arith.constant 0 : index
      %c0_24 = arith.constant 0 : index
      %28 = vector.load %arg7[%c0_23, %c0_24] : memref<2x16xf32, #tpu.memory_space<vmem>>, vector<2x16xf32>
      %cst_25 = arith.constant dense<0.000000e+00> : vector<16xf32>
      %29 = vector.multi_reduction <add>, %24, %cst_25 [0] : vector<512x16xf32> to vector<16xf32>
      %30 = vector.shape_cast %29 : vector<16xf32> to vector<1x16xf32>
      %31 = arith.mulf %24, %24 : vector<512x16xf32>
      %cst_26 = arith.constant dense<0.000000e+00> : vector<16xf32>
      %32 = vector.multi_reduction <add>, %31, %cst_26 [0] : vector<512x16xf32> to vector<16xf32>
      %33 = vector.shape_cast %32 : vector<16xf32> to vector<1x16xf32>
      %34 = tpu.concatenate %30, %33 in 0 : vector<1x16xf32>, vector<1x16xf32> -> vector<2x16xf32>
      %35 = arith.addf %28, %34 : vector<2x16xf32>
      %c0_27 = arith.constant 0 : index
      %c0_28 = arith.constant 0 : index
      %36 = vector.load %arg7[%c0_27, %c0_28] : memref<2x16xf32, #tpu.memory_space<vmem>>, vector<2x16xf32>
      tpu.vector_store %arg7[%c0_27, %c0_28], %35 {strides = array<i32>} : memref<2x16xf32, #tpu.memory_space<vmem>>, vector<2x16xf32>,
    } else {
    }
    return
  }
  func.func @transform_0(%arg0: i32, %arg1: i32, %arg2: i32) -> (i32, i32, i32) {
    %c0_i32 = arith.constant 0 : i32
    return %arg0, %arg1, %arg2 : i32, i32, i32
  }
  func.func @transform_1(%arg0: i32, %arg1: i32, %arg2: i32) -> (i32, i32, i32) {
    %c0_i32 = arith.constant 0 : i32
    %c0_i32_0 = arith.constant 0 : i32
    return %arg0, %arg2, %c0_i32 : i32, i32, i32
  }
  func.func @transform_2(%arg0: i32, %arg1: i32, %arg2: i32) -> (i32, i32) {
    %c0_i32 = arith.constant 0 : i32
    %c0_i32_0 = arith.constant 0 : i32
    %c0_i32_1 = arith.constant 0 : i32
    return %c0_i32, %c0_i32_0 : i32, i32
  }
  func.func @transform_3(%arg0: i32, %arg1: i32, %arg2: i32) -> (i32, i32, i32) {
    %c0_i32 = arith.constant 0 : i32
    %c0_i32_0 = arith.constant 0 : i32
    return %arg0, %arg1, %c0_i32 : i32, i32, i32
  }
  func.func @transform_4(%arg0: i32, %arg1: i32, %arg2: i32) -> (i32, i32) {
    %c0_i32 = arith.constant 0 : i32
    %c0_i32_0 = arith.constant 0 : i32
    %c0_i32_1 = arith.constant 0 : i32
    return %c0_i32, %c0_i32_0 : i32, i32
  }
}

module attributes {stable_mosaic.version = 11 : i64} {
  func.func @_bn_relu_kernel(%arg0: i32, %arg1: memref<512x16xf32, #tpu.memory_space<vmem>>, %arg2: memref<1x16xf32, #tpu.memory_space<vmem>>, %arg3: memref<1x16xf32, #tpu.memory_space<vmem>>, %arg4: memref<512x16xf32, #tpu.memory_space<vmem>>) attributes {dimension_semantics = [#tpu.dimension_semantics<parallel>], iteration_bounds = array<i64: 4>, scalar_prefetch = 0 : i64, scratch_operands = 0 : i64, tpu.core_type = #tpu.core_type<tc>, window_params = [{transform_indices = @transform_0, window_bounds = array<i64: 512, 16>}, {pipeline_mode = #tpu.pipeline_mode<synchronous>, transform_indices = @transform_1, window_bounds = array<i64: 1, 16>}, {pipeline_mode = #tpu.pipeline_mode<synchronous>, transform_indices = @transform_2, window_bounds = array<i64: 1, 16>}, {transform_indices = @transform_3, window_bounds = array<i64: 512, 16>}]} {
    %c0 = arith.constant 0 : index
    %c0_0 = arith.constant 0 : index
    %0 = vector.load %arg1[%c0, %c0_0] : memref<512x16xf32, #tpu.memory_space<vmem>>, vector<512x16xf32>
    %c0_1 = arith.constant 0 : index
    %c0_2 = arith.constant 0 : index
    %1 = vector.load %arg2[%c0_1, %c0_2] : memref<1x16xf32, #tpu.memory_space<vmem>>, vector<1x16xf32>
    %2 = vector.broadcast %1 : vector<1x16xf32> to vector<512x16xf32>
    %3 = arith.mulf %0, %2 : vector<512x16xf32>
    %c0_3 = arith.constant 0 : index
    %c0_4 = arith.constant 0 : index
    %4 = vector.load %arg3[%c0_3, %c0_4] : memref<1x16xf32, #tpu.memory_space<vmem>>, vector<1x16xf32>
    %5 = vector.broadcast %4 : vector<1x16xf32> to vector<512x16xf32>
    %6 = arith.addf %3, %5 : vector<512x16xf32>
    %cst = arith.constant 0.000000e+00 : f32
    %7 = vector.broadcast %cst : f32 to vector<512x16xf32>
    %8 = arith.maximumf %6, %7 : vector<512x16xf32>
    %c0_5 = arith.constant 0 : index
    %c0_6 = arith.constant 0 : index
    %9 = vector.load %arg4[%c0_5, %c0_6] : memref<512x16xf32, #tpu.memory_space<vmem>>, vector<512x16xf32>
    tpu.vector_store %arg4[%c0_5, %c0_6], %8 {strides = array<i32>} : memref<512x16xf32, #tpu.memory_space<vmem>>, vector<512x16xf32>,
    return
  }
  func.func @transform_0(%arg0: i32) -> (i32, i32) {
    %c0_i32 = arith.constant 0 : i32
    %c0_i32_0 = arith.constant 0 : i32
    return %arg0, %c0_i32 : i32, i32
  }
  func.func @transform_1(%arg0: i32) -> (i32, i32) {
    %c0_i32 = arith.constant 0 : i32
    %c0_i32_0 = arith.constant 0 : i32
    %c0_i32_1 = arith.constant 0 : i32
    return %c0_i32, %c0_i32_0 : i32, i32
  }
  func.func @transform_2(%arg0: i32) -> (i32, i32) {
    %c0_i32 = arith.constant 0 : i32
    %c0_i32_0 = arith.constant 0 : i32
    %c0_i32_1 = arith.constant 0 : i32
    return %c0_i32, %c0_i32_0 : i32, i32
  }
  func.func @transform_3(%arg0: i32) -> (i32, i32) {
    %c0_i32 = arith.constant 0 : i32
    %c0_i32_0 = arith.constant 0 : i32
    return %arg0, %c0_i32 : i32, i32
  }
}

module attributes {stable_mosaic.version = 11 : i64} {
  func.func @_mm_kernel(%arg0: i32, %arg1: i32, %arg2: i32, %arg3: memref<1x512x64xbf16, #tpu.memory_space<vmem>>, %arg4: memref<1x64x3xbf16, #tpu.memory_space<vmem>>, %arg5: memref<1x3xf32, #tpu.memory_space<vmem>>, %arg6: memref<1x512x3xf32, #tpu.memory_space<vmem>>, %arg7: memref<512x3xf32, #tpu.memory_space<vmem>>) attributes {dimension_semantics = [#tpu.dimension_semantics<parallel>, #tpu.dimension_semantics<parallel>, #tpu.dimension_semantics<arbitrary>], iteration_bounds = array<i64: 4, 4, 1>, scalar_prefetch = 0 : i64, scratch_operands = 1 : i64, tpu.core_type = #tpu.core_type<tc>, window_params = [{transform_indices = @transform_0, window_bounds = array<i64: 1, 512, 64>}, {transform_indices = @transform_1, window_bounds = array<i64: 1, 64, 3>}, {pipeline_mode = #tpu.pipeline_mode<synchronous>, transform_indices = @transform_2, window_bounds = array<i64: 1, 3>}, {transform_indices = @transform_3, window_bounds = array<i64: 1, 512, 3>}]} {
    %c0_i32 = arith.constant 0 : i32
    %0 = arith.cmpi eq, %arg2, %c0_i32 : i32
    %1 = arith.extui %0 : i1 to i32
    %c0_i32_0 = arith.constant 0 : i32
    %2 = arith.cmpi ne, %1, %c0_i32_0 : i32
    scf.if %2 {
      %cst_12 = arith.constant 0.000000e+00 : f32
      %14 = vector.broadcast %cst_12 : f32 to vector<512x3xf32>
      %c0_13 = arith.constant 0 : index
      %c0_14 = arith.constant 0 : index
      %15 = vector.load %arg7[%c0_13, %c0_14] : memref<512x3xf32, #tpu.memory_space<vmem>>, vector<512x3xf32>
      tpu.vector_store %arg7[%c0_13, %c0_14], %14 {strides = array<i32>} : memref<512x3xf32, #tpu.memory_space<vmem>>, vector<512x3xf32>,
    } else {
    }
    %c0 = arith.constant 0 : index
    %c0_1 = arith.constant 0 : index
    %3 = vector.load %arg7[%c0, %c0_1] : memref<512x3xf32, #tpu.memory_space<vmem>>, vector<512x3xf32>
    %c0_2 = arith.constant 0 : index
    %c0_3 = arith.constant 0 : index
    %c0_4 = arith.constant 0 : index
    %4 = vector.load %arg3[%c0_2, %c0_3, %c0_4] : memref<1x512x64xbf16, #tpu.memory_space<vmem>>, vector<1x512x64xbf16>
    %5 = vector.shape_cast %4 : vector<1x512x64xbf16> to vector<512x64xbf16>
    %c0_5 = arith.constant 0 : index
    %c0_6 = arith.constant 0 : index
    %c0_7 = arith.constant 0 : index
    %6 = vector.load %arg4[%c0_5, %c0_6, %c0_7] : memref<1x64x3xbf16, #tpu.memory_space<vmem>>, vector<1x64x3xbf16>
    %7 = vector.shape_cast %6 : vector<1x64x3xbf16> to vector<64x3xbf16>
    %cst = arith.constant dense<0.000000e+00> : vector<512x3xf32>
    %8 = tpu.matmul %5, %7, %cst {dimension_numbers = #tpu.dot_dimension_numbers<[1], [0], [0], [1], [0, 0, 1, 1], [], []>} : vector<512x64xbf16>, vector<64x3xbf16>, vector<512x3xf32> -> vector<512x3xf32>
    %9 = arith.addf %3, %8 : vector<512x3xf32>
    %c0_8 = arith.constant 0 : index
    %c0_9 = arith.constant 0 : index
    %10 = vector.load %arg7[%c0_8, %c0_9] : memref<512x3xf32, #tpu.memory_space<vmem>>, vector<512x3xf32>
    tpu.vector_store %arg7[%c0_8, %c0_9], %9 {strides = array<i32>} : memref<512x3xf32, #tpu.memory_space<vmem>>, vector<512x3xf32>,
    %c0_i32_10 = arith.constant 0 : i32
    %11 = arith.cmpi eq, %arg2, %c0_i32_10 : i32
    %12 = arith.extui %11 : i1 to i32
    %c0_i32_11 = arith.constant 0 : i32
    %13 = arith.cmpi ne, %12, %c0_i32_11 : i32
    scf.if %13 {
      %c0_12 = arith.constant 0 : index
      %c0_13 = arith.constant 0 : index
      %14 = vector.load %arg7[%c0_12, %c0_13] : memref<512x3xf32, #tpu.memory_space<vmem>>, vector<512x3xf32>
      %c0_14 = arith.constant 0 : index
      %c0_15 = arith.constant 0 : index
      %15 = vector.load %arg5[%c0_14, %c0_15] : memref<1x3xf32, #tpu.memory_space<vmem>>, vector<1x3xf32>
      %16 = vector.broadcast %15 : vector<1x3xf32> to vector<512x3xf32>
      %17 = arith.addf %14, %16 : vector<512x3xf32>
      %18 = math.tanh %17 : vector<512x3xf32>
      %c0_16 = arith.constant 0 : index
      %c0_17 = arith.constant 0 : index
      %c0_18 = arith.constant 0 : index
      %19 = vector.load %arg6[%c0_16, %c0_17, %c0_18] : memref<1x512x3xf32, #tpu.memory_space<vmem>>, vector<1x512x3xf32>
      %20 = vector.shape_cast %19 : vector<1x512x3xf32> to vector<512x3xf32>
      %21 = vector.shape_cast %18 : vector<512x3xf32> to vector<1x512x3xf32>
      tpu.vector_store %arg6[%c0_16, %c0_17, %c0_18], %21 {strides = array<i32>} : memref<1x512x3xf32, #tpu.memory_space<vmem>>, vector<1x512x3xf32>,
    } else {
    }
    return
  }
  func.func @transform_0(%arg0: i32, %arg1: i32, %arg2: i32) -> (i32, i32, i32) {
    %c0_i32 = arith.constant 0 : i32
    return %arg0, %arg1, %arg2 : i32, i32, i32
  }
  func.func @transform_1(%arg0: i32, %arg1: i32, %arg2: i32) -> (i32, i32, i32) {
    %c0_i32 = arith.constant 0 : i32
    %c0_i32_0 = arith.constant 0 : i32
    return %arg0, %arg2, %c0_i32 : i32, i32, i32
  }
  func.func @transform_2(%arg0: i32, %arg1: i32, %arg2: i32) -> (i32, i32) {
    %c0_i32 = arith.constant 0 : i32
    %c0_i32_0 = arith.constant 0 : i32
    %c0_i32_1 = arith.constant 0 : i32
    return %c0_i32, %c0_i32_0 : i32, i32
  }
  func.func @transform_3(%arg0: i32, %arg1: i32, %arg2: i32) -> (i32, i32, i32) {
    %c0_i32 = arith.constant 0 : i32
    %c0_i32_0 = arith.constant 0 : i32
    return %arg0, %arg1, %c0_i32 : i32, i32, i32
  }
}

</mosaic_0001>

<llo_original>
// kernel: generator_forward.10
$region0: #{generator_forward.10}
  #allocation0 [shape = 'u32[]', space=smem, size = 0x4, offset = 0x4, fixed_abs, tag = 'smem constant byte address 0x4 - core index']
  #allocation1 [shape = 'u32[144,128]{1,0:T(1,128)}', space=vmem, size = 0x12000, scoped, tag = 'internal scratch']
  %s0 = inlined_call_operand.vmem [shape: f32[32,128], index: 0, kind: input, shape index: {}]
  %s1 = inlined_call_operand.vmem [shape: f32[1,128], index: 1, kind: input, shape index: {}]
  %s2 = inlined_call_operand.vmem [shape: f32[1,128], index: 2, kind: input, shape index: {}]
  %s3 = inlined_call_operand.vmem [shape: f32[32,128], index: 3, kind: output, shape index: {}]
  %s4 = sld [smem:[#allocation0]]
  $region22: #{generator_forward.10} parent=0
    _
  %s6 = ssub.s32 1, %s4
  %s7 = scalar_select 0, %s6, %s4
  // Predicated region
  $region2: #{generator_forward.10} parent=0 // pred_check
    _
  $region3: #{generator_forward.10} parent=0 // pred_check_branch
    %9 = sbr.rel (0) target = $region5
  $region4: #{generator_forward.10} parent=0 // pred_region
    _
  $region5: #{generator_forward.10} parent=0 // pred_fallthru
    _
  // Predicated region
  $region6: #{generator_forward.10} parent=0 // pred_check
    _
  $region7: #{generator_forward.10} parent=0 // pred_check_branch
    %11 = sbr.rel (0) target = $region9
  $region8: #{generator_forward.10} parent=0 // pred_region
    _
  $region9: #{generator_forward.10} parent=0 // pred_fallthru
    _
  // Predicated region
  $region10: #{generator_forward.10} parent=0 // pred_check
    _
  $region11: #{generator_forward.10} parent=0 // pred_check_branch
    %13 = sbr.rel (0) target = $region13
  $region12: #{generator_forward.10} parent=0 // pred_region
    _
  $region13: #{generator_forward.10} parent=0 // pred_fallthru
    _
  %v14 = vld [vmem:[%s0] sm:$0xff]
  %v15 = vld [vmem:[%s0 + $0x8] sm:$0xff]
  %v16 = vld [vmem:[%s0 + $0x10] sm:$0xff]
  %v17 = vld [vmem:[%s0 + $0x18] sm:$0xff]
  %v18 = vld [vmem:[%s1] sm:$0x1]
  %v20 = vlaneseq
  %v21 = vshrl.u32 %v20, 7
  %v22 = vsub.s32 0, %v21
  %v23 = vrot.slane %v18, %v22
  %v25 = vmul.f32 %v14, %v23
  %v26 = vmul.f32 %v15, %v23
  %v27 = vmul.f32 %v16, %v23
  %v28 = vmul.f32 %v17, %v23
  %v29 = vld [vmem:[%s2] sm:$0x1]
  %v31 = vlaneseq
  %v32 = vshrl.u32 %v31, 7
  %v33 = vsub.s32 0, %v32
  %v34 = vrot.slane %v29, %v33
  %v36 = vadd.f32 %v25, %v34
  %v37 = vadd.f32 %v26, %v34
  %v38 = vadd.f32 %v27, %v34
  %v39 = vadd.f32 %v28, %v34
  %v40 = vmax.f32 %v36, 0.0
  %v41 = vmax.f32 %v37, 0.0
  %v42 = vmax.f32 %v38, 0.0
  %v43 = vmax.f32 %v39, 0.0
  %44 = vst [vmem:[%s3] sm:$0xff] %v40
  %45 = vst [vmem:[%s3 + $0x8] sm:$0xff] %v41
  %46 = vst [vmem:[%s3 + $0x10] sm:$0xff] %v42
  %47 = vst [vmem:[%s3 + $0x18] sm:$0xff] %v43
  // Predicated region
  $region14: #{generator_forward.10} parent=0 // pred_check
    _
  $region15: #{generator_forward.10} parent=0 // pred_check_branch
    %49 = sbr.rel (0) target = $region17
  $region16: #{generator_forward.10} parent=0 // pred_region
    _
  $region17: #{generator_forward.10} parent=0 // pred_fallthru
    _
  // Predicated region
  $region18: #{generator_forward.10} parent=0 // pred_check
    _
  $region19: #{generator_forward.10} parent=0 // pred_check_branch
    %51 = sbr.rel (0) target = $region21
  $region20: #{generator_forward.10} parent=0 // pred_region
    _
  $region21: #{generator_forward.10} parent=0 // pred_fallthru
    _

// kernel: generator_forward.9
$region0: #{generator_forward.9}
  #allocation0 [shape = 'u32[]', space=smem, size = 0x4, offset = 0x4, fixed_abs, tag = 'smem constant byte address 0x4 - core index']
  #allocation1 [shape = 'u32[144,128]{1,0:T(1,128)}', space=vmem, size = 0x12000, scoped, tag = 'internal scratch']
  #allocation2 [shape = 'f32[2,2048]{1,0:T(2,128)}', space=vmem, size = 0x4000, scoped, tag = 'scratch operand']
  %s0 = inlined_call_operand.vmem [shape: bf16[1,2,8], index: 0, kind: input, shape index: {}]
  %s1 = inlined_call_operand.vmem [shape: bf16[1,8,2048], index: 1, kind: input, shape index: {}]
  %s2 = inlined_call_operand.vmem [shape: f32[1,2048], index: 2, kind: input, shape index: {}]
  %s3 = inlined_call_operand.vmem [shape: f32[1,2,2048], index: 3, kind: output, shape index: {0}]
  %s4 = inlined_call_operand.vmem [shape: f32[2,2048], index: 4, kind: output, shape index: {1}]
  %5 = xla_tuple %s3, %s4
  %s6 = sld [smem:[#allocation0]]
  $region42: #{generator_forward.9} parent=0
    _
  %s8 = ssub.s32 1, %s6
  %s9 = scalar_select 0, %s8, %s6
  // Predicated region
  $region2: #{generator_forward.9} parent=0 // pred_check
    _
  $region3: #{generator_forward.9} parent=0 // pred_check_branch
    %11 = sbr.rel (0) target = $region5
  $region4: #{generator_forward.9} parent=0 // pred_region
    _
  $region5: #{generator_forward.9} parent=0 // pred_fallthru
    _
  // Predicated region
  $region6: #{generator_forward.9} parent=0 // pred_check
    _
  $region7: #{generator_forward.9} parent=0 // pred_check_branch
    %13 = sbr.rel (0) target = $region9
  $region8: #{generator_forward.9} parent=0 // pred_region
    _
  $region9: #{generator_forward.9} parent=0 // pred_fallthru
    _
  // Predicated region
  $region10: #{generator_forward.9} parent=0 // pred_check
    _
  $region11: #{generator_forward.9} parent=0 // pred_check_branch
    %15 = sbr.rel (0) target = $region13
  $region12: #{generator_forward.9} parent=0 // pred_region
    _
  $region13: #{generator_forward.9} parent=0 // pred_fallthru
    _
  %p17 = scmp.eq.s32.totalorder 0, 0
  // Predicated region
  $region14: #{generator_forward.9} parent=0 // pred_check
    %p18 = pneg %p17
  $region15: #{generator_forward.9} parent=0 // pred_check_branch
    %20 = sbr.rel (%p18) target = $region17
  $region16: #{generator_forward.9} parent=0 // pred_region
    %21 = vst [vmem:[#allocation2] sm:$0xff] 0.0
    %22 = vst [vmem:[#allocation2 + $0x8] sm:$0xff] 0.0
    %23 = vst [vmem:[#allocation2 + $0x10] sm:$0xff] 0.0
    %24 = vst [vmem:[#allocation2 + $0x18] sm:$0xff] 0.0
  $region17: #{generator_forward.9} parent=0 // pred_fallthru
    _
  %p25 = scmp.eq.s32.totalorder 0, 0
  %p26 = scmp.eq.s32.totalorder 0, 0
  %p27 = pnand %p25, %p26
  %p28 = pneg %p27
  %p29 = pnand %p28, %p17
  %p30 = pneg %p29
  // Predicated region
  $region18: #{generator_forward.9} parent=0 // pred_check
    _
  $region19: #{generator_forward.9} parent=0 // pred_check_branch
    %32 = sbr.rel (%p29) target = $region21
  $region20: #{generator_forward.9} parent=0 // pred_region
    %33 = vst [vmem:[%s4] sm:$0xff] 0.0
    %34 = vst [vmem:[%s4 + $0x8] sm:$0xff] 0.0
    %35 = vst [vmem:[%s4 + $0x10] sm:$0xff] 0.0
    %36 = vst [vmem:[%s4 + $0x18] sm:$0xff] 0.0
  $region21: #{generator_forward.9} parent=0 // pred_fallthru
    _
  %v37 = vld [vmem:[#allocation2] sm:$0xff]
  %v38 = vld [vmem:[#allocation2 + $0x8] sm:$0xff]
  %v39 = vld [vmem:[#allocation2 + $0x10] sm:$0xff]
  %v40 = vld [vmem:[#allocation2 + $0x18] sm:$0xff]
  %v41 = vld [vmem:[%s0] sm:$0x1]
  %v42 = vld [vmem:[%s1] sm:$0xff]
  %v43 = vld [vmem:[%s1 + $0x8] sm:$0xff]
  %v44 = vld [vmem:[%s1 + $0x10] sm:$0xff]
  %v45 = vld [vmem:[%s1 + $0x18] sm:$0xff]
  %v46 = vld [vmem:[%s1 + $0x20] sm:$0xff]
  %v47 = vld [vmem:[%s1 + $0x28] sm:$0xff]
  %v48 = vld [vmem:[%s1 + $0x30] sm:$0xff]
  %v49 = vld [vmem:[%s1 + $0x38] sm:$0xff]
  %v58 = vunpack.c.l.b16 %v42
  %v59 = vunpack.c.h.b16 %v42
  %v60 = vunpack.c.l.b16 %v43
  %v61 = vunpack.c.h.b16 %v43
  %v62 = vunpack.c.l.b16 %v44
  %v63 = vunpack.c.h.b16 %v44
  %v64 = vunpack.c.l.b16 %v45
  %v65 = vunpack.c.h.b16 %v45
  %v66 = vunpack.c.l.b16 %v46
  %v67 = vunpack.c.h.b16 %v46
  %v68 = vunpack.c.l.b16 %v47
  %v69 = vunpack.c.h.b16 %v47
  %v70 = vunpack.c.l.b16 %v48
  %v71 = vunpack.c.h.b16 %v48
  %v72 = vunpack.c.l.b16 %v49
  %v73 = vunpack.c.h.b16 %v49
  %v74 = vpack.c.b16 %v58, %v58
  %v75 = vpack.c.b16 %v59, %v59
  %v76 = vpack.c.b16 %v60, %v60
  %v77 = vpack.c.b16 %v61, %v61
  %v78 = vpack.c.b16 %v62, %v62
  %v79 = vpack.c.b16 %v63, %v63
  %v80 = vpack.c.b16 %v64, %v64
  %v81 = vpack.c.b16 %v65, %v65
  %v82 = vpack.c.b16 %v66, %v66
  %v83 = vpack.c.b16 %v67, %v67
  %v84 = vpack.c.b16 %v68, %v68
  %v85 = vpack.c.b16 %v69, %v69
  %v86 = vpack.c.b16 %v70, %v70
  %v87 = vpack.c.b16 %v71, %v71
  %v88 = vpack.c.b16 %v72, %v72
  %v89 = vpack.c.b16 %v73, %v73
  %vm90 = vcmask 64512
  %v92 = vsel %vm90, %v41, 0
  %vm94 = vcmask 1043456
  %v96 = vsel %vm94, %v74, 0
  %v99 = vsel %vm94, %v75, 0
  %v102 = vsel %vm94, %v76, 0
  %v105 = vsel %vm94, %v77, 0
  %v108 = vsel %vm94, %v78, 0
  %v111 = vsel %vm94, %v79, 0
  %v114 = vsel %vm94, %v80, 0
  %v117 = vsel %vm94, %v81, 0
  %v120 = vsel %vm94, %v82, 0
  %v123 = vsel %vm94, %v83, 0
  %v126 = vsel %vm94, %v84, 0
  %v129 = vsel %vm94, %v85, 0
  %v132 = vsel %vm94, %v86, 0
  %v135 = vsel %vm94, %v87, 0
  %v138 = vsel %vm94, %v88, 0
  %v141 = vsel %vm94, %v89, 0
  %143 = vmatprep.subr.bf16.mxu0 0
  %144 = vmatpush1.bf16.msra.mxu0 0
  %145 = vmatprep.subr.bf16.mxu0 0
  %146 = vmatpush1.bf16.msra.mxu0 0
  %147 = vmatprep.subr.bf16.mxu0 0
  %148 = vmatpush1.bf16.msra.mxu0 0
  %149 = vmatprep.subr.bf16.mxu0 0
  %150 = vmatpush1.bf16.msra.mxu0 0
  %151 = vmatprep.subr.bf16.mxu0 0
  %152 = vmatpush1.bf16.msra.mxu0 0
  %153 = vmatprep.subr.bf16.mxu0 0
  %154 = vmatpush1.bf16.msra.mxu0 0
  %155 = vmatprep.subr.bf16.mxu0 0
  %156 = vmatpush1.bf16.msra.mxu0 0
  %157 = vmatprep.subr.bf16.mxu0 %v99
  %158 = vmatpush1.bf16.msra.mxu0 %v96
  %159 = vmatprep.subr.bf16.mxu0 0
  %160 = vmatpush2.bf16.msra.mxu0 0
  %161 = vmatprep.subr.bf16.mxu0 0
  %162 = vmatpush2.bf16.msra.mxu0 0
  %163 = vmatprep.subr.bf16.mxu0 0
  %164 = vmatpush2.bf16.msra.mxu0 0
  %165 = vmatprep.subr.bf16.mxu0 0
  %166 = vmatpush2.bf16.msra.mxu0 0
  %167 = vmatprep.subr.bf16.mxu0 0
  %168 = vmatpush2.bf16.msra.mxu0 0
  %169 = vmatprep.subr.bf16.mxu0 0
  %170 = vmatpush2.bf16.msra.mxu0 0
  %171 = vmatprep.subr.bf16.mxu0 0
  %172 = vmatpush2.bf16.msra.mxu0 0
  %173 = vmatprep.subr.bf16.mxu0 0
  %174 = vmatpush2.bf16.msra.mxu0 0
  %175 = vmatprep.mubr.bf16.mxu0 0
  %176 = vmatmul.mubr.bf16.gmra.mxu0 %v92
  %v177 = vpop.f32.mrf.mxu0
  %v178 = vadd.f32 0.0, %v177
  %v179 = vpop.f32.mrf.mxu0
  %v180 = vadd.f32 0.0, %v179
  %v181 = vpop.f32.mrf.mxu0
  %v182 = vpop.f32.mrf.mxu0
  %183 = vdwg.mxu0
  %184 = vmatprep.subr.bf16.mxu0 0
  %185 = vmatpush1.bf16.msra.mxu0 0
  %186 = vmatprep.subr.bf16.mxu0 0
  %187 = vmatpush1.bf16.msra.mxu0 0
  %188 = vmatprep.subr.bf16.mxu0 0
  %189 = vmatpush1.bf16.msra.mxu0 0
  %190 = vmatprep.subr.bf16.mxu0 0
  %191 = vmatpush1.bf16.msra.mxu0 0
  %192 = vmatprep.subr.bf16.mxu0 0
  %193 = vmatpush1.bf16.msra.mxu0 0
  %194 = vmatprep.subr.bf16.mxu0 0
  %195 = vmatpush1.bf16.msra.mxu0 0
  %196 = vmatprep.subr.bf16.mxu0 0
  %197 = vmatpush1.bf16.msra.mxu0 0
  %198 = vmatprep.subr.bf16.mxu0 %v105
  %199 = vmatpush1.bf16.msra.mxu0 %v102
  %200 = vmatprep.subr.bf16.mxu0 0
  %201 = vmatpush2.bf16.msra.mxu0 0
  %202 = vmatprep.subr.bf16.mxu0 0
  %203 = vmatpush2.bf16.msra.mxu0 0
  %204 = vmatprep.subr.bf16.mxu0 0
  %205 = vmatpush2.bf16.msra.mxu0 0
  %206 = vmatprep.subr.bf16.mxu0 0
  %207 = vmatpush2.bf16.msra.mxu0 0
  %208 = vmatprep.subr.bf16.mxu0 0
  %209 = vmatpush2.bf16.msra.mxu0 0
  %210 = vmatprep.subr.bf16.mxu0 0
  %211 = vmatpush2.bf16.msra.mxu0 0
  %212 = vmatprep.subr.bf16.mxu0 0
  %213 = vmatpush2.bf16.msra.mxu0 0
  %214 = vmatprep.subr.bf16.mxu0 0
  %215 = vmatpush2.bf16.msra.mxu0 0
  %216 = vmatprep.mubr.bf16.mxu0 0
  %217 = vmatmul.mubr.bf16.gmra.mxu0 %v92
  %v218 = vpop.f32.mrf.mxu0
  %v219 = vadd.f32 0.0, %v218
  %v220 = vpop.f32.mrf.mxu0
  %v221 = vadd.f32 0.0, %v220
  %v222 = vpop.f32.mrf.mxu0
  %v223 = vpop.f32.mrf.mxu0
  %224 = vdwg.mxu0
  %225 = vmatprep.subr.bf16.mxu0 0
  %226 = vmatpush1.bf16.msra.mxu0 0
  %227 = vmatprep.subr.bf16.mxu0 0
  %228 = vmatpush1.bf16.msra.mxu0 0
  %229 = vmatprep.subr.bf16.mxu0 0
  %230 = vmatpush1.bf16.msra.mxu0 0
  %231 = vmatprep.subr.bf16.mxu0 0
  %232 = vmatpush1.bf16.msra.mxu0 0
  %233 = vmatprep.subr.bf16.mxu0 0
  %234 = vmatpush1.bf16.msra.mxu0 0
  %235 = vmatprep.subr.bf16.mxu0 0
  %236 = vmatpush1.bf16.msra.mxu0 0
  %237 = vmatprep.subr.bf16.mxu0 0
  %238 = vmatpush1.bf16.msra.mxu0 0
  %239 = vmatprep.subr.bf16.mxu0 %v111
  %240 = vmatpush1.bf16.msra.mxu0 %v108
  %241 = vmatprep.subr.bf16.mxu0 0
  %242 = vmatpush2.bf16.msra.mxu0 0
  %243 = vmatprep.subr.bf16.mxu0 0
  %244 = vmatpush2.bf16.msra.mxu0 0
  %245 = vmatprep.subr.bf16.mxu0 0
  %246 = vmatpush2.bf16.msra.mxu0 0
  %247 = vmatprep.subr.bf16.mxu0 0
  %248 = vmatpush2.bf16.msra.mxu0 0
  %249 = vmatprep.subr.bf16.mxu0 0
  %250 = vmatpush2.bf16.msra.mxu0 0
  %251 = vmatprep.subr.bf16.mxu0 0
  %252 = vmatpush2.bf16.msra.mxu0 0
  %253 = vmatprep.subr.bf16.mxu0 0
  %254 = vmatpush2.bf16.msra.mxu0 0
  %255 = vmatprep.subr.bf16.mxu0 0
  %256 = vmatpush2.bf16.msra.mxu0 0
  %257 = vmatprep.mubr.bf16.mxu0 0
  %258 = vmatmul.mubr.bf16.gmra.mxu0 %v92
  %v259 = vpop.f32.mrf.mxu0
  %v260 = vadd.f32 0.0, %v259
  %v261 = vpop.f32.mrf.mxu0
  %v262 = vadd.f32 0.0, %v261
  %v263 = vpop.f32.mrf.mxu0
  %v264 = vpop.f32.mrf.mxu0
  %265 = vdwg.mxu0
  %266 = vmatprep.subr.bf16.mxu0 0
  %267 = vmatpush1.bf16.msra.mxu0 0
  %268 = vmatprep.subr.bf16.mxu0 0
  %269 = vmatpush1.bf16.msra.mxu0 0
  %270 = vmatprep.subr.bf16.mxu0 0
  %271 = vmatpush1.bf16.msra.mxu0 0
  %272 = vmatprep.subr.bf16.mxu0 0
  %273 = vmatpush1.bf16.msra.mxu0 0
  %274 = vmatprep.subr.bf16.mxu0 0
  %275 = vmatpush1.bf16.msra.mxu0 0
  %276 = vmatprep.subr.bf16.mxu0 0
  %277 = vmatpush1.bf16.msra.mxu0 0
  %278 = vmatprep.subr.bf16.mxu0 0
  %279 = vmatpush1.bf16.msra.mxu0 0
  %280 = vmatprep.subr.bf16.mxu0 %v117
  %281 = vmatpush1.bf16.msra.mxu0 %v114
  %282 = vmatprep.subr.bf16.mxu0 0
  %283 = vmatpush2.bf16.msra.mxu0 0
  %284 = vmatprep.subr.bf16.mxu0 0
  %285 = vmatpush2.bf16.msra.mxu0 0
  %286 = vmatprep.subr.bf16.mxu0 0
  %287 = vmatpush2.bf16.msra.mxu0 0
  %288 = vmatprep.subr.bf16.mxu0 0
  %289 = vmatpush2.bf16.msra.mxu0 0
  %290 = vmatprep.subr.bf16.mxu0 0
  %291 = vmatpush2.bf16.msra.mxu0 0
  %292 = vmatprep.subr.bf16.mxu0 0
  %293 = vmatpush2.bf16.msra.mxu0 0
  %294 = vmatprep.subr.bf16.mxu0 0
  %295 = vmatpush2.bf16.msra.mxu0 0
  %296 = vmatprep.subr.bf16.mxu0 0
  %297 = vmatpush2.bf16.msra.mxu0 0
  %298 = vmatprep.mubr.bf16.mxu0 0
  %299 = vmatmul.mubr.bf16.gmra.mxu0 %v92
  %v300 = vpop.f32.mrf.mxu0
  %v301 = vadd.f32 0.0, %v300
  %v302 = vpop.f32.mrf.mxu0
  %v303 = vadd.f32 0.0, %v302
  %v304 = vpop.f32.mrf.mxu0
  %v305 = vpop.f32.mrf.mxu0
  %306 = vdwg.mxu0
  %307 = vmatprep.subr.bf16.mxu0 0
  %308 = vmatpush1.bf16.msra.mxu0 0
  %309 = vmatprep.subr.bf16.mxu0 0
  %310 = vmatpush1.bf16.msra.mxu0 0
  %311 = vmatprep.subr.bf16.mxu0 0
  %312 = vmatpush1.bf16.msra.mxu0 0
  %313 = vmatprep.subr.bf16.mxu0 0
  %314 = vmatpush1.bf16.msra.mxu0 0
  %315 = vmatprep.subr.bf16.mxu0 0
  %316 = vmatpush1.bf16.msra.mxu0 0
  %317 = vmatprep.subr.bf16.mxu0 0
  %318 = vmatpush1.bf16.msra.mxu0 0
  %319 = vmatprep.subr.bf16.mxu0 0
  %320 = vmatpush1.bf16.msra.mxu0 0
  %321 = vmatprep.subr.bf16.mxu0 %v123
  %322 = vmatpush1.bf16.msra.mxu0 %v120
  %323 = vmatprep.subr.bf16.mxu0 0
  %324 = vmatpush2.bf16.msra.mxu0 0
  %325 = vmatprep.subr.bf16.mxu0 0
  %326 = vmatpush2.bf16.msra.mxu0 0
  %327 = vmatprep.subr.bf16.mxu0 0
  %328 = vmatpush2.bf16.msra.mxu0 0
  %329 = vmatprep.subr.bf16.mxu0 0
  %330 = vmatpush2.bf16.msra.mxu0 0
  %331 = vmatprep.subr.bf16.mxu0 0
  %332 = vmatpush2.bf16.msra.mxu0 0
  %333 = vmatprep.subr.bf16.mxu0 0
  %334 = vmatpush2.bf16.msra.mxu0 0
  %335 = vmatprep.subr.bf16.mxu0 0
  %336 = vmatpush2.bf16.msra.mxu0 0
  %337 = vmatprep.subr.bf16.mxu0 0
  %338 = vmatpush2.bf16.msra.mxu0 0
  %339 = vmatprep.mubr.bf16.mxu0 0
  %340 = vmatmul.mubr.bf16.gmra.mxu0 %v92
  %v341 = vpop.f32.mrf.mxu0
  %v342 = vadd.f32 0.0, %v341
  %v343 = vpop.f32.mrf.mxu0
  %v344 = vadd.f32 0.0, %v343
  %v345 = vpop.f32.mrf.mxu0
  %v346 = vpop.f32.mrf.mxu0
  %347 = vdwg.mxu0
  %348 = vmatprep.subr.bf16.mxu0 0
  %349 = vmatpush1.bf16.msra.mxu0 0
  %350 = vmatprep.subr.bf16.mxu0 0
  %351 = vmatpush1.bf16.msra.mxu0 0
  %352 = vmatprep.subr.bf16.mxu0 0
  %353 = vmatpush1.bf16.msra.mxu0 0
  %354 = vmatprep.subr.bf16.mxu0 0
  %355 = vmatpush1.bf16.msra.mxu0 0
  %356 = vmatprep.subr.bf16.mxu0 0
  %357 = vmatpush1.bf16.msra.mxu0 0
  %358 = vmatprep.subr.bf16.mxu0 0
  %359 = vmatpush1.bf16.msra.mxu0 0
  %360 = vmatprep.subr.bf16.mxu0 0
  %361 = vmatpush1.bf16.msra.mxu0 0
  %362 = vmatprep.subr.bf16.mxu0 %v129
  %363 = vmatpush1.bf16.msra.mxu0 %v126
  %364 = vmatprep.subr.bf16.mxu0 0
  %365 = vmatpush2.bf16.msra.mxu0 0
  %366 = vmatprep.subr.bf16.mxu0 0
  %367 = vmatpush2.bf16.msra.mxu0 0
  %368 = vmatprep.subr.bf16.mxu0 0
  %369 = vmatpush2.bf16.msra.mxu0 0
  %370 = vmatprep.subr.bf16.mxu0 0
  %371 = vmatpush2.bf16.msra.mxu0 0
  %372 = vmatprep.subr.bf16.mxu0 0
  %373 = vmatpush2.bf16.msra.mxu0 0
  %374 = vmatprep.subr.bf16.mxu0 0
  %375 = vmatpush2.bf16.msra.mxu0 0
  %376 = vmatprep.subr.bf16.mxu0 0
  %377 = vmatpush2.bf16.msra.mxu0 0
  %378 = vmatprep.subr.bf16.mxu0 0
  %379 = vmatpush2.bf16.msra.mxu0 0
  %380 = vmatprep.mubr.bf16.mxu0 0
  %381 = vmatmul.mubr.bf16.gmra.mxu0 %v92
  %v382 = vpop.f32.mrf.mxu0
  %v383 = vadd.f32 0.0, %v382
  %v384 = vpop.f32.mrf.mxu0
  %v385 = vadd.f32 0.0, %v384
  %v386 = vpop.f32.mrf.mxu0
  %v387 = vpop.f32.mrf.mxu0
  %388 = vdwg.mxu0
  %389 = vmatprep.subr.bf16.mxu0 0
  %390 = vmatpush1.bf16.msra.mxu0 0
  %391 = vmatprep.subr.bf16.mxu0 0
  %392 = vmatpush1.bf16.msra.mxu0 0
  %393 = vmatprep.subr.bf16.mxu0 0
  %394 = vmatpush1.bf16.msra.mxu0 0
  %395 = vmatprep.subr.bf16.mxu0 0
  %396 = vmatpush1.bf16.msra.mxu0 0
  %397 = vmatprep.subr.bf16.mxu0 0
  %398 = vmatpush1.bf16.msra.mxu0 0
  %399 = vmatprep.subr.bf16.mxu0 0
  %400 = vmatpush1.bf16.msra.mxu0 0
  %401 = vmatprep.subr.bf16.mxu0 0
  %402 = vmatpush1.bf16.msra.mxu0 0
  %403 = vmatprep.subr.bf16.mxu0 %v135
  %404 = vmatpush1.bf16.msra.mxu0 %v132
  %405 = vmatprep.subr.bf16.mxu0 0
  %406 = vmatpush2.bf16.msra.mxu0 0
  %407 = vmatprep.subr.bf16.mxu0 0
  %408 = vmatpush2.bf16.msra.mxu0 0
  %409 = vmatprep.subr.bf16.mxu0 0
  %410 = vmatpush2.bf16.msra.mxu0 0
  %411 = vmatprep.subr.bf16.mxu0 0
  %412 = vmatpush2.bf16.msra.mxu0 0
  %413 = vmatprep.subr.bf16.mxu0 0
  %414 = vmatpush2.bf16.msra.mxu0 0
  %415 = vmatprep.subr.bf16.mxu0 0
  %416 = vmatpush2.bf16.msra.mxu0 0
  %417 = vmatprep.subr.bf16.mxu0 0
  %418 = vmatpush2.bf16.msra.mxu0 0
  %419 = vmatprep.subr.bf16.mxu0 0
  %420 = vmatpush2.bf16.msra.mxu0 0
  %421 = vmatprep.mubr.bf16.mxu0 0
  %422 = vmatmul.mubr.bf16.gmra.mxu0 %v92
  %v423 = vpop.f32.mrf.mxu0
  %v424 = vadd.f32 0.0, %v423
  %v425 = vpop.f32.mrf.mxu0
  %v426 = vadd.f32 0.0, %v425
  %v427 = vpop.f32.mrf.mxu0
  %v428 = vpop.f32.mrf.mxu0
  %429 = vdwg.mxu0
  %430 = vmatprep.subr.bf16.mxu0 0
  %431 = vmatpush1.bf16.msra.mxu0 0
  %432 = vmatprep.subr.bf16.mxu0 0
  %433 = vmatpush1.bf16.msra.mxu0 0
  %434 = vmatprep.subr.bf16.mxu0 0
  %435 = vmatpush1.bf16.msra.mxu0 0
  %436 = vmatprep.subr.bf16.mxu0 0
  %437 = vmatpush1.bf16.msra.mxu0 0
  %438 = vmatprep.subr.bf16.mxu0 0
  %439 = vmatpush1.bf16.msra.mxu0 0
  %440 = vmatprep.subr.bf16.mxu0 0
  %441 = vmatpush1.bf16.msra.mxu0 0
  %442 = vmatprep.subr.bf16.mxu0 0
  %443 = vmatpush1.bf16.msra.mxu0 0
  %444 = vmatprep.subr.bf16.mxu0 %v141
  %445 = vmatpush1.bf16.msra.mxu0 %v138
  %446 = vmatprep.subr.bf16.mxu0 0
  %447 = vmatpush2.bf16.msra.mxu0 0
  %448 = vmatprep.subr.bf16.mxu0 0
  %449 = vmatpush2.bf16.msra.mxu0 0
  %450 = vmatprep.subr.bf16.mxu0 0
  %451 = vmatpush2.bf16.msra.mxu0 0
  %452 = vmatprep.subr.bf16.mxu0 0
  %453 = vmatpush2.bf16.msra.mxu0 0
  %454 = vmatprep.subr.bf16.mxu0 0
  %455 = vmatpush2.bf16.msra.mxu0 0
  %456 = vmatprep.subr.bf16.mxu0 0
  %457 = vmatpush2.bf16.msra.mxu0 0
  %458 = vmatprep.subr.bf16.mxu0 0
  %459 = vmatpush2.bf16.msra.mxu0 0
  %460 = vmatprep.subr.bf16.mxu0 0
  %461 = vmatpush2.bf16.msra.mxu0 0
  %462 = vmatprep.mubr.bf16.mxu0 0
  %463 = vmatmul.mubr.bf16.gmra.mxu0 %v92
  %v464 = vpop.f32.mrf.mxu0
  %v465 = vadd.f32 0.0, %v464
  %v466 = vpop.f32.mrf.mxu0
  %v467 = vadd.f32 0.0, %v466
  %v468 = vpop.f32.mrf.mxu0
  %v469 = vpop.f32.mrf.mxu0
  %470 = vdwg.mxu0
  %v487 = vcombine.low %v178, %v180
  %v488 = vcombine.low %v219, %v221
  %v490 = vunpack.c.l.s4 1983009808
  %v491 = vunpack.c.0.s8 %v490
  %v492 = vlaneseq
  %v493 = vshrl.u32 %v492, 7
  %v494 = vsub.s32 %v491, %v493
  %v495 = vrot.slane %v487, %v494
  %v497 = vunpack.c.l.s4 1983009808
  %v498 = vunpack.c.0.s8 %v497
  %v499 = vlaneseq
  %v500 = vshrl.u32 %v499, 7
  %v501 = vsub.s32 %v498, %v500
  %v502 = vrot.slane %v488, %v501
  %v503 = vcombine.low %v495, %v502
  %v504 = vcombine.low %v260, %v262
  %v505 = vcombine.low %v301, %v303
  %v507 = vunpack.c.l.s4 1983009808
  %v508 = vunpack.c.0.s8 %v507
  %v509 = vlaneseq
  %v510 = vshrl.u32 %v509, 7
  %v511 = vsub.s32 %v508, %v510
  %v512 = vrot.slane %v504, %v511
  %v514 = vunpack.c.l.s4 1983009808
  %v515 = vunpack.c.0.s8 %v514
  %v516 = vlaneseq
  %v517 = vshrl.u32 %v516, 7
  %v518 = vsub.s32 %v515, %v517
  %v519 = vrot.slane %v505, %v518
  %v520 = vcombine.low %v512, %v519
  %v521 = vcombine.low %v342, %v344
  %v522 = vcombine.low %v383, %v385
  %v524 = vunpack.c.l.s4 1983009808
  %v525 = vunpack.c.0.s8 %v524
  %v526 = vlaneseq
  %v527 = vshrl.u32 %v526, 7
  %v528 = vsub.s32 %v525, %v527
  %v529 = vrot.slane %v521, %v528
  %v531 = vunpack.c.l.s4 1983009808
  %v532 = vunpack.c.0.s8 %v531
  %v533 = vlaneseq
  %v534 = vshrl.u32 %v533, 7
  %v535 = vsub.s32 %v532, %v534
  %v536 = vrot.slane %v522, %v535
  %v537 = vcombine.low %v529, %v536
  %v538 = vcombine.low %v424, %v426
  %v539 = vcombine.low %v465, %v467
  %v541 = vunpack.c.l.s4 1983009808
  %v542 = vunpack.c.0.s8 %v541
  %v543 = vlaneseq
  %v544 = vshrl.u32 %v543, 7
  %v545 = vsub.s32 %v542, %v544
  %v546 = vrot.slane %v538, %v545
  %v548 = vunpack.c.l.s4 1983009808
  %v549 = vunpack.c.0.s8 %v548
  %v550 = vlaneseq
  %v551 = vshrl.u32 %v550, 7
  %v552 = vsub.s32 %v549, %v551
  %v553 = vrot.slane %v539, %v552
  %v554 = vcombine.low %v546, %v553
  %v559 = vadd.f32 %v37, %v503
  %v560 = vadd.f32 %v38, %v520
  %v561 = vadd.f32 %v39, %v537
  %v562 = vadd.f32 %v40, %v554
  %563 = vst [vmem:[#allocation2] sm:$0xff] %v559
  %564 = vst [vmem:[#allocation2 + $0x8] sm:$0xff] %v560
  %565 = vst [vmem:[#allocation2 + $0x10] sm:$0xff] %v561
  %566 = vst [vmem:[#allocation2 + $0x18] sm:$0xff] %v562
  // Predicated region
  $region22: #{generator_forward.9} parent=0 // pred_check
    %p567 = pneg %p17
  $region23: #{generator_forward.9} parent=0 // pred_check_branch
    %569 = sbr.rel (%p567) target = $region25
  $region24: #{generator_forward.9} parent=0 // pred_region
    %v570 = vld [vmem:[#allocation2] sm:$0xff]
    %v571 = vld [vmem:[#allocation2 + $0x8] sm:$0xff]
    %v572 = vld [vmem:[#allocation2 + $0x10] sm:$0xff]
    %v573 = vld [vmem:[#allocation2 + $0x18] sm:$0xff]
    %v574 = vld [vmem:[%s2] sm:$0xff]
    %v575 = vld [vmem:[%s2 + $0x8] sm:$0xff]
    %v578 = vlaneseq
    %v579 = vshrl.u32 %v578, 7
    %v580 = vsub.s32 0, %v579
    %v581 = vrot.slane %v574, %v580
    %v582 = vlaneseq
    %v583 = vshrl.u32 %v582, 7
    %v584 = vsub.s32 1, %v583
    %v585 = vrot.slane %v574, %v584
    %v586 = vlaneseq
    %v587 = vshrl.u32 %v586, 7
    %v588 = vsub.s32 2, %v587
    %v589 = vrot.slane %v574, %v588
    %v590 = vlaneseq
    %v591 = vshrl.u32 %v590, 7
    %v592 = vsub.s32 3, %v591
    %v593 = vrot.slane %v574, %v592
    %v594 = vlaneseq
    %v595 = vshrl.u32 %v594, 7
    %v596 = vsub.s32 4, %v595
    %v597 = vrot.slane %v574, %v596
    %v598 = vlaneseq
    %v599 = vshrl.u32 %v598, 7
    %v600 = vsub.s32 5, %v599
    %v601 = vrot.slane %v574, %v600
    %v602 = vlaneseq
    %v603 = vshrl.u32 %v602, 7
    %v604 = vsub.s32 6, %v603
    %v605 = vrot.slane %v574, %v604
    %v606 = vlaneseq
    %v607 = vshrl.u32 %v606, 7
    %v608 = vsub.s32 7, %v607
    %v609 = vrot.slane %v574, %v608
    %v610 = vlaneseq
    %v611 = vshrl.u32 %v610, 7
    %v612 = vsub.s32 0, %v611
    %v613 = vrot.slane %v575, %v612
    %v614 = vlaneseq
    %v615 = vshrl.u32 %v614, 7
    %v616 = vsub.s32 1, %v615
    %v617 = vrot.slane %v575, %v616
    %v618 = vlaneseq
    %v619 = vshrl.u32 %v618, 7
    %v620 = vsub.s32 2, %v619
    %v621 = vrot.slane %v575, %v620
    %v622 = vlaneseq
    %v623 = vshrl.u32 %v622, 7
    %v624 = vsub.s32 3, %v623
    %v625 = vrot.slane %v575, %v624
    %v626 = vlaneseq
    %v627 = vshrl.u32 %v626, 7
    %v628 = vsub.s32 4, %v627
    %v629 = vrot.slane %v575, %v628
    %v630 = vlaneseq
    %v631 = vshrl.u32 %v630, 7
    %v632 = vsub.s32 5, %v631
    %v633 = vrot.slane %v575, %v632
    %v634 = vlaneseq
    %v635 = vshrl.u32 %v634, 7
    %v636 = vsub.s32 6, %v635
    %v637 = vrot.slane %v575, %v636
    %v638 = vlaneseq
    %v639 = vshrl.u32 %v638, 7
    %v640 = vsub.s32 7, %v639
    %v641 = vrot.slane %v575, %v640
    %v642 = vcombine.low %v581, %v585
    %v643 = vcombine.low %v589, %v593
    %v645 = vunpack.c.l.s4 1983009808
    %v646 = vunpack.c.0.s8 %v645
    %v647 = vlaneseq
    %v648 = vshrl.u32 %v647, 7
    %v649 = vsub.s32 %v646, %v648
    %v650 = vrot.slane %v642, %v649
    %v652 = vunpack.c.l.s4 1983009808
    %v653 = vunpack.c.0.s8 %v652
    %v654 = vlaneseq
    %v655 = vshrl.u32 %v654, 7
    %v656 = vsub.s32 %v653, %v655
    %v657 = vrot.slane %v643, %v656
    %v658 = vcombine.low %v650, %v657
    %v659 = vcombine.low %v597, %v601
    %v660 = vcombine.low %v605, %v609
    %v662 = vunpack.c.l.s4 1983009808
    %v663 = vunpack.c.0.s8 %v662
    %v664 = vlaneseq
    %v665 = vshrl.u32 %v664, 7
    %v666 = vsub.s32 %v663, %v665
    %v667 = vrot.slane %v659, %v666
    %v669 = vunpack.c.l.s4 1983009808
    %v670 = vunpack.c.0.s8 %v669
    %v671 = vlaneseq
    %v672 = vshrl.u32 %v671, 7
    %v673 = vsub.s32 %v670, %v672
    %v674 = vrot.slane %v660, %v673
    %v675 = vcombine.low %v667, %v674
    %v676 = vcombine.low %v613, %v617
    %v677 = vcombine.low %v621, %v625
    %v679 = vunpack.c.l.s4 1983009808
    %v680 = vunpack.c.0.s8 %v679
    %v681 = vlaneseq
    %v682 = vshrl.u32 %v681, 7
    %v683 = vsub.s32 %v680, %v682
    %v684 = vrot.slane %v676, %v683
    %v686 = vunpack.c.l.s4 1983009808
    %v687 = vunpack.c.0.s8 %v686
    %v688 = vlaneseq
    %v689 = vshrl.u32 %v688, 7
    %v690 = vsub.s32 %v687, %v689
    %v691 = vrot.slane %v677, %v690
    %v692 = vcombine.low %v684, %v691
    %v693 = vcombine.low %v629, %v633
    %v694 = vcombine.low %v637, %v641
    %v696 = vunpack.c.l.s4 1983009808
    %v697 = vunpack.c.0.s8 %v696
    %v698 = vlaneseq
    %v699 = vshrl.u32 %v698, 7
    %v700 = vsub.s32 %v697, %v699
    %v701 = vrot.slane %v693, %v700
    %v703 = vunpack.c.l.s4 1983009808
    %v704 = vunpack.c.0.s8 %v703
    %v705 = vlaneseq
    %v706 = vshrl.u32 %v705, 7
    %v707 = vsub.s32 %v704, %v706
    %v708 = vrot.slane %v694, %v707
    %v709 = vcombine.low %v701, %v708
    %v714 = vadd.f32 %v570, %v658
    %v715 = vadd.f32 %v571, %v675
    %v716 = vadd.f32 %v572, %v692
    %v717 = vadd.f32 %v573, %v709
    %718 = vst [vmem:[%s3] sm:$0xff] %v714
    %719 = vst [vmem:[%s3 + $0x8] sm:$0xff] %v715
    %720 = vst [vmem:[%s3 + $0x10] sm:$0xff] %v716
    %721 = vst [vmem:[%s3 + $0x18] sm:$0xff] %v717
    %v722 = vld [vmem:[%s4] sm:$0xff]
    %v723 = vld [vmem:[%s4 + $0x8] sm:$0xff]
    %v724 = vld [vmem:[%s4 + $0x10] sm:$0xff]
    %v725 = vld [vmem:[%s4 + $0x18] sm:$0xff]
    %v730 = vcombine.high %v714, %v714
    %v732 = vunpack.c.l.s4 1983009808
    %v733 = vunpack.c.0.s8 %v732
    %v734 = vlaneseq
    %v735 = vshrl.u32 %v734, 7
    %v736 = vsub.s32 %v733, %v735
    %v737 = vrot.slane %v714, %v736
    %v739 = vunpack.c.l.s4 1983009808
    %v740 = vunpack.c.0.s8 %v739
    %v741 = vlaneseq
    %v742 = vshrl.u32 %v741, 7
    %v743 = vsub.s32 %v740, %v742
    %v744 = vrot.slane %v730, %v743
    %v745 = vcombine.high %v737, %v737
    %v746 = vcombine.high %v744, %v744
    %v747 = vcombine.high %v715, %v715
    %v749 = vunpack.c.l.s4 1983009808
    %v750 = vunpack.c.0.s8 %v749
    %v751 = vlaneseq
    %v752 = vshrl.u32 %v751, 7
    %v753 = vsub.s32 %v750, %v752
    %v754 = vrot.slane %v715, %v753
    %v756 = vunpack.c.l.s4 1983009808
    %v757 = vunpack.c.0.s8 %v756
    %v758 = vlaneseq
    %v759 = vshrl.u32 %v758, 7
    %v760 = vsub.s32 %v757, %v759
    %v761 = vrot.slane %v747, %v760
    %v762 = vcombine.high %v754, %v754
    %v763 = vcombine.high %v761, %v761
    %v764 = vcombine.high %v716, %v716
    %v766 = vunpack.c.l.s4 1983009808
    %v767 = vunpack.c.0.s8 %v766
    %v768 = vlaneseq
    %v769 = vshrl.u32 %v768, 7
    %v770 = vsub.s32 %v767, %v769
    %v771 = vrot.slane %v716, %v770
    %v773 = vunpack.c.l.s4 1983009808
    %v774 = vunpack.c.0.s8 %v773
    %v775 = vlaneseq
    %v776 = vshrl.u32 %v775, 7
    %v777 = vsub.s32 %v774, %v776
    %v778 = vrot.slane %v764, %v777
    %v779 = vcombine.high %v771, %v771
    %v780 = vcombine.high %v778, %v778
    %v781 = vcombine.high %v717, %v717
    %v783 = vunpack.c.l.s4 1983009808
    %v784 = vunpack.c.0.s8 %v783
    %v785 = vlaneseq
    %v786 = vshrl.u32 %v785, 7
    %v787 = vsub.s32 %v784, %v786
    %v788 = vrot.slane %v717, %v787
    %v790 = vunpack.c.l.s4 1983009808
    %v791 = vunpack.c.0.s8 %v790
    %v792 = vlaneseq
    %v793 = vshrl.u32 %v792, 7
    %v794 = vsub.s32 %v791, %v793
    %v795 = vrot.slane %v781, %v794
    %v796 = vcombine.high %v788, %v788
    %v797 = vcombine.high %v795, %v795
    %vm814 = vcmask 1041408
    %v815 = vsel %vm814, %v737, 0.0
    %v816 = vrot.slane %v815, 4
    %v817 = vadd.f32 %v815, %v816
    %v818 = vrot.slane %v817, 2
    %v819 = vadd.f32 %v817, %v818
    %v820 = vrot.slane %v819, 1
    %v821 = vadd.f32 %v819, %v820
    %v822 = vsel %vm814, %v745, 0.0
    %v823 = vrot.slane %v822, 4
    %v824 = vadd.f32 %v822, %v823
    %v825 = vrot.slane %v824, 2
    %v826 = vadd.f32 %v824, %v825
    %v827 = vrot.slane %v826, 1
    %v828 = vadd.f32 %v826, %v827
    %v829 = vsel %vm814, %v744, 0.0
    %v830 = vrot.slane %v829, 4
    %v831 = vadd.f32 %v829, %v830
    %v832 = vrot.slane %v831, 2
    %v833 = vadd.f32 %v831, %v832
    %v834 = vrot.slane %v833, 1
    %v835 = vadd.f32 %v833, %v834
    %v836 = vsel %vm814, %v746, 0.0
    %v837 = vrot.slane %v836, 4
    %v838 = vadd.f32 %v836, %v837
    %v839 = vrot.slane %v838, 2
    %v840 = vadd.f32 %v838, %v839
    %v841 = vrot.slane %v840, 1
    %v842 = vadd.f32 %v840, %v841
    %v843 = vsel %vm814, %v754, 0.0
    %v844 = vrot.slane %v843, 4
    %v845 = vadd.f32 %v843, %v844
    %v846 = vrot.slane %v845, 2
    %v847 = vadd.f32 %v845, %v846
    %v848 = vrot.slane %v847, 1
    %v849 = vadd.f32 %v847, %v848
    %v850 = vsel %vm814, %v762, 0.0
    %v851 = vrot.slane %v850, 4
    %v852 = vadd.f32 %v850, %v851
    %v853 = vrot.slane %v852, 2
    %v854 = vadd.f32 %v852, %v853
    %v855 = vrot.slane %v854, 1
    %v856 = vadd.f32 %v854, %v855
    %v857 = vsel %vm814, %v761, 0.0
    %v858 = vrot.slane %v857, 4
    %v859 = vadd.f32 %v857, %v858
    %v860 = vrot.slane %v859, 2
    %v861 = vadd.f32 %v859, %v860
    %v862 = vrot.slane %v861, 1
    %v863 = vadd.f32 %v861, %v862
    %v864 = vsel %vm814, %v763, 0.0
    %v865 = vrot.slane %v864, 4
    %v866 = vadd.f32 %v864, %v865
    %v867 = vrot.slane %v866, 2
    %v868 = vadd.f32 %v866, %v867
    %v869 = vrot.slane %v868, 1
    %v870 = vadd.f32 %v868, %v869
    %v871 = vsel %vm814, %v771, 0.0
    %v872 = vrot.slane %v871, 4
    %v873 = vadd.f32 %v871, %v872
    %v874 = vrot.slane %v873, 2
    %v875 = vadd.f32 %v873, %v874
    %v876 = vrot.slane %v875, 1
    %v877 = vadd.f32 %v875, %v876
    %v878 = vsel %vm814, %v779, 0.0
    %v879 = vrot.slane %v878, 4
    %v880 = vadd.f32 %v878, %v879
    %v881 = vrot.slane %v880, 2
    %v882 = vadd.f32 %v880, %v881
    %v883 = vrot.slane %v882, 1
    %v884 = vadd.f32 %v882, %v883
    %v885 = vsel %vm814, %v778, 0.0
    %v886 = vrot.slane %v885, 4
    %v887 = vadd.f32 %v885, %v886
    %v888 = vrot.slane %v887, 2
    %v889 = vadd.f32 %v887, %v888
    %v890 = vrot.slane %v889, 1
    %v891 = vadd.f32 %v889, %v890
    %v892 = vsel %vm814, %v780, 0.0
    %v893 = vrot.slane %v892, 4
    %v894 = vadd.f32 %v892, %v893
    %v895 = vrot.slane %v894, 2
    %v896 = vadd.f32 %v894, %v895
    %v897 = vrot.slane %v896, 1
    %v898 = vadd.f32 %v896, %v897
    %v899 = vsel %vm814, %v788, 0.0
    %v900 = vrot.slane %v899, 4
    %v901 = vadd.f32 %v899, %v900
    %v902 = vrot.slane %v901, 2
    %v903 = vadd.f32 %v901, %v902
    %v904 = vrot.slane %v903, 1
    %v905 = vadd.f32 %v903, %v904
    %v906 = vsel %vm814, %v796, 0.0
    %v907 = vrot.slane %v906, 4
    %v908 = vadd.f32 %v906, %v907
    %v909 = vrot.slane %v908, 2
    %v910 = vadd.f32 %v908, %v909
    %v911 = vrot.slane %v910, 1
    %v912 = vadd.f32 %v910, %v911
    %v913 = vsel %vm814, %v795, 0.0
    %v914 = vrot.slane %v913, 4
    %v915 = vadd.f32 %v913, %v914
    %v916 = vrot.slane %v915, 2
    %v917 = vadd.f32 %v915, %v916
    %v918 = vrot.slane %v917, 1
    %v919 = vadd.f32 %v917, %v918
    %v920 = vsel %vm814, %v797, 0.0
    %v921 = vrot.slane %v920, 4
    %v922 = vadd.f32 %v920, %v921
    %v923 = vrot.slane %v922, 2
    %v924 = vadd.f32 %v922, %v923
    %v925 = vrot.slane %v924, 1
    %v926 = vadd.f32 %v924, %v925
    %v927 = vmul.f32 %v714, %v714
    %v928 = vmul.f32 %v715, %v715
    %v929 = vmul.f32 %v716, %v716
    %v930 = vmul.f32 %v717, %v717
    %v935 = vcombine.high %v927, %v927
    %v937 = vunpack.c.l.s4 1983009808
    %v938 = vunpack.c.0.s8 %v937
    %v939 = vlaneseq
    %v940 = vshrl.u32 %v939, 7
    %v941 = vsub.s32 %v938, %v940
    %v942 = vrot.slane %v927, %v941
    %v944 = vunpack.c.l.s4 1983009808
    %v945 = vunpack.c.0.s8 %v944
    %v946 = vlaneseq
    %v947 = vshrl.u32 %v946, 7
    %v948 = vsub.s32 %v945, %v947
    %v949 = vrot.slane %v935, %v948
    %v950 = vcombine.high %v942, %v942
    %v951 = vcombine.high %v949, %v949
    %v952 = vcombine.high %v928, %v928
    %v954 = vunpack.c.l.s4 1983009808
    %v955 = vunpack.c.0.s8 %v954
    %v956 = vlaneseq
    %v957 = vshrl.u32 %v956, 7
    %v958 = vsub.s32 %v955, %v957
    %v959 = vrot.slane %v928, %v958
    %v961 = vunpack.c.l.s4 1983009808
    %v962 = vunpack.c.0.s8 %v961
    %v963 = vlaneseq
    %v964 = vshrl.u32 %v963, 7
    %v965 = vsub.s32 %v962, %v964
    %v966 = vrot.slane %v952, %v965
    %v967 = vcombine.high %v959, %v959
    %v968 = vcombine.high %v966, %v966
    %v969 = vcombine.high %v929, %v929
    %v971 = vunpack.c.l.s4 1983009808
    %v972 = vunpack.c.0.s8 %v971
    %v973 = vlaneseq
    %v974 = vshrl.u32 %v973, 7
    %v975 = vsub.s32 %v972, %v974
    %v976 = vrot.slane %v929, %v975
    %v978 = vunpack.c.l.s4 1983009808
    %v979 = vunpack.c.0.s8 %v978
    %v980 = vlaneseq
    %v981 = vshrl.u32 %v980, 7
    %v982 = vsub.s32 %v979, %v981
    %v983 = vrot.slane %v969, %v982
    %v984 = vcombine.high %v976, %v976
    %v985 = vcombine.high %v983, %v983
    %v986 = vcombine.high %v930, %v930
    %v988 = vunpack.c.l.s4 1983009808
    %v989 = vunpack.c.0.s8 %v988
    %v990 = vlaneseq
    %v991 = vshrl.u32 %v990, 7
    %v992 = vsub.s32 %v989, %v991
    %v993 = vrot.slane %v930, %v992
    %v995 = vunpack.c.l.s4 1983009808
    %v996 = vunpack.c.0.s8 %v995
    %v997 = vlaneseq
    %v998 = vshrl.u32 %v997, 7
    %v999 = vsub.s32 %v996, %v998
    %v1000 = vrot.slane %v986, %v999
    %v1001 = vcombine.high %v993, %v993
    %v1002 = vcombine.high %v1000, %v1000
    %v1019 = vsel %vm814, %v942, 0.0
    %v1020 = vrot.slane %v1019, 4
    %v1021 = vadd.f32 %v1019, %v1020
    %v1022 = vrot.slane %v1021, 2
    %v1023 = vadd.f32 %v1021, %v1022
    %v1024 = vrot.slane %v1023, 1
    %v1025 = vadd.f32 %v1023, %v1024
    %v1026 = vsel %vm814, %v950, 0.0
    %v1027 = vrot.slane %v1026, 4
    %v1028 = vadd.f32 %v1026, %v1027
    %v1029 = vrot.slane %v1028, 2
    %v1030 = vadd.f32 %v1028, %v1029
    %v1031 = vrot.slane %v1030, 1
    %v1032 = vadd.f32 %v1030, %v1031
    %v1033 = vsel %vm814, %v949, 0.0
    %v1034 = vrot.slane %v1033, 4
    %v1035 = vadd.f32 %v1033, %v1034
    %v1036 = vrot.slane %v1035, 2
    %v1037 = vadd.f32 %v1035, %v1036
    %v1038 = vrot.slane %v1037, 1
    %v1039 = vadd.f32 %v1037, %v1038
    %v1040 = vsel %vm814, %v951, 0.0
    %v1041 = vrot.slane %v1040, 4
    %v1042 = vadd.f32 %v1040, %v1041
    %v1043 = vrot.slane %v1042, 2
    %v1044 = vadd.f32 %v1042, %v1043
    %v1045 = vrot.slane %v1044, 1
    %v1046 = vadd.f32 %v1044, %v1045
    %v1047 = vsel %vm814, %v959, 0.0
    %v1048 = vrot.slane %v1047, 4
    %v1049 = vadd.f32 %v1047, %v1048
    %v1050 = vrot.slane %v1049, 2
    %v1051 = vadd.f32 %v1049, %v1050
    %v1052 = vrot.slane %v1051, 1
    %v1053 = vadd.f32 %v1051, %v1052
    %v1054 = vsel %vm814, %v967, 0.0
    %v1055 = vrot.slane %v1054, 4
    %v1056 = vadd.f32 %v1054, %v1055
    %v1057 = vrot.slane %v1056, 2
    %v1058 = vadd.f32 %v1056, %v1057
    %v1059 = vrot.slane %v1058, 1
    %v1060 = vadd.f32 %v1058, %v1059
    %v1061 = vsel %vm814, %v966, 0.0
    %v1062 = vrot.slane %v1061, 4
    %v1063 = vadd.f32 %v1061, %v1062
    %v1064 = vrot.slane %v1063, 2
    %v1065 = vadd.f32 %v1063, %v1064
    %v1066 = vrot.slane %v1065, 1
    %v1067 = vadd.f32 %v1065, %v1066
    %v1068 = vsel %vm814, %v968, 0.0
    %v1069 = vrot.slane %v1068, 4
    %v1070 = vadd.f32 %v1068, %v1069
    %v1071 = vrot.slane %v1070, 2
    %v1072 = vadd.f32 %v1070, %v1071
    %v1073 = vrot.slane %v1072, 1
    %v1074 = vadd.f32 %v1072, %v1073
    %v1075 = vsel %vm814, %v976, 0.0
    %v1076 = vrot.slane %v1075, 4
    %v1077 = vadd.f32 %v1075, %v1076
    %v1078 = vrot.slane %v1077, 2
    %v1079 = vadd.f32 %v1077, %v1078
    %v1080 = vrot.slane %v1079, 1
    %v1081 = vadd.f32 %v1079, %v1080
    %v1082 = vsel %vm814, %v984, 0.0
    %v1083 = vrot.slane %v1082, 4
    %v1084 = vadd.f32 %v1082, %v1083
    %v1085 = vrot.slane %v1084, 2
    %v1086 = vadd.f32 %v1084, %v1085
    %v1087 = vrot.slane %v1086, 1
    %v1088 = vadd.f32 %v1086, %v1087
    %v1089 = vsel %vm814, %v983, 0.0
    %v1090 = vrot.slane %v1089, 4
    %v1091 = vadd.f32 %v1089, %v1090
    %v1092 = vrot.slane %v1091, 2
    %v1093 = vadd.f32 %v1091, %v1092
    %v1094 = vrot.slane %v1093, 1
    %v1095 = vadd.f32 %v1093, %v1094
    %v1096 = vsel %vm814, %v985, 0.0
    %v1097 = vrot.slane %v1096, 4
    %v1098 = vadd.f32 %v1096, %v1097
    %v1099 = vrot.slane %v1098, 2
    %v1100 = vadd.f32 %v1098, %v1099
    %v1101 = vrot.slane %v1100, 1
    %v1102 = vadd.f32 %v1100, %v1101
    %v1103 = vsel %vm814, %v993, 0.0
    %v1104 = vrot.slane %v1103, 4
    %v1105 = vadd.f32 %v1103, %v1104
    %v1106 = vrot.slane %v1105, 2
    %v1107 = vadd.f32 %v1105, %v1106
    %v1108 = vrot.slane %v1107, 1
    %v1109 = vadd.f32 %v1107, %v1108
    %v1110 = vsel %vm814, %v1001, 0.0
    %v1111 = vrot.slane %v1110, 4
    %v1112 = vadd.f32 %v1110, %v1111
    %v1113 = vrot.slane %v1112, 2
    %v1114 = vadd.f32 %v1112, %v1113
    %v1115 = vrot.slane %v1114, 1
    %v1116 = vadd.f32 %v1114, %v1115
    %v1117 = vsel %vm814, %v1000, 0.0
    %v1118 = vrot.slane %v1117, 4
    %v1119 = vadd.f32 %v1117, %v1118
    %v1120 = vrot.slane %v1119, 2
    %v1121 = vadd.f32 %v1119, %v1120
    %v1122 = vrot.slane %v1121, 1
    %v1123 = vadd.f32 %v1121, %v1122
    %v1124 = vsel %vm814, %v1002, 0.0
    %v1125 = vrot.slane %v1124, 4
    %v1126 = vadd.f32 %v1124, %v1125
    %v1127 = vrot.slane %v1126, 2
    %v1128 = vadd.f32 %v1126, %v1127
    %v1129 = vrot.slane %v1128, 1
    %v1130 = vadd.f32 %v1128, %v1129
    %vm1131 = vcmask 1040384
    %v1132 = vsel %vm1131, %v821, %v1025
    %v1133 = vsel %vm1131, %v828, %v1032
    %v1134 = vsel %vm1131, %v835, %v1039
    %v1135 = vsel %vm1131, %v842, %v1046
    %v1136 = vsel %vm1131, %v849, %v1053
    %v1137 = vsel %vm1131, %v856, %v1060
    %v1138 = vsel %vm1131, %v863, %v1067
    %v1139 = vsel %vm1131, %v870, %v1074
    %v1140 = vsel %vm1131, %v877, %v1081
    %v1141 = vsel %vm1131, %v884, %v1088
    %v1142 = vsel %vm1131, %v891, %v1095
    %v1143 = vsel %vm1131, %v898, %v1102
    %v1144 = vsel %vm1131, %v905, %v1109
    %v1145 = vsel %vm1131, %v912, %v1116
    %v1146 = vsel %vm1131, %v919, %v1123
    %v1147 = vsel %vm1131, %v926, %v1130
    %v1164 = vcombine.low %v1132, %v1133
    %v1165 = vcombine.low %v1134, %v1135
    %v1167 = vunpack.c.l.s4 1983009808
    %v1168 = vunpack.c.0.s8 %v1167
    %v1169 = vlaneseq
    %v1170 = vshrl.u32 %v1169, 7
    %v1171 = vsub.s32 %v1168, %v1170
    %v1172 = vrot.slane %v1164, %v1171
    %v1174 = vunpack.c.l.s4 1983009808
    %v1175 = vunpack.c.0.s8 %v1174
    %v1176 = vlaneseq
    %v1177 = vshrl.u32 %v1176, 7
    %v1178 = vsub.s32 %v1175, %v1177
    %v1179 = vrot.slane %v1165, %v1178
    %v1180 = vcombine.low %v1172, %v1179
    %v1181 = vcombine.low %v1136, %v1137
    %v1182 = vcombine.low %v1138, %v1139
    %v1184 = vunpack.c.l.s4 1983009808
    %v1185 = vunpack.c.0.s8 %v1184
    %v1186 = vlaneseq
    %v1187 = vshrl.u32 %v1186, 7
    %v1188 = vsub.s32 %v1185, %v1187
    %v1189 = vrot.slane %v1181, %v1188
    %v1191 = vunpack.c.l.s4 1983009808
    %v1192 = vunpack.c.0.s8 %v1191
    %v1193 = vlaneseq
    %v1194 = vshrl.u32 %v1193, 7
    %v1195 = vsub.s32 %v1192, %v1194
    %v1196 = vrot.slane %v1182, %v1195
    %v1197 = vcombine.low %v1189, %v1196
    %v1198 = vcombine.low %v1140, %v1141
    %v1199 = vcombine.low %v1142, %v1143
    %v1201 = vunpack.c.l.s4 1983009808
    %v1202 = vunpack.c.0.s8 %v1201
    %v1203 = vlaneseq
    %v1204 = vshrl.u32 %v1203, 7
    %v1205 = vsub.s32 %v1202, %v1204
    %v1206 = vrot.slane %v1198, %v1205
    %v1208 = vunpack.c.l.s4 1983009808
    %v1209 = vunpack.c.0.s8 %v1208
    %v1210 = vlaneseq
    %v1211 = vshrl.u32 %v1210, 7
    %v1212 = vsub.s32 %v1209, %v1211
    %v1213 = vrot.slane %v1199, %v1212
    %v1214 = vcombine.low %v1206, %v1213
    %v1215 = vcombine.low %v1144, %v1145
    %v1216 = vcombine.low %v1146, %v1147
    %v1218 = vunpack.c.l.s4 1983009808
    %v1219 = vunpack.c.0.s8 %v1218
    %v1220 = vlaneseq
    %v1221 = vshrl.u32 %v1220, 7
    %v1222 = vsub.s32 %v1219, %v1221
    %v1223 = vrot.slane %v1215, %v1222
    %v1225 = vunpack.c.l.s4 1983009808
    %v1226 = vunpack.c.0.s8 %v1225
    %v1227 = vlaneseq
    %v1228 = vshrl.u32 %v1227, 7
    %v1229 = vsub.s32 %v1226, %v1228
    %v1230 = vrot.slane %v1216, %v1229
    %v1231 = vcombine.low %v1223, %v1230
    %v1236 = vadd.f32 %v722, %v1180
    %v1237 = vadd.f32 %v723, %v1197
    %v1238 = vadd.f32 %v724, %v1214
    %v1239 = vadd.f32 %v725, %v1231
    %1240 = vst [vmem:[%s4] sm:$0xff] %v1236
    %1241 = vst [vmem:[%s4 + $0x8] sm:$0xff] %v1237
    %1242 = vst [vmem:[%s4 + $0x10] sm:$0xff] %v1238
    %1243 = vst [vmem:[%s4 + $0x18] sm:$0xff] %v1239
  $region25: #{generator_forward.9} parent=0 // pred_fallthru
    _
  // Predicated region
  $region26: #{generator_forward.9} parent=0 // pred_check
    _
  $region27: #{generator_forward.9} parent=0 // pred_check_branch
    %1245 = sbr.rel (0) target = $region29
  $region28: #{generator_forward.9} parent=0 // pred_region
    _
  $region29: #{generator_forward.9} parent=0 // pred_fallthru
    _
  // Predicated region
  $region30: #{generator_forward.9} parent=0 // pred_check
    _
  $region31: #{generator_forward.9} parent=0 // pred_check_branch
    %1247 = sbr.rel (0) target = $region33
  $region32: #{generator_forward.9} parent=0 // pred_region
    _
  $region33: #{generator_forward.9} parent=0 // pred_fallthru
    _
  // Predicated region
  $region34: #{generator_forward.9} parent=0 // pred_check
    _
  $region35: #{generator_forward.9} parent=0 // pred_check_branch
    %1249 = sbr.rel (0) target = $region37
  $region36: #{generator_forward.9} parent=0 // pred_region
    _
  $region37: #{generator_forward.9} parent=0 // pred_fallthru
    _
  // Predicated region
  $region38: #{generator_forward.9} parent=0 // pred_check
    _
  $region39: #{generator_forward.9} parent=0 // pred_check_branch
    %1251 = sbr.rel (0) target = $region41
  $region40: #{generator_forward.9} parent=0 // pred_region
    _
  $region41: #{generator_forward.9} parent=0 // pred_fallthru
    _

// kernel: generator_forward.12
$region0: #{generator_forward.12}
  #allocation0 [shape = 'u32[]', space=smem, size = 0x4, offset = 0x4, fixed_abs, tag = 'smem constant byte address 0x4 - core index']
  #allocation1 [shape = 'u32[144,128]{1,0:T(1,128)}', space=vmem, size = 0x12000, scoped, tag = 'internal scratch']
  %s0 = inlined_call_operand.vmem [shape: f32[128,64], index: 0, kind: input, shape index: {}]
  %s1 = inlined_call_operand.vmem [shape: f32[1,64], index: 1, kind: input, shape index: {}]
  %s2 = inlined_call_operand.vmem [shape: f32[1,64], index: 2, kind: input, shape index: {}]
  %s3 = inlined_call_operand.vmem [shape: f32[128,64], index: 3, kind: output, shape index: {}]
  %s4 = sld [smem:[#allocation0]]
  $region22: #{generator_forward.12} parent=0
    _
  %s6 = ssub.s32 1, %s4
  %s7 = scalar_select 0, %s6, %s4
  // Predicated region
  $region2: #{generator_forward.12} parent=0 // pred_check
    _
  $region3: #{generator_forward.12} parent=0 // pred_check_branch
    %9 = sbr.rel (0) target = $region5
  $region4: #{generator_forward.12} parent=0 // pred_region
    _
  $region5: #{generator_forward.12} parent=0 // pred_fallthru
    _
  // Predicated region
  $region6: #{generator_forward.12} parent=0 // pred_check
    _
  $region7: #{generator_forward.12} parent=0 // pred_check_branch
    %11 = sbr.rel (0) target = $region9
  $region8: #{generator_forward.12} parent=0 // pred_region
    _
  $region9: #{generator_forward.12} parent=0 // pred_fallthru
    _
  // Predicated region
  $region10: #{generator_forward.12} parent=0 // pred_check
    _
  $region11: #{generator_forward.12} parent=0 // pred_check_branch
    %13 = sbr.rel (0) target = $region13
  $region12: #{generator_forward.12} parent=0 // pred_region
    _
  $region13: #{generator_forward.12} parent=0 // pred_fallthru
    _
  %v14 = vld [vmem:[%s0] sm:$0xff]
  %v15 = vld [vmem:[%s0 + $0x8] sm:$0xff]
  %v16 = vld [vmem:[%s0 + $0x10] sm:$0xff]
  %v17 = vld [vmem:[%s0 + $0x18] sm:$0xff]
  %v18 = vld [vmem:[%s0 + $0x20] sm:$0xff]
  %v19 = vld [vmem:[%s0 + $0x28] sm:$0xff]
  %v20 = vld [vmem:[%s0 + $0x30] sm:$0xff]
  %v21 = vld [vmem:[%s0 + $0x38] sm:$0xff]
  %v22 = vld [vmem:[%s0 + $0x40] sm:$0xff]
  %v23 = vld [vmem:[%s0 + $0x48] sm:$0xff]
  %v24 = vld [vmem:[%s0 + $0x50] sm:$0xff]
  %v25 = vld [vmem:[%s0 + $0x58] sm:$0xff]
  %v26 = vld [vmem:[%s0 + $0x60] sm:$0xff]
  %v27 = vld [vmem:[%s0 + $0x68] sm:$0xff]
  %v28 = vld [vmem:[%s0 + $0x70] sm:$0xff]
  %v29 = vld [vmem:[%s0 + $0x78] sm:$0xff]
  %v30 = vld [vmem:[%s1] sm:$0x1]
  %v32 = vlaneseq
  %v33 = vshrl.u32 %v32, 7
  %v34 = vsub.s32 0, %v33
  %v35 = vrot.slane %v30, %v34
  %v37 = vmul.f32 %v14, %v35
  %v38 = vmul.f32 %v15, %v35
  %v39 = vmul.f32 %v16, %v35
  %v40 = vmul.f32 %v17, %v35
  %v41 = vmul.f32 %v18, %v35
  %v42 = vmul.f32 %v19, %v35
  %v43 = vmul.f32 %v20, %v35
  %v44 = vmul.f32 %v21, %v35
  %v45 = vmul.f32 %v22, %v35
  %v46 = vmul.f32 %v23, %v35
  %v47 = vmul.f32 %v24, %v35
  %v48 = vmul.f32 %v25, %v35
  %v49 = vmul.f32 %v26, %v35
  %v50 = vmul.f32 %v27, %v35
  %v51 = vmul.f32 %v28, %v35
  %v52 = vmul.f32 %v29, %v35
  %v53 = vld [vmem:[%s2] sm:$0x1]
  %v55 = vlaneseq
  %v56 = vshrl.u32 %v55, 7
  %v57 = vsub.s32 0, %v56
  %v58 = vrot.slane %v53, %v57
  %v60 = vadd.f32 %v37, %v58
  %v61 = vadd.f32 %v38, %v58
  %v62 = vadd.f32 %v39, %v58
  %v63 = vadd.f32 %v40, %v58
  %v64 = vadd.f32 %v41, %v58
  %v65 = vadd.f32 %v42, %v58
  %v66 = vadd.f32 %v43, %v58
  %v67 = vadd.f32 %v44, %v58
  %v68 = vadd.f32 %v45, %v58
  %v69 = vadd.f32 %v46, %v58
  %v70 = vadd.f32 %v47, %v58
  %v71 = vadd.f32 %v48, %v58
  %v72 = vadd.f32 %v49, %v58
  %v73 = vadd.f32 %v50, %v58
  %v74 = vadd.f32 %v51, %v58
  %v75 = vadd.f32 %v52, %v58
  %v76 = vmax.f32 %v60, 0.0
  %v77 = vmax.f32 %v61, 0.0
  %v78 = vmax.f32 %v62, 0.0
  %v79 = vmax.f32 %v63, 0.0
  %v80 = vmax.f32 %v64, 0.0
  %v81 = vmax.f32 %v65, 0.0
  %v82 = vmax.f32 %v66, 0.0
  %v83 = vmax.f32 %v67, 0.0
  %v84 = vmax.f32 %v68, 0.0
  %v85 = vmax.f32 %v69, 0.0
  %v86 = vmax.f32 %v70, 0.0
  %v87 = vmax.f32 %v71, 0.0
  %v88 = vmax.f32 %v72, 0.0
  %v89 = vmax.f32 %v73, 0.0
  %v90 = vmax.f32 %v74, 0.0
  %v91 = vmax.f32 %v75, 0.0
  %vm92 = vcmask 523264
  %93 = vst.msk [vmem:[%s3] sm:$0xff] %vm92, %v76
  %94 = vst.msk [vmem:[%s3 + $0x8] sm:$0xff] %vm92, %v77
  %95 = vst.msk [vmem:[%s3 + $0x10] sm:$0xff] %vm92, %v78
  %96 = vst.msk [vmem:[%s3 + $0x18] sm:$0xff] %vm92, %v79
  %97 = vst.msk [vmem:[%s3 + $0x20] sm:$0xff] %vm92, %v80
  %98 = vst.msk [vmem:[%s3 + $0x28] sm:$0xff] %vm92, %v81
  %99 = vst.msk [vmem:[%s3 + $0x30] sm:$0xff] %vm92, %v82
  %100 = vst.msk [vmem:[%s3 + $0x38] sm:$0xff] %vm92, %v83
  %101 = vst.msk [vmem:[%s3 + $0x40] sm:$0xff] %vm92, %v84
  %102 = vst.msk [vmem:[%s3 + $0x48] sm:$0xff] %vm92, %v85
  %103 = vst.msk [vmem:[%s3 + $0x50] sm:$0xff] %vm92, %v86
  %104 = vst.msk [vmem:[%s3 + $0x58] sm:$0xff] %vm92, %v87
  %105 = vst.msk [vmem:[%s3 + $0x60] sm:$0xff] %vm92, %v88
  %106 = vst.msk [vmem:[%s3 + $0x68] sm:$0xff] %vm92, %v89
  %107 = vst.msk [vmem:[%s3 + $0x70] sm:$0xff] %vm92, %v90
  %108 = vst.msk [vmem:[%s3 + $0x78] sm:$0xff] %vm92, %v91
  // Predicated region
  $region14: #{generator_forward.12} parent=0 // pred_check
    _
  $region15: #{generator_forward.12} parent=0 // pred_check_branch
    %110 = sbr.rel (0) target = $region17
  $region16: #{generator_forward.12} parent=0 // pred_region
    _
  $region17: #{generator_forward.12} parent=0 // pred_fallthru
    _
  // Predicated region
  $region18: #{generator_forward.12} parent=0 // pred_check
    _
  $region19: #{generator_forward.12} parent=0 // pred_check_branch
    %112 = sbr.rel (0) target = $region21
  $region20: #{generator_forward.12} parent=0 // pred_region
    _
  $region21: #{generator_forward.12} parent=0 // pred_fallthru
    _

// kernel: generator_forward.11
$region0: #{generator_forward.11}
  #allocation0 [shape = 'u32[]', space=smem, size = 0x4, offset = 0x4, fixed_abs, tag = 'smem constant byte address 0x4 - core index']
  #allocation1 [shape = 'u32[144,128]{1,0:T(1,128)}', space=vmem, size = 0x12000, scoped, tag = 'internal scratch']
  #allocation2 [shape = 'f32[32,64]{1,0:T(8,128)}', space=vmem, size = 0x4000, scoped, tag = 'scratch operand']
  %s0 = inlined_call_operand.vmem [shape: bf16[4,32,512], index: 0, kind: input, shape index: {}]
  %s1 = inlined_call_operand.vmem [shape: bf16[4,512,64], index: 1, kind: input, shape index: {}]
  %s2 = inlined_call_operand.vmem [shape: f32[1,64], index: 2, kind: input, shape index: {}]
  %s3 = inlined_call_operand.vmem [shape: f32[4,32,64], index: 3, kind: output, shape index: {0}]
  %s4 = inlined_call_operand.vmem [shape: f32[2,64], index: 4, kind: output, shape index: {1}]
  %5 = xla_tuple %s3, %s4
  %s6 = sld [smem:[#allocation0]]
  $region65: #{generator_forward.11} parent=0
    _
  %s8 = ssub.s32 1, %s6
  %s9 = scalar_select 0, %s8, %s6
  loop: start=0, step=1, limit=6
  $region2: #{generator_forward.11} parent=0 // loop_pre_header
    _
  $region3: #{generator_forward.11} parent=0 // loop_header
    %s11 = sphi 0, %s15
    %p12 = scmp.ge.s32.totalorder %s11, 6
    %s18 = sphi 0, %s37
    %s19 = sphi 0, %s33
    %s20 = sphi 0, %s29
    %s21 = sphi 0, %s18
    %s22 = sphi 0, %s19
    %s23 = sphi 0, %s20
    %s24 = sphi 0, %s21
    %s25 = sphi 0, %s22
    %s26 = sphi 0, %s23
    %s44 = sphi 0, %s46
    %s47 = sphi 0, %s44
    %s48 = sphi 0, %s47
    %s64 = sphi 0, %s48
    %s72 = sphi 0, %s74
    %s75 = sphi 0, %s72
    %s76 = sphi 0, %s75
    %s92 = sphi 0, %s76
    %s96 = sphi 0, %s96
    %s98 = sphi 0, %s96
    %s99 = sphi 0, %s98
    %s113 = sphi 0, %s99
    %s121 = sphi 0, %s123
    %s124 = sphi 0, %s121
    %s125 = sphi 0, %s124
    %s141 = sphi 0, %s125
    %s145 = sphi 0, %s145
    %s147 = sphi 0, %s145
    %s148 = sphi 0, %s147
    %s162 = sphi 0, %s148
  $region4: #{generator_forward.11} parent=0 // loop_header_branch
    %14 = sbr.rel (%p12) target = $region8
  $region5: #{generator_forward.11} parent=0 // loop_body
    %s16 = ssub.s32 %s11, 1
    %s17 = ssub.s32 %s11, 2
    %s27 = sadd.s32 1, %s20
    %p28 = scmp.ge.s32.totalorder %s27, 1
    %s29 = scalar_select %p28, 0, %s27
    %s30 = sadd.s32 1, %s19
    %s31 = scalar_select %p28, %s30, %s19
    %p32 = scmp.ge.s32.totalorder %s31, 1
    %s33 = scalar_select %p32, 0, %s31
    %s34 = sadd.s32 1, %s18
    %s35 = scalar_select %p32, %s34, %s18
    %p36 = scmp.ge.s32.totalorder %s35, 4
    %s37 = scalar_select %p36, 0, %s35
    %s38 = ssub.s32 %s18, %s37
    %s39 = ssub.s32 %s19, %s33
    %s40 = sor.u32 %s38, %s39
    %s41 = ssub.s32 %s20, %s29
    %s42 = sor.u32 %s40, %s41
    %p43 = scmp.eq.s32.totalorder %s42, 0
    %s45 = sadd.s32 %s44, 1
    %s46 = scalar_select %p43, %s44, %s45
    %p49 = pneg %p43
    %p50 = scmp.eq.s32.totalorder %s11, 3
    %p51 = por %p49, %p50
    %p52 = scmp.ne.s32.totalorder %s44, %s47
    %p53 = scmp.eq.s32.totalorder %s11, 0
    %p54 = por %p52, %p53
    %p55 = scmp.ne.s32.totalorder %s44, %s47
    %p56 = scmp.eq.s32.totalorder %s16, 3
    %p57 = por %p55, %p56
    %p58 = scmp.ne.s32.totalorder %s47, %s48
    %p59 = scmp.eq.s32.totalorder %s16, 0
    %p60 = por %p58, %p59
    %p61 = scmp.ne.s32.totalorder %s47, %s48
    %p62 = scmp.eq.s32.totalorder %s17, 3
    %p63 = por %p61, %p62
    %p65 = scmp.ne.s32.totalorder %s48, %s64
    %p66 = scmp.eq.s32.totalorder %s17, 0
    %p67 = por %p65, %p66
    %s68 = ssub.s32 %s18, %s37
    %s69 = ssub.s32 %s20, %s29
    %s70 = sor.u32 %s68, %s69
    %p71 = scmp.eq.s32.totalorder %s70, 0
    %s73 = sadd.s32 %s72, 1
    %s74 = scalar_select %p71, %s72, %s73
    %p77 = pneg %p71
    %p78 = scmp.eq.s32.totalorder %s11, 3
    %p79 = por %p77, %p78
    %p80 = scmp.ne.s32.totalorder %s72, %s75
    %p81 = scmp.eq.s32.totalorder %s11, 0
    %p82 = por %p80, %p81
    %p83 = scmp.ne.s32.totalorder %s72, %s75
    %p84 = scmp.eq.s32.totalorder %s16, 3
    %p85 = por %p83, %p84
    %p86 = scmp.ne.s32.totalorder %s75, %s76
    %p87 = scmp.eq.s32.totalorder %s16, 0
    %p88 = por %p86, %p87
    %p89 = scmp.ne.s32.totalorder %s75, %s76
    %p90 = scmp.eq.s32.totalorder %s17, 3
    %p91 = por %p89, %p90
    %p93 = scmp.ne.s32.totalorder %s76, %s92
    %p94 = scmp.eq.s32.totalorder %s17, 0
    %p95 = por %p93, %p94
    %s97 = sadd.s32 %s96, 1
    %p100 = scmp.eq.s32.totalorder %s11, 3
    %p101 = scmp.ne.s32.totalorder %s96, %s98
    %p102 = scmp.eq.s32.totalorder %s11, 0
    %p103 = por %p101, %p102
    %p104 = scmp.ne.s32.totalorder %s96, %s98
    %p105 = scmp.eq.s32.totalorder %s16, 3
    %p106 = por %p104, %p105
    %p107 = scmp.ne.s32.totalorder %s98, %s99
    %p108 = scmp.eq.s32.totalorder %s16, 0
    %p109 = por %p107, %p108
    %p110 = scmp.ne.s32.totalorder %s98, %s99
    %p111 = scmp.eq.s32.totalorder %s17, 3
    %p112 = por %p110, %p111
    %p114 = scmp.ne.s32.totalorder %s99, %s113
    %p115 = scmp.eq.s32.totalorder %s17, 0
    %p116 = por %p114, %p115
    %s117 = ssub.s32 %s18, %s37
    %s118 = ssub.s32 %s19, %s33
    %s119 = sor.u32 %s117, %s118
    %p120 = scmp.eq.s32.totalorder %s119, 0
    %s122 = sadd.s32 %s121, 1
    %s123 = scalar_select %p120, %s121, %s122
    %p126 = pneg %p120
    %p127 = scmp.eq.s32.totalorder %s11, 3
    %p128 = por %p126, %p127
    %p129 = scmp.ne.s32.totalorder %s121, %s124
    %p130 = scmp.eq.s32.totalorder %s11, 0
    %p131 = por %p129, %p130
    %p132 = scmp.ne.s32.totalorder %s121, %s124
    %p133 = scmp.eq.s32.totalorder %s16, 3
    %p134 = por %p132, %p133
    %p135 = scmp.ne.s32.totalorder %s124, %s125
    %p136 = scmp.eq.s32.totalorder %s16, 0
    %p137 = por %p135, %p136
    %p138 = scmp.ne.s32.totalorder %s124, %s125
    %p139 = scmp.eq.s32.totalorder %s17, 3
    %p140 = por %p138, %p139
    %p142 = scmp.ne.s32.totalorder %s125, %s141
    %p143 = scmp.eq.s32.totalorder %s17, 0
    %p144 = por %p142, %p143
    %s146 = sadd.s32 %s145, 1
    %p149 = scmp.eq.s32.totalorder %s11, 3
    %p150 = scmp.ne.s32.totalorder %s145, %s147
    %p151 = scmp.eq.s32.totalorder %s11, 0
    %p152 = por %p150, %p151
    %p153 = scmp.ne.s32.totalorder %s145, %s147
    %p154 = scmp.eq.s32.totalorder %s16, 3
    %p155 = por %p153, %p154
    %p156 = scmp.ne.s32.totalorder %s147, %s148
    %p157 = scmp.eq.s32.totalorder %s16, 0
    %p158 = por %p156, %p157
    %p159 = scmp.ne.s32.totalorder %s147, %s148
    %p160 = scmp.eq.s32.totalorder %s17, 3
    %p161 = por %p159, %p160
    %p163 = scmp.ne.s32.totalorder %s148, %s162
    %p164 = scmp.eq.s32.totalorder %s17, 0
    %p165 = por %p163, %p164
    %p166 = scmp.le.s32.totalorder 1, %s11
    %p167 = scmp.lt.s32.totalorder %s11, 5
    %p168 = pnand %p166, %p167
    %p169 = pneg %p168
    // Predicated region
    $region9: #{generator_forward.11} parent=5 // pred_check
      _
    $region10: #{generator_forward.11} parent=5 // pred_check_branch
      %171 = sbr.rel (%p168) target = $region12
    $region11: #{generator_forward.11} parent=5 // pred_region
      %s172 = ssub.s32 %s11, 1
      // Predicated region
      $region13: #{generator_forward.11} parent=11 // pred_check
        %p173 = pneg %p109
      $region14: #{generator_forward.11} parent=11 // pred_check_branch
        %175 = sbr.rel (%p173) target = $region16
      $region15: #{generator_forward.11} parent=11 // pred_region
        _
      $region16: #{generator_forward.11} parent=11 // pred_fallthru
        _
    $region12: #{generator_forward.11} parent=5 // pred_fallthru
      _
    %p176 = scmp.lt.s32.totalorder %s11, 4
    // Predicated region
    $region17: #{generator_forward.11} parent=5 // pred_check
      %p177 = pneg %p176
    $region18: #{generator_forward.11} parent=5 // pred_check_branch
      %179 = sbr.rel (%p177) target = $region20
    $region19: #{generator_forward.11} parent=5 // pred_region
      // Predicated region
      $region21: #{generator_forward.11} parent=19 // pred_check
        %p180 = pneg %p54
      $region22: #{generator_forward.11} parent=19 // pred_check_branch
        %182 = sbr.rel (%p180) target = $region24
      $region23: #{generator_forward.11} parent=19 // pred_region
        %s183 = smul.u32 4, %s19
        %s184 = smul.u32 4, %s20
        %p185 = scmp.lt.s32.totalorder %s18, 3
        %s186 = scalar_select %p185, %s18, 3
        %p187 = scmp.lt.s32.totalorder %s183, 3
        %s188 = scalar_select %p187, %s183, 3
        %p189 = scmp.lt.s32.totalorder %s184, 3
        %s190 = scalar_select %p189, %s184, 3
        %s191 = smul.addr %s188, 4
        %s192 = sadd.s32 %s190, %s191
        %s193 = smul.addr %s186, 16
        %s194 = sadd.s32 %s192, %s193
        %s195 = smul.addr %s194, 4
        %s196 = scalar_lea.vmem %s0, %s195
        %s197 = smul.u32 4, %s19
        %s198 = smul.u32 4, %s20
      $region24: #{generator_forward.11} parent=19 // pred_fallthru
        _
      // Predicated region
      $region25: #{generator_forward.11} parent=19 // pred_check
        %p199 = pneg %p82
      $region26: #{generator_forward.11} parent=19 // pred_check_branch
        %201 = sbr.rel (%p199) target = $region28
      $region27: #{generator_forward.11} parent=19 // pred_region
        %s202 = smul.u32 64, %s20
        %p203 = scmp.lt.s32.totalorder %s18, 3
        %s204 = scalar_select %p203, %s18, 3
        %p205 = scmp.lt.s32.totalorder %s202, 63
        %s206 = scalar_select %p205, %s202, 63
        %s207 = smul.addr %s204, 64
        %s208 = sadd.s32 %s206, %s207
        %s209 = smul.addr %s208, 4
        %s210 = scalar_lea.vmem %s1, %s209
        %s211 = smul.u32 64, %s20
      $region28: #{generator_forward.11} parent=19 // pred_fallthru
        _
    $region20: #{generator_forward.11} parent=5 // pred_fallthru
      _
    %p212 = scmp.le.s32.totalorder 1, %s11
    %p213 = scmp.lt.s32.totalorder %s11, 5
    %p214 = pnand %p212, %p213
    %p215 = pneg %p214
    // Predicated region
    $region29: #{generator_forward.11} parent=5 // pred_check
      _
    $region30: #{generator_forward.11} parent=5 // pred_check_branch
      %217 = sbr.rel (%p214) target = $region32
    $region31: #{generator_forward.11} parent=5 // pred_region
      %s218 = ssub.s32 %s11, 1
      %s219 = smul.u32 4, %s22
      %s220 = smul.u32 4, %s23
      %p221 = scmp.lt.s32.totalorder %s21, 3
      %s222 = scalar_select %p221, %s21, 3
      %p223 = scmp.lt.s32.totalorder %s219, 3
      %s224 = scalar_select %p223, %s219, 3
      %p225 = scmp.lt.s32.totalorder %s220, 3
      %s226 = scalar_select %p225, %s220, 3
      %s227 = smul.addr %s224, 4
      %s228 = sadd.s32 %s226, %s227
      %s229 = smul.addr %s222, 16
      %s230 = sadd.s32 %s228, %s229
      %s231 = smul.addr %s230, 4
      %s232 = scalar_lea.vmem %s0, %s231
      %p233 = pneg %p60
      %p234 = pneg %p57
      %s235 = smul.u32 64, %s23
      %p236 = scmp.lt.s32.totalorder %s21, 3
      %s237 = scalar_select %p236, %s21, 3
      %p238 = scmp.lt.s32.totalorder %s235, 63
      %s239 = scalar_select %p238, %s235, 63
      %s240 = smul.addr %s237, 64
      %s241 = sadd.s32 %s239, %s240
      %s242 = smul.addr %s241, 4
      %s243 = scalar_lea.vmem %s1, %s242
      %p244 = pneg %p88
      %p245 = pneg %p85
      %p246 = pneg %p109
      %p247 = pneg %p106
      %p248 = pneg %p137
      %p249 = pneg %p134
      %s250 = smul.u32 4, %s22
      %p251 = scmp.lt.s32.totalorder %s21, 3
      %s252 = scalar_select %p251, %s21, 3
      %p253 = scmp.lt.s32.totalorder %s250, 3
      %s254 = scalar_select %p253, %s250, 3
      %s255 = smul.addr %s252, 4
      %s256 = sadd.s32 %s254, %s255
      %s257 = smul.addr %s256, 8
      %s258 = scalar_lea.vmem %s3, %s257
      %p259 = pneg %p158
      %p260 = pneg %p155
      %s261 = smul.u32 4, %s22
      %s262 = smul.u32 4, %s23
      %p263 = scmp.lt.s32.totalorder %s21, 3
      %s264 = scalar_select %p263, %s21, 3
      %p265 = scmp.lt.s32.totalorder %s261, 3
      %s266 = scalar_select %p265, %s261, 3
      %p267 = scmp.lt.s32.totalorder %s262, 3
      %s268 = scalar_select %p267, %s262, 3
      %s269 = smul.addr %s266, 4
      %s270 = sadd.s32 %s268, %s269
      %s271 = smul.addr %s264, 16
      %s272 = sadd.s32 %s270, %s271
      %s273 = smul.addr %s272, 4
      %s274 = scalar_lea.vmem %s0, %s273
      %s275 = smul.u32 4, %s22
      %s276 = smul.u32 4, %s23
      %s277 = smul.u32 64, %s23
      %p278 = scmp.lt.s32.totalorder %s21, 3
      %s279 = scalar_select %p278, %s21, 3
      %p280 = scmp.lt.s32.totalorder %s277, 63
      %s281 = scalar_select %p280, %s277, 63
      %s282 = smul.addr %s279, 64
      %s283 = sadd.s32 %s281, %s282
      %s284 = smul.addr %s283, 4
      %s285 = scalar_lea.vmem %s1, %s284
      %s286 = smul.u32 64, %s23
      %s287 = smul.u32 4, %s22
      %p288 = scmp.lt.s32.totalorder %s21, 3
      %s289 = scalar_select %p288, %s21, 3
      %p290 = scmp.lt.s32.totalorder %s287, 3
      %s291 = scalar_select %p290, %s287, 3
      %s292 = smul.addr %s289, 4
      %s293 = sadd.s32 %s291, %s292
      %s294 = smul.addr %s293, 8
      %s295 = scalar_lea.vmem %s3, %s294
      %s296 = smul.u32 4, %s22
      %p298 = scmp.eq.s32.totalorder %s23, 0
      // Predicated region
      $region33: #{generator_forward.11} parent=31 // pred_check
        %p299 = pneg %p298
      $region34: #{generator_forward.11} parent=31 // pred_check_branch
        %301 = sbr.rel (%p299) target = $region36
      $region35: #{generator_forward.11} parent=31 // pred_region
        %vm302 = vcmask 523264
        %303 = vst.msk [vmem:[#allocation2] sm:$0xff] %vm302, 0.0
        %304 = vst.msk [vmem:[#allocation2 + $0x8] sm:$0xff] %vm302, 0.0
        %305 = vst.msk [vmem:[#allocation2 + $0x10] sm:$0xff] %vm302, 0.0
        %306 = vst.msk [vmem:[#allocation2 + $0x18] sm:$0xff] %vm302, 0.0
      $region36: #{generator_forward.11} parent=31 // pred_fallthru
        _
      %p307 = scmp.eq.s32.totalorder %s21, 0
      %p308 = scmp.eq.s32.totalorder %s22, 0
      %p309 = pnand %p307, %p308
      %p310 = pneg %p309
      %p311 = pnand %p310, %p298
      %p312 = pneg %p311
      // Predicated region
      $region37: #{generator_forward.11} parent=31 // pred_check
        _
      $region38: #{generator_forward.11} parent=31 // pred_check_branch
        %314 = sbr.rel (%p311) target = $region40
      $region39: #{generator_forward.11} parent=31 // pred_region
        %vm315 = vcmask 517120
        %316 = vst.msk [vmem:[%s4] sm:$0x3] %vm315, 0.0
      $region40: #{generator_forward.11} parent=31 // pred_fallthru
        _
      %v317 = vld [vmem:[#allocation2] sm:$0xff]
      %v318 = vld [vmem:[#allocation2 + $0x8] sm:$0xff]
      %v319 = vld [vmem:[#allocation2 + $0x10] sm:$0xff]
      %v320 = vld [vmem:[#allocation2 + $0x18] sm:$0xff]
      %v321 = vld [vmem:[%s274] sm:$0xff]
      %v322 = vld [vmem:[%s274 + $0x8] sm:$0xff]
      %v323 = vld [vmem:[%s274 + $0x10] sm:$0xff]
      %v324 = vld [vmem:[%s274 + $0x18] sm:$0xff]
      %v325 = vld [vmem:[%s274 + $0x20] sm:$0xff]
      %v326 = vld [vmem:[%s274 + $0x28] sm:$0xff]
      %v327 = vld [vmem:[%s274 + $0x30] sm:$0xff]
      %v328 = vld [vmem:[%s274 + $0x38] sm:$0xff]
      %v329 = vld [vmem:[%s285] sm:$0xf]
      %v330 = vld [vmem:[%s285 + $0x4] sm:$0xf]
      %v331 = vld [vmem:[%s285 + $0x8] sm:$0xf]
      %v332 = vld [vmem:[%s285 + $0xc] sm:$0xf]
      %v333 = vld [vmem:[%s285 + $0x10] sm:$0xf]
      %v334 = vld [vmem:[%s285 + $0x14] sm:$0xf]
      %v335 = vld [vmem:[%s285 + $0x18] sm:$0xf]
      %v336 = vld [vmem:[%s285 + $0x1c] sm:$0xf]
      %v337 = vld [vmem:[%s285 + $0x20] sm:$0xf]
      %v338 = vld [vmem:[%s285 + $0x24] sm:$0xf]
      %v339 = vld [vmem:[%s285 + $0x28] sm:$0xf]
      %v340 = vld [vmem:[%s285 + $0x2c] sm:$0xf]
      %v341 = vld [vmem:[%s285 + $0x30] sm:$0xf]
      %v342 = vld [vmem:[%s285 + $0x34] sm:$0xf]
      %v343 = vld [vmem:[%s285 + $0x38] sm:$0xf]
      %v344 = vld [vmem:[%s285 + $0x3c] sm:$0xf]
      %v345 = vld [vmem:[%s285 + $0x40] sm:$0xf]
      %v346 = vld [vmem:[%s285 + $0x44] sm:$0xf]
      %v347 = vld [vmem:[%s285 + $0x48] sm:$0xf]
      %v348 = vld [vmem:[%s285 + $0x4c] sm:$0xf]
      %v349 = vld [vmem:[%s285 + $0x50] sm:$0xf]
      %v350 = vld [vmem:[%s285 + $0x54] sm:$0xf]
      %v351 = vld [vmem:[%s285 + $0x58] sm:$0xf]
      %v352 = vld [vmem:[%s285 + $0x5c] sm:$0xf]
      %v353 = vld [vmem:[%s285 + $0x60] sm:$0xf]
      %v354 = vld [vmem:[%s285 + $0x64] sm:$0xf]
      %v355 = vld [vmem:[%s285 + $0x68] sm:$0xf]
      %v356 = vld [vmem:[%s285 + $0x6c] sm:$0xf]
      %v357 = vld [vmem:[%s285 + $0x70] sm:$0xf]
      %v358 = vld [vmem:[%s285 + $0x74] sm:$0xf]
      %v359 = vld [vmem:[%s285 + $0x78] sm:$0xf]
      %v360 = vld [vmem:[%s285 + $0x7c] sm:$0xf]
      %v361 = vld [vmem:[%s285 + $0x80] sm:$0xf]
      %v362 = vld [vmem:[%s285 + $0x84] sm:$0xf]
      %v363 = vld [vmem:[%s285 + $0x88] sm:$0xf]
      %v364 = vld [vmem:[%s285 + $0x8c] sm:$0xf]
      %v365 = vld [vmem:[%s285 + $0x90] sm:$0xf]
      %v366 = vld [vmem:[%s285 + $0x94] sm:$0xf]
      %v367 = vld [vmem:[%s285 + $0x98] sm:$0xf]
      %v368 = vld [vmem:[%s285 + $0x9c] sm:$0xf]
      %v369 = vld [vmem:[%s285 + $0xa0] sm:$0xf]
      %v370 = vld [vmem:[%s285 + $0xa4] sm:$0xf]
      %v371 = vld [vmem:[%s285 + $0xa8] sm:$0xf]
      %v372 = vld [vmem:[%s285 + $0xac] sm:$0xf]
      %v373 = vld [vmem:[%s285 + $0xb0] sm:$0xf]
      %v374 = vld [vmem:[%s285 + $0xb4] sm:$0xf]
      %v375 = vld [vmem:[%s285 + $0xb8] sm:$0xf]
      %v376 = vld [vmem:[%s285 + $0xbc] sm:$0xf]
      %v377 = vld [vmem:[%s285 + $0xc0] sm:$0xf]
      %v378 = vld [vmem:[%s285 + $0xc4] sm:$0xf]
      %v379 = vld [vmem:[%s285 + $0xc8] sm:$0xf]
      %v380 = vld [vmem:[%s285 + $0xcc] sm:$0xf]
      %v381 = vld [vmem:[%s285 + $0xd0] sm:$0xf]
      %v382 = vld [vmem:[%s285 + $0xd4] sm:$0xf]
      %v383 = vld [vmem:[%s285 + $0xd8] sm:$0xf]
      %v384 = vld [vmem:[%s285 + $0xdc] sm:$0xf]
      %v385 = vld [vmem:[%s285 + $0xe0] sm:$0xf]
      %v386 = vld [vmem:[%s285 + $0xe4] sm:$0xf]
      %v387 = vld [vmem:[%s285 + $0xe8] sm:$0xf]
      %v388 = vld [vmem:[%s285 + $0xec] sm:$0xf]
      %v389 = vld [vmem:[%s285 + $0xf0] sm:$0xf]
      %v390 = vld [vmem:[%s285 + $0xf4] sm:$0xf]
      %v391 = vld [vmem:[%s285 + $0xf8] sm:$0xf]
      %v392 = vld [vmem:[%s285 + $0xfc] sm:$0xf]
      %v401 = vunpack.c.l.b16 %v321
      %v402 = vunpack.c.h.b16 %v321
      %v403 = vunpack.c.l.b16 %v322
      %v404 = vunpack.c.h.b16 %v322
      %v405 = vunpack.c.l.b16 %v323
      %v406 = vunpack.c.h.b16 %v323
      %v407 = vunpack.c.l.b16 %v324
      %v408 = vunpack.c.h.b16 %v324
      %v409 = vunpack.c.l.b16 %v325
      %v410 = vunpack.c.h.b16 %v325
      %v411 = vunpack.c.l.b16 %v326
      %v412 = vunpack.c.h.b16 %v326
      %v413 = vunpack.c.l.b16 %v327
      %v414 = vunpack.c.h.b16 %v327
      %v415 = vunpack.c.l.b16 %v328
      %v416 = vunpack.c.h.b16 %v328
      %v417 = vpack.c.b16 %v405, %v401
      %v418 = vpack.c.b16 %v406, %v402
      %v419 = vpack.c.b16 %v407, %v403
      %v420 = vpack.c.b16 %v408, %v404
      %v421 = vpack.c.b16 %v413, %v409
      %v422 = vpack.c.b16 %v414, %v410
      %v423 = vpack.c.b16 %v415, %v411
      %v424 = vpack.c.b16 %v416, %v412
      %v497 = vunpack.c.l.b16 %v329
      %v498 = vunpack.c.l.b16 %v330
      %v499 = vunpack.c.l.b16 %v331
      %v500 = vunpack.c.l.b16 %v332
      %v501 = vunpack.c.l.b16 %v333
      %v502 = vunpack.c.l.b16 %v334
      %v503 = vunpack.c.l.b16 %v335
      %v504 = vunpack.c.l.b16 %v336
      %v505 = vunpack.c.l.b16 %v337
      %v506 = vunpack.c.l.b16 %v338
      %v507 = vunpack.c.l.b16 %v339
      %v508 = vunpack.c.l.b16 %v340
      %v509 = vunpack.c.l.b16 %v341
      %v510 = vunpack.c.l.b16 %v342
      %v511 = vunpack.c.l.b16 %v343
      %v512 = vunpack.c.l.b16 %v344
      %v513 = vunpack.c.l.b16 %v345
      %v514 = vunpack.c.l.b16 %v346
      %v515 = vunpack.c.l.b16 %v347
      %v516 = vunpack.c.l.b16 %v348
      %v517 = vunpack.c.l.b16 %v349
      %v518 = vunpack.c.l.b16 %v350
      %v519 = vunpack.c.l.b16 %v351
      %v520 = vunpack.c.l.b16 %v352
      %v521 = vunpack.c.l.b16 %v353
      %v522 = vunpack.c.l.b16 %v354
      %v523 = vunpack.c.l.b16 %v355
      %v524 = vunpack.c.l.b16 %v356
      %v525 = vunpack.c.l.b16 %v357
      %v526 = vunpack.c.l.b16 %v358
      %v527 = vunpack.c.l.b16 %v359
      %v528 = vunpack.c.l.b16 %v360
      %v529 = vunpack.c.l.b16 %v361
      %v530 = vunpack.c.l.b16 %v362
      %v531 = vunpack.c.l.b16 %v363
      %v532 = vunpack.c.l.b16 %v364
      %v533 = vunpack.c.l.b16 %v365
      %v534 = vunpack.c.l.b16 %v366
      %v535 = vunpack.c.l.b16 %v367
      %v536 = vunpack.c.l.b16 %v368
      %v537 = vunpack.c.l.b16 %v369
      %v538 = vunpack.c.l.b16 %v370
      %v539 = vunpack.c.l.b16 %v371
      %v540 = vunpack.c.l.b16 %v372
      %v541 = vunpack.c.l.b16 %v373
      %v542 = vunpack.c.l.b16 %v374
      %v543 = vunpack.c.l.b16 %v375
      %v544 = vunpack.c.l.b16 %v376
      %v545 = vunpack.c.l.b16 %v377
      %v546 = vunpack.c.l.b16 %v378
      %v547 = vunpack.c.l.b16 %v379
      %v548 = vunpack.c.l.b16 %v380
      %v549 = vunpack.c.l.b16 %v381
      %v550 = vunpack.c.l.b16 %v382
      %v551 = vunpack.c.l.b16 %v383
      %v552 = vunpack.c.l.b16 %v384
      %v553 = vunpack.c.l.b16 %v385
      %v554 = vunpack.c.l.b16 %v386
      %v555 = vunpack.c.l.b16 %v387
      %v556 = vunpack.c.l.b16 %v388
      %v557 = vunpack.c.l.b16 %v389
      %v558 = vunpack.c.l.b16 %v390
      %v559 = vunpack.c.l.b16 %v391
      %v560 = vunpack.c.l.b16 %v392
      %v561 = vpack.c.b16 %v498, %v497
      %v562 = vpack.c.b16 %v500, %v499
      %v563 = vpack.c.b16 %v502, %v501
      %v564 = vpack.c.b16 %v504, %v503
      %v565 = vpack.c.b16 %v506, %v505
      %v566 = vpack.c.b16 %v508, %v507
      %v567 = vpack.c.b16 %v510, %v509
      %v568 = vpack.c.b16 %v512, %v511
      %v569 = vpack.c.b16 %v514, %v513
      %v570 = vpack.c.b16 %v516, %v515
      %v571 = vpack.c.b16 %v518, %v517
      %v572 = vpack.c.b16 %v520, %v519
      %v573 = vpack.c.b16 %v522, %v521
      %v574 = vpack.c.b16 %v524, %v523
      %v575 = vpack.c.b16 %v526, %v525
      %v576 = vpack.c.b16 %v528, %v527
      %v577 = vpack.c.b16 %v530, %v529
      %v578 = vpack.c.b16 %v532, %v531
      %v579 = vpack.c.b16 %v534, %v533
      %v580 = vpack.c.b16 %v536, %v535
      %v581 = vpack.c.b16 %v538, %v537
      %v582 = vpack.c.b16 %v540, %v539
      %v583 = vpack.c.b16 %v542, %v541
      %v584 = vpack.c.b16 %v544, %v543
      %v585 = vpack.c.b16 %v546, %v545
      %v586 = vpack.c.b16 %v548, %v547
      %v587 = vpack.c.b16 %v550, %v549
      %v588 = vpack.c.b16 %v552, %v551
      %v589 = vpack.c.b16 %v554, %v553
      %v590 = vpack.c.b16 %v556, %v555
      %v591 = vpack.c.b16 %v558, %v557
      %v592 = vpack.c.b16 %v560, %v559
      %625 = vmatprep.subr.bf16.mxu0 0
      %626 = vmatpush1.bf16.msra.mxu0 %v568
      %627 = vmatprep.subr.bf16.mxu0 0
      %628 = vmatpush1.bf16.msra.mxu0 %v567
      %629 = vmatprep.subr.bf16.mxu0 0
      %630 = vmatpush1.bf16.msra.mxu0 %v566
      %631 = vmatprep.subr.bf16.mxu0 0
      %632 = vmatpush1.bf16.msra.mxu0 %v565
      %633 = vmatprep.subr.bf16.mxu0 0
      %634 = vmatpush1.bf16.msra.mxu0 %v564
      %635 = vmatprep.subr.bf16.mxu0 0
      %636 = vmatpush1.bf16.msra.mxu0 %v563
      %637 = vmatprep.subr.bf16.mxu0 0
      %638 = vmatpush1.bf16.msra.mxu0 %v562
      %639 = vmatprep.subr.bf16.mxu0 0
      %640 = vmatpush1.bf16.msra.mxu0 %v561
      %641 = vmatprep.subr.bf16.mxu0 0
      %642 = vmatpush2.bf16.msra.mxu0 %v576
      %643 = vmatprep.subr.bf16.mxu0 0
      %644 = vmatpush2.bf16.msra.mxu0 %v575
      %645 = vmatprep.subr.bf16.mxu0 0
      %646 = vmatpush2.bf16.msra.mxu0 %v574
      %647 = vmatprep.subr.bf16.mxu0 0
      %648 = vmatpush2.bf16.msra.mxu0 %v573
      %649 = vmatprep.subr.bf16.mxu0 0
      %650 = vmatpush2.bf16.msra.mxu0 %v572
      %651 = vmatprep.subr.bf16.mxu0 0
      %652 = vmatpush2.bf16.msra.mxu0 %v571
      %653 = vmatprep.subr.bf16.mxu0 0
      %654 = vmatpush2.bf16.msra.mxu0 %v570
      %655 = vmatprep.subr.bf16.mxu0 0
      %656 = vmatpush2.bf16.msra.mxu0 %v569
      %657 = vmatprep.mubr.bf16.mxu0 %v418
      %658 = vmatmul.mubr.bf16.gmra.mxu0 %v417
      %v659 = vpop.f32.mrf.mxu0
      %v660 = vadd.f32 0.0, %v659
      %v661 = vpop.f32.mrf.mxu0
      %v662 = vpop.f32.mrf.mxu0
      %v663 = vadd.f32 0.0, %v662
      %v664 = vpop.f32.mrf.mxu0
      %665 = vmatprep.mubr.bf16.mxu0 %v422
      %666 = vmatmul.mubr.bf16.gmra.mxu0 %v421
      %v667 = vpop.f32.mrf.mxu0
      %v668 = vadd.f32 0.0, %v667
      %v669 = vpop.f32.mrf.mxu0
      %v670 = vpop.f32.mrf.mxu0
      %v671 = vadd.f32 0.0, %v670
      %v672 = vpop.f32.mrf.mxu0
      %673 = vdwg.mxu0
      %674 = vmatprep.subr.bf16.mxu0 0
      %675 = vmatpush1.bf16.msra.mxu0 %v584
      %676 = vmatprep.subr.bf16.mxu0 0
      %677 = vmatpush1.bf16.msra.mxu0 %v583
      %678 = vmatprep.subr.bf16.mxu0 0
      %679 = vmatpush1.bf16.msra.mxu0 %v582
      %680 = vmatprep.subr.bf16.mxu0 0
      %681 = vmatpush1.bf16.msra.mxu0 %v581
      %682 = vmatprep.subr.bf16.mxu0 0
      %683 = vmatpush1.bf16.msra.mxu0 %v580
      %684 = vmatprep.subr.bf16.mxu0 0
      %685 = vmatpush1.bf16.msra.mxu0 %v579
      %686 = vmatprep.subr.bf16.mxu0 0
      %687 = vmatpush1.bf16.msra.mxu0 %v578
      %688 = vmatprep.subr.bf16.mxu0 0
      %689 = vmatpush1.bf16.msra.mxu0 %v577
      %690 = vmatprep.subr.bf16.mxu0 0
      %691 = vmatpush2.bf16.msra.mxu0 %v592
      %692 = vmatprep.subr.bf16.mxu0 0
      %693 = vmatpush2.bf16.msra.mxu0 %v591
      %694 = vmatprep.subr.bf16.mxu0 0
      %695 = vmatpush2.bf16.msra.mxu0 %v590
      %696 = vmatprep.subr.bf16.mxu0 0
      %697 = vmatpush2.bf16.msra.mxu0 %v589
      %698 = vmatprep.subr.bf16.mxu0 0
      %699 = vmatpush2.bf16.msra.mxu0 %v588
      %700 = vmatprep.subr.bf16.mxu0 0
      %701 = vmatpush2.bf16.msra.mxu0 %v587
      %702 = vmatprep.subr.bf16.mxu0 0
      %703 = vmatpush2.bf16.msra.mxu0 %v586
      %704 = vmatprep.subr.bf16.mxu0 0
      %705 = vmatpush2.bf16.msra.mxu0 %v585
      %706 = vmatprep.mubr.bf16.mxu0 %v420
      %707 = vmatmul.mubr.bf16.gmra.mxu0 %v419
      %v708 = vpop.f32.mrf.mxu0
      %v709 = vadd.f32 %v660, %v708
      %v710 = vpop.f32.mrf.mxu0
      %v711 = vpop.f32.mrf.mxu0
      %v712 = vadd.f32 %v663, %v711
      %v713 = vpop.f32.mrf.mxu0
      %714 = vmatprep.mubr.bf16.mxu0 %v424
      %715 = vmatmul.mubr.bf16.gmra.mxu0 %v423
      %v716 = vpop.f32.mrf.mxu0
      %v717 = vadd.f32 %v668, %v716
      %v718 = vpop.f32.mrf.mxu0
      %v719 = vpop.f32.mrf.mxu0
      %v720 = vadd.f32 %v671, %v719
      %v721 = vpop.f32.mrf.mxu0
      %722 = vdwg.mxu0
      %v723 = vadd.f32 %v317, %v709
      %v724 = vadd.f32 %v318, %v712
      %v725 = vadd.f32 %v319, %v717
      %v726 = vadd.f32 %v320, %v720
      %vm727 = vcmask 523264
      %728 = vst.msk [vmem:[#allocation2] sm:$0xff] %vm727, %v723
      %729 = vst.msk [vmem:[#allocation2 + $0x8] sm:$0xff] %vm727, %v724
      %730 = vst.msk [vmem:[#allocation2 + $0x10] sm:$0xff] %vm727, %v725
      %731 = vst.msk [vmem:[#allocation2 + $0x18] sm:$0xff] %vm727, %v726
      // Predicated region
      $region41: #{generator_forward.11} parent=31 // pred_check
        %p732 = pneg %p298
      $region42: #{generator_forward.11} parent=31 // pred_check_branch
        %734 = sbr.rel (%p732) target = $region44
      $region43: #{generator_forward.11} parent=31 // pred_region
        %v735 = vld [vmem:[#allocation2] sm:$0xff]
        %v736 = vld [vmem:[#allocation2 + $0x8] sm:$0xff]
        %v737 = vld [vmem:[#allocation2 + $0x10] sm:$0xff]
        %v738 = vld [vmem:[#allocation2 + $0x18] sm:$0xff]
        %v739 = vld [vmem:[%s2] sm:$0x1]
        %v741 = vlaneseq
        %v742 = vshrl.u32 %v741, 7
        %v743 = vsub.s32 0, %v742
        %v744 = vrot.slane %v739, %v743
        %v746 = vadd.f32 %v735, %v744
        %v747 = vadd.f32 %v736, %v744
        %v748 = vadd.f32 %v737, %v744
        %v749 = vadd.f32 %v738, %v744
        %750 = vst.msk [vmem:[%s295] sm:$0xff] %vm727, %v746
        %751 = vst.msk [vmem:[%s295 + $0x8] sm:$0xff] %vm727, %v747
        %752 = vst.msk [vmem:[%s295 + $0x10] sm:$0xff] %vm727, %v748
        %753 = vst.msk [vmem:[%s295 + $0x18] sm:$0xff] %vm727, %v749
        %v754 = vld [vmem:[%s4] sm:$0x3]
        %v755 = vsel %vm727, %v746, 0.0
        %v756 = vsel %vm727, %v747, 0.0
        %v757 = vadd.f32 %v755, %v756
        %v758 = vsel %vm727, %v748, 0.0
        %v759 = vadd.f32 %v757, %v758
        %v760 = vsel %vm727, %v749, 0.0
        %v761 = vadd.f32 %v759, %v760
        %v762 = vrot.slane %v761, 4
        %v763 = vadd.f32 %v761, %v762
        %v764 = vrot.slane %v763, 2
        %v765 = vadd.f32 %v763, %v764
        %v766 = vrot.slane %v765, 1
        %v767 = vadd.f32 %v765, %v766
        %v768 = vmul.f32 %v746, %v746
        %v769 = vmul.f32 %v747, %v747
        %v770 = vmul.f32 %v748, %v748
        %v771 = vmul.f32 %v749, %v749
        %v772 = vsel %vm727, %v768, 0.0
        %v773 = vsel %vm727, %v769, 0.0
        %v774 = vadd.f32 %v772, %v773
        %v775 = vsel %vm727, %v770, 0.0
        %v776 = vadd.f32 %v774, %v775
        %v777 = vsel %vm727, %v771, 0.0
        %v778 = vadd.f32 %v776, %v777
        %v779 = vrot.slane %v778, 4
        %v780 = vadd.f32 %v778, %v779
        %v781 = vrot.slane %v780, 2
        %v782 = vadd.f32 %v780, %v781
        %v783 = vrot.slane %v782, 1
        %v784 = vadd.f32 %v782, %v783
        %vm785 = vcmask 1040384
        %v786 = vsel %vm785, %v767, %v784
        %v787 = vadd.f32 %v754, %v786
        %vm788 = vcmask 517120
        %789 = vst.msk [vmem:[%s4] sm:$0x3] %vm788, %v787
      $region44: #{generator_forward.11} parent=31 // pred_fallthru
        _
      %s790 = smul.u32 4, %s22
      %p791 = scmp.lt.s32.totalorder %s21, 3
      %s792 = scalar_select %p791, %s21, 3
      %p793 = scmp.lt.s32.totalorder %s790, 3
      %s794 = scalar_select %p793, %s790, 3
      %s795 = smul.addr %s792, 4
      %s796 = sadd.s32 %s794, %s795
      %s797 = smul.addr %s796, 8
      %s798 = scalar_lea.vmem %s3, %s797
      // Predicated region
      $region45: #{generator_forward.11} parent=31 // pred_check
        %p799 = pneg %p134
      $region46: #{generator_forward.11} parent=31 // pred_check_branch
        %801 = sbr.rel (%p799) target = $region48
      $region47: #{generator_forward.11} parent=31 // pred_region
        %s802 = smul.u32 4, %s22
      $region48: #{generator_forward.11} parent=31 // pred_fallthru
        _
      // Predicated region
      $region49: #{generator_forward.11} parent=31 // pred_check
        %p803 = pneg %p155
      $region50: #{generator_forward.11} parent=31 // pred_check_branch
        %805 = sbr.rel (%p803) target = $region52
      $region51: #{generator_forward.11} parent=31 // pred_region
        _
      $region52: #{generator_forward.11} parent=31 // pred_fallthru
        _
      // Predicated region
      $region53: #{generator_forward.11} parent=31 // pred_check
        %p806 = pneg %p155
      $region54: #{generator_forward.11} parent=31 // pred_check_branch
        %808 = sbr.rel (%p806) target = $region56
      $region55: #{generator_forward.11} parent=31 // pred_region
        _
      $region56: #{generator_forward.11} parent=31 // pred_fallthru
        _
    $region32: #{generator_forward.11} parent=5 // pred_fallthru
      _
    %p809 = scmp.le.s32.totalorder 2, %s11
    // Predicated region
    $region57: #{generator_forward.11} parent=5 // pred_check
      %p810 = pneg %p809
    $region58: #{generator_forward.11} parent=5 // pred_check_branch
      %812 = sbr.rel (%p810) target = $region60
    $region59: #{generator_forward.11} parent=5 // pred_region
      %s813 = ssub.s32 %s11, 2
      // Predicated region
      $region61: #{generator_forward.11} parent=59 // pred_check
        %p814 = pneg %p140
      $region62: #{generator_forward.11} parent=59 // pred_check_branch
        %816 = sbr.rel (%p814) target = $region64
      $region63: #{generator_forward.11} parent=59 // pred_region
        %s817 = smul.u32 4, %s25
        %p818 = scmp.lt.s32.totalorder %s24, 3
        %s819 = scalar_select %p818, %s24, 3
        %p820 = scmp.lt.s32.totalorder %s817, 3
        %s821 = scalar_select %p820, %s817, 3
        %s822 = smul.addr %s819, 4
        %s823 = sadd.s32 %s821, %s822
        %s824 = smul.addr %s823, 8
        %s825 = scalar_lea.vmem %s3, %s824
      $region64: #{generator_forward.11} parent=59 // pred_fallthru
        _
    $region60: #{generator_forward.11} parent=5 // pred_fallthru
      _
  $region6: #{generator_forward.11} parent=0 // loop_footer
    %s15 = sadd.s32 1, %s11
  $region7: #{generator_forward.11} parent=0 // loop_footer_branch
    %10 = sbr.rel target = $region3
  $region8: #{generator_forward.11} parent=0 // loop_exit
    _

// kernel: generator_forward.13
$region0: #{generator_forward.13}
  #allocation0 [shape = 'u32[]', space=smem, size = 0x4, offset = 0x4, fixed_abs, tag = 'smem constant byte address 0x4 - core index']
  #allocation1 [shape = 'u32[144,128]{1,0:T(1,128)}', space=vmem, size = 0x12000, scoped, tag = 'internal scratch']
  #allocation2 [shape = 'f32[128,32]{1,0:T(8,128)}', space=vmem, size = 0x10000, scoped, tag = 'scratch operand']
  %s0 = inlined_call_operand.vmem [shape: bf16[4,128,256], index: 0, kind: input, shape index: {}]
  %s1 = inlined_call_operand.vmem [shape: bf16[4,256,32], index: 1, kind: input, shape index: {}]
  %s2 = inlined_call_operand.vmem [shape: f32[1,32], index: 2, kind: input, shape index: {}]
  %s3 = inlined_call_operand.vmem [shape: f32[4,128,32], index: 3, kind: output, shape index: {0}]
  %s4 = inlined_call_operand.vmem [shape: f32[2,32], index: 4, kind: output, shape index: {1}]
  %5 = xla_tuple %s3, %s4
  %s6 = sld [smem:[#allocation0]]
  $region65: #{generator_forward.13} parent=0
    _
  %s8 = ssub.s32 1, %s6
  %s9 = scalar_select 0, %s8, %s6
  loop: start=0, step=1, limit=6
  $region2: #{generator_forward.13} parent=0 // loop_pre_header
    _
  $region3: #{generator_forward.13} parent=0 // loop_header
    %s11 = sphi 0, %s15
    %p12 = scmp.ge.s32.totalorder %s11, 6
    %s18 = sphi 0, %s37
    %s19 = sphi 0, %s33
    %s20 = sphi 0, %s29
    %s21 = sphi 0, %s18
    %s22 = sphi 0, %s19
    %s23 = sphi 0, %s20
    %s24 = sphi 0, %s21
    %s25 = sphi 0, %s22
    %s26 = sphi 0, %s23
    %s44 = sphi 0, %s46
    %s47 = sphi 0, %s44
    %s48 = sphi 0, %s47
    %s64 = sphi 0, %s48
    %s72 = sphi 0, %s74
    %s75 = sphi 0, %s72
    %s76 = sphi 0, %s75
    %s92 = sphi 0, %s76
    %s96 = sphi 0, %s96
    %s98 = sphi 0, %s96
    %s99 = sphi 0, %s98
    %s113 = sphi 0, %s99
    %s121 = sphi 0, %s123
    %s124 = sphi 0, %s121
    %s125 = sphi 0, %s124
    %s141 = sphi 0, %s125
    %s145 = sphi 0, %s145
    %s147 = sphi 0, %s145
    %s148 = sphi 0, %s147
    %s162 = sphi 0, %s148
  $region4: #{generator_forward.13} parent=0 // loop_header_branch
    %14 = sbr.rel (%p12) target = $region8
  $region5: #{generator_forward.13} parent=0 // loop_body
    %s16 = ssub.s32 %s11, 1
    %s17 = ssub.s32 %s11, 2
    %s27 = sadd.s32 1, %s20
    %p28 = scmp.ge.s32.totalorder %s27, 1
    %s29 = scalar_select %p28, 0, %s27
    %s30 = sadd.s32 1, %s19
    %s31 = scalar_select %p28, %s30, %s19
    %p32 = scmp.ge.s32.totalorder %s31, 1
    %s33 = scalar_select %p32, 0, %s31
    %s34 = sadd.s32 1, %s18
    %s35 = scalar_select %p32, %s34, %s18
    %p36 = scmp.ge.s32.totalorder %s35, 4
    %s37 = scalar_select %p36, 0, %s35
    %s38 = ssub.s32 %s18, %s37
    %s39 = ssub.s32 %s19, %s33
    %s40 = sor.u32 %s38, %s39
    %s41 = ssub.s32 %s20, %s29
    %s42 = sor.u32 %s40, %s41
    %p43 = scmp.eq.s32.totalorder %s42, 0
    %s45 = sadd.s32 %s44, 1
    %s46 = scalar_select %p43, %s44, %s45
    %p49 = pneg %p43
    %p50 = scmp.eq.s32.totalorder %s11, 3
    %p51 = por %p49, %p50
    %p52 = scmp.ne.s32.totalorder %s44, %s47
    %p53 = scmp.eq.s32.totalorder %s11, 0
    %p54 = por %p52, %p53
    %p55 = scmp.ne.s32.totalorder %s44, %s47
    %p56 = scmp.eq.s32.totalorder %s16, 3
    %p57 = por %p55, %p56
    %p58 = scmp.ne.s32.totalorder %s47, %s48
    %p59 = scmp.eq.s32.totalorder %s16, 0
    %p60 = por %p58, %p59
    %p61 = scmp.ne.s32.totalorder %s47, %s48
    %p62 = scmp.eq.s32.totalorder %s17, 3
    %p63 = por %p61, %p62
    %p65 = scmp.ne.s32.totalorder %s48, %s64
    %p66 = scmp.eq.s32.totalorder %s17, 0
    %p67 = por %p65, %p66
    %s68 = ssub.s32 %s18, %s37
    %s69 = ssub.s32 %s20, %s29
    %s70 = sor.u32 %s68, %s69
    %p71 = scmp.eq.s32.totalorder %s70, 0
    %s73 = sadd.s32 %s72, 1
    %s74 = scalar_select %p71, %s72, %s73
    %p77 = pneg %p71
    %p78 = scmp.eq.s32.totalorder %s11, 3
    %p79 = por %p77, %p78
    %p80 = scmp.ne.s32.totalorder %s72, %s75
    %p81 = scmp.eq.s32.totalorder %s11, 0
    %p82 = por %p80, %p81
    %p83 = scmp.ne.s32.totalorder %s72, %s75
    %p84 = scmp.eq.s32.totalorder %s16, 3
    %p85 = por %p83, %p84
    %p86 = scmp.ne.s32.totalorder %s75, %s76
    %p87 = scmp.eq.s32.totalorder %s16, 0
    %p88 = por %p86, %p87
    %p89 = scmp.ne.s32.totalorder %s75, %s76
    %p90 = scmp.eq.s32.totalorder %s17, 3
    %p91 = por %p89, %p90
    %p93 = scmp.ne.s32.totalorder %s76, %s92
    %p94 = scmp.eq.s32.totalorder %s17, 0
    %p95 = por %p93, %p94
    %s97 = sadd.s32 %s96, 1
    %p100 = scmp.eq.s32.totalorder %s11, 3
    %p101 = scmp.ne.s32.totalorder %s96, %s98
    %p102 = scmp.eq.s32.totalorder %s11, 0
    %p103 = por %p101, %p102
    %p104 = scmp.ne.s32.totalorder %s96, %s98
    %p105 = scmp.eq.s32.totalorder %s16, 3
    %p106 = por %p104, %p105
    %p107 = scmp.ne.s32.totalorder %s98, %s99
    %p108 = scmp.eq.s32.totalorder %s16, 0
    %p109 = por %p107, %p108
    %p110 = scmp.ne.s32.totalorder %s98, %s99
    %p111 = scmp.eq.s32.totalorder %s17, 3
    %p112 = por %p110, %p111
    %p114 = scmp.ne.s32.totalorder %s99, %s113
    %p115 = scmp.eq.s32.totalorder %s17, 0
    %p116 = por %p114, %p115
    %s117 = ssub.s32 %s18, %s37
    %s118 = ssub.s32 %s19, %s33
    %s119 = sor.u32 %s117, %s118
    %p120 = scmp.eq.s32.totalorder %s119, 0
    %s122 = sadd.s32 %s121, 1
    %s123 = scalar_select %p120, %s121, %s122
    %p126 = pneg %p120
    %p127 = scmp.eq.s32.totalorder %s11, 3
    %p128 = por %p126, %p127
    %p129 = scmp.ne.s32.totalorder %s121, %s124
    %p130 = scmp.eq.s32.totalorder %s11, 0
    %p131 = por %p129, %p130
    %p132 = scmp.ne.s32.totalorder %s121, %s124
    %p133 = scmp.eq.s32.totalorder %s16, 3
    %p134 = por %p132, %p133
    %p135 = scmp.ne.s32.totalorder %s124, %s125
    %p136 = scmp.eq.s32.totalorder %s16, 0
    %p137 = por %p135, %p136
    %p138 = scmp.ne.s32.totalorder %s124, %s125
    %p139 = scmp.eq.s32.totalorder %s17, 3
    %p140 = por %p138, %p139
    %p142 = scmp.ne.s32.totalorder %s125, %s141
    %p143 = scmp.eq.s32.totalorder %s17, 0
    %p144 = por %p142, %p143
    %s146 = sadd.s32 %s145, 1
    %p149 = scmp.eq.s32.totalorder %s11, 3
    %p150 = scmp.ne.s32.totalorder %s145, %s147
    %p151 = scmp.eq.s32.totalorder %s11, 0
    %p152 = por %p150, %p151
    %p153 = scmp.ne.s32.totalorder %s145, %s147
    %p154 = scmp.eq.s32.totalorder %s16, 3
    %p155 = por %p153, %p154
    %p156 = scmp.ne.s32.totalorder %s147, %s148
    %p157 = scmp.eq.s32.totalorder %s16, 0
    %p158 = por %p156, %p157
    %p159 = scmp.ne.s32.totalorder %s147, %s148
    %p160 = scmp.eq.s32.totalorder %s17, 3
    %p161 = por %p159, %p160
    %p163 = scmp.ne.s32.totalorder %s148, %s162
    %p164 = scmp.eq.s32.totalorder %s17, 0
    %p165 = por %p163, %p164
    %p166 = scmp.le.s32.totalorder 1, %s11
    %p167 = scmp.lt.s32.totalorder %s11, 5
    %p168 = pnand %p166, %p167
    %p169 = pneg %p168
    // Predicated region
    $region9: #{generator_forward.13} parent=5 // pred_check
      _
    $region10: #{generator_forward.13} parent=5 // pred_check_branch
      %171 = sbr.rel (%p168) target = $region12
    $region11: #{generator_forward.13} parent=5 // pred_region
      %s172 = ssub.s32 %s11, 1
      // Predicated region
      $region13: #{generator_forward.13} parent=11 // pred_check
        %p173 = pneg %p109
      $region14: #{generator_forward.13} parent=11 // pred_check_branch
        %175 = sbr.rel (%p173) target = $region16
      $region15: #{generator_forward.13} parent=11 // pred_region
        _
      $region16: #{generator_forward.13} parent=11 // pred_fallthru
        _
    $region12: #{generator_forward.13} parent=5 // pred_fallthru
      _
    %p176 = scmp.lt.s32.totalorder %s11, 4
    // Predicated region
    $region17: #{generator_forward.13} parent=5 // pred_check
      %p177 = pneg %p176
    $region18: #{generator_forward.13} parent=5 // pred_check_branch
      %179 = sbr.rel (%p177) target = $region20
    $region19: #{generator_forward.13} parent=5 // pred_region
      // Predicated region
      $region21: #{generator_forward.13} parent=19 // pred_check
        %p180 = pneg %p54
      $region22: #{generator_forward.13} parent=19 // pred_check_branch
        %182 = sbr.rel (%p180) target = $region24
      $region23: #{generator_forward.13} parent=19 // pred_region
        %s183 = smul.u32 16, %s19
        %s184 = smul.u32 2, %s20
        %p185 = scmp.lt.s32.totalorder %s18, 3
        %s186 = scalar_select %p185, %s18, 3
        %p187 = scmp.lt.s32.totalorder %s183, 15
        %s188 = scalar_select %p187, %s183, 15
        %p189 = scmp.lt.s32.totalorder %s184, 1
        %s190 = scalar_select %p189, %s184, 1
        %s191 = smul.addr %s188, 2
        %s192 = sadd.s32 %s190, %s191
        %s193 = smul.addr %s186, 32
        %s194 = sadd.s32 %s192, %s193
        %s195 = smul.addr %s194, 4
        %s196 = scalar_lea.vmem %s0, %s195
        %s197 = smul.u32 16, %s19
        %s198 = smul.u32 2, %s20
      $region24: #{generator_forward.13} parent=19 // pred_fallthru
        _
      // Predicated region
      $region25: #{generator_forward.13} parent=19 // pred_check
        %p199 = pneg %p82
      $region26: #{generator_forward.13} parent=19 // pred_check_branch
        %201 = sbr.rel (%p199) target = $region28
      $region27: #{generator_forward.13} parent=19 // pred_region
        %s202 = smul.u32 32, %s20
        %p203 = scmp.lt.s32.totalorder %s18, 3
        %s204 = scalar_select %p203, %s18, 3
        %p205 = scmp.lt.s32.totalorder %s202, 31
        %s206 = scalar_select %p205, %s202, 31
        %s207 = smul.addr %s204, 32
        %s208 = sadd.s32 %s206, %s207
        %s209 = smul.addr %s208, 4
        %s210 = scalar_lea.vmem %s1, %s209
        %s211 = smul.u32 32, %s20
      $region28: #{generator_forward.13} parent=19 // pred_fallthru
        _
    $region20: #{generator_forward.13} parent=5 // pred_fallthru
      _
    %p212 = scmp.le.s32.totalorder 1, %s11
    %p213 = scmp.lt.s32.totalorder %s11, 5
    %p214 = pnand %p212, %p213
    %p215 = pneg %p214
    // Predicated region
    $region29: #{generator_forward.13} parent=5 // pred_check
      _
    $region30: #{generator_forward.13} parent=5 // pred_check_branch
      %217 = sbr.rel (%p214) target = $region32
    $region31: #{generator_forward.13} parent=5 // pred_region
      %s218 = ssub.s32 %s11, 1
      %s219 = smul.u32 16, %s22
      %s220 = smul.u32 2, %s23
      %p221 = scmp.lt.s32.totalorder %s21, 3
      %s222 = scalar_select %p221, %s21, 3
      %p223 = scmp.lt.s32.totalorder %s219, 15
      %s224 = scalar_select %p223, %s219, 15
      %p225 = scmp.lt.s32.totalorder %s220, 1
      %s226 = scalar_select %p225, %s220, 1
      %s227 = smul.addr %s224, 2
      %s228 = sadd.s32 %s226, %s227
      %s229 = smul.addr %s222, 32
      %s230 = sadd.s32 %s228, %s229
      %s231 = smul.addr %s230, 4
      %s232 = scalar_lea.vmem %s0, %s231
      %p233 = pneg %p60
      %p234 = pneg %p57
      %s235 = smul.u32 32, %s23
      %p236 = scmp.lt.s32.totalorder %s21, 3
      %s237 = scalar_select %p236, %s21, 3
      %p238 = scmp.lt.s32.totalorder %s235, 31
      %s239 = scalar_select %p238, %s235, 31
      %s240 = smul.addr %s237, 32
      %s241 = sadd.s32 %s239, %s240
      %s242 = smul.addr %s241, 4
      %s243 = scalar_lea.vmem %s1, %s242
      %p244 = pneg %p88
      %p245 = pneg %p85
      %p246 = pneg %p109
      %p247 = pneg %p106
      %p248 = pneg %p137
      %p249 = pneg %p134
      %s250 = smul.u32 16, %s22
      %p251 = scmp.lt.s32.totalorder %s21, 3
      %s252 = scalar_select %p251, %s21, 3
      %p253 = scmp.lt.s32.totalorder %s250, 15
      %s254 = scalar_select %p253, %s250, 15
      %s255 = smul.addr %s252, 16
      %s256 = sadd.s32 %s254, %s255
      %s257 = smul.addr %s256, 8
      %s258 = scalar_lea.vmem %s3, %s257
      %p259 = pneg %p158
      %p260 = pneg %p155
      %s261 = smul.u32 16, %s22
      %s262 = smul.u32 2, %s23
      %p263 = scmp.lt.s32.totalorder %s21, 3
      %s264 = scalar_select %p263, %s21, 3
      %p265 = scmp.lt.s32.totalorder %s261, 15
      %s266 = scalar_select %p265, %s261, 15
      %p267 = scmp.lt.s32.totalorder %s262, 1
      %s268 = scalar_select %p267, %s262, 1
      %s269 = smul.addr %s266, 2
      %s270 = sadd.s32 %s268, %s269
      %s271 = smul.addr %s264, 32
      %s272 = sadd.s32 %s270, %s271
      %s273 = smul.addr %s272, 4
      %s274 = scalar_lea.vmem %s0, %s273
      %s275 = smul.u32 16, %s22
      %s276 = smul.u32 2, %s23
      %s277 = smul.u32 32, %s23
      %p278 = scmp.lt.s32.totalorder %s21, 3
      %s279 = scalar_select %p278, %s21, 3
      %p280 = scmp.lt.s32.totalorder %s277, 31
      %s281 = scalar_select %p280, %s277, 31
      %s282 = smul.addr %s279, 32
      %s283 = sadd.s32 %s281, %s282
      %s284 = smul.addr %s283, 4
      %s285 = scalar_lea.vmem %s1, %s284
      %s286 = smul.u32 32, %s23
      %s287 = smul.u32 16, %s22
      %p288 = scmp.lt.s32.totalorder %s21, 3
      %s289 = scalar_select %p288, %s21, 3
      %p290 = scmp.lt.s32.totalorder %s287, 15
      %s291 = scalar_select %p290, %s287, 15
      %s292 = smul.addr %s289, 16
      %s293 = sadd.s32 %s291, %s292
      %s294 = smul.addr %s293, 8
      %s295 = scalar_lea.vmem %s3, %s294
      %s296 = smul.u32 16, %s22
      %p298 = scmp.eq.s32.totalorder %s23, 0
      // Predicated region
      $region33: #{generator_forward.13} parent=31 // pred_check
        %p299 = pneg %p298
      $region34: #{generator_forward.13} parent=31 // pred_check_branch
        %301 = sbr.rel (%p299) target = $region36
      $region35: #{generator_forward.13} parent=31 // pred_region
        %vm302 = vcmask 261120
        %303 = vst.msk [vmem:[#allocation2] sm:$0xff] %vm302, 0.0
        %304 = vst.msk [vmem:[#allocation2 + $0x8] sm:$0xff] %vm302, 0.0
        %305 = vst.msk [vmem:[#allocation2 + $0x10] sm:$0xff] %vm302, 0.0
        %306 = vst.msk [vmem:[#allocation2 + $0x18] sm:$0xff] %vm302, 0.0
        %307 = vst.msk [vmem:[#allocation2 + $0x20] sm:$0xff] %vm302, 0.0
        %308 = vst.msk [vmem:[#allocation2 + $0x28] sm:$0xff] %vm302, 0.0
        %309 = vst.msk [vmem:[#allocation2 + $0x30] sm:$0xff] %vm302, 0.0
        %310 = vst.msk [vmem:[#allocation2 + $0x38] sm:$0xff] %vm302, 0.0
        %311 = vst.msk [vmem:[#allocation2 + $0x40] sm:$0xff] %vm302, 0.0
        %312 = vst.msk [vmem:[#allocation2 + $0x48] sm:$0xff] %vm302, 0.0
        %313 = vst.msk [vmem:[#allocation2 + $0x50] sm:$0xff] %vm302, 0.0
        %314 = vst.msk [vmem:[#allocation2 + $0x58] sm:$0xff] %vm302, 0.0
        %315 = vst.msk [vmem:[#allocation2 + $0x60] sm:$0xff] %vm302, 0.0
        %316 = vst.msk [vmem:[#allocation2 + $0x68] sm:$0xff] %vm302, 0.0
        %317 = vst.msk [vmem:[#allocation2 + $0x70] sm:$0xff] %vm302, 0.0
        %318 = vst.msk [vmem:[#allocation2 + $0x78] sm:$0xff] %vm302, 0.0
      $region36: #{generator_forward.13} parent=31 // pred_fallthru
        _
      %p319 = scmp.eq.s32.totalorder %s21, 0
      %p320 = scmp.eq.s32.totalorder %s22, 0
      %p321 = pnand %p319, %p320
      %p322 = pneg %p321
      %p323 = pnand %p322, %p298
      %p324 = pneg %p323
      // Predicated region
      $region37: #{generator_forward.13} parent=31 // pred_check
        _
      $region38: #{generator_forward.13} parent=31 // pred_check_branch
        %326 = sbr.rel (%p323) target = $region40
      $region39: #{generator_forward.13} parent=31 // pred_region
        %vm327 = vcmask 254976
        %328 = vst.msk [vmem:[%s4] sm:$0x3] %vm327, 0.0
      $region40: #{generator_forward.13} parent=31 // pred_fallthru
        _
      %v329 = vld [vmem:[#allocation2] sm:$0xff]
      %v330 = vld [vmem:[#allocation2 + $0x8] sm:$0xff]
      %v331 = vld [vmem:[#allocation2 + $0x10] sm:$0xff]
      %v332 = vld [vmem:[#allocation2 + $0x18] sm:$0xff]
      %v333 = vld [vmem:[#allocation2 + $0x20] sm:$0xff]
      %v334 = vld [vmem:[#allocation2 + $0x28] sm:$0xff]
      %v335 = vld [vmem:[#allocation2 + $0x30] sm:$0xff]
      %v336 = vld [vmem:[#allocation2 + $0x38] sm:$0xff]
      %v337 = vld [vmem:[#allocation2 + $0x40] sm:$0xff]
      %v338 = vld [vmem:[#allocation2 + $0x48] sm:$0xff]
      %v339 = vld [vmem:[#allocation2 + $0x50] sm:$0xff]
      %v340 = vld [vmem:[#allocation2 + $0x58] sm:$0xff]
      %v341 = vld [vmem:[#allocation2 + $0x60] sm:$0xff]
      %v342 = vld [vmem:[#allocation2 + $0x68] sm:$0xff]
      %v343 = vld [vmem:[#allocation2 + $0x70] sm:$0xff]
      %v344 = vld [vmem:[#allocation2 + $0x78] sm:$0xff]
      %v345 = vld [vmem:[%s274] sm:$0xff]
      %v346 = vld [vmem:[%s274 + $0x8] sm:$0xff]
      %v347 = vld [vmem:[%s274 + $0x10] sm:$0xff]
      %v348 = vld [vmem:[%s274 + $0x18] sm:$0xff]
      %v349 = vld [vmem:[%s274 + $0x20] sm:$0xff]
      %v350 = vld [vmem:[%s274 + $0x28] sm:$0xff]
      %v351 = vld [vmem:[%s274 + $0x30] sm:$0xff]
      %v352 = vld [vmem:[%s274 + $0x38] sm:$0xff]
      %v353 = vld [vmem:[%s274 + $0x40] sm:$0xff]
      %v354 = vld [vmem:[%s274 + $0x48] sm:$0xff]
      %v355 = vld [vmem:[%s274 + $0x50] sm:$0xff]
      %v356 = vld [vmem:[%s274 + $0x58] sm:$0xff]
      %v357 = vld [vmem:[%s274 + $0x60] sm:$0xff]
      %v358 = vld [vmem:[%s274 + $0x68] sm:$0xff]
      %v359 = vld [vmem:[%s274 + $0x70] sm:$0xff]
      %v360 = vld [vmem:[%s274 + $0x78] sm:$0xff]
      %v361 = vld [vmem:[%s285] sm:$0xf]
      %v362 = vld [vmem:[%s285 + $0x4] sm:$0xf]
      %v363 = vld [vmem:[%s285 + $0x8] sm:$0xf]
      %v364 = vld [vmem:[%s285 + $0xc] sm:$0xf]
      %v365 = vld [vmem:[%s285 + $0x10] sm:$0xf]
      %v366 = vld [vmem:[%s285 + $0x14] sm:$0xf]
      %v367 = vld [vmem:[%s285 + $0x18] sm:$0xf]
      %v368 = vld [vmem:[%s285 + $0x1c] sm:$0xf]
      %v369 = vld [vmem:[%s285 + $0x20] sm:$0xf]
      %v370 = vld [vmem:[%s285 + $0x24] sm:$0xf]
      %v371 = vld [vmem:[%s285 + $0x28] sm:$0xf]
      %v372 = vld [vmem:[%s285 + $0x2c] sm:$0xf]
      %v373 = vld [vmem:[%s285 + $0x30] sm:$0xf]
      %v374 = vld [vmem:[%s285 + $0x34] sm:$0xf]
      %v375 = vld [vmem:[%s285 + $0x38] sm:$0xf]
      %v376 = vld [vmem:[%s285 + $0x3c] sm:$0xf]
      %v377 = vld [vmem:[%s285 + $0x40] sm:$0xf]
      %v378 = vld [vmem:[%s285 + $0x44] sm:$0xf]
      %v379 = vld [vmem:[%s285 + $0x48] sm:$0xf]
      %v380 = vld [vmem:[%s285 + $0x4c] sm:$0xf]
      %v381 = vld [vmem:[%s285 + $0x50] sm:$0xf]
      %v382 = vld [vmem:[%s285 + $0x54] sm:$0xf]
      %v383 = vld [vmem:[%s285 + $0x58] sm:$0xf]
      %v384 = vld [vmem:[%s285 + $0x5c] sm:$0xf]
      %v385 = vld [vmem:[%s285 + $0x60] sm:$0xf]
      %v386 = vld [vmem:[%s285 + $0x64] sm:$0xf]
      %v387 = vld [vmem:[%s285 + $0x68] sm:$0xf]
      %v388 = vld [vmem:[%s285 + $0x6c] sm:$0xf]
      %v389 = vld [vmem:[%s285 + $0x70] sm:$0xf]
      %v390 = vld [vmem:[%s285 + $0x74] sm:$0xf]
      %v391 = vld [vmem:[%s285 + $0x78] sm:$0xf]
      %v392 = vld [vmem:[%s285 + $0x7c] sm:$0xf]
      %v409 = vunpack.c.l.b16 %v345
      %v410 = vunpack.c.h.b16 %v345
      %v411 = vunpack.c.l.b16 %v346
      %v412 = vunpack.c.h.b16 %v346
      %v413 = vunpack.c.l.b16 %v347
      %v414 = vunpack.c.h.b16 %v347
      %v415 = vunpack.c.l.b16 %v348
      %v416 = vunpack.c.h.b16 %v348
      %v417 = vunpack.c.l.b16 %v349
      %v418 = vunpack.c.h.b16 %v349
      %v419 = vunpack.c.l.b16 %v350
      %v420 = vunpack.c.h.b16 %v350
      %v421 = vunpack.c.l.b16 %v351
      %v422 = vunpack.c.h.b16 %v351
      %v423 = vunpack.c.l.b16 %v352
      %v424 = vunpack.c.h.b16 %v352
      %v425 = vunpack.c.l.b16 %v353
      %v426 = vunpack.c.h.b16 %v353
      %v427 = vunpack.c.l.b16 %v354
      %v428 = vunpack.c.h.b16 %v354
      %v429 = vunpack.c.l.b16 %v355
      %v430 = vunpack.c.h.b16 %v355
      %v431 = vunpack.c.l.b16 %v356
      %v432 = vunpack.c.h.b16 %v356
      %v433 = vunpack.c.l.b16 %v357
      %v434 = vunpack.c.h.b16 %v357
      %v435 = vunpack.c.l.b16 %v358
      %v436 = vunpack.c.h.b16 %v358
      %v437 = vunpack.c.l.b16 %v359
      %v438 = vunpack.c.h.b16 %v359
      %v439 = vunpack.c.l.b16 %v360
      %v440 = vunpack.c.h.b16 %v360
      %v441 = vpack.c.b16 %v411, %v409
      %v442 = vpack.c.b16 %v412, %v410
      %v443 = vpack.c.b16 %v415, %v413
      %v444 = vpack.c.b16 %v416, %v414
      %v445 = vpack.c.b16 %v419, %v417
      %v446 = vpack.c.b16 %v420, %v418
      %v447 = vpack.c.b16 %v423, %v421
      %v448 = vpack.c.b16 %v424, %v422
      %v449 = vpack.c.b16 %v427, %v425
      %v450 = vpack.c.b16 %v428, %v426
      %v451 = vpack.c.b16 %v431, %v429
      %v452 = vpack.c.b16 %v432, %v430
      %v453 = vpack.c.b16 %v435, %v433
      %v454 = vpack.c.b16 %v436, %v434
      %v455 = vpack.c.b16 %v439, %v437
      %v456 = vpack.c.b16 %v440, %v438
      %v505 = vunpack.c.l.b16 %v361
      %v506 = vunpack.c.l.b16 %v362
      %v507 = vunpack.c.l.b16 %v363
      %v508 = vunpack.c.l.b16 %v364
      %v509 = vunpack.c.l.b16 %v365
      %v510 = vunpack.c.l.b16 %v366
      %v511 = vunpack.c.l.b16 %v367
      %v512 = vunpack.c.l.b16 %v368
      %v513 = vunpack.c.l.b16 %v369
      %v514 = vunpack.c.l.b16 %v370
      %v515 = vunpack.c.l.b16 %v371
      %v516 = vunpack.c.l.b16 %v372
      %v517 = vunpack.c.l.b16 %v373
      %v518 = vunpack.c.l.b16 %v374
      %v519 = vunpack.c.l.b16 %v375
      %v520 = vunpack.c.l.b16 %v376
      %v521 = vunpack.c.l.b16 %v377
      %v522 = vunpack.c.l.b16 %v378
      %v523 = vunpack.c.l.b16 %v379
      %v524 = vunpack.c.l.b16 %v380
      %v525 = vunpack.c.l.b16 %v381
      %v526 = vunpack.c.l.b16 %v382
      %v527 = vunpack.c.l.b16 %v383
      %v528 = vunpack.c.l.b16 %v384
      %v529 = vunpack.c.l.b16 %v385
      %v530 = vunpack.c.l.b16 %v386
      %v531 = vunpack.c.l.b16 %v387
      %v532 = vunpack.c.l.b16 %v388
      %v533 = vunpack.c.l.b16 %v389
      %v534 = vunpack.c.l.b16 %v390
      %v535 = vunpack.c.l.b16 %v391
      %v536 = vunpack.c.l.b16 %v392
      %v537 = vpack.c.b16 %v506, %v505
      %v538 = vpack.c.b16 %v508, %v507
      %v539 = vpack.c.b16 %v510, %v509
      %v540 = vpack.c.b16 %v512, %v511
      %v541 = vpack.c.b16 %v514, %v513
      %v542 = vpack.c.b16 %v516, %v515
      %v543 = vpack.c.b16 %v518, %v517
      %v544 = vpack.c.b16 %v520, %v519
      %v545 = vpack.c.b16 %v522, %v521
      %v546 = vpack.c.b16 %v524, %v523
      %v547 = vpack.c.b16 %v526, %v525
      %v548 = vpack.c.b16 %v528, %v527
      %v549 = vpack.c.b16 %v530, %v529
      %v550 = vpack.c.b16 %v532, %v531
      %v551 = vpack.c.b16 %v534, %v533
      %v552 = vpack.c.b16 %v536, %v535
      %569 = vmatprep.subr.bf16.mxu0 0
      %570 = vmatpush1.bf16.msra.mxu0 %v544
      %571 = vmatprep.subr.bf16.mxu0 0
      %572 = vmatpush1.bf16.msra.mxu0 %v543
      %573 = vmatprep.subr.bf16.mxu0 0
      %574 = vmatpush1.bf16.msra.mxu0 %v542
      %575 = vmatprep.subr.bf16.mxu0 0
      %576 = vmatpush1.bf16.msra.mxu0 %v541
      %577 = vmatprep.subr.bf16.mxu0 0
      %578 = vmatpush1.bf16.msra.mxu0 %v540
      %579 = vmatprep.subr.bf16.mxu0 0
      %580 = vmatpush1.bf16.msra.mxu0 %v539
      %581 = vmatprep.subr.bf16.mxu0 0
      %582 = vmatpush1.bf16.msra.mxu0 %v538
      %583 = vmatprep.subr.bf16.mxu0 0
      %584 = vmatpush1.bf16.msra.mxu0 %v537
      %585 = vmatprep.subr.bf16.mxu0 0
      %586 = vmatpush2.bf16.msra.mxu0 %v552
      %587 = vmatprep.subr.bf16.mxu0 0
      %588 = vmatpush2.bf16.msra.mxu0 %v551
      %589 = vmatprep.subr.bf16.mxu0 0
      %590 = vmatpush2.bf16.msra.mxu0 %v550
      %591 = vmatprep.subr.bf16.mxu0 0
      %592 = vmatpush2.bf16.msra.mxu0 %v549
      %593 = vmatprep.subr.bf16.mxu0 0
      %594 = vmatpush2.bf16.msra.mxu0 %v548
      %595 = vmatprep.subr.bf16.mxu0 0
      %596 = vmatpush2.bf16.msra.mxu0 %v547
      %597 = vmatprep.subr.bf16.mxu0 0
      %598 = vmatpush2.bf16.msra.mxu0 %v546
      %599 = vmatprep.subr.bf16.mxu0 0
      %600 = vmatpush2.bf16.msra.mxu0 %v545
      %601 = vmatprep.mubr.bf16.mxu0 %v442
      %602 = vmatmul.mubr.bf16.gmra.mxu0 %v441
      %v603 = vpop.f32.mrf.mxu0
      %v604 = vadd.f32 0.0, %v603
      %v605 = vpop.f32.mrf.mxu0
      %v606 = vpop.f32.mrf.mxu0
      %v607 = vadd.f32 0.0, %v606
      %v608 = vpop.f32.mrf.mxu0
      %609 = vmatprep.mubr.bf16.mxu0 %v444
      %610 = vmatmul.mubr.bf16.gmra.mxu0 %v443
      %v611 = vpop.f32.mrf.mxu0
      %v612 = vadd.f32 0.0, %v611
      %v613 = vpop.f32.mrf.mxu0
      %v614 = vpop.f32.mrf.mxu0
      %v615 = vadd.f32 0.0, %v614
      %v616 = vpop.f32.mrf.mxu0
      %617 = vmatprep.mubr.bf16.mxu0 %v446
      %618 = vmatmul.mubr.bf16.gmra.mxu0 %v445
      %v619 = vpop.f32.mrf.mxu0
      %v620 = vadd.f32 0.0, %v619
      %v621 = vpop.f32.mrf.mxu0
      %v622 = vpop.f32.mrf.mxu0
      %v623 = vadd.f32 0.0, %v622
      %v624 = vpop.f32.mrf.mxu0
      %625 = vmatprep.mubr.bf16.mxu0 %v448
      %626 = vmatmul.mubr.bf16.gmra.mxu0 %v447
      %v627 = vpop.f32.mrf.mxu0
      %v628 = vadd.f32 0.0, %v627
      %v629 = vpop.f32.mrf.mxu0
      %v630 = vpop.f32.mrf.mxu0
      %v631 = vadd.f32 0.0, %v630
      %v632 = vpop.f32.mrf.mxu0
      %633 = vmatprep.mubr.bf16.mxu0 %v450
      %634 = vmatmul.mubr.bf16.gmra.mxu0 %v449
      %v635 = vpop.f32.mrf.mxu0
      %v636 = vadd.f32 0.0, %v635
      %v637 = vpop.f32.mrf.mxu0
      %v638 = vpop.f32.mrf.mxu0
      %v639 = vadd.f32 0.0, %v638
      %v640 = vpop.f32.mrf.mxu0
      %641 = vmatprep.mubr.bf16.mxu0 %v452
      %642 = vmatmul.mubr.bf16.gmra.mxu0 %v451
      %v643 = vpop.f32.mrf.mxu0
      %v644 = vadd.f32 0.0, %v643
      %v645 = vpop.f32.mrf.mxu0
      %v646 = vpop.f32.mrf.mxu0
      %v647 = vadd.f32 0.0, %v646
      %v648 = vpop.f32.mrf.mxu0
      %649 = vmatprep.mubr.bf16.mxu0 %v454
      %650 = vmatmul.mubr.bf16.gmra.mxu0 %v453
      %v651 = vpop.f32.mrf.mxu0
      %v652 = vadd.f32 0.0, %v651
      %v653 = vpop.f32.mrf.mxu0
      %v654 = vpop.f32.mrf.mxu0
      %v655 = vadd.f32 0.0, %v654
      %v656 = vpop.f32.mrf.mxu0
      %657 = vmatprep.mubr.bf16.mxu0 %v456
      %658 = vmatmul.mubr.bf16.gmra.mxu0 %v455
      %v659 = vpop.f32.mrf.mxu0
      %v660 = vadd.f32 0.0, %v659
      %v661 = vpop.f32.mrf.mxu0
      %v662 = vpop.f32.mrf.mxu0
      %v663 = vadd.f32 0.0, %v662
      %v664 = vpop.f32.mrf.mxu0
      %665 = vdwg.mxu0
      %v666 = vadd.f32 %v329, %v604
      %v667 = vadd.f32 %v330, %v607
      %v668 = vadd.f32 %v331, %v612
      %v669 = vadd.f32 %v332, %v615
      %v670 = vadd.f32 %v333, %v620
      %v671 = vadd.f32 %v334, %v623
      %v672 = vadd.f32 %v335, %v628
      %v673 = vadd.f32 %v336, %v631
      %v674 = vadd.f32 %v337, %v636
      %v675 = vadd.f32 %v338, %v639
      %v676 = vadd.f32 %v339, %v644
      %v677 = vadd.f32 %v340, %v647
      %v678 = vadd.f32 %v341, %v652
      %v679 = vadd.f32 %v342, %v655
      %v680 = vadd.f32 %v343, %v660
      %v681 = vadd.f32 %v344, %v663
      %vm682 = vcmask 261120
      %683 = vst.msk [vmem:[#allocation2] sm:$0xff] %vm682, %v666
      %684 = vst.msk [vmem:[#allocation2 + $0x8] sm:$0xff] %vm682, %v667
      %685 = vst.msk [vmem:[#allocation2 + $0x10] sm:$0xff] %vm682, %v668
      %686 = vst.msk [vmem:[#allocation2 + $0x18] sm:$0xff] %vm682, %v669
      %687 = vst.msk [vmem:[#allocation2 + $0x20] sm:$0xff] %vm682, %v670
      %688 = vst.msk [vmem:[#allocation2 + $0x28] sm:$0xff] %vm682, %v671
      %689 = vst.msk [vmem:[#allocation2 + $0x30] sm:$0xff] %vm682, %v672
      %690 = vst.msk [vmem:[#allocation2 + $0x38] sm:$0xff] %vm682, %v673
      %691 = vst.msk [vmem:[#allocation2 + $0x40] sm:$0xff] %vm682, %v674
      %692 = vst.msk [vmem:[#allocation2 + $0x48] sm:$0xff] %vm682, %v675
      %693 = vst.msk [vmem:[#allocation2 + $0x50] sm:$0xff] %vm682, %v676
      %694 = vst.msk [vmem:[#allocation2 + $0x58] sm:$0xff] %vm682, %v677
      %695 = vst.msk [vmem:[#allocation2 + $0x60] sm:$0xff] %vm682, %v678
      %696 = vst.msk [vmem:[#allocation2 + $0x68] sm:$0xff] %vm682, %v679
      %697 = vst.msk [vmem:[#allocation2 + $0x70] sm:$0xff] %vm682, %v680
      %698 = vst.msk [vmem:[#allocation2 + $0x78] sm:$0xff] %vm682, %v681
      // Predicated region
      $region41: #{generator_forward.13} parent=31 // pred_check
        %p699 = pneg %p298
      $region42: #{generator_forward.13} parent=31 // pred_check_branch
        %701 = sbr.rel (%p699) target = $region44
      $region43: #{generator_forward.13} parent=31 // pred_region
        %v702 = vld [vmem:[#allocation2] sm:$0xff]
        %v703 = vld [vmem:[#allocation2 + $0x8] sm:$0xff]
        %v704 = vld [vmem:[#allocation2 + $0x10] sm:$0xff]
        %v705 = vld [vmem:[#allocation2 + $0x18] sm:$0xff]
        %v706 = vld [vmem:[#allocation2 + $0x20] sm:$0xff]
        %v707 = vld [vmem:[#allocation2 + $0x28] sm:$0xff]
        %v708 = vld [vmem:[#allocation2 + $0x30] sm:$0xff]
        %v709 = vld [vmem:[#allocation2 + $0x38] sm:$0xff]
        %v710 = vld [vmem:[#allocation2 + $0x40] sm:$0xff]
        %v711 = vld [vmem:[#allocation2 + $0x48] sm:$0xff]
        %v712 = vld [vmem:[#allocation2 + $0x50] sm:$0xff]
        %v713 = vld [vmem:[#allocation2 + $0x58] sm:$0xff]
        %v714 = vld [vmem:[#allocation2 + $0x60] sm:$0xff]
        %v715 = vld [vmem:[#allocation2 + $0x68] sm:$0xff]
        %v716 = vld [vmem:[#allocation2 + $0x70] sm:$0xff]
        %v717 = vld [vmem:[#allocation2 + $0x78] sm:$0xff]
        %v718 = vld [vmem:[%s2] sm:$0x1]
        %v720 = vlaneseq
        %v721 = vshrl.u32 %v720, 7
        %v722 = vsub.s32 0, %v721
        %v723 = vrot.slane %v718, %v722
        %v725 = vadd.f32 %v702, %v723
        %v726 = vadd.f32 %v703, %v723
        %v727 = vadd.f32 %v704, %v723
        %v728 = vadd.f32 %v705, %v723
        %v729 = vadd.f32 %v706, %v723
        %v730 = vadd.f32 %v707, %v723
        %v731 = vadd.f32 %v708, %v723
        %v732 = vadd.f32 %v709, %v723
        %v733 = vadd.f32 %v710, %v723
        %v734 = vadd.f32 %v711, %v723
        %v735 = vadd.f32 %v712, %v723
        %v736 = vadd.f32 %v713, %v723
        %v737 = vadd.f32 %v714, %v723
        %v738 = vadd.f32 %v715, %v723
        %v739 = vadd.f32 %v716, %v723
        %v740 = vadd.f32 %v717, %v723
        %741 = vst.msk [vmem:[%s295] sm:$0xff] %vm682, %v725
        %742 = vst.msk [vmem:[%s295 + $0x8] sm:$0xff] %vm682, %v726
        %743 = vst.msk [vmem:[%s295 + $0x10] sm:$0xff] %vm682, %v727
        %744 = vst.msk [vmem:[%s295 + $0x18] sm:$0xff] %vm682, %v728
        %745 = vst.msk [vmem:[%s295 + $0x20] sm:$0xff] %vm682, %v729
        %746 = vst.msk [vmem:[%s295 + $0x28] sm:$0xff] %vm682, %v730
        %747 = vst.msk [vmem:[%s295 + $0x30] sm:$0xff] %vm682, %v731
        %748 = vst.msk [vmem:[%s295 + $0x38] sm:$0xff] %vm682, %v732
        %749 = vst.msk [vmem:[%s295 + $0x40] sm:$0xff] %vm682, %v733
        %750 = vst.msk [vmem:[%s295 + $0x48] sm:$0xff] %vm682, %v734
        %751 = vst.msk [vmem:[%s295 + $0x50] sm:$0xff] %vm682, %v735
        %752 = vst.msk [vmem:[%s295 + $0x58] sm:$0xff] %vm682, %v736
        %753 = vst.msk [vmem:[%s295 + $0x60] sm:$0xff] %vm682, %v737
        %754 = vst.msk [vmem:[%s295 + $0x68] sm:$0xff] %vm682, %v738
        %755 = vst.msk [vmem:[%s295 + $0x70] sm:$0xff] %vm682, %v739
        %756 = vst.msk [vmem:[%s295 + $0x78] sm:$0xff] %vm682, %v740
        %v757 = vld [vmem:[%s4] sm:$0x3]
        %v758 = vsel %vm682, %v725, 0.0
        %v759 = vsel %vm682, %v726, 0.0
        %v760 = vadd.f32 %v758, %v759
        %v761 = vsel %vm682, %v727, 0.0
        %v762 = vadd.f32 %v760, %v761
        %v763 = vsel %vm682, %v728, 0.0
        %v764 = vadd.f32 %v762, %v763
        %v765 = vsel %vm682, %v729, 0.0
        %v766 = vadd.f32 %v764, %v765
        %v767 = vsel %vm682, %v730, 0.0
        %v768 = vadd.f32 %v766, %v767
        %v769 = vsel %vm682, %v731, 0.0
        %v770 = vadd.f32 %v768, %v769
        %v771 = vsel %vm682, %v732, 0.0
        %v772 = vadd.f32 %v770, %v771
        %v773 = vsel %vm682, %v733, 0.0
        %v774 = vadd.f32 %v772, %v773
        %v775 = vsel %vm682, %v734, 0.0
        %v776 = vadd.f32 %v774, %v775
        %v777 = vsel %vm682, %v735, 0.0
        %v778 = vadd.f32 %v776, %v777
        %v779 = vsel %vm682, %v736, 0.0
        %v780 = vadd.f32 %v778, %v779
        %v781 = vsel %vm682, %v737, 0.0
        %v782 = vadd.f32 %v780, %v781
        %v783 = vsel %vm682, %v738, 0.0
        %v784 = vadd.f32 %v782, %v783
        %v785 = vsel %vm682, %v739, 0.0
        %v786 = vadd.f32 %v784, %v785
        %v787 = vsel %vm682, %v740, 0.0
        %v788 = vadd.f32 %v786, %v787
        %v789 = vrot.slane %v788, 4
        %v790 = vadd.f32 %v788, %v789
        %v791 = vrot.slane %v790, 2
        %v792 = vadd.f32 %v790, %v791
        %v793 = vrot.slane %v792, 1
        %v794 = vadd.f32 %v792, %v793
        %v795 = vmul.f32 %v725, %v725
        %v796 = vmul.f32 %v726, %v726
        %v797 = vmul.f32 %v727, %v727
        %v798 = vmul.f32 %v728, %v728
        %v799 = vmul.f32 %v729, %v729
        %v800 = vmul.f32 %v730, %v730
        %v801 = vmul.f32 %v731, %v731
        %v802 = vmul.f32 %v732, %v732
        %v803 = vmul.f32 %v733, %v733
        %v804 = vmul.f32 %v734, %v734
        %v805 = vmul.f32 %v735, %v735
        %v806 = vmul.f32 %v736, %v736
        %v807 = vmul.f32 %v737, %v737
        %v808 = vmul.f32 %v738, %v738
        %v809 = vmul.f32 %v739, %v739
        %v810 = vmul.f32 %v740, %v740
        %v811 = vsel %vm682, %v795, 0.0
        %v812 = vsel %vm682, %v796, 0.0
        %v813 = vadd.f32 %v811, %v812
        %v814 = vsel %vm682, %v797, 0.0
        %v815 = vadd.f32 %v813, %v814
        %v816 = vsel %vm682, %v798, 0.0
        %v817 = vadd.f32 %v815, %v816
        %v818 = vsel %vm682, %v799, 0.0
        %v819 = vadd.f32 %v817, %v818
        %v820 = vsel %vm682, %v800, 0.0
        %v821 = vadd.f32 %v819, %v820
        %v822 = vsel %vm682, %v801, 0.0
        %v823 = vadd.f32 %v821, %v822
        %v824 = vsel %vm682, %v802, 0.0
        %v825 = vadd.f32 %v823, %v824
        %v826 = vsel %vm682, %v803, 0.0
        %v827 = vadd.f32 %v825, %v826
        %v828 = vsel %vm682, %v804, 0.0
        %v829 = vadd.f32 %v827, %v828
        %v830 = vsel %vm682, %v805, 0.0
        %v831 = vadd.f32 %v829, %v830
        %v832 = vsel %vm682, %v806, 0.0
        %v833 = vadd.f32 %v831, %v832
        %v834 = vsel %vm682, %v807, 0.0
        %v835 = vadd.f32 %v833, %v834
        %v836 = vsel %vm682, %v808, 0.0
        %v837 = vadd.f32 %v835, %v836
        %v838 = vsel %vm682, %v809, 0.0
        %v839 = vadd.f32 %v837, %v838
        %v840 = vsel %vm682, %v810, 0.0
        %v841 = vadd.f32 %v839, %v840
        %v842 = vrot.slane %v841, 4
        %v843 = vadd.f32 %v841, %v842
        %v844 = vrot.slane %v843, 2
        %v845 = vadd.f32 %v843, %v844
        %v846 = vrot.slane %v845, 1
        %v847 = vadd.f32 %v845, %v846
        %vm848 = vcmask 1040384
        %v849 = vsel %vm848, %v794, %v847
        %v850 = vadd.f32 %v757, %v849
        %vm851 = vcmask 254976
        %852 = vst.msk [vmem:[%s4] sm:$0x3] %vm851, %v850
      $region44: #{generator_forward.13} parent=31 // pred_fallthru
        _
      %s853 = smul.u32 16, %s22
      %p854 = scmp.lt.s32.totalorder %s21, 3
      %s855 = scalar_select %p854, %s21, 3
      %p856 = scmp.lt.s32.totalorder %s853, 15
      %s857 = scalar_select %p856, %s853, 15
      %s858 = smul.addr %s855, 16
      %s859 = sadd.s32 %s857, %s858
      %s860 = smul.addr %s859, 8
      %s861 = scalar_lea.vmem %s3, %s860
      // Predicated region
      $region45: #{generator_forward.13} parent=31 // pred_check
        %p862 = pneg %p134
      $region46: #{generator_forward.13} parent=31 // pred_check_branch
        %864 = sbr.rel (%p862) target = $region48
      $region47: #{generator_forward.13} parent=31 // pred_region
        %s865 = smul.u32 16, %s22
      $region48: #{generator_forward.13} parent=31 // pred_fallthru
        _
      // Predicated region
      $region49: #{generator_forward.13} parent=31 // pred_check
        %p866 = pneg %p155
      $region50: #{generator_forward.13} parent=31 // pred_check_branch
        %868 = sbr.rel (%p866) target = $region52
      $region51: #{generator_forward.13} parent=31 // pred_region
        _
      $region52: #{generator_forward.13} parent=31 // pred_fallthru
        _
      // Predicated region
      $region53: #{generator_forward.13} parent=31 // pred_check
        %p869 = pneg %p155
      $region54: #{generator_forward.13} parent=31 // pred_check_branch
        %871 = sbr.rel (%p869) target = $region56
      $region55: #{generator_forward.13} parent=31 // pred_region
        _
      $region56: #{generator_forward.13} parent=31 // pred_fallthru
        _
    $region32: #{generator_forward.13} parent=5 // pred_fallthru
      _
    %p872 = scmp.le.s32.totalorder 2, %s11
    // Predicated region
    $region57: #{generator_forward.13} parent=5 // pred_check
      %p873 = pneg %p872
    $region58: #{generator_forward.13} parent=5 // pred_check_branch
      %875 = sbr.rel (%p873) target = $region60
    $region59: #{generator_forward.13} parent=5 // pred_region
      %s876 = ssub.s32 %s11, 2
      // Predicated region
      $region61: #{generator_forward.13} parent=59 // pred_check
        %p877 = pneg %p140
      $region62: #{generator_forward.13} parent=59 // pred_check_branch
        %879 = sbr.rel (%p877) target = $region64
      $region63: #{generator_forward.13} parent=59 // pred_region
        %s880 = smul.u32 16, %s25
        %p881 = scmp.lt.s32.totalorder %s24, 3
        %s882 = scalar_select %p881, %s24, 3
        %p883 = scmp.lt.s32.totalorder %s880, 15
        %s884 = scalar_select %p883, %s880, 15
        %s885 = smul.addr %s882, 16
        %s886 = sadd.s32 %s884, %s885
        %s887 = smul.addr %s886, 8
        %s888 = scalar_lea.vmem %s3, %s887
      $region64: #{generator_forward.13} parent=59 // pred_fallthru
        _
    $region60: #{generator_forward.13} parent=5 // pred_fallthru
      _
  $region6: #{generator_forward.13} parent=0 // loop_footer
    %s15 = sadd.s32 1, %s11
  $region7: #{generator_forward.13} parent=0 // loop_footer_branch
    %10 = sbr.rel target = $region3
  $region8: #{generator_forward.13} parent=0 // loop_exit
    _

// kernel: generator_forward.14
$region0: #{generator_forward.14}
  #allocation0 [shape = 'u32[]', space=smem, size = 0x4, offset = 0x4, fixed_abs, tag = 'smem constant byte address 0x4 - core index']
  #allocation1 [shape = 'u32[144,128]{1,0:T(1,128)}', space=vmem, size = 0x12000, scoped, tag = 'internal scratch']
  %s0 = inlined_call_operand.vmem [shape: f32[512,32], index: 0, kind: input, shape index: {}]
  %s1 = inlined_call_operand.vmem [shape: f32[1,32], index: 1, kind: input, shape index: {}]
  %s2 = inlined_call_operand.vmem [shape: f32[1,32], index: 2, kind: input, shape index: {}]
  %s3 = inlined_call_operand.vmem [shape: f32[512,32], index: 3, kind: output, shape index: {}]
  %s4 = sld [smem:[#allocation0]]
  $region22: #{generator_forward.14} parent=0
    _
  %s6 = ssub.s32 1, %s4
  %s7 = scalar_select 0, %s6, %s4
  // Predicated region
  $region2: #{generator_forward.14} parent=0 // pred_check
    _
  $region3: #{generator_forward.14} parent=0 // pred_check_branch
    %9 = sbr.rel (0) target = $region5
  $region4: #{generator_forward.14} parent=0 // pred_region
    _
  $region5: #{generator_forward.14} parent=0 // pred_fallthru
    _
  // Predicated region
  $region6: #{generator_forward.14} parent=0 // pred_check
    _
  $region7: #{generator_forward.14} parent=0 // pred_check_branch
    %11 = sbr.rel (0) target = $region9
  $region8: #{generator_forward.14} parent=0 // pred_region
    _
  $region9: #{generator_forward.14} parent=0 // pred_fallthru
    _
  // Predicated region
  $region10: #{generator_forward.14} parent=0 // pred_check
    _
  $region11: #{generator_forward.14} parent=0 // pred_check_branch
    %13 = sbr.rel (0) target = $region13
  $region12: #{generator_forward.14} parent=0 // pred_region
    _
  $region13: #{generator_forward.14} parent=0 // pred_fallthru
    _
  %v14 = vld [vmem:[%s0] sm:$0xff]
  %v15 = vld [vmem:[%s0 + $0x8] sm:$0xff]
  %v16 = vld [vmem:[%s0 + $0x10] sm:$0xff]
  %v17 = vld [vmem:[%s0 + $0x18] sm:$0xff]
  %v18 = vld [vmem:[%s0 + $0x20] sm:$0xff]
  %v19 = vld [vmem:[%s0 + $0x28] sm:$0xff]
  %v20 = vld [vmem:[%s0 + $0x30] sm:$0xff]
  %v21 = vld [vmem:[%s0 + $0x38] sm:$0xff]
  %v22 = vld [vmem:[%s0 + $0x40] sm:$0xff]
  %v23 = vld [vmem:[%s0 + $0x48] sm:$0xff]
  %v24 = vld [vmem:[%s0 + $0x50] sm:$0xff]
  %v25 = vld [vmem:[%s0 + $0x58] sm:$0xff]
  %v26 = vld [vmem:[%s0 + $0x60] sm:$0xff]
  %v27 = vld [vmem:[%s0 + $0x68] sm:$0xff]
  %v28 = vld [vmem:[%s0 + $0x70] sm:$0xff]
  %v29 = vld [vmem:[%s0 + $0x78] sm:$0xff]
  %v30 = vld [vmem:[%s0 + $0x80] sm:$0xff]
  %v31 = vld [vmem:[%s0 + $0x88] sm:$0xff]
  %v32 = vld [vmem:[%s0 + $0x90] sm:$0xff]
  %v33 = vld [vmem:[%s0 + $0x98] sm:$0xff]
  %v34 = vld [vmem:[%s0 + $0xa0] sm:$0xff]
  %v35 = vld [vmem:[%s0 + $0xa8] sm:$0xff]
  %v36 = vld [vmem:[%s0 + $0xb0] sm:$0xff]
  %v37 = vld [vmem:[%s0 + $0xb8] sm:$0xff]
  %v38 = vld [vmem:[%s0 + $0xc0] sm:$0xff]
  %v39 = vld [vmem:[%s0 + $0xc8] sm:$0xff]
  %v40 = vld [vmem:[%s0 + $0xd0] sm:$0xff]
  %v41 = vld [vmem:[%s0 + $0xd8] sm:$0xff]
  %v42 = vld [vmem:[%s0 + $0xe0] sm:$0xff]
  %v43 = vld [vmem:[%s0 + $0xe8] sm:$0xff]
  %v44 = vld [vmem:[%s0 + $0xf0] sm:$0xff]
  %v45 = vld [vmem:[%s0 + $0xf8] sm:$0xff]
  %v46 = vld [vmem:[%s0 + $0x100] sm:$0xff]
  %v47 = vld [vmem:[%s0 + $0x108] sm:$0xff]
  %v48 = vld [vmem:[%s0 + $0x110] sm:$0xff]
  %v49 = vld [vmem:[%s0 + $0x118] sm:$0xff]
  %v50 = vld [vmem:[%s0 + $0x120] sm:$0xff]
  %v51 = vld [vmem:[%s0 + $0x128] sm:$0xff]
  %v52 = vld [vmem:[%s0 + $0x130] sm:$0xff]
  %v53 = vld [vmem:[%s0 + $0x138] sm:$0xff]
  %v54 = vld [vmem:[%s0 + $0x140] sm:$0xff]
  %v55 = vld [vmem:[%s0 + $0x148] sm:$0xff]
  %v56 = vld [vmem:[%s0 + $0x150] sm:$0xff]
  %v57 = vld [vmem:[%s0 + $0x158] sm:$0xff]
  %v58 = vld [vmem:[%s0 + $0x160] sm:$0xff]
  %v59 = vld [vmem:[%s0 + $0x168] sm:$0xff]
  %v60 = vld [vmem:[%s0 + $0x170] sm:$0xff]
  %v61 = vld [vmem:[%s0 + $0x178] sm:$0xff]
  %v62 = vld [vmem:[%s0 + $0x180] sm:$0xff]
  %v63 = vld [vmem:[%s0 + $0x188] sm:$0xff]
  %v64 = vld [vmem:[%s0 + $0x190] sm:$0xff]
  %v65 = vld [vmem:[%s0 + $0x198] sm:$0xff]
  %v66 = vld [vmem:[%s0 + $0x1a0] sm:$0xff]
  %v67 = vld [vmem:[%s0 + $0x1a8] sm:$0xff]
  %v68 = vld [vmem:[%s0 + $0x1b0] sm:$0xff]
  %v69 = vld [vmem:[%s0 + $0x1b8] sm:$0xff]
  %v70 = vld [vmem:[%s0 + $0x1c0] sm:$0xff]
  %v71 = vld [vmem:[%s0 + $0x1c8] sm:$0xff]
  %v72 = vld [vmem:[%s0 + $0x1d0] sm:$0xff]
  %v73 = vld [vmem:[%s0 + $0x1d8] sm:$0xff]
  %v74 = vld [vmem:[%s0 + $0x1e0] sm:$0xff]
  %v75 = vld [vmem:[%s0 + $0x1e8] sm:$0xff]
  %v76 = vld [vmem:[%s0 + $0x1f0] sm:$0xff]
  %v77 = vld [vmem:[%s0 + $0x1f8] sm:$0xff]
  %v78 = vld [vmem:[%s1] sm:$0x1]
  %v80 = vlaneseq
  %v81 = vshrl.u32 %v80, 7
  %v82 = vsub.s32 0, %v81
  %v83 = vrot.slane %v78, %v82
  %v85 = vmul.f32 %v14, %v83
  %v86 = vmul.f32 %v15, %v83
  %v87 = vmul.f32 %v16, %v83
  %v88 = vmul.f32 %v17, %v83
  %v89 = vmul.f32 %v18, %v83
  %v90 = vmul.f32 %v19, %v83
  %v91 = vmul.f32 %v20, %v83
  %v92 = vmul.f32 %v21, %v83
  %v93 = vmul.f32 %v22, %v83
  %v94 = vmul.f32 %v23, %v83
  %v95 = vmul.f32 %v24, %v83
  %v96 = vmul.f32 %v25, %v83
  %v97 = vmul.f32 %v26, %v83
  %v98 = vmul.f32 %v27, %v83
  %v99 = vmul.f32 %v28, %v83
  %v100 = vmul.f32 %v29, %v83
  %v101 = vmul.f32 %v30, %v83
  %v102 = vmul.f32 %v31, %v83
  %v103 = vmul.f32 %v32, %v83
  %v104 = vmul.f32 %v33, %v83
  %v105 = vmul.f32 %v34, %v83
  %v106 = vmul.f32 %v35, %v83
  %v107 = vmul.f32 %v36, %v83
  %v108 = vmul.f32 %v37, %v83
  %v109 = vmul.f32 %v38, %v83
  %v110 = vmul.f32 %v39, %v83
  %v111 = vmul.f32 %v40, %v83
  %v112 = vmul.f32 %v41, %v83
  %v113 = vmul.f32 %v42, %v83
  %v114 = vmul.f32 %v43, %v83
  %v115 = vmul.f32 %v44, %v83
  %v116 = vmul.f32 %v45, %v83
  %v117 = vmul.f32 %v46, %v83
  %v118 = vmul.f32 %v47, %v83
  %v119 = vmul.f32 %v48, %v83
  %v120 = vmul.f32 %v49, %v83
  %v121 = vmul.f32 %v50, %v83
  %v122 = vmul.f32 %v51, %v83
  %v123 = vmul.f32 %v52, %v83
  %v124 = vmul.f32 %v53, %v83
  %v125 = vmul.f32 %v54, %v83
  %v126 = vmul.f32 %v55, %v83
  %v127 = vmul.f32 %v56, %v83
  %v128 = vmul.f32 %v57, %v83
  %v129 = vmul.f32 %v58, %v83
  %v130 = vmul.f32 %v59, %v83
  %v131 = vmul.f32 %v60, %v83
  %v132 = vmul.f32 %v61, %v83
  %v133 = vmul.f32 %v62, %v83
  %v134 = vmul.f32 %v63, %v83
  %v135 = vmul.f32 %v64, %v83
  %v136 = vmul.f32 %v65, %v83
  %v137 = vmul.f32 %v66, %v83
  %v138 = vmul.f32 %v67, %v83
  %v139 = vmul.f32 %v68, %v83
  %v140 = vmul.f32 %v69, %v83
  %v141 = vmul.f32 %v70, %v83
  %v142 = vmul.f32 %v71, %v83
  %v143 = vmul.f32 %v72, %v83
  %v144 = vmul.f32 %v73, %v83
  %v145 = vmul.f32 %v74, %v83
  %v146 = vmul.f32 %v75, %v83
  %v147 = vmul.f32 %v76, %v83
  %v148 = vmul.f32 %v77, %v83
  %v149 = vld [vmem:[%s2] sm:$0x1]
  %v151 = vlaneseq
  %v152 = vshrl.u32 %v151, 7
  %v153 = vsub.s32 0, %v152
  %v154 = vrot.slane %v149, %v153
  %v156 = vadd.f32 %v85, %v154
  %v157 = vadd.f32 %v86, %v154
  %v158 = vadd.f32 %v87, %v154
  %v159 = vadd.f32 %v88, %v154
  %v160 = vadd.f32 %v89, %v154
  %v161 = vadd.f32 %v90, %v154
  %v162 = vadd.f32 %v91, %v154
  %v163 = vadd.f32 %v92, %v154
  %v164 = vadd.f32 %v93, %v154
  %v165 = vadd.f32 %v94, %v154
  %v166 = vadd.f32 %v95, %v154
  %v167 = vadd.f32 %v96, %v154
  %v168 = vadd.f32 %v97, %v154
  %v169 = vadd.f32 %v98, %v154
  %v170 = vadd.f32 %v99, %v154
  %v171 = vadd.f32 %v100, %v154
  %v172 = vadd.f32 %v101, %v154
  %v173 = vadd.f32 %v102, %v154
  %v174 = vadd.f32 %v103, %v154
  %v175 = vadd.f32 %v104, %v154
  %v176 = vadd.f32 %v105, %v154
  %v177 = vadd.f32 %v106, %v154
  %v178 = vadd.f32 %v107, %v154
  %v179 = vadd.f32 %v108, %v154
  %v180 = vadd.f32 %v109, %v154
  %v181 = vadd.f32 %v110, %v154
  %v182 = vadd.f32 %v111, %v154
  %v183 = vadd.f32 %v112, %v154
  %v184 = vadd.f32 %v113, %v154
  %v185 = vadd.f32 %v114, %v154
  %v186 = vadd.f32 %v115, %v154
  %v187 = vadd.f32 %v116, %v154
  %v188 = vadd.f32 %v117, %v154
  %v189 = vadd.f32 %v118, %v154
  %v190 = vadd.f32 %v119, %v154
  %v191 = vadd.f32 %v120, %v154
  %v192 = vadd.f32 %v121, %v154
  %v193 = vadd.f32 %v122, %v154
  %v194 = vadd.f32 %v123, %v154
  %v195 = vadd.f32 %v124, %v154
  %v196 = vadd.f32 %v125, %v154
  %v197 = vadd.f32 %v126, %v154
  %v198 = vadd.f32 %v127, %v154
  %v199 = vadd.f32 %v128, %v154
  %v200 = vadd.f32 %v129, %v154
  %v201 = vadd.f32 %v130, %v154
  %v202 = vadd.f32 %v131, %v154
  %v203 = vadd.f32 %v132, %v154
  %v204 = vadd.f32 %v133, %v154
  %v205 = vadd.f32 %v134, %v154
  %v206 = vadd.f32 %v135, %v154
  %v207 = vadd.f32 %v136, %v154
  %v208 = vadd.f32 %v137, %v154
  %v209 = vadd.f32 %v138, %v154
  %v210 = vadd.f32 %v139, %v154
  %v211 = vadd.f32 %v140, %v154
  %v212 = vadd.f32 %v141, %v154
  %v213 = vadd.f32 %v142, %v154
  %v214 = vadd.f32 %v143, %v154
  %v215 = vadd.f32 %v144, %v154
  %v216 = vadd.f32 %v145, %v154
  %v217 = vadd.f32 %v146, %v154
  %v218 = vadd.f32 %v147, %v154
  %v219 = vadd.f32 %v148, %v154
  %v220 = vmax.f32 %v156, 0.0
  %v221 = vmax.f32 %v157, 0.0
  %v222 = vmax.f32 %v158, 0.0
  %v223 = vmax.f32 %v159, 0.0
  %v224 = vmax.f32 %v160, 0.0
  %v225 = vmax.f32 %v161, 0.0
  %v226 = vmax.f32 %v162, 0.0
  %v227 = vmax.f32 %v163, 0.0
  %v228 = vmax.f32 %v164, 0.0
  %v229 = vmax.f32 %v165, 0.0
  %v230 = vmax.f32 %v166, 0.0
  %v231 = vmax.f32 %v167, 0.0
  %v232 = vmax.f32 %v168, 0.0
  %v233 = vmax.f32 %v169, 0.0
  %v234 = vmax.f32 %v170, 0.0
  %v235 = vmax.f32 %v171, 0.0
  %v236 = vmax.f32 %v172, 0.0
  %v237 = vmax.f32 %v173, 0.0
  %v238 = vmax.f32 %v174, 0.0
  %v239 = vmax.f32 %v175, 0.0
  %v240 = vmax.f32 %v176, 0.0
  %v241 = vmax.f32 %v177, 0.0
  %v242 = vmax.f32 %v178, 0.0
  %v243 = vmax.f32 %v179, 0.0
  %v244 = vmax.f32 %v180, 0.0
  %v245 = vmax.f32 %v181, 0.0
  %v246 = vmax.f32 %v182, 0.0
  %v247 = vmax.f32 %v183, 0.0
  %v248 = vmax.f32 %v184, 0.0
  %v249 = vmax.f32 %v185, 0.0
  %v250 = vmax.f32 %v186, 0.0
  %v251 = vmax.f32 %v187, 0.0
  %v252 = vmax.f32 %v188, 0.0
  %v253 = vmax.f32 %v189, 0.0
  %v254 = vmax.f32 %v190, 0.0
  %v255 = vmax.f32 %v191, 0.0
  %v256 = vmax.f32 %v192, 0.0
  %v257 = vmax.f32 %v193, 0.0
  %v258 = vmax.f32 %v194, 0.0
  %v259 = vmax.f32 %v195, 0.0
  %v260 = vmax.f32 %v196, 0.0
  %v261 = vmax.f32 %v197, 0.0
  %v262 = vmax.f32 %v198, 0.0
  %v263 = vmax.f32 %v199, 0.0
  %v264 = vmax.f32 %v200, 0.0
  %v265 = vmax.f32 %v201, 0.0
  %v266 = vmax.f32 %v202, 0.0
  %v267 = vmax.f32 %v203, 0.0
  %v268 = vmax.f32 %v204, 0.0
  %v269 = vmax.f32 %v205, 0.0
  %v270 = vmax.f32 %v206, 0.0
  %v271 = vmax.f32 %v207, 0.0
  %v272 = vmax.f32 %v208, 0.0
  %v273 = vmax.f32 %v209, 0.0
  %v274 = vmax.f32 %v210, 0.0
  %v275 = vmax.f32 %v211, 0.0
  %v276 = vmax.f32 %v212, 0.0
  %v277 = vmax.f32 %v213, 0.0
  %v278 = vmax.f32 %v214, 0.0
  %v279 = vmax.f32 %v215, 0.0
  %v280 = vmax.f32 %v216, 0.0
  %v281 = vmax.f32 %v217, 0.0
  %v282 = vmax.f32 %v218, 0.0
  %v283 = vmax.f32 %v219, 0.0
  %vm284 = vcmask 261120
  %285 = vst.msk [vmem:[%s3] sm:$0xff] %vm284, %v220
  %286 = vst.msk [vmem:[%s3 + $0x8] sm:$0xff] %vm284, %v221
  %287 = vst.msk [vmem:[%s3 + $0x10] sm:$0xff] %vm284, %v222
  %288 = vst.msk [vmem:[%s3 + $0x18] sm:$0xff] %vm284, %v223
  %289 = vst.msk [vmem:[%s3 + $0x20] sm:$0xff] %vm284, %v224
  %290 = vst.msk [vmem:[%s3 + $0x28] sm:$0xff] %vm284, %v225
  %291 = vst.msk [vmem:[%s3 + $0x30] sm:$0xff] %vm284, %v226
  %292 = vst.msk [vmem:[%s3 + $0x38] sm:$0xff] %vm284, %v227
  %293 = vst.msk [vmem:[%s3 + $0x40] sm:$0xff] %vm284, %v228
  %294 = vst.msk [vmem:[%s3 + $0x48] sm:$0xff] %vm284, %v229
  %295 = vst.msk [vmem:[%s3 + $0x50] sm:$0xff] %vm284, %v230
  %296 = vst.msk [vmem:[%s3 + $0x58] sm:$0xff] %vm284, %v231
  %297 = vst.msk [vmem:[%s3 + $0x60] sm:$0xff] %vm284, %v232
  %298 = vst.msk [vmem:[%s3 + $0x68] sm:$0xff] %vm284, %v233
  %299 = vst.msk [vmem:[%s3 + $0x70] sm:$0xff] %vm284, %v234
  %300 = vst.msk [vmem:[%s3 + $0x78] sm:$0xff] %vm284, %v235
  %301 = vst.msk [vmem:[%s3 + $0x80] sm:$0xff] %vm284, %v236
  %302 = vst.msk [vmem:[%s3 + $0x88] sm:$0xff] %vm284, %v237
  %303 = vst.msk [vmem:[%s3 + $0x90] sm:$0xff] %vm284, %v238
  %304 = vst.msk [vmem:[%s3 + $0x98] sm:$0xff] %vm284, %v239
  %305 = vst.msk [vmem:[%s3 + $0xa0] sm:$0xff] %vm284, %v240
  %306 = vst.msk [vmem:[%s3 + $0xa8] sm:$0xff] %vm284, %v241
  %307 = vst.msk [vmem:[%s3 + $0xb0] sm:$0xff] %vm284, %v242
  %308 = vst.msk [vmem:[%s3 + $0xb8] sm:$0xff] %vm284, %v243
  %309 = vst.msk [vmem:[%s3 + $0xc0] sm:$0xff] %vm284, %v244
  %310 = vst.msk [vmem:[%s3 + $0xc8] sm:$0xff] %vm284, %v245
  %311 = vst.msk [vmem:[%s3 + $0xd0] sm:$0xff] %vm284, %v246
  %312 = vst.msk [vmem:[%s3 + $0xd8] sm:$0xff] %vm284, %v247
  %313 = vst.msk [vmem:[%s3 + $0xe0] sm:$0xff] %vm284, %v248
  %314 = vst.msk [vmem:[%s3 + $0xe8] sm:$0xff] %vm284, %v249
  %315 = vst.msk [vmem:[%s3 + $0xf0] sm:$0xff] %vm284, %v250
  %316 = vst.msk [vmem:[%s3 + $0xf8] sm:$0xff] %vm284, %v251
  %317 = vst.msk [vmem:[%s3 + $0x100] sm:$0xff] %vm284, %v252
  %318 = vst.msk [vmem:[%s3 + $0x108] sm:$0xff] %vm284, %v253
  %319 = vst.msk [vmem:[%s3 + $0x110] sm:$0xff] %vm284, %v254
  %320 = vst.msk [vmem:[%s3 + $0x118] sm:$0xff] %vm284, %v255
  %321 = vst.msk [vmem:[%s3 + $0x120] sm:$0xff] %vm284, %v256
  %322 = vst.msk [vmem:[%s3 + $0x128] sm:$0xff] %vm284, %v257
  %323 = vst.msk [vmem:[%s3 + $0x130] sm:$0xff] %vm284, %v258
  %324 = vst.msk [vmem:[%s3 + $0x138] sm:$0xff] %vm284, %v259
  %325 = vst.msk [vmem:[%s3 + $0x140] sm:$0xff] %vm284, %v260
  %326 = vst.msk [vmem:[%s3 + $0x148] sm:$0xff] %vm284, %v261
  %327 = vst.msk [vmem:[%s3 + $0x150] sm:$0xff] %vm284, %v262
  %328 = vst.msk [vmem:[%s3 + $0x158] sm:$0xff] %vm284, %v263
  %329 = vst.msk [vmem:[%s3 + $0x160] sm:$0xff] %vm284, %v264
  %330 = vst.msk [vmem:[%s3 + $0x168] sm:$0xff] %vm284, %v265
  %331 = vst.msk [vmem:[%s3 + $0x170] sm:$0xff] %vm284, %v266
  %332 = vst.msk [vmem:[%s3 + $0x178] sm:$0xff] %vm284, %v267
  %333 = vst.msk [vmem:[%s3 + $0x180] sm:$0xff] %vm284, %v268
  %334 = vst.msk [vmem:[%s3 + $0x188] sm:$0xff] %vm284, %v269
  %335 = vst.msk [vmem:[%s3 + $0x190] sm:$0xff] %vm284, %v270
  %336 = vst.msk [vmem:[%s3 + $0x198] sm:$0xff] %vm284, %v271
  %337 = vst.msk [vmem:[%s3 + $0x1a0] sm:$0xff] %vm284, %v272
  %338 = vst.msk [vmem:[%s3 + $0x1a8] sm:$0xff] %vm284, %v273
  %339 = vst.msk [vmem:[%s3 + $0x1b0] sm:$0xff] %vm284, %v274
  %340 = vst.msk [vmem:[%s3 + $0x1b8] sm:$0xff] %vm284, %v275
  %341 = vst.msk [vmem:[%s3 + $0x1c0] sm:$0xff] %vm284, %v276
  %342 = vst.msk [vmem:[%s3 + $0x1c8] sm:$0xff] %vm284, %v277
  %343 = vst.msk [vmem:[%s3 + $0x1d0] sm:$0xff] %vm284, %v278
  %344 = vst.msk [vmem:[%s3 + $0x1d8] sm:$0xff] %vm284, %v279
  %345 = vst.msk [vmem:[%s3 + $0x1e0] sm:$0xff] %vm284, %v280
  %346 = vst.msk [vmem:[%s3 + $0x1e8] sm:$0xff] %vm284, %v281
  %347 = vst.msk [vmem:[%s3 + $0x1f0] sm:$0xff] %vm284, %v282
  %348 = vst.msk [vmem:[%s3 + $0x1f8] sm:$0xff] %vm284, %v283
  // Predicated region
  $region14: #{generator_forward.14} parent=0 // pred_check
    _
  $region15: #{generator_forward.14} parent=0 // pred_check_branch
    %350 = sbr.rel (0) target = $region17
  $region16: #{generator_forward.14} parent=0 // pred_region
    _
  $region17: #{generator_forward.14} parent=0 // pred_fallthru
    _
  // Predicated region
  $region18: #{generator_forward.14} parent=0 // pred_check
    _
  $region19: #{generator_forward.14} parent=0 // pred_check_branch
    %352 = sbr.rel (0) target = $region21
  $region20: #{generator_forward.14} parent=0 // pred_region
    _
  $region21: #{generator_forward.14} parent=0 // pred_fallthru
    _

// kernel: generator_forward.16
$region0: #{generator_forward.16}
  #allocation0 [shape = 'u32[]', space=smem, size = 0x4, offset = 0x4, fixed_abs, tag = 'smem constant byte address 0x4 - core index']
  #allocation1 [shape = 'u32[144,128]{1,0:T(1,128)}', space=vmem, size = 0x12000, scoped, tag = 'internal scratch']
  %s0 = inlined_call_operand.vmem [shape: f32[2048,16], index: 0, kind: input, shape index: {}]
  %s1 = inlined_call_operand.vmem [shape: f32[1,16], index: 1, kind: input, shape index: {}]
  %s2 = inlined_call_operand.vmem [shape: f32[1,16], index: 2, kind: input, shape index: {}]
  %s3 = inlined_call_operand.vmem [shape: f32[2048,16], index: 3, kind: output, shape index: {}]
  %s4 = sld [smem:[#allocation0]]
  $region45: #{generator_forward.16} parent=0
    _
  %s6 = ssub.s32 1, %s4
  %s7 = scalar_select 0, %s6, %s4
  loop: start=0, step=1, limit=6
  $region2: #{generator_forward.16} parent=0 // loop_pre_header
    _
  $region3: #{generator_forward.16} parent=0 // loop_header
    %s9 = sphi 0, %s13
    %p10 = scmp.ge.s32.totalorder %s9, 6
    %s19 = sphi 0, %s21
    %s22 = sphi 0, %s19
    %s23 = sphi 0, %s22
    %s39 = sphi 0, %s23
    %s43 = sphi 0, %s43
    %s45 = sphi 0, %s43
    %s46 = sphi 0, %s45
    %s60 = sphi 0, %s46
    %s64 = sphi 0, %s64
    %s66 = sphi 0, %s64
    %s67 = sphi 0, %s66
    %s81 = sphi 0, %s67
    %s87 = sphi 0, %s89
    %s90 = sphi 0, %s87
    %s91 = sphi 0, %s90
    %s107 = sphi 0, %s91
  $region4: #{generator_forward.16} parent=0 // loop_header_branch
    %12 = sbr.rel (%p10) target = $region8
  $region5: #{generator_forward.16} parent=0 // loop_body
    %s14 = ssub.s32 %s9, 1
    %s15 = ssub.s32 %s9, 2
    %s16 = sadd.s32 %s9, 1
    %s17 = ssub.s32 %s9, %s16
    %p18 = scmp.eq.s32.totalorder %s17, 0
    %s20 = sadd.s32 %s19, 1
    %s21 = scalar_select %p18, %s19, %s20
    %p24 = pneg %p18
    %p25 = scmp.eq.s32.totalorder %s9, 3
    %p26 = por %p24, %p25
    %p27 = scmp.ne.s32.totalorder %s19, %s22
    %p28 = scmp.eq.s32.totalorder %s9, 0
    %p29 = por %p27, %p28
    %p30 = scmp.ne.s32.totalorder %s19, %s22
    %p31 = scmp.eq.s32.totalorder %s14, 3
    %p32 = por %p30, %p31
    %p33 = scmp.ne.s32.totalorder %s22, %s23
    %p34 = scmp.eq.s32.totalorder %s14, 0
    %p35 = por %p33, %p34
    %p36 = scmp.ne.s32.totalorder %s22, %s23
    %p37 = scmp.eq.s32.totalorder %s15, 3
    %p38 = por %p36, %p37
    %p40 = scmp.ne.s32.totalorder %s23, %s39
    %p41 = scmp.eq.s32.totalorder %s15, 0
    %p42 = por %p40, %p41
    %s44 = sadd.s32 %s43, 1
    %p47 = scmp.eq.s32.totalorder %s9, 3
    %p48 = scmp.ne.s32.totalorder %s43, %s45
    %p49 = scmp.eq.s32.totalorder %s9, 0
    %p50 = por %p48, %p49
    %p51 = scmp.ne.s32.totalorder %s43, %s45
    %p52 = scmp.eq.s32.totalorder %s14, 3
    %p53 = por %p51, %p52
    %p54 = scmp.ne.s32.totalorder %s45, %s46
    %p55 = scmp.eq.s32.totalorder %s14, 0
    %p56 = por %p54, %p55
    %p57 = scmp.ne.s32.totalorder %s45, %s46
    %p58 = scmp.eq.s32.totalorder %s15, 3
    %p59 = por %p57, %p58
    %p61 = scmp.ne.s32.totalorder %s46, %s60
    %p62 = scmp.eq.s32.totalorder %s15, 0
    %p63 = por %p61, %p62
    %s65 = sadd.s32 %s64, 1
    %p68 = scmp.eq.s32.totalorder %s9, 3
    %p69 = scmp.ne.s32.totalorder %s64, %s66
    %p70 = scmp.eq.s32.totalorder %s9, 0
    %p71 = por %p69, %p70
    %p72 = scmp.ne.s32.totalorder %s64, %s66
    %p73 = scmp.eq.s32.totalorder %s14, 3
    %p74 = por %p72, %p73
    %p75 = scmp.ne.s32.totalorder %s66, %s67
    %p76 = scmp.eq.s32.totalorder %s14, 0
    %p77 = por %p75, %p76
    %p78 = scmp.ne.s32.totalorder %s66, %s67
    %p79 = scmp.eq.s32.totalorder %s15, 3
    %p80 = por %p78, %p79
    %p82 = scmp.ne.s32.totalorder %s67, %s81
    %p83 = scmp.eq.s32.totalorder %s15, 0
    %p84 = por %p82, %p83
    %s85 = ssub.s32 %s9, %s16
    %p86 = scmp.eq.s32.totalorder %s85, 0
    %s88 = sadd.s32 %s87, 1
    %s89 = scalar_select %p86, %s87, %s88
    %p92 = pneg %p86
    %p93 = scmp.eq.s32.totalorder %s9, 3
    %p94 = por %p92, %p93
    %p95 = scmp.ne.s32.totalorder %s87, %s90
    %p96 = scmp.eq.s32.totalorder %s9, 0
    %p97 = por %p95, %p96
    %p98 = scmp.ne.s32.totalorder %s87, %s90
    %p99 = scmp.eq.s32.totalorder %s14, 3
    %p100 = por %p98, %p99
    %p101 = scmp.ne.s32.totalorder %s90, %s91
    %p102 = scmp.eq.s32.totalorder %s14, 0
    %p103 = por %p101, %p102
    %p104 = scmp.ne.s32.totalorder %s90, %s91
    %p105 = scmp.eq.s32.totalorder %s15, 3
    %p106 = por %p104, %p105
    %p108 = scmp.ne.s32.totalorder %s91, %s107
    %p109 = scmp.eq.s32.totalorder %s15, 0
    %p110 = por %p108, %p109
    %p111 = scmp.le.s32.totalorder 1, %s9
    %p112 = scmp.lt.s32.totalorder %s9, 5
    %p113 = pnand %p111, %p112
    %p114 = pneg %p113
    // Predicated region
    $region9: #{generator_forward.16} parent=5 // pred_check
      _
    $region10: #{generator_forward.16} parent=5 // pred_check_branch
      %116 = sbr.rel (%p113) target = $region12
    $region11: #{generator_forward.16} parent=5 // pred_region
      %s117 = ssub.s32 %s9, 1
      // Predicated region
      $region13: #{generator_forward.16} parent=11 // pred_check
        %p118 = pneg %p56
      $region14: #{generator_forward.16} parent=11 // pred_check_branch
        %120 = sbr.rel (%p118) target = $region16
      $region15: #{generator_forward.16} parent=11 // pred_region
        _
      $region16: #{generator_forward.16} parent=11 // pred_fallthru
        _
      // Predicated region
      $region17: #{generator_forward.16} parent=11 // pred_check
        %p121 = pneg %p77
      $region18: #{generator_forward.16} parent=11 // pred_check_branch
        %123 = sbr.rel (%p121) target = $region20
      $region19: #{generator_forward.16} parent=11 // pred_region
        _
      $region20: #{generator_forward.16} parent=11 // pred_fallthru
        _
    $region12: #{generator_forward.16} parent=5 // pred_fallthru
      _
    %p124 = scmp.lt.s32.totalorder %s9, 4
    // Predicated region
    $region21: #{generator_forward.16} parent=5 // pred_check
      %p125 = pneg %p124
    $region22: #{generator_forward.16} parent=5 // pred_check_branch
      %127 = sbr.rel (%p125) target = $region24
    $region23: #{generator_forward.16} parent=5 // pred_region
      // Predicated region
      $region25: #{generator_forward.16} parent=23 // pred_check
        %p128 = pneg %p29
      $region26: #{generator_forward.16} parent=23 // pred_check_branch
        %130 = sbr.rel (%p128) target = $region28
      $region27: #{generator_forward.16} parent=23 // pred_region
        %s131 = smul.u32 64, %s9
        %p132 = scmp.lt.s32.totalorder %s131, 255
        %s133 = scalar_select %p132, %s131, 255
        %s134 = smul.addr %s133, 8
        %s135 = scalar_lea.vmem %s0, %s134
        %s136 = smul.u32 64, %s9
      $region28: #{generator_forward.16} parent=23 // pred_fallthru
        _
    $region24: #{generator_forward.16} parent=5 // pred_fallthru
      _
    %p137 = scmp.le.s32.totalorder 1, %s9
    %p138 = scmp.lt.s32.totalorder %s9, 5
    %p139 = pnand %p137, %p138
    %p140 = pneg %p139
    // Predicated region
    $region29: #{generator_forward.16} parent=5 // pred_check
      _
    $region30: #{generator_forward.16} parent=5 // pred_check_branch
      %142 = sbr.rel (%p139) target = $region32
    $region31: #{generator_forward.16} parent=5 // pred_region
      %s143 = ssub.s32 %s9, 1
      %s144 = smul.u32 64, %s14
      %p145 = scmp.lt.s32.totalorder %s144, 255
      %s146 = scalar_select %p145, %s144, 255
      %s147 = smul.addr %s146, 8
      %s148 = scalar_lea.vmem %s0, %s147
      %p149 = pneg %p35
      %p150 = pneg %p32
      %p151 = pneg %p56
      %p152 = pneg %p53
      %p153 = pneg %p77
      %p154 = pneg %p74
      %p155 = pneg %p103
      %p156 = pneg %p100
      %s157 = smul.u32 64, %s14
      %p158 = scmp.lt.s32.totalorder %s157, 255
      %s159 = scalar_select %p158, %s157, 255
      %s160 = smul.addr %s159, 8
      %s161 = scalar_lea.vmem %s3, %s160
      %s162 = smul.u32 64, %s14
      %p163 = scmp.lt.s32.totalorder %s162, 255
      %s164 = scalar_select %p163, %s162, 255
      %s165 = smul.addr %s164, 8
      %s166 = scalar_lea.vmem %s0, %s165
      %s167 = smul.u32 64, %s14
      %s168 = smul.u32 64, %s14
      %p169 = scmp.lt.s32.totalorder %s168, 255
      %s170 = scalar_select %p169, %s168, 255
      %s171 = smul.addr %s170, 8
      %s172 = scalar_lea.vmem %s3, %s171
      %s173 = smul.u32 64, %s14
      %v174 = vld [vmem:[%s166] sm:$0xff]
      %v175 = vld [vmem:[%s166 + $0x8] sm:$0xff]
      %v176 = vld [vmem:[%s166 + $0x10] sm:$0xff]
      %v177 = vld [vmem:[%s166 + $0x18] sm:$0xff]
      %v178 = vld [vmem:[%s166 + $0x20] sm:$0xff]
      %v179 = vld [vmem:[%s166 + $0x28] sm:$0xff]
      %v180 = vld [vmem:[%s166 + $0x30] sm:$0xff]
      %v181 = vld [vmem:[%s166 + $0x38] sm:$0xff]
      %v182 = vld [vmem:[%s166 + $0x40] sm:$0xff]
      %v183 = vld [vmem:[%s166 + $0x48] sm:$0xff]
      %v184 = vld [vmem:[%s166 + $0x50] sm:$0xff]
      %v185 = vld [vmem:[%s166 + $0x58] sm:$0xff]
      %v186 = vld [vmem:[%s166 + $0x60] sm:$0xff]
      %v187 = vld [vmem:[%s166 + $0x68] sm:$0xff]
      %v188 = vld [vmem:[%s166 + $0x70] sm:$0xff]
      %v189 = vld [vmem:[%s166 + $0x78] sm:$0xff]
      %v190 = vld [vmem:[%s166 + $0x80] sm:$0xff]
      %v191 = vld [vmem:[%s166 + $0x88] sm:$0xff]
      %v192 = vld [vmem:[%s166 + $0x90] sm:$0xff]
      %v193 = vld [vmem:[%s166 + $0x98] sm:$0xff]
      %v194 = vld [vmem:[%s166 + $0xa0] sm:$0xff]
      %v195 = vld [vmem:[%s166 + $0xa8] sm:$0xff]
      %v196 = vld [vmem:[%s166 + $0xb0] sm:$0xff]
      %v197 = vld [vmem:[%s166 + $0xb8] sm:$0xff]
      %v198 = vld [vmem:[%s166 + $0xc0] sm:$0xff]
      %v199 = vld [vmem:[%s166 + $0xc8] sm:$0xff]
      %v200 = vld [vmem:[%s166 + $0xd0] sm:$0xff]
      %v201 = vld [vmem:[%s166 + $0xd8] sm:$0xff]
      %v202 = vld [vmem:[%s166 + $0xe0] sm:$0xff]
      %v203 = vld [vmem:[%s166 + $0xe8] sm:$0xff]
      %v204 = vld [vmem:[%s166 + $0xf0] sm:$0xff]
      %v205 = vld [vmem:[%s166 + $0xf8] sm:$0xff]
      %v206 = vld [vmem:[%s166 + $0x100] sm:$0xff]
      %v207 = vld [vmem:[%s166 + $0x108] sm:$0xff]
      %v208 = vld [vmem:[%s166 + $0x110] sm:$0xff]
      %v209 = vld [vmem:[%s166 + $0x118] sm:$0xff]
      %v210 = vld [vmem:[%s166 + $0x120] sm:$0xff]
      %v211 = vld [vmem:[%s166 + $0x128] sm:$0xff]
      %v212 = vld [vmem:[%s166 + $0x130] sm:$0xff]
      %v213 = vld [vmem:[%s166 + $0x138] sm:$0xff]
      %v214 = vld [vmem:[%s166 + $0x140] sm:$0xff]
      %v215 = vld [vmem:[%s166 + $0x148] sm:$0xff]
      %v216 = vld [vmem:[%s166 + $0x150] sm:$0xff]
      %v217 = vld [vmem:[%s166 + $0x158] sm:$0xff]
      %v218 = vld [vmem:[%s166 + $0x160] sm:$0xff]
      %v219 = vld [vmem:[%s166 + $0x168] sm:$0xff]
      %v220 = vld [vmem:[%s166 + $0x170] sm:$0xff]
      %v221 = vld [vmem:[%s166 + $0x178] sm:$0xff]
      %v222 = vld [vmem:[%s166 + $0x180] sm:$0xff]
      %v223 = vld [vmem:[%s166 + $0x188] sm:$0xff]
      %v224 = vld [vmem:[%s166 + $0x190] sm:$0xff]
      %v225 = vld [vmem:[%s166 + $0x198] sm:$0xff]
      %v226 = vld [vmem:[%s166 + $0x1a0] sm:$0xff]
      %v227 = vld [vmem:[%s166 + $0x1a8] sm:$0xff]
      %v228 = vld [vmem:[%s166 + $0x1b0] sm:$0xff]
      %v229 = vld [vmem:[%s166 + $0x1b8] sm:$0xff]
      %v230 = vld [vmem:[%s166 + $0x1c0] sm:$0xff]
      %v231 = vld [vmem:[%s166 + $0x1c8] sm:$0xff]
      %v232 = vld [vmem:[%s166 + $0x1d0] sm:$0xff]
      %v233 = vld [vmem:[%s166 + $0x1d8] sm:$0xff]
      %v234 = vld [vmem:[%s166 + $0x1e0] sm:$0xff]
      %v235 = vld [vmem:[%s166 + $0x1e8] sm:$0xff]
      %v236 = vld [vmem:[%s166 + $0x1f0] sm:$0xff]
      %v237 = vld [vmem:[%s166 + $0x1f8] sm:$0xff]
      %v238 = vld [vmem:[%s1] sm:$0x1]
      %v240 = vlaneseq
      %v241 = vshrl.u32 %v240, 7
      %v242 = vsub.s32 0, %v241
      %v243 = vrot.slane %v238, %v242
      %v245 = vmul.f32 %v174, %v243
      %v246 = vmul.f32 %v175, %v243
      %v247 = vmul.f32 %v176, %v243
      %v248 = vmul.f32 %v177, %v243
      %v249 = vmul.f32 %v178, %v243
      %v250 = vmul.f32 %v179, %v243
      %v251 = vmul.f32 %v180, %v243
      %v252 = vmul.f32 %v181, %v243
      %v253 = vmul.f32 %v182, %v243
      %v254 = vmul.f32 %v183, %v243
      %v255 = vmul.f32 %v184, %v243
      %v256 = vmul.f32 %v185, %v243
      %v257 = vmul.f32 %v186, %v243
      %v258 = vmul.f32 %v187, %v243
      %v259 = vmul.f32 %v188, %v243
      %v260 = vmul.f32 %v189, %v243
      %v261 = vmul.f32 %v190, %v243
      %v262 = vmul.f32 %v191, %v243
      %v263 = vmul.f32 %v192, %v243
      %v264 = vmul.f32 %v193, %v243
      %v265 = vmul.f32 %v194, %v243
      %v266 = vmul.f32 %v195, %v243
      %v267 = vmul.f32 %v196, %v243
      %v268 = vmul.f32 %v197, %v243
      %v269 = vmul.f32 %v198, %v243
      %v270 = vmul.f32 %v199, %v243
      %v271 = vmul.f32 %v200, %v243
      %v272 = vmul.f32 %v201, %v243
      %v273 = vmul.f32 %v202, %v243
      %v274 = vmul.f32 %v203, %v243
      %v275 = vmul.f32 %v204, %v243
      %v276 = vmul.f32 %v205, %v243
      %v277 = vmul.f32 %v206, %v243
      %v278 = vmul.f32 %v207, %v243
      %v279 = vmul.f32 %v208, %v243
      %v280 = vmul.f32 %v209, %v243
      %v281 = vmul.f32 %v210, %v243
      %v282 = vmul.f32 %v211, %v243
      %v283 = vmul.f32 %v212, %v243
      %v284 = vmul.f32 %v213, %v243
      %v285 = vmul.f32 %v214, %v243
      %v286 = vmul.f32 %v215, %v243
      %v287 = vmul.f32 %v216, %v243
      %v288 = vmul.f32 %v217, %v243
      %v289 = vmul.f32 %v218, %v243
      %v290 = vmul.f32 %v219, %v243
      %v291 = vmul.f32 %v220, %v243
      %v292 = vmul.f32 %v221, %v243
      %v293 = vmul.f32 %v222, %v243
      %v294 = vmul.f32 %v223, %v243
      %v295 = vmul.f32 %v224, %v243
      %v296 = vmul.f32 %v225, %v243
      %v297 = vmul.f32 %v226, %v243
      %v298 = vmul.f32 %v227, %v243
      %v299 = vmul.f32 %v228, %v243
      %v300 = vmul.f32 %v229, %v243
      %v301 = vmul.f32 %v230, %v243
      %v302 = vmul.f32 %v231, %v243
      %v303 = vmul.f32 %v232, %v243
      %v304 = vmul.f32 %v233, %v243
      %v305 = vmul.f32 %v234, %v243
      %v306 = vmul.f32 %v235, %v243
      %v307 = vmul.f32 %v236, %v243
      %v308 = vmul.f32 %v237, %v243
      %v309 = vld [vmem:[%s2] sm:$0x1]
      %v311 = vlaneseq
      %v312 = vshrl.u32 %v311, 7
      %v313 = vsub.s32 0, %v312
      %v314 = vrot.slane %v309, %v313
      %v316 = vadd.f32 %v245, %v314
      %v317 = vadd.f32 %v246, %v314
      %v318 = vadd.f32 %v247, %v314
      %v319 = vadd.f32 %v248, %v314
      %v320 = vadd.f32 %v249, %v314
      %v321 = vadd.f32 %v250, %v314
      %v322 = vadd.f32 %v251, %v314
      %v323 = vadd.f32 %v252, %v314
      %v324 = vadd.f32 %v253, %v314
      %v325 = vadd.f32 %v254, %v314
      %v326 = vadd.f32 %v255, %v314
      %v327 = vadd.f32 %v256, %v314
      %v328 = vadd.f32 %v257, %v314
      %v329 = vadd.f32 %v258, %v314
      %v330 = vadd.f32 %v259, %v314
      %v331 = vadd.f32 %v260, %v314
      %v332 = vadd.f32 %v261, %v314
      %v333 = vadd.f32 %v262, %v314
      %v334 = vadd.f32 %v263, %v314
      %v335 = vadd.f32 %v264, %v314
      %v336 = vadd.f32 %v265, %v314
      %v337 = vadd.f32 %v266, %v314
      %v338 = vadd.f32 %v267, %v314
      %v339 = vadd.f32 %v268, %v314
      %v340 = vadd.f32 %v269, %v314
      %v341 = vadd.f32 %v270, %v314
      %v342 = vadd.f32 %v271, %v314
      %v343 = vadd.f32 %v272, %v314
      %v344 = vadd.f32 %v273, %v314
      %v345 = vadd.f32 %v274, %v314
      %v346 = vadd.f32 %v275, %v314
      %v347 = vadd.f32 %v276, %v314
      %v348 = vadd.f32 %v277, %v314
      %v349 = vadd.f32 %v278, %v314
      %v350 = vadd.f32 %v279, %v314
      %v351 = vadd.f32 %v280, %v314
      %v352 = vadd.f32 %v281, %v314
      %v353 = vadd.f32 %v282, %v314
      %v354 = vadd.f32 %v283, %v314
      %v355 = vadd.f32 %v284, %v314
      %v356 = vadd.f32 %v285, %v314
      %v357 = vadd.f32 %v286, %v314
      %v358 = vadd.f32 %v287, %v314
      %v359 = vadd.f32 %v288, %v314
      %v360 = vadd.f32 %v289, %v314
      %v361 = vadd.f32 %v290, %v314
      %v362 = vadd.f32 %v291, %v314
      %v363 = vadd.f32 %v292, %v314
      %v364 = vadd.f32 %v293, %v314
      %v365 = vadd.f32 %v294, %v314
      %v366 = vadd.f32 %v295, %v314
      %v367 = vadd.f32 %v296, %v314
      %v368 = vadd.f32 %v297, %v314
      %v369 = vadd.f32 %v298, %v314
      %v370 = vadd.f32 %v299, %v314
      %v371 = vadd.f32 %v300, %v314
      %v372 = vadd.f32 %v301, %v314
      %v373 = vadd.f32 %v302, %v314
      %v374 = vadd.f32 %v303, %v314
      %v375 = vadd.f32 %v304, %v314
      %v376 = vadd.f32 %v305, %v314
      %v377 = vadd.f32 %v306, %v314
      %v378 = vadd.f32 %v307, %v314
      %v379 = vadd.f32 %v308, %v314
      %v380 = vmax.f32 %v316, 0.0
      %v381 = vmax.f32 %v317, 0.0
      %v382 = vmax.f32 %v318, 0.0
      %v383 = vmax.f32 %v319, 0.0
      %v384 = vmax.f32 %v320, 0.0
      %v385 = vmax.f32 %v321, 0.0
      %v386 = vmax.f32 %v322, 0.0
      %v387 = vmax.f32 %v323, 0.0
      %v388 = vmax.f32 %v324, 0.0
      %v389 = vmax.f32 %v325, 0.0
      %v390 = vmax.f32 %v326, 0.0
      %v391 = vmax.f32 %v327, 0.0
      %v392 = vmax.f32 %v328, 0.0
      %v393 = vmax.f32 %v329, 0.0
      %v394 = vmax.f32 %v330, 0.0
      %v395 = vmax.f32 %v331, 0.0
      %v396 = vmax.f32 %v332, 0.0
      %v397 = vmax.f32 %v333, 0.0
      %v398 = vmax.f32 %v334, 0.0
      %v399 = vmax.f32 %v335, 0.0
      %v400 = vmax.f32 %v336, 0.0
      %v401 = vmax.f32 %v337, 0.0
      %v402 = vmax.f32 %v338, 0.0
      %v403 = vmax.f32 %v339, 0.0
      %v404 = vmax.f32 %v340, 0.0
      %v405 = vmax.f32 %v341, 0.0
      %v406 = vmax.f32 %v342, 0.0
      %v407 = vmax.f32 %v343, 0.0
      %v408 = vmax.f32 %v344, 0.0
      %v409 = vmax.f32 %v345, 0.0
      %v410 = vmax.f32 %v346, 0.0
      %v411 = vmax.f32 %v347, 0.0
      %v412 = vmax.f32 %v348, 0.0
      %v413 = vmax.f32 %v349, 0.0
      %v414 = vmax.f32 %v350, 0.0
      %v415 = vmax.f32 %v351, 0.0
      %v416 = vmax.f32 %v352, 0.0
      %v417 = vmax.f32 %v353, 0.0
      %v418 = vmax.f32 %v354, 0.0
      %v419 = vmax.f32 %v355, 0.0
      %v420 = vmax.f32 %v356, 0.0
      %v421 = vmax.f32 %v357, 0.0
      %v422 = vmax.f32 %v358, 0.0
      %v423 = vmax.f32 %v359, 0.0
      %v424 = vmax.f32 %v360, 0.0
      %v425 = vmax.f32 %v361, 0.0
      %v426 = vmax.f32 %v362, 0.0
      %v427 = vmax.f32 %v363, 0.0
      %v428 = vmax.f32 %v364, 0.0
      %v429 = vmax.f32 %v365, 0.0
      %v430 = vmax.f32 %v366, 0.0
      %v431 = vmax.f32 %v367, 0.0
      %v432 = vmax.f32 %v368, 0.0
      %v433 = vmax.f32 %v369, 0.0
      %v434 = vmax.f32 %v370, 0.0
      %v435 = vmax.f32 %v371, 0.0
      %v436 = vmax.f32 %v372, 0.0
      %v437 = vmax.f32 %v373, 0.0
      %v438 = vmax.f32 %v374, 0.0
      %v439 = vmax.f32 %v375, 0.0
      %v440 = vmax.f32 %v376, 0.0
      %v441 = vmax.f32 %v377, 0.0
      %v442 = vmax.f32 %v378, 0.0
      %v443 = vmax.f32 %v379, 0.0
      %vm444 = vcmask 130048
      %445 = vst.msk [vmem:[%s172] sm:$0xff] %vm444, %v380
      %446 = vst.msk [vmem:[%s172 + $0x8] sm:$0xff] %vm444, %v381
      %447 = vst.msk [vmem:[%s172 + $0x10] sm:$0xff] %vm444, %v382
      %448 = vst.msk [vmem:[%s172 + $0x18] sm:$0xff] %vm444, %v383
      %449 = vst.msk [vmem:[%s172 + $0x20] sm:$0xff] %vm444, %v384
      %450 = vst.msk [vmem:[%s172 + $0x28] sm:$0xff] %vm444, %v385
      %451 = vst.msk [vmem:[%s172 + $0x30] sm:$0xff] %vm444, %v386
      %452 = vst.msk [vmem:[%s172 + $0x38] sm:$0xff] %vm444, %v387
      %453 = vst.msk [vmem:[%s172 + $0x40] sm:$0xff] %vm444, %v388
      %454 = vst.msk [vmem:[%s172 + $0x48] sm:$0xff] %vm444, %v389
      %455 = vst.msk [vmem:[%s172 + $0x50] sm:$0xff] %vm444, %v390
      %456 = vst.msk [vmem:[%s172 + $0x58] sm:$0xff] %vm444, %v391
      %457 = vst.msk [vmem:[%s172 + $0x60] sm:$0xff] %vm444, %v392
      %458 = vst.msk [vmem:[%s172 + $0x68] sm:$0xff] %vm444, %v393
      %459 = vst.msk [vmem:[%s172 + $0x70] sm:$0xff] %vm444, %v394
      %460 = vst.msk [vmem:[%s172 + $0x78] sm:$0xff] %vm444, %v395
      %461 = vst.msk [vmem:[%s172 + $0x80] sm:$0xff] %vm444, %v396
      %462 = vst.msk [vmem:[%s172 + $0x88] sm:$0xff] %vm444, %v397
      %463 = vst.msk [vmem:[%s172 + $0x90] sm:$0xff] %vm444, %v398
      %464 = vst.msk [vmem:[%s172 + $0x98] sm:$0xff] %vm444, %v399
      %465 = vst.msk [vmem:[%s172 + $0xa0] sm:$0xff] %vm444, %v400
      %466 = vst.msk [vmem:[%s172 + $0xa8] sm:$0xff] %vm444, %v401
      %467 = vst.msk [vmem:[%s172 + $0xb0] sm:$0xff] %vm444, %v402
      %468 = vst.msk [vmem:[%s172 + $0xb8] sm:$0xff] %vm444, %v403
      %469 = vst.msk [vmem:[%s172 + $0xc0] sm:$0xff] %vm444, %v404
      %470 = vst.msk [vmem:[%s172 + $0xc8] sm:$0xff] %vm444, %v405
      %471 = vst.msk [vmem:[%s172 + $0xd0] sm:$0xff] %vm444, %v406
      %472 = vst.msk [vmem:[%s172 + $0xd8] sm:$0xff] %vm444, %v407
      %473 = vst.msk [vmem:[%s172 + $0xe0] sm:$0xff] %vm444, %v408
      %474 = vst.msk [vmem:[%s172 + $0xe8] sm:$0xff] %vm444, %v409
      %475 = vst.msk [vmem:[%s172 + $0xf0] sm:$0xff] %vm444, %v410
      %476 = vst.msk [vmem:[%s172 + $0xf8] sm:$0xff] %vm444, %v411
      %477 = vst.msk [vmem:[%s172 + $0x100] sm:$0xff] %vm444, %v412
      %478 = vst.msk [vmem:[%s172 + $0x108] sm:$0xff] %vm444, %v413
      %479 = vst.msk [vmem:[%s172 + $0x110] sm:$0xff] %vm444, %v414
      %480 = vst.msk [vmem:[%s172 + $0x118] sm:$0xff] %vm444, %v415
      %481 = vst.msk [vmem:[%s172 + $0x120] sm:$0xff] %vm444, %v416
      %482 = vst.msk [vmem:[%s172 + $0x128] sm:$0xff] %vm444, %v417
      %483 = vst.msk [vmem:[%s172 + $0x130] sm:$0xff] %vm444, %v418
      %484 = vst.msk [vmem:[%s172 + $0x138] sm:$0xff] %vm444, %v419
      %485 = vst.msk [vmem:[%s172 + $0x140] sm:$0xff] %vm444, %v420
      %486 = vst.msk [vmem:[%s172 + $0x148] sm:$0xff] %vm444, %v421
      %487 = vst.msk [vmem:[%s172 + $0x150] sm:$0xff] %vm444, %v422
      %488 = vst.msk [vmem:[%s172 + $0x158] sm:$0xff] %vm444, %v423
      %489 = vst.msk [vmem:[%s172 + $0x160] sm:$0xff] %vm444, %v424
      %490 = vst.msk [vmem:[%s172 + $0x168] sm:$0xff] %vm444, %v425
      %491 = vst.msk [vmem:[%s172 + $0x170] sm:$0xff] %vm444, %v426
      %492 = vst.msk [vmem:[%s172 + $0x178] sm:$0xff] %vm444, %v427
      %493 = vst.msk [vmem:[%s172 + $0x180] sm:$0xff] %vm444, %v428
      %494 = vst.msk [vmem:[%s172 + $0x188] sm:$0xff] %vm444, %v429
      %495 = vst.msk [vmem:[%s172 + $0x190] sm:$0xff] %vm444, %v430
      %496 = vst.msk [vmem:[%s172 + $0x198] sm:$0xff] %vm444, %v431
      %497 = vst.msk [vmem:[%s172 + $0x1a0] sm:$0xff] %vm444, %v432
      %498 = vst.msk [vmem:[%s172 + $0x1a8] sm:$0xff] %vm444, %v433
      %499 = vst.msk [vmem:[%s172 + $0x1b0] sm:$0xff] %vm444, %v434
      %500 = vst.msk [vmem:[%s172 + $0x1b8] sm:$0xff] %vm444, %v435
      %501 = vst.msk [vmem:[%s172 + $0x1c0] sm:$0xff] %vm444, %v436
      %502 = vst.msk [vmem:[%s172 + $0x1c8] sm:$0xff] %vm444, %v437
      %503 = vst.msk [vmem:[%s172 + $0x1d0] sm:$0xff] %vm444, %v438
      %504 = vst.msk [vmem:[%s172 + $0x1d8] sm:$0xff] %vm444, %v439
      %505 = vst.msk [vmem:[%s172 + $0x1e0] sm:$0xff] %vm444, %v440
      %506 = vst.msk [vmem:[%s172 + $0x1e8] sm:$0xff] %vm444, %v441
      %507 = vst.msk [vmem:[%s172 + $0x1f0] sm:$0xff] %vm444, %v442
      %508 = vst.msk [vmem:[%s172 + $0x1f8] sm:$0xff] %vm444, %v443
      %s509 = smul.u32 64, %s14
      %p510 = scmp.lt.s32.totalorder %s509, 255
      %s511 = scalar_select %p510, %s509, 255
      %s512 = smul.addr %s511, 8
      %s513 = scalar_lea.vmem %s3, %s512
      // Predicated region
      $region33: #{generator_forward.16} parent=31 // pred_check
        %p514 = pneg %p100
      $region34: #{generator_forward.16} parent=31 // pred_check_branch
        %516 = sbr.rel (%p514) target = $region36
      $region35: #{generator_forward.16} parent=31 // pred_region
        %s517 = smul.u32 64, %s14
      $region36: #{generator_forward.16} parent=31 // pred_fallthru
        _
    $region32: #{generator_forward.16} parent=5 // pred_fallthru
      _
    %p518 = scmp.le.s32.totalorder 2, %s9
    // Predicated region
    $region37: #{generator_forward.16} parent=5 // pred_check
      %p519 = pneg %p518
    $region38: #{generator_forward.16} parent=5 // pred_check_branch
      %521 = sbr.rel (%p519) target = $region40
    $region39: #{generator_forward.16} parent=5 // pred_region
      %s522 = ssub.s32 %s9, 2
      // Predicated region
      $region41: #{generator_forward.16} parent=39 // pred_check
        %p523 = pneg %p106
      $region42: #{generator_forward.16} parent=39 // pred_check_branch
        %525 = sbr.rel (%p523) target = $region44
      $region43: #{generator_forward.16} parent=39 // pred_region
        %s526 = smul.u32 64, %s15
        %p527 = scmp.lt.s32.totalorder %s526, 255
        %s528 = scalar_select %p527, %s526, 255
        %s529 = smul.addr %s528, 8
        %s530 = scalar_lea.vmem %s3, %s529
      $region44: #{generator_forward.16} parent=39 // pred_fallthru
        _
    $region40: #{generator_forward.16} parent=5 // pred_fallthru
      _
  $region6: #{generator_forward.16} parent=0 // loop_footer
    %s13 = sadd.s32 1, %s9
  $region7: #{generator_forward.16} parent=0 // loop_footer_branch
    %8 = sbr.rel target = $region3
  $region8: #{generator_forward.16} parent=0 // loop_exit
    _

// kernel: generator_forward.15
$region0: #{generator_forward.15}
  #allocation0 [shape = 'u32[]', space=smem, size = 0x4, offset = 0x4, fixed_abs, tag = 'smem constant byte address 0x4 - core index']
  #allocation1 [shape = 'u32[144,128]{1,0:T(1,128)}', space=vmem, size = 0x12000, scoped, tag = 'internal scratch']
  #allocation2 [shape = 'f32[512,16]{1,0:T(8,128)}', space=vmem, size = 0x40000, scoped, tag = 'scratch operand']
  %s0 = inlined_call_operand.vmem [shape: bf16[4,512,128], index: 0, kind: input, shape index: {}]
  %s1 = inlined_call_operand.vmem [shape: bf16[4,128,16], index: 1, kind: input, shape index: {}]
  %s2 = inlined_call_operand.vmem [shape: f32[1,16], index: 2, kind: input, shape index: {}]
  %s3 = inlined_call_operand.vmem [shape: f32[4,512,16], index: 3, kind: output, shape index: {0}]
  %s4 = inlined_call_operand.vmem [shape: f32[2,16], index: 4, kind: output, shape index: {1}]
  %5 = xla_tuple %s3, %s4
  %s6 = sld [smem:[#allocation0]]
  $region65: #{generator_forward.15} parent=0
    _
  %s8 = ssub.s32 1, %s6
  %s9 = scalar_select 0, %s8, %s6
  loop: start=0, step=1, limit=6
  $region2: #{generator_forward.15} parent=0 // loop_pre_header
    _
  $region3: #{generator_forward.15} parent=0 // loop_header
    %s11 = sphi 0, %s15
    %p12 = scmp.ge.s32.totalorder %s11, 6
    %s18 = sphi 0, %s37
    %s19 = sphi 0, %s33
    %s20 = sphi 0, %s29
    %s21 = sphi 0, %s18
    %s22 = sphi 0, %s19
    %s23 = sphi 0, %s20
    %s24 = sphi 0, %s21
    %s25 = sphi 0, %s22
    %s26 = sphi 0, %s23
    %s44 = sphi 0, %s46
    %s47 = sphi 0, %s44
    %s48 = sphi 0, %s47
    %s64 = sphi 0, %s48
    %s72 = sphi 0, %s74
    %s75 = sphi 0, %s72
    %s76 = sphi 0, %s75
    %s92 = sphi 0, %s76
    %s96 = sphi 0, %s96
    %s98 = sphi 0, %s96
    %s99 = sphi 0, %s98
    %s113 = sphi 0, %s99
    %s121 = sphi 0, %s123
    %s124 = sphi 0, %s121
    %s125 = sphi 0, %s124
    %s141 = sphi 0, %s125
    %s145 = sphi 0, %s145
    %s147 = sphi 0, %s145
    %s148 = sphi 0, %s147
    %s162 = sphi 0, %s148
  $region4: #{generator_forward.15} parent=0 // loop_header_branch
    %14 = sbr.rel (%p12) target = $region8
  $region5: #{generator_forward.15} parent=0 // loop_body
    %s16 = ssub.s32 %s11, 1
    %s17 = ssub.s32 %s11, 2
    %s27 = sadd.s32 1, %s20
    %p28 = scmp.ge.s32.totalorder %s27, 1
    %s29 = scalar_select %p28, 0, %s27
    %s30 = sadd.s32 1, %s19
    %s31 = scalar_select %p28, %s30, %s19
    %p32 = scmp.ge.s32.totalorder %s31, 1
    %s33 = scalar_select %p32, 0, %s31
    %s34 = sadd.s32 1, %s18
    %s35 = scalar_select %p32, %s34, %s18
    %p36 = scmp.ge.s32.totalorder %s35, 4
    %s37 = scalar_select %p36, 0, %s35
    %s38 = ssub.s32 %s18, %s37
    %s39 = ssub.s32 %s19, %s33
    %s40 = sor.u32 %s38, %s39
    %s41 = ssub.s32 %s20, %s29
    %s42 = sor.u32 %s40, %s41
    %p43 = scmp.eq.s32.totalorder %s42, 0
    %s45 = sadd.s32 %s44, 1
    %s46 = scalar_select %p43, %s44, %s45
    %p49 = pneg %p43
    %p50 = scmp.eq.s32.totalorder %s11, 3
    %p51 = por %p49, %p50
    %p52 = scmp.ne.s32.totalorder %s44, %s47
    %p53 = scmp.eq.s32.totalorder %s11, 0
    %p54 = por %p52, %p53
    %p55 = scmp.ne.s32.totalorder %s44, %s47
    %p56 = scmp.eq.s32.totalorder %s16, 3
    %p57 = por %p55, %p56
    %p58 = scmp.ne.s32.totalorder %s47, %s48
    %p59 = scmp.eq.s32.totalorder %s16, 0
    %p60 = por %p58, %p59
    %p61 = scmp.ne.s32.totalorder %s47, %s48
    %p62 = scmp.eq.s32.totalorder %s17, 3
    %p63 = por %p61, %p62
    %p65 = scmp.ne.s32.totalorder %s48, %s64
    %p66 = scmp.eq.s32.totalorder %s17, 0
    %p67 = por %p65, %p66
    %s68 = ssub.s32 %s18, %s37
    %s69 = ssub.s32 %s20, %s29
    %s70 = sor.u32 %s68, %s69
    %p71 = scmp.eq.s32.totalorder %s70, 0
    %s73 = sadd.s32 %s72, 1
    %s74 = scalar_select %p71, %s72, %s73
    %p77 = pneg %p71
    %p78 = scmp.eq.s32.totalorder %s11, 3
    %p79 = por %p77, %p78
    %p80 = scmp.ne.s32.totalorder %s72, %s75
    %p81 = scmp.eq.s32.totalorder %s11, 0
    %p82 = por %p80, %p81
    %p83 = scmp.ne.s32.totalorder %s72, %s75
    %p84 = scmp.eq.s32.totalorder %s16, 3
    %p85 = por %p83, %p84
    %p86 = scmp.ne.s32.totalorder %s75, %s76
    %p87 = scmp.eq.s32.totalorder %s16, 0
    %p88 = por %p86, %p87
    %p89 = scmp.ne.s32.totalorder %s75, %s76
    %p90 = scmp.eq.s32.totalorder %s17, 3
    %p91 = por %p89, %p90
    %p93 = scmp.ne.s32.totalorder %s76, %s92
    %p94 = scmp.eq.s32.totalorder %s17, 0
    %p95 = por %p93, %p94
    %s97 = sadd.s32 %s96, 1
    %p100 = scmp.eq.s32.totalorder %s11, 3
    %p101 = scmp.ne.s32.totalorder %s96, %s98
    %p102 = scmp.eq.s32.totalorder %s11, 0
    %p103 = por %p101, %p102
    %p104 = scmp.ne.s32.totalorder %s96, %s98
    %p105 = scmp.eq.s32.totalorder %s16, 3
    %p106 = por %p104, %p105
    %p107 = scmp.ne.s32.totalorder %s98, %s99
    %p108 = scmp.eq.s32.totalorder %s16, 0
    %p109 = por %p107, %p108
    %p110 = scmp.ne.s32.totalorder %s98, %s99
    %p111 = scmp.eq.s32.totalorder %s17, 3
    %p112 = por %p110, %p111
    %p114 = scmp.ne.s32.totalorder %s99, %s113
    %p115 = scmp.eq.s32.totalorder %s17, 0
    %p116 = por %p114, %p115
    %s117 = ssub.s32 %s18, %s37
    %s118 = ssub.s32 %s19, %s33
    %s119 = sor.u32 %s117, %s118
    %p120 = scmp.eq.s32.totalorder %s119, 0
    %s122 = sadd.s32 %s121, 1
    %s123 = scalar_select %p120, %s121, %s122
    %p126 = pneg %p120
    %p127 = scmp.eq.s32.totalorder %s11, 3
    %p128 = por %p126, %p127
    %p129 = scmp.ne.s32.totalorder %s121, %s124
    %p130 = scmp.eq.s32.totalorder %s11, 0
    %p131 = por %p129, %p130
    %p132 = scmp.ne.s32.totalorder %s121, %s124
    %p133 = scmp.eq.s32.totalorder %s16, 3
    %p134 = por %p132, %p133
    %p135 = scmp.ne.s32.totalorder %s124, %s125
    %p136 = scmp.eq.s32.totalorder %s16, 0
    %p137 = por %p135, %p136
    %p138 = scmp.ne.s32.totalorder %s124, %s125
    %p139 = scmp.eq.s32.totalorder %s17, 3
    %p140 = por %p138, %p139
    %p142 = scmp.ne.s32.totalorder %s125, %s141
    %p143 = scmp.eq.s32.totalorder %s17, 0
    %p144 = por %p142, %p143
    %s146 = sadd.s32 %s145, 1
    %p149 = scmp.eq.s32.totalorder %s11, 3
    %p150 = scmp.ne.s32.totalorder %s145, %s147
    %p151 = scmp.eq.s32.totalorder %s11, 0
    %p152 = por %p150, %p151
    %p153 = scmp.ne.s32.totalorder %s145, %s147
    %p154 = scmp.eq.s32.totalorder %s16, 3
    %p155 = por %p153, %p154
    %p156 = scmp.ne.s32.totalorder %s147, %s148
    %p157 = scmp.eq.s32.totalorder %s16, 0
    %p158 = por %p156, %p157
    %p159 = scmp.ne.s32.totalorder %s147, %s148
    %p160 = scmp.eq.s32.totalorder %s17, 3
    %p161 = por %p159, %p160
    %p163 = scmp.ne.s32.totalorder %s148, %s162
    %p164 = scmp.eq.s32.totalorder %s17, 0
    %p165 = por %p163, %p164
    %p166 = scmp.le.s32.totalorder 1, %s11
    %p167 = scmp.lt.s32.totalorder %s11, 5
    %p168 = pnand %p166, %p167
    %p169 = pneg %p168
    // Predicated region
    $region9: #{generator_forward.15} parent=5 // pred_check
      _
    $region10: #{generator_forward.15} parent=5 // pred_check_branch
      %171 = sbr.rel (%p168) target = $region12
    $region11: #{generator_forward.15} parent=5 // pred_region
      %s172 = ssub.s32 %s11, 1
      // Predicated region
      $region13: #{generator_forward.15} parent=11 // pred_check
        %p173 = pneg %p109
      $region14: #{generator_forward.15} parent=11 // pred_check_branch
        %175 = sbr.rel (%p173) target = $region16
      $region15: #{generator_forward.15} parent=11 // pred_region
        _
      $region16: #{generator_forward.15} parent=11 // pred_fallthru
        _
    $region12: #{generator_forward.15} parent=5 // pred_fallthru
      _
    %p176 = scmp.lt.s32.totalorder %s11, 4
    // Predicated region
    $region17: #{generator_forward.15} parent=5 // pred_check
      %p177 = pneg %p176
    $region18: #{generator_forward.15} parent=5 // pred_check_branch
      %179 = sbr.rel (%p177) target = $region20
    $region19: #{generator_forward.15} parent=5 // pred_region
      // Predicated region
      $region21: #{generator_forward.15} parent=19 // pred_check
        %p180 = pneg %p54
      $region22: #{generator_forward.15} parent=19 // pred_check_branch
        %182 = sbr.rel (%p180) target = $region24
      $region23: #{generator_forward.15} parent=19 // pred_region
        %s183 = smul.u32 64, %s19
        %p184 = scmp.lt.s32.totalorder %s18, 3
        %s185 = scalar_select %p184, %s18, 3
        %p186 = scmp.lt.s32.totalorder %s183, 63
        %s187 = scalar_select %p186, %s183, 63
        %p188 = scmp.lt.s32.totalorder %s20, 0
        %s189 = scalar_select %p188, %s20, 0
        %s190 = sadd.s32 %s189, %s187
        %s191 = smul.addr %s185, 64
        %s192 = sadd.s32 %s190, %s191
        %s193 = smul.addr %s192, 4
        %s194 = scalar_lea.vmem %s0, %s193
        %s195 = smul.u32 64, %s19
      $region24: #{generator_forward.15} parent=19 // pred_fallthru
        _
      // Predicated region
      $region25: #{generator_forward.15} parent=19 // pred_check
        %p196 = pneg %p82
      $region26: #{generator_forward.15} parent=19 // pred_check_branch
        %198 = sbr.rel (%p196) target = $region28
      $region27: #{generator_forward.15} parent=19 // pred_region
        %s199 = smul.u32 16, %s20
        %p200 = scmp.lt.s32.totalorder %s18, 3
        %s201 = scalar_select %p200, %s18, 3
        %p202 = scmp.lt.s32.totalorder %s199, 15
        %s203 = scalar_select %p202, %s199, 15
        %s204 = smul.addr %s201, 16
        %s205 = sadd.s32 %s203, %s204
        %s206 = smul.addr %s205, 4
        %s207 = scalar_lea.vmem %s1, %s206
        %s208 = smul.u32 16, %s20
      $region28: #{generator_forward.15} parent=19 // pred_fallthru
        _
    $region20: #{generator_forward.15} parent=5 // pred_fallthru
      _
    %p209 = scmp.le.s32.totalorder 1, %s11
    %p210 = scmp.lt.s32.totalorder %s11, 5
    %p211 = pnand %p209, %p210
    %p212 = pneg %p211
    // Predicated region
    $region29: #{generator_forward.15} parent=5 // pred_check
      _
    $region30: #{generator_forward.15} parent=5 // pred_check_branch
      %214 = sbr.rel (%p211) target = $region32
    $region31: #{generator_forward.15} parent=5 // pred_region
      %s215 = ssub.s32 %s11, 1
      %s216 = smul.u32 64, %s22
      %p217 = scmp.lt.s32.totalorder %s21, 3
      %s218 = scalar_select %p217, %s21, 3
      %p219 = scmp.lt.s32.totalorder %s216, 63
      %s220 = scalar_select %p219, %s216, 63
      %p221 = scmp.lt.s32.totalorder %s23, 0
      %s222 = scalar_select %p221, %s23, 0
      %s223 = sadd.s32 %s222, %s220
      %s224 = smul.addr %s218, 64
      %s225 = sadd.s32 %s223, %s224
      %s226 = smul.addr %s225, 4
      %s227 = scalar_lea.vmem %s0, %s226
      %p228 = pneg %p60
      %p229 = pneg %p57
      %s230 = smul.u32 16, %s23
      %p231 = scmp.lt.s32.totalorder %s21, 3
      %s232 = scalar_select %p231, %s21, 3
      %p233 = scmp.lt.s32.totalorder %s230, 15
      %s234 = scalar_select %p233, %s230, 15
      %s235 = smul.addr %s232, 16
      %s236 = sadd.s32 %s234, %s235
      %s237 = smul.addr %s236, 4
      %s238 = scalar_lea.vmem %s1, %s237
      %p239 = pneg %p88
      %p240 = pneg %p85
      %p241 = pneg %p109
      %p242 = pneg %p106
      %p243 = pneg %p137
      %p244 = pneg %p134
      %s245 = smul.u32 64, %s22
      %p246 = scmp.lt.s32.totalorder %s21, 3
      %s247 = scalar_select %p246, %s21, 3
      %p248 = scmp.lt.s32.totalorder %s245, 63
      %s249 = scalar_select %p248, %s245, 63
      %s250 = smul.addr %s247, 64
      %s251 = sadd.s32 %s249, %s250
      %s252 = smul.addr %s251, 8
      %s253 = scalar_lea.vmem %s3, %s252
      %p254 = pneg %p158
      %p255 = pneg %p155
      %s256 = smul.u32 64, %s22
      %p257 = scmp.lt.s32.totalorder %s21, 3
      %s258 = scalar_select %p257, %s21, 3
      %p259 = scmp.lt.s32.totalorder %s256, 63
      %s260 = scalar_select %p259, %s256, 63
      %p261 = scmp.lt.s32.totalorder %s23, 0
      %s262 = scalar_select %p261, %s23, 0
      %s263 = sadd.s32 %s262, %s260
      %s264 = smul.addr %s258, 64
      %s265 = sadd.s32 %s263, %s264
      %s266 = smul.addr %s265, 4
      %s267 = scalar_lea.vmem %s0, %s266
      %s268 = smul.u32 64, %s22
      %s269 = smul.u32 16, %s23
      %p270 = scmp.lt.s32.totalorder %s21, 3
      %s271 = scalar_select %p270, %s21, 3
      %p272 = scmp.lt.s32.totalorder %s269, 15
      %s273 = scalar_select %p272, %s269, 15
      %s274 = smul.addr %s271, 16
      %s275 = sadd.s32 %s273, %s274
      %s276 = smul.addr %s275, 4
      %s277 = scalar_lea.vmem %s1, %s276
      %s278 = smul.u32 16, %s23
      %s279 = smul.u32 64, %s22
      %p280 = scmp.lt.s32.totalorder %s21, 3
      %s281 = scalar_select %p280, %s21, 3
      %p282 = scmp.lt.s32.totalorder %s279, 63
      %s283 = scalar_select %p282, %s279, 63
      %s284 = smul.addr %s281, 64
      %s285 = sadd.s32 %s283, %s284
      %s286 = smul.addr %s285, 8
      %s287 = scalar_lea.vmem %s3, %s286
      %s288 = smul.u32 64, %s22
      %p290 = scmp.eq.s32.totalorder %s23, 0
      // Predicated region
      $region33: #{generator_forward.15} parent=31 // pred_check
        %p291 = pneg %p290
      $region34: #{generator_forward.15} parent=31 // pred_check_branch
        %293 = sbr.rel (%p291) target = $region36
      $region35: #{generator_forward.15} parent=31 // pred_region
        %vm294 = vcmask 130048
        %295 = vst.msk [vmem:[#allocation2] sm:$0xff] %vm294, 0.0
        %296 = vst.msk [vmem:[#allocation2 + $0x8] sm:$0xff] %vm294, 0.0
        %297 = vst.msk [vmem:[#allocation2 + $0x10] sm:$0xff] %vm294, 0.0
        %298 = vst.msk [vmem:[#allocation2 + $0x18] sm:$0xff] %vm294, 0.0
        %299 = vst.msk [vmem:[#allocation2 + $0x20] sm:$0xff] %vm294, 0.0
        %300 = vst.msk [vmem:[#allocation2 + $0x28] sm:$0xff] %vm294, 0.0
        %301 = vst.msk [vmem:[#allocation2 + $0x30] sm:$0xff] %vm294, 0.0
        %302 = vst.msk [vmem:[#allocation2 + $0x38] sm:$0xff] %vm294, 0.0
        %303 = vst.msk [vmem:[#allocation2 + $0x40] sm:$0xff] %vm294, 0.0
        %304 = vst.msk [vmem:[#allocation2 + $0x48] sm:$0xff] %vm294, 0.0
        %305 = vst.msk [vmem:[#allocation2 + $0x50] sm:$0xff] %vm294, 0.0
        %306 = vst.msk [vmem:[#allocation2 + $0x58] sm:$0xff] %vm294, 0.0
        %307 = vst.msk [vmem:[#allocation2 + $0x60] sm:$0xff] %vm294, 0.0
        %308 = vst.msk [vmem:[#allocation2 + $0x68] sm:$0xff] %vm294, 0.0
        %309 = vst.msk [vmem:[#allocation2 + $0x70] sm:$0xff] %vm294, 0.0
        %310 = vst.msk [vmem:[#allocation2 + $0x78] sm:$0xff] %vm294, 0.0
        %311 = vst.msk [vmem:[#allocation2 + $0x80] sm:$0xff] %vm294, 0.0
        %312 = vst.msk [vmem:[#allocation2 + $0x88] sm:$0xff] %vm294, 0.0
        %313 = vst.msk [vmem:[#allocation2 + $0x90] sm:$0xff] %vm294, 0.0
        %314 = vst.msk [vmem:[#allocation2 + $0x98] sm:$0xff] %vm294, 0.0
        %315 = vst.msk [vmem:[#allocation2 + $0xa0] sm:$0xff] %vm294, 0.0
        %316 = vst.msk [vmem:[#allocation2 + $0xa8] sm:$0xff] %vm294, 0.0
        %317 = vst.msk [vmem:[#allocation2 + $0xb0] sm:$0xff] %vm294, 0.0
        %318 = vst.msk [vmem:[#allocation2 + $0xb8] sm:$0xff] %vm294, 0.0
        %319 = vst.msk [vmem:[#allocation2 + $0xc0] sm:$0xff] %vm294, 0.0
        %320 = vst.msk [vmem:[#allocation2 + $0xc8] sm:$0xff] %vm294, 0.0
        %321 = vst.msk [vmem:[#allocation2 + $0xd0] sm:$0xff] %vm294, 0.0
        %322 = vst.msk [vmem:[#allocation2 + $0xd8] sm:$0xff] %vm294, 0.0
        %323 = vst.msk [vmem:[#allocation2 + $0xe0] sm:$0xff] %vm294, 0.0
        %324 = vst.msk [vmem:[#allocation2 + $0xe8] sm:$0xff] %vm294, 0.0
        %325 = vst.msk [vmem:[#allocation2 + $0xf0] sm:$0xff] %vm294, 0.0
        %326 = vst.msk [vmem:[#allocation2 + $0xf8] sm:$0xff] %vm294, 0.0
        %327 = vst.msk [vmem:[#allocation2 + $0x100] sm:$0xff] %vm294, 0.0
        %328 = vst.msk [vmem:[#allocation2 + $0x108] sm:$0xff] %vm294, 0.0
        %329 = vst.msk [vmem:[#allocation2 + $0x110] sm:$0xff] %vm294, 0.0
        %330 = vst.msk [vmem:[#allocation2 + $0x118] sm:$0xff] %vm294, 0.0
        %331 = vst.msk [vmem:[#allocation2 + $0x120] sm:$0xff] %vm294, 0.0
        %332 = vst.msk [vmem:[#allocation2 + $0x128] sm:$0xff] %vm294, 0.0
        %333 = vst.msk [vmem:[#allocation2 + $0x130] sm:$0xff] %vm294, 0.0
        %334 = vst.msk [vmem:[#allocation2 + $0x138] sm:$0xff] %vm294, 0.0
        %335 = vst.msk [vmem:[#allocation2 + $0x140] sm:$0xff] %vm294, 0.0
        %336 = vst.msk [vmem:[#allocation2 + $0x148] sm:$0xff] %vm294, 0.0
        %337 = vst.msk [vmem:[#allocation2 + $0x150] sm:$0xff] %vm294, 0.0
        %338 = vst.msk [vmem:[#allocation2 + $0x158] sm:$0xff] %vm294, 0.0
        %339 = vst.msk [vmem:[#allocation2 + $0x160] sm:$0xff] %vm294, 0.0
        %340 = vst.msk [vmem:[#allocation2 + $0x168] sm:$0xff] %vm294, 0.0
        %341 = vst.msk [vmem:[#allocation2 + $0x170] sm:$0xff] %vm294, 0.0
        %342 = vst.msk [vmem:[#allocation2 + $0x178] sm:$0xff] %vm294, 0.0
        %343 = vst.msk [vmem:[#allocation2 + $0x180] sm:$0xff] %vm294, 0.0
        %344 = vst.msk [vmem:[#allocation2 + $0x188] sm:$0xff] %vm294, 0.0
        %345 = vst.msk [vmem:[#allocation2 + $0x190] sm:$0xff] %vm294, 0.0
        %346 = vst.msk [vmem:[#allocation2 + $0x198] sm:$0xff] %vm294, 0.0
        %347 = vst.msk [vmem:[#allocation2 + $0x1a0] sm:$0xff] %vm294, 0.0
        %348 = vst.msk [vmem:[#allocation2 + $0x1a8] sm:$0xff] %vm294, 0.0
        %349 = vst.msk [vmem:[#allocation2 + $0x1b0] sm:$0xff] %vm294, 0.0
        %350 = vst.msk [vmem:[#allocation2 + $0x1b8] sm:$0xff] %vm294, 0.0
        %351 = vst.msk [vmem:[#allocation2 + $0x1c0] sm:$0xff] %vm294, 0.0
        %352 = vst.msk [vmem:[#allocation2 + $0x1c8] sm:$0xff] %vm294, 0.0
        %353 = vst.msk [vmem:[#allocation2 + $0x1d0] sm:$0xff] %vm294, 0.0
        %354 = vst.msk [vmem:[#allocation2 + $0x1d8] sm:$0xff] %vm294, 0.0
        %355 = vst.msk [vmem:[#allocation2 + $0x1e0] sm:$0xff] %vm294, 0.0
        %356 = vst.msk [vmem:[#allocation2 + $0x1e8] sm:$0xff] %vm294, 0.0
        %357 = vst.msk [vmem:[#allocation2 + $0x1f0] sm:$0xff] %vm294, 0.0
        %358 = vst.msk [vmem:[#allocation2 + $0x1f8] sm:$0xff] %vm294, 0.0
      $region36: #{generator_forward.15} parent=31 // pred_fallthru
        _
      %p359 = scmp.eq.s32.totalorder %s21, 0
      %p360 = scmp.eq.s32.totalorder %s22, 0
      %p361 = pnand %p359, %p360
      %p362 = pneg %p361
      %p363 = pnand %p362, %p290
      %p364 = pneg %p363
      // Predicated region
      $region37: #{generator_forward.15} parent=31 // pred_check
        _
      $region38: #{generator_forward.15} parent=31 // pred_check_branch
        %366 = sbr.rel (%p363) target = $region40
      $region39: #{generator_forward.15} parent=31 // pred_region
        %vm367 = vcmask 123904
        %368 = vst.msk [vmem:[%s4] sm:$0x3] %vm367, 0.0
      $region40: #{generator_forward.15} parent=31 // pred_fallthru
        _
      %v369 = vld [vmem:[#allocation2] sm:$0xff]
      %v370 = vld [vmem:[#allocation2 + $0x8] sm:$0xff]
      %v371 = vld [vmem:[#allocation2 + $0x10] sm:$0xff]
      %v372 = vld [vmem:[#allocation2 + $0x18] sm:$0xff]
      %v373 = vld [vmem:[#allocation2 + $0x20] sm:$0xff]
      %v374 = vld [vmem:[#allocation2 + $0x28] sm:$0xff]
      %v375 = vld [vmem:[#allocation2 + $0x30] sm:$0xff]
      %v376 = vld [vmem:[#allocation2 + $0x38] sm:$0xff]
      %v377 = vld [vmem:[#allocation2 + $0x40] sm:$0xff]
      %v378 = vld [vmem:[#allocation2 + $0x48] sm:$0xff]
      %v379 = vld [vmem:[#allocation2 + $0x50] sm:$0xff]
      %v380 = vld [vmem:[#allocation2 + $0x58] sm:$0xff]
      %v381 = vld [vmem:[#allocation2 + $0x60] sm:$0xff]
      %v382 = vld [vmem:[#allocation2 + $0x68] sm:$0xff]
      %v383 = vld [vmem:[#allocation2 + $0x70] sm:$0xff]
      %v384 = vld [vmem:[#allocation2 + $0x78] sm:$0xff]
      %v385 = vld [vmem:[#allocation2 + $0x80] sm:$0xff]
      %v386 = vld [vmem:[#allocation2 + $0x88] sm:$0xff]
      %v387 = vld [vmem:[#allocation2 + $0x90] sm:$0xff]
      %v388 = vld [vmem:[#allocation2 + $0x98] sm:$0xff]
      %v389 = vld [vmem:[#allocation2 + $0xa0] sm:$0xff]
      %v390 = vld [vmem:[#allocation2 + $0xa8] sm:$0xff]
      %v391 = vld [vmem:[#allocation2 + $0xb0] sm:$0xff]
      %v392 = vld [vmem:[#allocation2 + $0xb8] sm:$0xff]
      %v393 = vld [vmem:[#allocation2 + $0xc0] sm:$0xff]
      %v394 = vld [vmem:[#allocation2 + $0xc8] sm:$0xff]
      %v395 = vld [vmem:[#allocation2 + $0xd0] sm:$0xff]
      %v396 = vld [vmem:[#allocation2 + $0xd8] sm:$0xff]
      %v397 = vld [vmem:[#allocation2 + $0xe0] sm:$0xff]
      %v398 = vld [vmem:[#allocation2 + $0xe8] sm:$0xff]
      %v399 = vld [vmem:[#allocation2 + $0xf0] sm:$0xff]
      %v400 = vld [vmem:[#allocation2 + $0xf8] sm:$0xff]
      %v401 = vld [vmem:[#allocation2 + $0x100] sm:$0xff]
      %v402 = vld [vmem:[#allocation2 + $0x108] sm:$0xff]
      %v403 = vld [vmem:[#allocation2 + $0x110] sm:$0xff]
      %v404 = vld [vmem:[#allocation2 + $0x118] sm:$0xff]
      %v405 = vld [vmem:[#allocation2 + $0x120] sm:$0xff]
      %v406 = vld [vmem:[#allocation2 + $0x128] sm:$0xff]
      %v407 = vld [vmem:[#allocation2 + $0x130] sm:$0xff]
      %v408 = vld [vmem:[#allocation2 + $0x138] sm:$0xff]
      %v409 = vld [vmem:[#allocation2 + $0x140] sm:$0xff]
      %v410 = vld [vmem:[#allocation2 + $0x148] sm:$0xff]
      %v411 = vld [vmem:[#allocation2 + $0x150] sm:$0xff]
      %v412 = vld [vmem:[#allocation2 + $0x158] sm:$0xff]
      %v413 = vld [vmem:[#allocation2 + $0x160] sm:$0xff]
      %v414 = vld [vmem:[#allocation2 + $0x168] sm:$0xff]
      %v415 = vld [vmem:[#allocation2 + $0x170] sm:$0xff]
      %v416 = vld [vmem:[#allocation2 + $0x178] sm:$0xff]
      %v417 = vld [vmem:[#allocation2 + $0x180] sm:$0xff]
      %v418 = vld [vmem:[#allocation2 + $0x188] sm:$0xff]
      %v419 = vld [vmem:[#allocation2 + $0x190] sm:$0xff]
      %v420 = vld [vmem:[#allocation2 + $0x198] sm:$0xff]
      %v421 = vld [vmem:[#allocation2 + $0x1a0] sm:$0xff]
      %v422 = vld [vmem:[#allocation2 + $0x1a8] sm:$0xff]
      %v423 = vld [vmem:[#allocation2 + $0x1b0] sm:$0xff]
      %v424 = vld [vmem:[#allocation2 + $0x1b8] sm:$0xff]
      %v425 = vld [vmem:[#allocation2 + $0x1c0] sm:$0xff]
      %v426 = vld [vmem:[#allocation2 + $0x1c8] sm:$0xff]
      %v427 = vld [vmem:[#allocation2 + $0x1d0] sm:$0xff]
      %v428 = vld [vmem:[#allocation2 + $0x1d8] sm:$0xff]
      %v429 = vld [vmem:[#allocation2 + $0x1e0] sm:$0xff]
      %v430 = vld [vmem:[#allocation2 + $0x1e8] sm:$0xff]
      %v431 = vld [vmem:[#allocation2 + $0x1f0] sm:$0xff]
      %v432 = vld [vmem:[#allocation2 + $0x1f8] sm:$0xff]
      %v433 = vld [vmem:[%s267] sm:$0xf]
      %v434 = vld [vmem:[%s267 + $0x4] sm:$0xf]
      %v435 = vld [vmem:[%s267 + $0x8] sm:$0xf]
      %v436 = vld [vmem:[%s267 + $0xc] sm:$0xf]
      %v437 = vld [vmem:[%s267 + $0x10] sm:$0xf]
      %v438 = vld [vmem:[%s267 + $0x14] sm:$0xf]
      %v439 = vld [vmem:[%s267 + $0x18] sm:$0xf]
      %v440 = vld [vmem:[%s267 + $0x1c] sm:$0xf]
      %v441 = vld [vmem:[%s267 + $0x20] sm:$0xf]
      %v442 = vld [vmem:[%s267 + $0x24] sm:$0xf]
      %v443 = vld [vmem:[%s267 + $0x28] sm:$0xf]
      %v444 = vld [vmem:[%s267 + $0x2c] sm:$0xf]
      %v445 = vld [vmem:[%s267 + $0x30] sm:$0xf]
      %v446 = vld [vmem:[%s267 + $0x34] sm:$0xf]
      %v447 = vld [vmem:[%s267 + $0x38] sm:$0xf]
      %v448 = vld [vmem:[%s267 + $0x3c] sm:$0xf]
      %v449 = vld [vmem:[%s267 + $0x40] sm:$0xf]
      %v450 = vld [vmem:[%s267 + $0x44] sm:$0xf]
      %v451 = vld [vmem:[%s267 + $0x48] sm:$0xf]
      %v452 = vld [vmem:[%s267 + $0x4c] sm:$0xf]
      %v453 = vld [vmem:[%s267 + $0x50] sm:$0xf]
      %v454 = vld [vmem:[%s267 + $0x54] sm:$0xf]
      %v455 = vld [vmem:[%s267 + $0x58] sm:$0xf]
      %v456 = vld [vmem:[%s267 + $0x5c] sm:$0xf]
      %v457 = vld [vmem:[%s267 + $0x60] sm:$0xf]
      %v458 = vld [vmem:[%s267 + $0x64] sm:$0xf]
      %v459 = vld [vmem:[%s267 + $0x68] sm:$0xf]
      %v460 = vld [vmem:[%s267 + $0x6c] sm:$0xf]
      %v461 = vld [vmem:[%s267 + $0x70] sm:$0xf]
      %v462 = vld [vmem:[%s267 + $0x74] sm:$0xf]
      %v463 = vld [vmem:[%s267 + $0x78] sm:$0xf]
      %v464 = vld [vmem:[%s267 + $0x7c] sm:$0xf]
      %v465 = vld [vmem:[%s267 + $0x80] sm:$0xf]
      %v466 = vld [vmem:[%s267 + $0x84] sm:$0xf]
      %v467 = vld [vmem:[%s267 + $0x88] sm:$0xf]
      %v468 = vld [vmem:[%s267 + $0x8c] sm:$0xf]
      %v469 = vld [vmem:[%s267 + $0x90] sm:$0xf]
      %v470 = vld [vmem:[%s267 + $0x94] sm:$0xf]
      %v471 = vld [vmem:[%s267 + $0x98] sm:$0xf]
      %v472 = vld [vmem:[%s267 + $0x9c] sm:$0xf]
      %v473 = vld [vmem:[%s267 + $0xa0] sm:$0xf]
      %v474 = vld [vmem:[%s267 + $0xa4] sm:$0xf]
      %v475 = vld [vmem:[%s267 + $0xa8] sm:$0xf]
      %v476 = vld [vmem:[%s267 + $0xac] sm:$0xf]
      %v477 = vld [vmem:[%s267 + $0xb0] sm:$0xf]
      %v478 = vld [vmem:[%s267 + $0xb4] sm:$0xf]
      %v479 = vld [vmem:[%s267 + $0xb8] sm:$0xf]
      %v480 = vld [vmem:[%s267 + $0xbc] sm:$0xf]
      %v481 = vld [vmem:[%s267 + $0xc0] sm:$0xf]
      %v482 = vld [vmem:[%s267 + $0xc4] sm:$0xf]
      %v483 = vld [vmem:[%s267 + $0xc8] sm:$0xf]
      %v484 = vld [vmem:[%s267 + $0xcc] sm:$0xf]
      %v485 = vld [vmem:[%s267 + $0xd0] sm:$0xf]
      %v486 = vld [vmem:[%s267 + $0xd4] sm:$0xf]
      %v487 = vld [vmem:[%s267 + $0xd8] sm:$0xf]
      %v488 = vld [vmem:[%s267 + $0xdc] sm:$0xf]
      %v489 = vld [vmem:[%s267 + $0xe0] sm:$0xf]
      %v490 = vld [vmem:[%s267 + $0xe4] sm:$0xf]
      %v491 = vld [vmem:[%s267 + $0xe8] sm:$0xf]
      %v492 = vld [vmem:[%s267 + $0xec] sm:$0xf]
      %v493 = vld [vmem:[%s267 + $0xf0] sm:$0xf]
      %v494 = vld [vmem:[%s267 + $0xf4] sm:$0xf]
      %v495 = vld [vmem:[%s267 + $0xf8] sm:$0xf]
      %v496 = vld [vmem:[%s267 + $0xfc] sm:$0xf]
      %v497 = vld [vmem:[%s277] sm:$0xf]
      %v498 = vld [vmem:[%s277 + $0x4] sm:$0xf]
      %v499 = vld [vmem:[%s277 + $0x8] sm:$0xf]
      %v500 = vld [vmem:[%s277 + $0xc] sm:$0xf]
      %v501 = vld [vmem:[%s277 + $0x10] sm:$0xf]
      %v502 = vld [vmem:[%s277 + $0x14] sm:$0xf]
      %v503 = vld [vmem:[%s277 + $0x18] sm:$0xf]
      %v504 = vld [vmem:[%s277 + $0x1c] sm:$0xf]
      %v505 = vld [vmem:[%s277 + $0x20] sm:$0xf]
      %v506 = vld [vmem:[%s277 + $0x24] sm:$0xf]
      %v507 = vld [vmem:[%s277 + $0x28] sm:$0xf]
      %v508 = vld [vmem:[%s277 + $0x2c] sm:$0xf]
      %v509 = vld [vmem:[%s277 + $0x30] sm:$0xf]
      %v510 = vld [vmem:[%s277 + $0x34] sm:$0xf]
      %v511 = vld [vmem:[%s277 + $0x38] sm:$0xf]
      %v512 = vld [vmem:[%s277 + $0x3c] sm:$0xf]
      %v577 = vunpack.c.l.b16 %v433
      %v578 = vunpack.c.l.b16 %v434
      %v579 = vunpack.c.l.b16 %v435
      %v580 = vunpack.c.l.b16 %v436
      %v581 = vunpack.c.l.b16 %v437
      %v582 = vunpack.c.l.b16 %v438
      %v583 = vunpack.c.l.b16 %v439
      %v584 = vunpack.c.l.b16 %v440
      %v585 = vunpack.c.l.b16 %v441
      %v586 = vunpack.c.l.b16 %v442
      %v587 = vunpack.c.l.b16 %v443
      %v588 = vunpack.c.l.b16 %v444
      %v589 = vunpack.c.l.b16 %v445
      %v590 = vunpack.c.l.b16 %v446
      %v591 = vunpack.c.l.b16 %v447
      %v592 = vunpack.c.l.b16 %v448
      %v593 = vunpack.c.l.b16 %v449
      %v594 = vunpack.c.l.b16 %v450
      %v595 = vunpack.c.l.b16 %v451
      %v596 = vunpack.c.l.b16 %v452
      %v597 = vunpack.c.l.b16 %v453
      %v598 = vunpack.c.l.b16 %v454
      %v599 = vunpack.c.l.b16 %v455
      %v600 = vunpack.c.l.b16 %v456
      %v601 = vunpack.c.l.b16 %v457
      %v602 = vunpack.c.l.b16 %v458
      %v603 = vunpack.c.l.b16 %v459
      %v604 = vunpack.c.l.b16 %v460
      %v605 = vunpack.c.l.b16 %v461
      %v606 = vunpack.c.l.b16 %v462
      %v607 = vunpack.c.l.b16 %v463
      %v608 = vunpack.c.l.b16 %v464
      %v609 = vunpack.c.l.b16 %v465
      %v610 = vunpack.c.l.b16 %v466
      %v611 = vunpack.c.l.b16 %v467
      %v612 = vunpack.c.l.b16 %v468
      %v613 = vunpack.c.l.b16 %v469
      %v614 = vunpack.c.l.b16 %v470
      %v615 = vunpack.c.l.b16 %v471
      %v616 = vunpack.c.l.b16 %v472
      %v617 = vunpack.c.l.b16 %v473
      %v618 = vunpack.c.l.b16 %v474
      %v619 = vunpack.c.l.b16 %v475
      %v620 = vunpack.c.l.b16 %v476
      %v621 = vunpack.c.l.b16 %v477
      %v622 = vunpack.c.l.b16 %v478
      %v623 = vunpack.c.l.b16 %v479
      %v624 = vunpack.c.l.b16 %v480
      %v625 = vunpack.c.l.b16 %v481
      %v626 = vunpack.c.l.b16 %v482
      %v627 = vunpack.c.l.b16 %v483
      %v628 = vunpack.c.l.b16 %v484
      %v629 = vunpack.c.l.b16 %v485
      %v630 = vunpack.c.l.b16 %v486
      %v631 = vunpack.c.l.b16 %v487
      %v632 = vunpack.c.l.b16 %v488
      %v633 = vunpack.c.l.b16 %v489
      %v634 = vunpack.c.l.b16 %v490
      %v635 = vunpack.c.l.b16 %v491
      %v636 = vunpack.c.l.b16 %v492
      %v637 = vunpack.c.l.b16 %v493
      %v638 = vunpack.c.l.b16 %v494
      %v639 = vunpack.c.l.b16 %v495
      %v640 = vunpack.c.l.b16 %v496
      %v641 = vpack.c.b16 %v578, %v577
      %v642 = vpack.c.b16 %v580, %v579
      %v643 = vpack.c.b16 %v582, %v581
      %v644 = vpack.c.b16 %v584, %v583
      %v645 = vpack.c.b16 %v586, %v585
      %v646 = vpack.c.b16 %v588, %v587
      %v647 = vpack.c.b16 %v590, %v589
      %v648 = vpack.c.b16 %v592, %v591
      %v649 = vpack.c.b16 %v594, %v593
      %v650 = vpack.c.b16 %v596, %v595
      %v651 = vpack.c.b16 %v598, %v597
      %v652 = vpack.c.b16 %v600, %v599
      %v653 = vpack.c.b16 %v602, %v601
      %v654 = vpack.c.b16 %v604, %v603
      %v655 = vpack.c.b16 %v606, %v605
      %v656 = vpack.c.b16 %v608, %v607
      %v657 = vpack.c.b16 %v610, %v609
      %v658 = vpack.c.b16 %v612, %v611
      %v659 = vpack.c.b16 %v614, %v613
      %v660 = vpack.c.b16 %v616, %v615
      %v661 = vpack.c.b16 %v618, %v617
      %v662 = vpack.c.b16 %v620, %v619
      %v663 = vpack.c.b16 %v622, %v621
      %v664 = vpack.c.b16 %v624, %v623
      %v665 = vpack.c.b16 %v626, %v625
      %v666 = vpack.c.b16 %v628, %v627
      %v667 = vpack.c.b16 %v630, %v629
      %v668 = vpack.c.b16 %v632, %v631
      %v669 = vpack.c.b16 %v634, %v633
      %v670 = vpack.c.b16 %v636, %v635
      %v671 = vpack.c.b16 %v638, %v637
      %v672 = vpack.c.b16 %v640, %v639
      %v721 = vunpack.c.l.b16 %v497
      %v722 = vunpack.c.l.b16 %v498
      %v723 = vunpack.c.l.b16 %v499
      %v724 = vunpack.c.l.b16 %v500
      %v725 = vunpack.c.l.b16 %v501
      %v726 = vunpack.c.l.b16 %v502
      %v727 = vunpack.c.l.b16 %v503
      %v728 = vunpack.c.l.b16 %v504
      %v729 = vunpack.c.l.b16 %v505
      %v730 = vunpack.c.l.b16 %v506
      %v731 = vunpack.c.l.b16 %v507
      %v732 = vunpack.c.l.b16 %v508
      %v733 = vunpack.c.l.b16 %v509
      %v734 = vunpack.c.l.b16 %v510
      %v735 = vunpack.c.l.b16 %v511
      %v736 = vunpack.c.l.b16 %v512
      %v737 = vpack.c.b16 %v722, %v721
      %v738 = vpack.c.b16 %v724, %v723
      %v739 = vpack.c.b16 %v726, %v725
      %v740 = vpack.c.b16 %v728, %v727
      %v741 = vpack.c.b16 %v730, %v729
      %v742 = vpack.c.b16 %v732, %v731
      %v743 = vpack.c.b16 %v734, %v733
      %v744 = vpack.c.b16 %v736, %v735
      %753 = vmatprep.subr.bf16.mxu0 0
      %754 = vmatpush1.bf16.msra.mxu0 %v744
      %755 = vmatprep.subr.bf16.mxu0 0
      %756 = vmatpush1.bf16.msra.mxu0 %v743
      %757 = vmatprep.subr.bf16.mxu0 0
      %758 = vmatpush1.bf16.msra.mxu0 %v742
      %759 = vmatprep.subr.bf16.mxu0 0
      %760 = vmatpush1.bf16.msra.mxu0 %v741
      %761 = vmatprep.subr.bf16.mxu0 0
      %762 = vmatpush1.bf16.msra.mxu0 %v740
      %763 = vmatprep.subr.bf16.mxu0 0
      %764 = vmatpush1.bf16.msra.mxu0 %v739
      %765 = vmatprep.subr.bf16.mxu0 0
      %766 = vmatpush1.bf16.msra.mxu0 %v738
      %767 = vmatprep.subr.bf16.mxu0 0
      %768 = vmatpush1.bf16.msra.mxu0 %v737
      %769 = vmatprep.subr.bf16.mxu0 0
      %770 = vmatpush2.bf16.msra.mxu0 0
      %771 = vmatprep.subr.bf16.mxu0 0
      %772 = vmatpush2.bf16.msra.mxu0 0
      %773 = vmatprep.subr.bf16.mxu0 0
      %774 = vmatpush2.bf16.msra.mxu0 0
      %775 = vmatprep.subr.bf16.mxu0 0
      %776 = vmatpush2.bf16.msra.mxu0 0
      %777 = vmatprep.subr.bf16.mxu0 0
      %778 = vmatpush2.bf16.msra.mxu0 0
      %779 = vmatprep.subr.bf16.mxu0 0
      %780 = vmatpush2.bf16.msra.mxu0 0
      %781 = vmatprep.subr.bf16.mxu0 0
      %782 = vmatpush2.bf16.msra.mxu0 0
      %783 = vmatprep.subr.bf16.mxu0 0
      %784 = vmatpush2.bf16.msra.mxu0 0
      %785 = vmatprep.mubr.bf16.mxu0 0
      %786 = vmatmul.mubr.bf16.gmra.mxu0 %v641
      %v787 = vpop.f32.mrf.mxu0
      %v788 = vadd.f32 0.0, %v787
      %v789 = vpop.f32.mrf.mxu0
      %v790 = vpop.f32.mrf.mxu0
      %v791 = vadd.f32 0.0, %v790
      %v792 = vpop.f32.mrf.mxu0
      %793 = vmatprep.mubr.bf16.mxu0 0
      %794 = vmatmul.mubr.bf16.gmra.mxu0 %v642
      %v795 = vpop.f32.mrf.mxu0
      %v796 = vadd.f32 0.0, %v795
      %v797 = vpop.f32.mrf.mxu0
      %v798 = vpop.f32.mrf.mxu0
      %v799 = vadd.f32 0.0, %v798
      %v800 = vpop.f32.mrf.mxu0
      %801 = vmatprep.mubr.bf16.mxu0 0
      %802 = vmatmul.mubr.bf16.gmra.mxu0 %v643
      %v803 = vpop.f32.mrf.mxu0
      %v804 = vadd.f32 0.0, %v803
      %v805 = vpop.f32.mrf.mxu0
      %v806 = vpop.f32.mrf.mxu0
      %v807 = vadd.f32 0.0, %v806
      %v808 = vpop.f32.mrf.mxu0
      %809 = vmatprep.mubr.bf16.mxu0 0
      %810 = vmatmul.mubr.bf16.gmra.mxu0 %v644
      %v811 = vpop.f32.mrf.mxu0
      %v812 = vadd.f32 0.0, %v811
      %v813 = vpop.f32.mrf.mxu0
      %v814 = vpop.f32.mrf.mxu0
      %v815 = vadd.f32 0.0, %v814
      %v816 = vpop.f32.mrf.mxu0
      %817 = vmatprep.mubr.bf16.mxu0 0
      %818 = vmatmul.mubr.bf16.gmra.mxu0 %v645
      %v819 = vpop.f32.mrf.mxu0
      %v820 = vadd.f32 0.0, %v819
      %v821 = vpop.f32.mrf.mxu0
      %v822 = vpop.f32.mrf.mxu0
      %v823 = vadd.f32 0.0, %v822
      %v824 = vpop.f32.mrf.mxu0
      %825 = vmatprep.mubr.bf16.mxu0 0
      %826 = vmatmul.mubr.bf16.gmra.mxu0 %v646
      %v827 = vpop.f32.mrf.mxu0
      %v828 = vadd.f32 0.0, %v827
      %v829 = vpop.f32.mrf.mxu0
      %v830 = vpop.f32.mrf.mxu0
      %v831 = vadd.f32 0.0, %v830
      %v832 = vpop.f32.mrf.mxu0
      %833 = vmatprep.mubr.bf16.mxu0 0
      %834 = vmatmul.mubr.bf16.gmra.mxu0 %v647
      %v835 = vpop.f32.mrf.mxu0
      %v836 = vadd.f32 0.0, %v835
      %v837 = vpop.f32.mrf.mxu0
      %v838 = vpop.f32.mrf.mxu0
      %v839 = vadd.f32 0.0, %v838
      %v840 = vpop.f32.mrf.mxu0
      %841 = vmatprep.mubr.bf16.mxu0 0
      %842 = vmatmul.mubr.bf16.gmra.mxu0 %v648
      %v843 = vpop.f32.mrf.mxu0
      %v844 = vadd.f32 0.0, %v843
      %v845 = vpop.f32.mrf.mxu0
      %v846 = vpop.f32.mrf.mxu0
      %v847 = vadd.f32 0.0, %v846
      %v848 = vpop.f32.mrf.mxu0
      %849 = vmatprep.mubr.bf16.mxu0 0
      %850 = vmatmul.mubr.bf16.gmra.mxu0 %v649
      %v851 = vpop.f32.mrf.mxu0
      %v852 = vadd.f32 0.0, %v851
      %v853 = vpop.f32.mrf.mxu0
      %v854 = vpop.f32.mrf.mxu0
      %v855 = vadd.f32 0.0, %v854
      %v856 = vpop.f32.mrf.mxu0
      %857 = vmatprep.mubr.bf16.mxu0 0
      %858 = vmatmul.mubr.bf16.gmra.mxu0 %v650
      %v859 = vpop.f32.mrf.mxu0
      %v860 = vadd.f32 0.0, %v859
      %v861 = vpop.f32.mrf.mxu0
      %v862 = vpop.f32.mrf.mxu0
      %v863 = vadd.f32 0.0, %v862
      %v864 = vpop.f32.mrf.mxu0
      %865 = vmatprep.mubr.bf16.mxu0 0
      %866 = vmatmul.mubr.bf16.gmra.mxu0 %v651
      %v867 = vpop.f32.mrf.mxu0
      %v868 = vadd.f32 0.0, %v867
      %v869 = vpop.f32.mrf.mxu0
      %v870 = vpop.f32.mrf.mxu0
      %v871 = vadd.f32 0.0, %v870
      %v872 = vpop.f32.mrf.mxu0
      %873 = vmatprep.mubr.bf16.mxu0 0
      %874 = vmatmul.mubr.bf16.gmra.mxu0 %v652
      %v875 = vpop.f32.mrf.mxu0
      %v876 = vadd.f32 0.0, %v875
      %v877 = vpop.f32.mrf.mxu0
      %v878 = vpop.f32.mrf.mxu0
      %v879 = vadd.f32 0.0, %v878
      %v880 = vpop.f32.mrf.mxu0
      %881 = vmatprep.mubr.bf16.mxu0 0
      %882 = vmatmul.mubr.bf16.gmra.mxu0 %v653
      %v883 = vpop.f32.mrf.mxu0
      %v884 = vadd.f32 0.0, %v883
      %v885 = vpop.f32.mrf.mxu0
      %v886 = vpop.f32.mrf.mxu0
      %v887 = vadd.f32 0.0, %v886
      %v888 = vpop.f32.mrf.mxu0
      %889 = vmatprep.mubr.bf16.mxu0 0
      %890 = vmatmul.mubr.bf16.gmra.mxu0 %v654
      %v891 = vpop.f32.mrf.mxu0
      %v892 = vadd.f32 0.0, %v891
      %v893 = vpop.f32.mrf.mxu0
      %v894 = vpop.f32.mrf.mxu0
      %v895 = vadd.f32 0.0, %v894
      %v896 = vpop.f32.mrf.mxu0
      %897 = vmatprep.mubr.bf16.mxu0 0
      %898 = vmatmul.mubr.bf16.gmra.mxu0 %v655
      %v899 = vpop.f32.mrf.mxu0
      %v900 = vadd.f32 0.0, %v899
      %v901 = vpop.f32.mrf.mxu0
      %v902 = vpop.f32.mrf.mxu0
      %v903 = vadd.f32 0.0, %v902
      %v904 = vpop.f32.mrf.mxu0
      %905 = vmatprep.mubr.bf16.mxu0 0
      %906 = vmatmul.mubr.bf16.gmra.mxu0 %v656
      %v907 = vpop.f32.mrf.mxu0
      %v908 = vadd.f32 0.0, %v907
      %v909 = vpop.f32.mrf.mxu0
      %v910 = vpop.f32.mrf.mxu0
      %v911 = vadd.f32 0.0, %v910
      %v912 = vpop.f32.mrf.mxu0
      %913 = vmatprep.mubr.bf16.mxu0 0
      %914 = vmatmul.mubr.bf16.gmra.mxu0 %v657
      %v915 = vpop.f32.mrf.mxu0
      %v916 = vadd.f32 0.0, %v915
      %v917 = vpop.f32.mrf.mxu0
      %v918 = vpop.f32.mrf.mxu0
      %v919 = vadd.f32 0.0, %v918
      %v920 = vpop.f32.mrf.mxu0
      %921 = vmatprep.mubr.bf16.mxu0 0
      %922 = vmatmul.mubr.bf16.gmra.mxu0 %v658
      %v923 = vpop.f32.mrf.mxu0
      %v924 = vadd.f32 0.0, %v923
      %v925 = vpop.f32.mrf.mxu0
      %v926 = vpop.f32.mrf.mxu0
      %v927 = vadd.f32 0.0, %v926
      %v928 = vpop.f32.mrf.mxu0
      %929 = vmatprep.mubr.bf16.mxu0 0
      %930 = vmatmul.mubr.bf16.gmra.mxu0 %v659
      %v931 = vpop.f32.mrf.mxu0
      %v932 = vadd.f32 0.0, %v931
      %v933 = vpop.f32.mrf.mxu0
      %v934 = vpop.f32.mrf.mxu0
      %v935 = vadd.f32 0.0, %v934
      %v936 = vpop.f32.mrf.mxu0
      %937 = vmatprep.mubr.bf16.mxu0 0
      %938 = vmatmul.mubr.bf16.gmra.mxu0 %v660
      %v939 = vpop.f32.mrf.mxu0
      %v940 = vadd.f32 0.0, %v939
      %v941 = vpop.f32.mrf.mxu0
      %v942 = vpop.f32.mrf.mxu0
      %v943 = vadd.f32 0.0, %v942
      %v944 = vpop.f32.mrf.mxu0
      %945 = vmatprep.mubr.bf16.mxu0 0
      %946 = vmatmul.mubr.bf16.gmra.mxu0 %v661
      %v947 = vpop.f32.mrf.mxu0
      %v948 = vadd.f32 0.0, %v947
      %v949 = vpop.f32.mrf.mxu0
      %v950 = vpop.f32.mrf.mxu0
      %v951 = vadd.f32 0.0, %v950
      %v952 = vpop.f32.mrf.mxu0
      %953 = vmatprep.mubr.bf16.mxu0 0
      %954 = vmatmul.mubr.bf16.gmra.mxu0 %v662
      %v955 = vpop.f32.mrf.mxu0
      %v956 = vadd.f32 0.0, %v955
      %v957 = vpop.f32.mrf.mxu0
      %v958 = vpop.f32.mrf.mxu0
      %v959 = vadd.f32 0.0, %v958
      %v960 = vpop.f32.mrf.mxu0
      %961 = vmatprep.mubr.bf16.mxu0 0
      %962 = vmatmul.mubr.bf16.gmra.mxu0 %v663
      %v963 = vpop.f32.mrf.mxu0
      %v964 = vadd.f32 0.0, %v963
      %v965 = vpop.f32.mrf.mxu0
      %v966 = vpop.f32.mrf.mxu0
      %v967 = vadd.f32 0.0, %v966
      %v968 = vpop.f32.mrf.mxu0
      %969 = vmatprep.mubr.bf16.mxu0 0
      %970 = vmatmul.mubr.bf16.gmra.mxu0 %v664
      %v971 = vpop.f32.mrf.mxu0
      %v972 = vadd.f32 0.0, %v971
      %v973 = vpop.f32.mrf.mxu0
      %v974 = vpop.f32.mrf.mxu0
      %v975 = vadd.f32 0.0, %v974
      %v976 = vpop.f32.mrf.mxu0
      %977 = vmatprep.mubr.bf16.mxu0 0
      %978 = vmatmul.mubr.bf16.gmra.mxu0 %v665
      %v979 = vpop.f32.mrf.mxu0
      %v980 = vadd.f32 0.0, %v979
      %v981 = vpop.f32.mrf.mxu0
      %v982 = vpop.f32.mrf.mxu0
      %v983 = vadd.f32 0.0, %v982
      %v984 = vpop.f32.mrf.mxu0
      %985 = vmatprep.mubr.bf16.mxu0 0
      %986 = vmatmul.mubr.bf16.gmra.mxu0 %v666
      %v987 = vpop.f32.mrf.mxu0
      %v988 = vadd.f32 0.0, %v987
      %v989 = vpop.f32.mrf.mxu0
      %v990 = vpop.f32.mrf.mxu0
      %v991 = vadd.f32 0.0, %v990
      %v992 = vpop.f32.mrf.mxu0
      %993 = vmatprep.mubr.bf16.mxu0 0
      %994 = vmatmul.mubr.bf16.gmra.mxu0 %v667
      %v995 = vpop.f32.mrf.mxu0
      %v996 = vadd.f32 0.0, %v995
      %v997 = vpop.f32.mrf.mxu0
      %v998 = vpop.f32.mrf.mxu0
      %v999 = vadd.f32 0.0, %v998
      %v1000 = vpop.f32.mrf.mxu0
      %1001 = vmatprep.mubr.bf16.mxu0 0
      %1002 = vmatmul.mubr.bf16.gmra.mxu0 %v668
      %v1003 = vpop.f32.mrf.mxu0
      %v1004 = vadd.f32 0.0, %v1003
      %v1005 = vpop.f32.mrf.mxu0
      %v1006 = vpop.f32.mrf.mxu0
      %v1007 = vadd.f32 0.0, %v1006
      %v1008 = vpop.f32.mrf.mxu0
      %1009 = vmatprep.mubr.bf16.mxu0 0
      %1010 = vmatmul.mubr.bf16.gmra.mxu0 %v669
      %v1011 = vpop.f32.mrf.mxu0
      %v1012 = vadd.f32 0.0, %v1011
      %v1013 = vpop.f32.mrf.mxu0
      %v1014 = vpop.f32.mrf.mxu0
      %v1015 = vadd.f32 0.0, %v1014
      %v1016 = vpop.f32.mrf.mxu0
      %1017 = vmatprep.mubr.bf16.mxu0 0
      %1018 = vmatmul.mubr.bf16.gmra.mxu0 %v670
      %v1019 = vpop.f32.mrf.mxu0
      %v1020 = vadd.f32 0.0, %v1019
      %v1021 = vpop.f32.mrf.mxu0
      %v1022 = vpop.f32.mrf.mxu0
      %v1023 = vadd.f32 0.0, %v1022
      %v1024 = vpop.f32.mrf.mxu0
      %1025 = vmatprep.mubr.bf16.mxu0 0
      %1026 = vmatmul.mubr.bf16.gmra.mxu0 %v671
      %v1027 = vpop.f32.mrf.mxu0
      %v1028 = vadd.f32 0.0, %v1027
      %v1029 = vpop.f32.mrf.mxu0
      %v1030 = vpop.f32.mrf.mxu0
      %v1031 = vadd.f32 0.0, %v1030
      %v1032 = vpop.f32.mrf.mxu0
      %1033 = vmatprep.mubr.bf16.mxu0 0
      %1034 = vmatmul.mubr.bf16.gmra.mxu0 %v672
      %v1035 = vpop.f32.mrf.mxu0
      %v1036 = vadd.f32 0.0, %v1035
      %v1037 = vpop.f32.mrf.mxu0
      %v1038 = vpop.f32.mrf.mxu0
      %v1039 = vadd.f32 0.0, %v1038
      %v1040 = vpop.f32.mrf.mxu0
      %1041 = vdwg.mxu0
      %v1042 = vadd.f32 %v369, %v788
      %v1043 = vadd.f32 %v370, %v791
      %v1044 = vadd.f32 %v371, %v796
      %v1045 = vadd.f32 %v372, %v799
      %v1046 = vadd.f32 %v373, %v804
      %v1047 = vadd.f32 %v374, %v807
      %v1048 = vadd.f32 %v375, %v812
      %v1049 = vadd.f32 %v376, %v815
      %v1050 = vadd.f32 %v377, %v820
      %v1051 = vadd.f32 %v378, %v823
      %v1052 = vadd.f32 %v379, %v828
      %v1053 = vadd.f32 %v380, %v831
      %v1054 = vadd.f32 %v381, %v836
      %v1055 = vadd.f32 %v382, %v839
      %v1056 = vadd.f32 %v383, %v844
      %v1057 = vadd.f32 %v384, %v847
      %v1058 = vadd.f32 %v385, %v852
      %v1059 = vadd.f32 %v386, %v855
      %v1060 = vadd.f32 %v387, %v860
      %v1061 = vadd.f32 %v388, %v863
      %v1062 = vadd.f32 %v389, %v868
      %v1063 = vadd.f32 %v390, %v871
      %v1064 = vadd.f32 %v391, %v876
      %v1065 = vadd.f32 %v392, %v879
      %v1066 = vadd.f32 %v393, %v884
      %v1067 = vadd.f32 %v394, %v887
      %v1068 = vadd.f32 %v395, %v892
      %v1069 = vadd.f32 %v396, %v895
      %v1070 = vadd.f32 %v397, %v900
      %v1071 = vadd.f32 %v398, %v903
      %v1072 = vadd.f32 %v399, %v908
      %v1073 = vadd.f32 %v400, %v911
      %v1074 = vadd.f32 %v401, %v916
      %v1075 = vadd.f32 %v402, %v919
      %v1076 = vadd.f32 %v403, %v924
      %v1077 = vadd.f32 %v404, %v927
      %v1078 = vadd.f32 %v405, %v932
      %v1079 = vadd.f32 %v406, %v935
      %v1080 = vadd.f32 %v407, %v940
      %v1081 = vadd.f32 %v408, %v943
      %v1082 = vadd.f32 %v409, %v948
      %v1083 = vadd.f32 %v410, %v951
      %v1084 = vadd.f32 %v411, %v956
      %v1085 = vadd.f32 %v412, %v959
      %v1086 = vadd.f32 %v413, %v964
      %v1087 = vadd.f32 %v414, %v967
      %v1088 = vadd.f32 %v415, %v972
      %v1089 = vadd.f32 %v416, %v975
      %v1090 = vadd.f32 %v417, %v980
      %v1091 = vadd.f32 %v418, %v983
      %v1092 = vadd.f32 %v419, %v988
      %v1093 = vadd.f32 %v420, %v991
      %v1094 = vadd.f32 %v421, %v996
      %v1095 = vadd.f32 %v422, %v999
      %v1096 = vadd.f32 %v423, %v1004
      %v1097 = vadd.f32 %v424, %v1007
      %v1098 = vadd.f32 %v425, %v1012
      %v1099 = vadd.f32 %v426, %v1015
      %v1100 = vadd.f32 %v427, %v1020
      %v1101 = vadd.f32 %v428, %v1023
      %v1102 = vadd.f32 %v429, %v1028
      %v1103 = vadd.f32 %v430, %v1031
      %v1104 = vadd.f32 %v431, %v1036
      %v1105 = vadd.f32 %v432, %v1039
      %vm1106 = vcmask 130048
      %1107 = vst.msk [vmem:[#allocation2] sm:$0xff] %vm1106, %v1042
      %1108 = vst.msk [vmem:[#allocation2 + $0x8] sm:$0xff] %vm1106, %v1043
      %1109 = vst.msk [vmem:[#allocation2 + $0x10] sm:$0xff] %vm1106, %v1044
      %1110 = vst.msk [vmem:[#allocation2 + $0x18] sm:$0xff] %vm1106, %v1045
      %1111 = vst.msk [vmem:[#allocation2 + $0x20] sm:$0xff] %vm1106, %v1046
      %1112 = vst.msk [vmem:[#allocation2 + $0x28] sm:$0xff] %vm1106, %v1047
      %1113 = vst.msk [vmem:[#allocation2 + $0x30] sm:$0xff] %vm1106, %v1048
      %1114 = vst.msk [vmem:[#allocation2 + $0x38] sm:$0xff] %vm1106, %v1049
      %1115 = vst.msk [vmem:[#allocation2 + $0x40] sm:$0xff] %vm1106, %v1050
      %1116 = vst.msk [vmem:[#allocation2 + $0x48] sm:$0xff] %vm1106, %v1051
      %1117 = vst.msk [vmem:[#allocation2 + $0x50] sm:$0xff] %vm1106, %v1052
      %1118 = vst.msk [vmem:[#allocation2 + $0x58] sm:$0xff] %vm1106, %v1053
      %1119 = vst.msk [vmem:[#allocation2 + $0x60] sm:$0xff] %vm1106, %v1054
      %1120 = vst.msk [vmem:[#allocation2 + $0x68] sm:$0xff] %vm1106, %v1055
      %1121 = vst.msk [vmem:[#allocation2 + $0x70] sm:$0xff] %vm1106, %v1056
      %1122 = vst.msk [vmem:[#allocation2 + $0x78] sm:$0xff] %vm1106, %v1057
      %1123 = vst.msk [vmem:[#allocation2 + $0x80] sm:$0xff] %vm1106, %v1058
      %1124 = vst.msk [vmem:[#allocation2 + $0x88] sm:$0xff] %vm1106, %v1059
      %1125 = vst.msk [vmem:[#allocation2 + $0x90] sm:$0xff] %vm1106, %v1060
      %1126 = vst.msk [vmem:[#allocation2 + $0x98] sm:$0xff] %vm1106, %v1061
      %1127 = vst.msk [vmem:[#allocation2 + $0xa0] sm:$0xff] %vm1106, %v1062
      %1128 = vst.msk [vmem:[#allocation2 + $0xa8] sm:$0xff] %vm1106, %v1063
      %1129 = vst.msk [vmem:[#allocation2 + $0xb0] sm:$0xff] %vm1106, %v1064
      %1130 = vst.msk [vmem:[#allocation2 + $0xb8] sm:$0xff] %vm1106, %v1065
      %1131 = vst.msk [vmem:[#allocation2 + $0xc0] sm:$0xff] %vm1106, %v1066
      %1132 = vst.msk [vmem:[#allocation2 + $0xc8] sm:$0xff] %vm1106, %v1067
      %1133 = vst.msk [vmem:[#allocation2 + $0xd0] sm:$0xff] %vm1106, %v1068
      %1134 = vst.msk [vmem:[#allocation2 + $0xd8] sm:$0xff] %vm1106, %v1069
      %1135 = vst.msk [vmem:[#allocation2 + $0xe0] sm:$0xff] %vm1106, %v1070
      %1136 = vst.msk [vmem:[#allocation2 + $0xe8] sm:$0xff] %vm1106, %v1071
      %1137 = vst.msk [vmem:[#allocation2 + $0xf0] sm:$0xff] %vm1106, %v1072
      %1138 = vst.msk [vmem:[#allocation2 + $0xf8] sm:$0xff] %vm1106, %v1073
      %1139 = vst.msk [vmem:[#allocation2 + $0x100] sm:$0xff] %vm1106, %v1074
      %1140 = vst.msk [vmem:[#allocation2 + $0x108] sm:$0xff] %vm1106, %v1075
      %1141 = vst.msk [vmem:[#allocation2 + $0x110] sm:$0xff] %vm1106, %v1076
      %1142 = vst.msk [vmem:[#allocation2 + $0x118] sm:$0xff] %vm1106, %v1077
      %1143 = vst.msk [vmem:[#allocation2 + $0x120] sm:$0xff] %vm1106, %v1078
      %1144 = vst.msk [vmem:[#allocation2 + $0x128] sm:$0xff] %vm1106, %v1079
      %1145 = vst.msk [vmem:[#allocation2 + $0x130] sm:$0xff] %vm1106, %v1080
      %1146 = vst.msk [vmem:[#allocation2 + $0x138] sm:$0xff] %vm1106, %v1081
      %1147 = vst.msk [vmem:[#allocation2 + $0x140] sm:$0xff] %vm1106, %v1082
      %1148 = vst.msk [vmem:[#allocation2 + $0x148] sm:$0xff] %vm1106, %v1083
      %1149 = vst.msk [vmem:[#allocation2 + $0x150] sm:$0xff] %vm1106, %v1084
      %1150 = vst.msk [vmem:[#allocation2 + $0x158] sm:$0xff] %vm1106, %v1085
      %1151 = vst.msk [vmem:[#allocation2 + $0x160] sm:$0xff] %vm1106, %v1086
      %1152 = vst.msk [vmem:[#allocation2 + $0x168] sm:$0xff] %vm1106, %v1087
      %1153 = vst.msk [vmem:[#allocation2 + $0x170] sm:$0xff] %vm1106, %v1088
      %1154 = vst.msk [vmem:[#allocation2 + $0x178] sm:$0xff] %vm1106, %v1089
      %1155 = vst.msk [vmem:[#allocation2 + $0x180] sm:$0xff] %vm1106, %v1090
      %1156 = vst.msk [vmem:[#allocation2 + $0x188] sm:$0xff] %vm1106, %v1091
      %1157 = vst.msk [vmem:[#allocation2 + $0x190] sm:$0xff] %vm1106, %v1092
      %1158 = vst.msk [vmem:[#allocation2 + $0x198] sm:$0xff] %vm1106, %v1093
      %1159 = vst.msk [vmem:[#allocation2 + $0x1a0] sm:$0xff] %vm1106, %v1094
      %1160 = vst.msk [vmem:[#allocation2 + $0x1a8] sm:$0xff] %vm1106, %v1095
      %1161 = vst.msk [vmem:[#allocation2 + $0x1b0] sm:$0xff] %vm1106, %v1096
      %1162 = vst.msk [vmem:[#allocation2 + $0x1b8] sm:$0xff] %vm1106, %v1097
      %1163 = vst.msk [vmem:[#allocation2 + $0x1c0] sm:$0xff] %vm1106, %v1098
      %1164 = vst.msk [vmem:[#allocation2 + $0x1c8] sm:$0xff] %vm1106, %v1099
      %1165 = vst.msk [vmem:[#allocation2 + $0x1d0] sm:$0xff] %vm1106, %v1100
      %1166 = vst.msk [vmem:[#allocation2 + $0x1d8] sm:$0xff] %vm1106, %v1101
      %1167 = vst.msk [vmem:[#allocation2 + $0x1e0] sm:$0xff] %vm1106, %v1102
      %1168 = vst.msk [vmem:[#allocation2 + $0x1e8] sm:$0xff] %vm1106, %v1103
      %1169 = vst.msk [vmem:[#allocation2 + $0x1f0] sm:$0xff] %vm1106, %v1104
      %1170 = vst.msk [vmem:[#allocation2 + $0x1f8] sm:$0xff] %vm1106, %v1105
      // Predicated region
      $region41: #{generator_forward.15} parent=31 // pred_check
        %p1171 = pneg %p290
      $region42: #{generator_forward.15} parent=31 // pred_check_branch
        %1173 = sbr.rel (%p1171) target = $region44
      $region43: #{generator_forward.15} parent=31 // pred_region
        %v1174 = vld [vmem:[#allocation2] sm:$0xff]
        %v1175 = vld [vmem:[#allocation2 + $0x8] sm:$0xff]
        %v1176 = vld [vmem:[#allocation2 + $0x10] sm:$0xff]
        %v1177 = vld [vmem:[#allocation2 + $0x18] sm:$0xff]
        %v1178 = vld [vmem:[#allocation2 + $0x20] sm:$0xff]
        %v1179 = vld [vmem:[#allocation2 + $0x28] sm:$0xff]
        %v1180 = vld [vmem:[#allocation2 + $0x30] sm:$0xff]
        %v1181 = vld [vmem:[#allocation2 + $0x38] sm:$0xff]
        %v1182 = vld [vmem:[#allocation2 + $0x40] sm:$0xff]
        %v1183 = vld [vmem:[#allocation2 + $0x48] sm:$0xff]
        %v1184 = vld [vmem:[#allocation2 + $0x50] sm:$0xff]
        %v1185 = vld [vmem:[#allocation2 + $0x58] sm:$0xff]
        %v1186 = vld [vmem:[#allocation2 + $0x60] sm:$0xff]
        %v1187 = vld [vmem:[#allocation2 + $0x68] sm:$0xff]
        %v1188 = vld [vmem:[#allocation2 + $0x70] sm:$0xff]
        %v1189 = vld [vmem:[#allocation2 + $0x78] sm:$0xff]
        %v1190 = vld [vmem:[#allocation2 + $0x80] sm:$0xff]
        %v1191 = vld [vmem:[#allocation2 + $0x88] sm:$0xff]
        %v1192 = vld [vmem:[#allocation2 + $0x90] sm:$0xff]
        %v1193 = vld [vmem:[#allocation2 + $0x98] sm:$0xff]
        %v1194 = vld [vmem:[#allocation2 + $0xa0] sm:$0xff]
        %v1195 = vld [vmem:[#allocation2 + $0xa8] sm:$0xff]
        %v1196 = vld [vmem:[#allocation2 + $0xb0] sm:$0xff]
        %v1197 = vld [vmem:[#allocation2 + $0xb8] sm:$0xff]
        %v1198 = vld [vmem:[#allocation2 + $0xc0] sm:$0xff]
        %v1199 = vld [vmem:[#allocation2 + $0xc8] sm:$0xff]
        %v1200 = vld [vmem:[#allocation2 + $0xd0] sm:$0xff]
        %v1201 = vld [vmem:[#allocation2 + $0xd8] sm:$0xff]
        %v1202 = vld [vmem:[#allocation2 + $0xe0] sm:$0xff]
        %v1203 = vld [vmem:[#allocation2 + $0xe8] sm:$0xff]
        %v1204 = vld [vmem:[#allocation2 + $0xf0] sm:$0xff]
        %v1205 = vld [vmem:[#allocation2 + $0xf8] sm:$0xff]
        %v1206 = vld [vmem:[#allocation2 + $0x100] sm:$0xff]
        %v1207 = vld [vmem:[#allocation2 + $0x108] sm:$0xff]
        %v1208 = vld [vmem:[#allocation2 + $0x110] sm:$0xff]
        %v1209 = vld [vmem:[#allocation2 + $0x118] sm:$0xff]
        %v1210 = vld [vmem:[#allocation2 + $0x120] sm:$0xff]
        %v1211 = vld [vmem:[#allocation2 + $0x128] sm:$0xff]
        %v1212 = vld [vmem:[#allocation2 + $0x130] sm:$0xff]
        %v1213 = vld [vmem:[#allocation2 + $0x138] sm:$0xff]
        %v1214 = vld [vmem:[#allocation2 + $0x140] sm:$0xff]
        %v1215 = vld [vmem:[#allocation2 + $0x148] sm:$0xff]
        %v1216 = vld [vmem:[#allocation2 + $0x150] sm:$0xff]
        %v1217 = vld [vmem:[#allocation2 + $0x158] sm:$0xff]
        %v1218 = vld [vmem:[#allocation2 + $0x160] sm:$0xff]
        %v1219 = vld [vmem:[#allocation2 + $0x168] sm:$0xff]
        %v1220 = vld [vmem:[#allocation2 + $0x170] sm:$0xff]
        %v1221 = vld [vmem:[#allocation2 + $0x178] sm:$0xff]
        %v1222 = vld [vmem:[#allocation2 + $0x180] sm:$0xff]
        %v1223 = vld [vmem:[#allocation2 + $0x188] sm:$0xff]
        %v1224 = vld [vmem:[#allocation2 + $0x190] sm:$0xff]
        %v1225 = vld [vmem:[#allocation2 + $0x198] sm:$0xff]
        %v1226 = vld [vmem:[#allocation2 + $0x1a0] sm:$0xff]
        %v1227 = vld [vmem:[#allocation2 + $0x1a8] sm:$0xff]
        %v1228 = vld [vmem:[#allocation2 + $0x1b0] sm:$0xff]
        %v1229 = vld [vmem:[#allocation2 + $0x1b8] sm:$0xff]
        %v1230 = vld [vmem:[#allocation2 + $0x1c0] sm:$0xff]
        %v1231 = vld [vmem:[#allocation2 + $0x1c8] sm:$0xff]
        %v1232 = vld [vmem:[#allocation2 + $0x1d0] sm:$0xff]
        %v1233 = vld [vmem:[#allocation2 + $0x1d8] sm:$0xff]
        %v1234 = vld [vmem:[#allocation2 + $0x1e0] sm:$0xff]
        %v1235 = vld [vmem:[#allocation2 + $0x1e8] sm:$0xff]
        %v1236 = vld [vmem:[#allocation2 + $0x1f0] sm:$0xff]
        %v1237 = vld [vmem:[#allocation2 + $0x1f8] sm:$0xff]
        %v1238 = vld [vmem:[%s2] sm:$0x1]
        %v1240 = vlaneseq
        %v1241 = vshrl.u32 %v1240, 7
        %v1242 = vsub.s32 0, %v1241
        %v1243 = vrot.slane %v1238, %v1242
        %v1245 = vadd.f32 %v1174, %v1243
        %v1246 = vadd.f32 %v1175, %v1243
        %v1247 = vadd.f32 %v1176, %v1243
        %v1248 = vadd.f32 %v1177, %v1243
        %v1249 = vadd.f32 %v1178, %v1243
        %v1250 = vadd.f32 %v1179, %v1243
        %v1251 = vadd.f32 %v1180, %v1243
        %v1252 = vadd.f32 %v1181, %v1243
        %v1253 = vadd.f32 %v1182, %v1243
        %v1254 = vadd.f32 %v1183, %v1243
        %v1255 = vadd.f32 %v1184, %v1243
        %v1256 = vadd.f32 %v1185, %v1243
        %v1257 = vadd.f32 %v1186, %v1243
        %v1258 = vadd.f32 %v1187, %v1243
        %v1259 = vadd.f32 %v1188, %v1243
        %v1260 = vadd.f32 %v1189, %v1243
        %v1261 = vadd.f32 %v1190, %v1243
        %v1262 = vadd.f32 %v1191, %v1243
        %v1263 = vadd.f32 %v1192, %v1243
        %v1264 = vadd.f32 %v1193, %v1243
        %v1265 = vadd.f32 %v1194, %v1243
        %v1266 = vadd.f32 %v1195, %v1243
        %v1267 = vadd.f32 %v1196, %v1243
        %v1268 = vadd.f32 %v1197, %v1243
        %v1269 = vadd.f32 %v1198, %v1243
        %v1270 = vadd.f32 %v1199, %v1243
        %v1271 = vadd.f32 %v1200, %v1243
        %v1272 = vadd.f32 %v1201, %v1243
        %v1273 = vadd.f32 %v1202, %v1243
        %v1274 = vadd.f32 %v1203, %v1243
        %v1275 = vadd.f32 %v1204, %v1243
        %v1276 = vadd.f32 %v1205, %v1243
        %v1277 = vadd.f32 %v1206, %v1243
        %v1278 = vadd.f32 %v1207, %v1243
        %v1279 = vadd.f32 %v1208, %v1243
        %v1280 = vadd.f32 %v1209, %v1243
        %v1281 = vadd.f32 %v1210, %v1243
        %v1282 = vadd.f32 %v1211, %v1243
        %v1283 = vadd.f32 %v1212, %v1243
        %v1284 = vadd.f32 %v1213, %v1243
        %v1285 = vadd.f32 %v1214, %v1243
        %v1286 = vadd.f32 %v1215, %v1243
        %v1287 = vadd.f32 %v1216, %v1243
        %v1288 = vadd.f32 %v1217, %v1243
        %v1289 = vadd.f32 %v1218, %v1243
        %v1290 = vadd.f32 %v1219, %v1243
        %v1291 = vadd.f32 %v1220, %v1243
        %v1292 = vadd.f32 %v1221, %v1243
        %v1293 = vadd.f32 %v1222, %v1243
        %v1294 = vadd.f32 %v1223, %v1243
        %v1295 = vadd.f32 %v1224, %v1243
        %v1296 = vadd.f32 %v1225, %v1243
        %v1297 = vadd.f32 %v1226, %v1243
        %v1298 = vadd.f32 %v1227, %v1243
        %v1299 = vadd.f32 %v1228, %v1243
        %v1300 = vadd.f32 %v1229, %v1243
        %v1301 = vadd.f32 %v1230, %v1243
        %v1302 = vadd.f32 %v1231, %v1243
        %v1303 = vadd.f32 %v1232, %v1243
        %v1304 = vadd.f32 %v1233, %v1243
        %v1305 = vadd.f32 %v1234, %v1243
        %v1306 = vadd.f32 %v1235, %v1243
        %v1307 = vadd.f32 %v1236, %v1243
        %v1308 = vadd.f32 %v1237, %v1243
        %1309 = vst.msk [vmem:[%s287] sm:$0xff] %vm1106, %v1245
        %1310 = vst.msk [vmem:[%s287 + $0x8] sm:$0xff] %vm1106, %v1246
        %1311 = vst.msk [vmem:[%s287 + $0x10] sm:$0xff] %vm1106, %v1247
        %1312 = vst.msk [vmem:[%s287 + $0x18] sm:$0xff] %vm1106, %v1248
        %1313 = vst.msk [vmem:[%s287 + $0x20] sm:$0xff] %vm1106, %v1249
        %1314 = vst.msk [vmem:[%s287 + $0x28] sm:$0xff] %vm1106, %v1250
        %1315 = vst.msk [vmem:[%s287 + $0x30] sm:$0xff] %vm1106, %v1251
        %1316 = vst.msk [vmem:[%s287 + $0x38] sm:$0xff] %vm1106, %v1252
        %1317 = vst.msk [vmem:[%s287 + $0x40] sm:$0xff] %vm1106, %v1253
        %1318 = vst.msk [vmem:[%s287 + $0x48] sm:$0xff] %vm1106, %v1254
        %1319 = vst.msk [vmem:[%s287 + $0x50] sm:$0xff] %vm1106, %v1255
        %1320 = vst.msk [vmem:[%s287 + $0x58] sm:$0xff] %vm1106, %v1256
        %1321 = vst.msk [vmem:[%s287 + $0x60] sm:$0xff] %vm1106, %v1257
        %1322 = vst.msk [vmem:[%s287 + $0x68] sm:$0xff] %vm1106, %v1258
        %1323 = vst.msk [vmem:[%s287 + $0x70] sm:$0xff] %vm1106, %v1259
        %1324 = vst.msk [vmem:[%s287 + $0x78] sm:$0xff] %vm1106, %v1260
        %1325 = vst.msk [vmem:[%s287 + $0x80] sm:$0xff] %vm1106, %v1261
        %1326 = vst.msk [vmem:[%s287 + $0x88] sm:$0xff] %vm1106, %v1262
        %1327 = vst.msk [vmem:[%s287 + $0x90] sm:$0xff] %vm1106, %v1263
        %1328 = vst.msk [vmem:[%s287 + $0x98] sm:$0xff] %vm1106, %v1264
        %1329 = vst.msk [vmem:[%s287 + $0xa0] sm:$0xff] %vm1106, %v1265
        %1330 = vst.msk [vmem:[%s287 + $0xa8] sm:$0xff] %vm1106, %v1266
        %1331 = vst.msk [vmem:[%s287 + $0xb0] sm:$0xff] %vm1106, %v1267
        %1332 = vst.msk [vmem:[%s287 + $0xb8] sm:$0xff] %vm1106, %v1268
        %1333 = vst.msk [vmem:[%s287 + $0xc0] sm:$0xff] %vm1106, %v1269
        %1334 = vst.msk [vmem:[%s287 + $0xc8] sm:$0xff] %vm1106, %v1270
        %1335 = vst.msk [vmem:[%s287 + $0xd0] sm:$0xff] %vm1106, %v1271
        %1336 = vst.msk [vmem:[%s287 + $0xd8] sm:$0xff] %vm1106, %v1272
        %1337 = vst.msk [vmem:[%s287 + $0xe0] sm:$0xff] %vm1106, %v1273
        %1338 = vst.msk [vmem:[%s287 + $0xe8] sm:$0xff] %vm1106, %v1274
        %1339 = vst.msk [vmem:[%s287 + $0xf0] sm:$0xff] %vm1106, %v1275
        %1340 = vst.msk [vmem:[%s287 + $0xf8] sm:$0xff] %vm1106, %v1276
        %1341 = vst.msk [vmem:[%s287 + $0x100] sm:$0xff] %vm1106, %v1277
        %1342 = vst.msk [vmem:[%s287 + $0x108] sm:$0xff] %vm1106, %v1278
        %1343 = vst.msk [vmem:[%s287 + $0x110] sm:$0xff] %vm1106, %v1279
        %1344 = vst.msk [vmem:[%s287 + $0x118] sm:$0xff] %vm1106, %v1280
        %1345 = vst.msk [vmem:[%s287 + $0x120] sm:$0xff] %vm1106, %v1281
        %1346 = vst.msk [vmem:[%s287 + $0x128] sm:$0xff] %vm1106, %v1282
        %1347 = vst.msk [vmem:[%s287 + $0x130] sm:$0xff] %vm1106, %v1283
        %1348 = vst.msk [vmem:[%s287 + $0x138] sm:$0xff] %vm1106, %v1284
        %1349 = vst.msk [vmem:[%s287 + $0x140] sm:$0xff] %vm1106, %v1285
        %1350 = vst.msk [vmem:[%s287 + $0x148] sm:$0xff] %vm1106, %v1286
        %1351 = vst.msk [vmem:[%s287 + $0x150] sm:$0xff] %vm1106, %v1287
        %1352 = vst.msk [vmem:[%s287 + $0x158] sm:$0xff] %vm1106, %v1288
        %1353 = vst.msk [vmem:[%s287 + $0x160] sm:$0xff] %vm1106, %v1289
        %1354 = vst.msk [vmem:[%s287 + $0x168] sm:$0xff] %vm1106, %v1290
        %1355 = vst.msk [vmem:[%s287 + $0x170] sm:$0xff] %vm1106, %v1291
        %1356 = vst.msk [vmem:[%s287 + $0x178] sm:$0xff] %vm1106, %v1292
        %1357 = vst.msk [vmem:[%s287 + $0x180] sm:$0xff] %vm1106, %v1293
        %1358 = vst.msk [vmem:[%s287 + $0x188] sm:$0xff] %vm1106, %v1294
        %1359 = vst.msk [vmem:[%s287 + $0x190] sm:$0xff] %vm1106, %v1295
        %1360 = vst.msk [vmem:[%s287 + $0x198] sm:$0xff] %vm1106, %v1296
        %1361 = vst.msk [vmem:[%s287 + $0x1a0] sm:$0xff] %vm1106, %v1297
        %1362 = vst.msk [vmem:[%s287 + $0x1a8] sm:$0xff] %vm1106, %v1298
        %1363 = vst.msk [vmem:[%s287 + $0x1b0] sm:$0xff] %vm1106, %v1299
        %1364 = vst.msk [vmem:[%s287 + $0x1b8] sm:$0xff] %vm1106, %v1300
        %1365 = vst.msk [vmem:[%s287 + $0x1c0] sm:$0xff] %vm1106, %v1301
        %1366 = vst.msk [vmem:[%s287 + $0x1c8] sm:$0xff] %vm1106, %v1302
        %1367 = vst.msk [vmem:[%s287 + $0x1d0] sm:$0xff] %vm1106, %v1303
        %1368 = vst.msk [vmem:[%s287 + $0x1d8] sm:$0xff] %vm1106, %v1304
        %1369 = vst.msk [vmem:[%s287 + $0x1e0] sm:$0xff] %vm1106, %v1305
        %1370 = vst.msk [vmem:[%s287 + $0x1e8] sm:$0xff] %vm1106, %v1306
        %1371 = vst.msk [vmem:[%s287 + $0x1f0] sm:$0xff] %vm1106, %v1307
        %1372 = vst.msk [vmem:[%s287 + $0x1f8] sm:$0xff] %vm1106, %v1308
        %v1373 = vld [vmem:[%s4] sm:$0x3]
        %v1374 = vsel %vm1106, %v1245, 0.0
        %v1375 = vsel %vm1106, %v1246, 0.0
        %v1376 = vadd.f32 %v1374, %v1375
        %v1377 = vsel %vm1106, %v1247, 0.0
        %v1378 = vadd.f32 %v1376, %v1377
        %v1379 = vsel %vm1106, %v1248, 0.0
        %v1380 = vadd.f32 %v1378, %v1379
        %v1381 = vsel %vm1106, %v1249, 0.0
        %v1382 = vadd.f32 %v1380, %v1381
        %v1383 = vsel %vm1106, %v1250, 0.0
        %v1384 = vadd.f32 %v1382, %v1383
        %v1385 = vsel %vm1106, %v1251, 0.0
        %v1386 = vadd.f32 %v1384, %v1385
        %v1387 = vsel %vm1106, %v1252, 0.0
        %v1388 = vadd.f32 %v1386, %v1387
        %v1389 = vsel %vm1106, %v1253, 0.0
        %v1390 = vadd.f32 %v1388, %v1389
        %v1391 = vsel %vm1106, %v1254, 0.0
        %v1392 = vadd.f32 %v1390, %v1391
        %v1393 = vsel %vm1106, %v1255, 0.0
        %v1394 = vadd.f32 %v1392, %v1393
        %v1395 = vsel %vm1106, %v1256, 0.0
        %v1396 = vadd.f32 %v1394, %v1395
        %v1397 = vsel %vm1106, %v1257, 0.0
        %v1398 = vadd.f32 %v1396, %v1397
        %v1399 = vsel %vm1106, %v1258, 0.0
        %v1400 = vadd.f32 %v1398, %v1399
        %v1401 = vsel %vm1106, %v1259, 0.0
        %v1402 = vadd.f32 %v1400, %v1401
        %v1403 = vsel %vm1106, %v1260, 0.0
        %v1404 = vadd.f32 %v1402, %v1403
        %v1405 = vsel %vm1106, %v1261, 0.0
        %v1406 = vadd.f32 %v1404, %v1405
        %v1407 = vsel %vm1106, %v1262, 0.0
        %v1408 = vadd.f32 %v1406, %v1407
        %v1409 = vsel %vm1106, %v1263, 0.0
        %v1410 = vadd.f32 %v1408, %v1409
        %v1411 = vsel %vm1106, %v1264, 0.0
        %v1412 = vadd.f32 %v1410, %v1411
        %v1413 = vsel %vm1106, %v1265, 0.0
        %v1414 = vadd.f32 %v1412, %v1413
        %v1415 = vsel %vm1106, %v1266, 0.0
        %v1416 = vadd.f32 %v1414, %v1415
        %v1417 = vsel %vm1106, %v1267, 0.0
        %v1418 = vadd.f32 %v1416, %v1417
        %v1419 = vsel %vm1106, %v1268, 0.0
        %v1420 = vadd.f32 %v1418, %v1419
        %v1421 = vsel %vm1106, %v1269, 0.0
        %v1422 = vadd.f32 %v1420, %v1421
        %v1423 = vsel %vm1106, %v1270, 0.0
        %v1424 = vadd.f32 %v1422, %v1423
        %v1425 = vsel %vm1106, %v1271, 0.0
        %v1426 = vadd.f32 %v1424, %v1425
        %v1427 = vsel %vm1106, %v1272, 0.0
        %v1428 = vadd.f32 %v1426, %v1427
        %v1429 = vsel %vm1106, %v1273, 0.0
        %v1430 = vadd.f32 %v1428, %v1429
        %v1431 = vsel %vm1106, %v1274, 0.0
        %v1432 = vadd.f32 %v1430, %v1431
        %v1433 = vsel %vm1106, %v1275, 0.0
        %v1434 = vadd.f32 %v1432, %v1433
        %v1435 = vsel %vm1106, %v1276, 0.0
        %v1436 = vadd.f32 %v1434, %v1435
        %v1437 = vsel %vm1106, %v1277, 0.0
        %v1438 = vadd.f32 %v1436, %v1437
        %v1439 = vsel %vm1106, %v1278, 0.0
        %v1440 = vadd.f32 %v1438, %v1439
        %v1441 = vsel %vm1106, %v1279, 0.0
        %v1442 = vadd.f32 %v1440, %v1441
        %v1443 = vsel %vm1106, %v1280, 0.0
        %v1444 = vadd.f32 %v1442, %v1443
        %v1445 = vsel %vm1106, %v1281, 0.0
        %v1446 = vadd.f32 %v1444, %v1445
        %v1447 = vsel %vm1106, %v1282, 0.0
        %v1448 = vadd.f32 %v1446, %v1447
        %v1449 = vsel %vm1106, %v1283, 0.0
        %v1450 = vadd.f32 %v1448, %v1449
        %v1451 = vsel %vm1106, %v1284, 0.0
        %v1452 = vadd.f32 %v1450, %v1451
        %v1453 = vsel %vm1106, %v1285, 0.0
        %v1454 = vadd.f32 %v1452, %v1453
        %v1455 = vsel %vm1106, %v1286, 0.0
        %v1456 = vadd.f32 %v1454, %v1455
        %v1457 = vsel %vm1106, %v1287, 0.0
        %v1458 = vadd.f32 %v1456, %v1457
        %v1459 = vsel %vm1106, %v1288, 0.0
        %v1460 = vadd.f32 %v1458, %v1459
        %v1461 = vsel %vm1106, %v1289, 0.0
        %v1462 = vadd.f32 %v1460, %v1461
        %v1463 = vsel %vm1106, %v1290, 0.0
        %v1464 = vadd.f32 %v1462, %v1463
        %v1465 = vsel %vm1106, %v1291, 0.0
        %v1466 = vadd.f32 %v1464, %v1465
        %v1467 = vsel %vm1106, %v1292, 0.0
        %v1468 = vadd.f32 %v1466, %v1467
        %v1469 = vsel %vm1106, %v1293, 0.0
        %v1470 = vadd.f32 %v1468, %v1469
        %v1471 = vsel %vm1106, %v1294, 0.0
        %v1472 = vadd.f32 %v1470, %v1471
        %v1473 = vsel %vm1106, %v1295, 0.0
        %v1474 = vadd.f32 %v1472, %v1473
        %v1475 = vsel %vm1106, %v1296, 0.0
        %v1476 = vadd.f32 %v1474, %v1475
        %v1477 = vsel %vm1106, %v1297, 0.0
        %v1478 = vadd.f32 %v1476, %v1477
        %v1479 = vsel %vm1106, %v1298, 0.0
        %v1480 = vadd.f32 %v1478, %v1479
        %v1481 = vsel %vm1106, %v1299, 0.0
        %v1482 = vadd.f32 %v1480, %v1481
        %v1483 = vsel %vm1106, %v1300, 0.0
        %v1484 = vadd.f32 %v1482, %v1483
        %v1485 = vsel %vm1106, %v1301, 0.0
        %v1486 = vadd.f32 %v1484, %v1485
        %v1487 = vsel %vm1106, %v1302, 0.0
        %v1488 = vadd.f32 %v1486, %v1487
        %v1489 = vsel %vm1106, %v1303, 0.0
        %v1490 = vadd.f32 %v1488, %v1489
        %v1491 = vsel %vm1106, %v1304, 0.0
        %v1492 = vadd.f32 %v1490, %v1491
        %v1493 = vsel %vm1106, %v1305, 0.0
        %v1494 = vadd.f32 %v1492, %v1493
        %v1495 = vsel %vm1106, %v1306, 0.0
        %v1496 = vadd.f32 %v1494, %v1495
        %v1497 = vsel %vm1106, %v1307, 0.0
        %v1498 = vadd.f32 %v1496, %v1497
        %v1499 = vsel %vm1106, %v1308, 0.0
        %v1500 = vadd.f32 %v1498, %v1499
        %v1501 = vrot.slane %v1500, 4
        %v1502 = vadd.f32 %v1500, %v1501
        %v1503 = vrot.slane %v1502, 2
        %v1504 = vadd.f32 %v1502, %v1503
        %v1505 = vrot.slane %v1504, 1
        %v1506 = vadd.f32 %v1504, %v1505
        %v1507 = vmul.f32 %v1245, %v1245
        %v1508 = vmul.f32 %v1246, %v1246
        %v1509 = vmul.f32 %v1247, %v1247
        %v1510 = vmul.f32 %v1248, %v1248
        %v1511 = vmul.f32 %v1249, %v1249
        %v1512 = vmul.f32 %v1250, %v1250
        %v1513 = vmul.f32 %v1251, %v1251
        %v1514 = vmul.f32 %v1252, %v1252
        %v1515 = vmul.f32 %v1253, %v1253
        %v1516 = vmul.f32 %v1254, %v1254
        %v1517 = vmul.f32 %v1255, %v1255
        %v1518 = vmul.f32 %v1256, %v1256
        %v1519 = vmul.f32 %v1257, %v1257
        %v1520 = vmul.f32 %v1258, %v1258
        %v1521 = vmul.f32 %v1259, %v1259
        %v1522 = vmul.f32 %v1260, %v1260
        %v1523 = vmul.f32 %v1261, %v1261
        %v1524 = vmul.f32 %v1262, %v1262
        %v1525 = vmul.f32 %v1263, %v1263
        %v1526 = vmul.f32 %v1264, %v1264
        %v1527 = vmul.f32 %v1265, %v1265
        %v1528 = vmul.f32 %v1266, %v1266
        %v1529 = vmul.f32 %v1267, %v1267
        %v1530 = vmul.f32 %v1268, %v1268
        %v1531 = vmul.f32 %v1269, %v1269
        %v1532 = vmul.f32 %v1270, %v1270
        %v1533 = vmul.f32 %v1271, %v1271
        %v1534 = vmul.f32 %v1272, %v1272
        %v1535 = vmul.f32 %v1273, %v1273
        %v1536 = vmul.f32 %v1274, %v1274
        %v1537 = vmul.f32 %v1275, %v1275
        %v1538 = vmul.f32 %v1276, %v1276
        %v1539 = vmul.f32 %v1277, %v1277
        %v1540 = vmul.f32 %v1278, %v1278
        %v1541 = vmul.f32 %v1279, %v1279
        %v1542 = vmul.f32 %v1280, %v1280
        %v1543 = vmul.f32 %v1281, %v1281
        %v1544 = vmul.f32 %v1282, %v1282
        %v1545 = vmul.f32 %v1283, %v1283
        %v1546 = vmul.f32 %v1284, %v1284
        %v1547 = vmul.f32 %v1285, %v1285
        %v1548 = vmul.f32 %v1286, %v1286
        %v1549 = vmul.f32 %v1287, %v1287
        %v1550 = vmul.f32 %v1288, %v1288
        %v1551 = vmul.f32 %v1289, %v1289
        %v1552 = vmul.f32 %v1290, %v1290
        %v1553 = vmul.f32 %v1291, %v1291
        %v1554 = vmul.f32 %v1292, %v1292
        %v1555 = vmul.f32 %v1293, %v1293
        %v1556 = vmul.f32 %v1294, %v1294
        %v1557 = vmul.f32 %v1295, %v1295
        %v1558 = vmul.f32 %v1296, %v1296
        %v1559 = vmul.f32 %v1297, %v1297
        %v1560 = vmul.f32 %v1298, %v1298
        %v1561 = vmul.f32 %v1299, %v1299
        %v1562 = vmul.f32 %v1300, %v1300
        %v1563 = vmul.f32 %v1301, %v1301
        %v1564 = vmul.f32 %v1302, %v1302
        %v1565 = vmul.f32 %v1303, %v1303
        %v1566 = vmul.f32 %v1304, %v1304
        %v1567 = vmul.f32 %v1305, %v1305
        %v1568 = vmul.f32 %v1306, %v1306
        %v1569 = vmul.f32 %v1307, %v1307
        %v1570 = vmul.f32 %v1308, %v1308
        %v1571 = vsel %vm1106, %v1507, 0.0
        %v1572 = vsel %vm1106, %v1508, 0.0
        %v1573 = vadd.f32 %v1571, %v1572
        %v1574 = vsel %vm1106, %v1509, 0.0
        %v1575 = vadd.f32 %v1573, %v1574
        %v1576 = vsel %vm1106, %v1510, 0.0
        %v1577 = vadd.f32 %v1575, %v1576
        %v1578 = vsel %vm1106, %v1511, 0.0
        %v1579 = vadd.f32 %v1577, %v1578
        %v1580 = vsel %vm1106, %v1512, 0.0
        %v1581 = vadd.f32 %v1579, %v1580
        %v1582 = vsel %vm1106, %v1513, 0.0
        %v1583 = vadd.f32 %v1581, %v1582
        %v1584 = vsel %vm1106, %v1514, 0.0
        %v1585 = vadd.f32 %v1583, %v1584
        %v1586 = vsel %vm1106, %v1515, 0.0
        %v1587 = vadd.f32 %v1585, %v1586
        %v1588 = vsel %vm1106, %v1516, 0.0
        %v1589 = vadd.f32 %v1587, %v1588
        %v1590 = vsel %vm1106, %v1517, 0.0
        %v1591 = vadd.f32 %v1589, %v1590
        %v1592 = vsel %vm1106, %v1518, 0.0
        %v1593 = vadd.f32 %v1591, %v1592
        %v1594 = vsel %vm1106, %v1519, 0.0
        %v1595 = vadd.f32 %v1593, %v1594
        %v1596 = vsel %vm1106, %v1520, 0.0
        %v1597 = vadd.f32 %v1595, %v1596
        %v1598 = vsel %vm1106, %v1521, 0.0
        %v1599 = vadd.f32 %v1597, %v1598
        %v1600 = vsel %vm1106, %v1522, 0.0
        %v1601 = vadd.f32 %v1599, %v1600
        %v1602 = vsel %vm1106, %v1523, 0.0
        %v1603 = vadd.f32 %v1601, %v1602
        %v1604 = vsel %vm1106, %v1524, 0.0
        %v1605 = vadd.f32 %v1603, %v1604
        %v1606 = vsel %vm1106, %v1525, 0.0
        %v1607 = vadd.f32 %v1605, %v1606
        %v1608 = vsel %vm1106, %v1526, 0.0
        %v1609 = vadd.f32 %v1607, %v1608
        %v1610 = vsel %vm1106, %v1527, 0.0
        %v1611 = vadd.f32 %v1609, %v1610
        %v1612 = vsel %vm1106, %v1528, 0.0
        %v1613 = vadd.f32 %v1611, %v1612
        %v1614 = vsel %vm1106, %v1529, 0.0
        %v1615 = vadd.f32 %v1613, %v1614
        %v1616 = vsel %vm1106, %v1530, 0.0
        %v1617 = vadd.f32 %v1615, %v1616
        %v1618 = vsel %vm1106, %v1531, 0.0
        %v1619 = vadd.f32 %v1617, %v1618
        %v1620 = vsel %vm1106, %v1532, 0.0
        %v1621 = vadd.f32 %v1619, %v1620
        %v1622 = vsel %vm1106, %v1533, 0.0
        %v1623 = vadd.f32 %v1621, %v1622
        %v1624 = vsel %vm1106, %v1534, 0.0
        %v1625 = vadd.f32 %v1623, %v1624
        %v1626 = vsel %vm1106, %v1535, 0.0
        %v1627 = vadd.f32 %v1625, %v1626
        %v1628 = vsel %vm1106, %v1536, 0.0
        %v1629 = vadd.f32 %v1627, %v1628
        %v1630 = vsel %vm1106, %v1537, 0.0
        %v1631 = vadd.f32 %v1629, %v1630
        %v1632 = vsel %vm1106, %v1538, 0.0
        %v1633 = vadd.f32 %v1631, %v1632
        %v1634 = vsel %vm1106, %v1539, 0.0
        %v1635 = vadd.f32 %v1633, %v1634
        %v1636 = vsel %vm1106, %v1540, 0.0
        %v1637 = vadd.f32 %v1635, %v1636
        %v1638 = vsel %vm1106, %v1541, 0.0
        %v1639 = vadd.f32 %v1637, %v1638
        %v1640 = vsel %vm1106, %v1542, 0.0
        %v1641 = vadd.f32 %v1639, %v1640
        %v1642 = vsel %vm1106, %v1543, 0.0
        %v1643 = vadd.f32 %v1641, %v1642
        %v1644 = vsel %vm1106, %v1544, 0.0
        %v1645 = vadd.f32 %v1643, %v1644
        %v1646 = vsel %vm1106, %v1545, 0.0
        %v1647 = vadd.f32 %v1645, %v1646
        %v1648 = vsel %vm1106, %v1546, 0.0
        %v1649 = vadd.f32 %v1647, %v1648
        %v1650 = vsel %vm1106, %v1547, 0.0
        %v1651 = vadd.f32 %v1649, %v1650
        %v1652 = vsel %vm1106, %v1548, 0.0
        %v1653 = vadd.f32 %v1651, %v1652
        %v1654 = vsel %vm1106, %v1549, 0.0
        %v1655 = vadd.f32 %v1653, %v1654
        %v1656 = vsel %vm1106, %v1550, 0.0
        %v1657 = vadd.f32 %v1655, %v1656
        %v1658 = vsel %vm1106, %v1551, 0.0
        %v1659 = vadd.f32 %v1657, %v1658
        %v1660 = vsel %vm1106, %v1552, 0.0
        %v1661 = vadd.f32 %v1659, %v1660
        %v1662 = vsel %vm1106, %v1553, 0.0
        %v1663 = vadd.f32 %v1661, %v1662
        %v1664 = vsel %vm1106, %v1554, 0.0
        %v1665 = vadd.f32 %v1663, %v1664
        %v1666 = vsel %vm1106, %v1555, 0.0
        %v1667 = vadd.f32 %v1665, %v1666
        %v1668 = vsel %vm1106, %v1556, 0.0
        %v1669 = vadd.f32 %v1667, %v1668
        %v1670 = vsel %vm1106, %v1557, 0.0
        %v1671 = vadd.f32 %v1669, %v1670
        %v1672 = vsel %vm1106, %v1558, 0.0
        %v1673 = vadd.f32 %v1671, %v1672
        %v1674 = vsel %vm1106, %v1559, 0.0
        %v1675 = vadd.f32 %v1673, %v1674
        %v1676 = vsel %vm1106, %v1560, 0.0
        %v1677 = vadd.f32 %v1675, %v1676
        %v1678 = vsel %vm1106, %v1561, 0.0
        %v1679 = vadd.f32 %v1677, %v1678
        %v1680 = vsel %vm1106, %v1562, 0.0
        %v1681 = vadd.f32 %v1679, %v1680
        %v1682 = vsel %vm1106, %v1563, 0.0
        %v1683 = vadd.f32 %v1681, %v1682
        %v1684 = vsel %vm1106, %v1564, 0.0
        %v1685 = vadd.f32 %v1683, %v1684
        %v1686 = vsel %vm1106, %v1565, 0.0
        %v1687 = vadd.f32 %v1685, %v1686
        %v1688 = vsel %vm1106, %v1566, 0.0
        %v1689 = vadd.f32 %v1687, %v1688
        %v1690 = vsel %vm1106, %v1567, 0.0
        %v1691 = vadd.f32 %v1689, %v1690
        %v1692 = vsel %vm1106, %v1568, 0.0
        %v1693 = vadd.f32 %v1691, %v1692
        %v1694 = vsel %vm1106, %v1569, 0.0
        %v1695 = vadd.f32 %v1693, %v1694
        %v1696 = vsel %vm1106, %v1570, 0.0
        %v1697 = vadd.f32 %v1695, %v1696
        %v1698 = vrot.slane %v1697, 4
        %v1699 = vadd.f32 %v1697, %v1698
        %v1700 = vrot.slane %v1699, 2
        %v1701 = vadd.f32 %v1699, %v1700
        %v1702 = vrot.slane %v1701, 1
        %v1703 = vadd.f32 %v1701, %v1702
        %vm1704 = vcmask 1040384
        %v1705 = vsel %vm1704, %v1506, %v1703
        %v1706 = vadd.f32 %v1373, %v1705
        %vm1707 = vcmask 123904
        %1708 = vst.msk [vmem:[%s4] sm:$0x3] %vm1707, %v1706
      $region44: #{generator_forward.15} parent=31 // pred_fallthru
        _
      %s1709 = smul.u32 64, %s22
      %p1710 = scmp.lt.s32.totalorder %s21, 3
      %s1711 = scalar_select %p1710, %s21, 3
      %p1712 = scmp.lt.s32.totalorder %s1709, 63
      %s1713 = scalar_select %p1712, %s1709, 63
      %s1714 = smul.addr %s1711, 64
      %s1715 = sadd.s32 %s1713, %s1714
      %s1716 = smul.addr %s1715, 8
      %s1717 = scalar_lea.vmem %s3, %s1716
      // Predicated region
      $region45: #{generator_forward.15} parent=31 // pred_check
        %p1718 = pneg %p134
      $region46: #{generator_forward.15} parent=31 // pred_check_branch
        %1720 = sbr.rel (%p1718) target = $region48
      $region47: #{generator_forward.15} parent=31 // pred_region
        %s1721 = smul.u32 64, %s22
      $region48: #{generator_forward.15} parent=31 // pred_fallthru
        _
      // Predicated region
      $region49: #{generator_forward.15} parent=31 // pred_check
        %p1722 = pneg %p155
      $region50: #{generator_forward.15} parent=31 // pred_check_branch
        %1724 = sbr.rel (%p1722) target = $region52
      $region51: #{generator_forward.15} parent=31 // pred_region
        _
      $region52: #{generator_forward.15} parent=31 // pred_fallthru
        _
      // Predicated region
      $region53: #{generator_forward.15} parent=31 // pred_check
        %p1725 = pneg %p155
      $region54: #{generator_forward.15} parent=31 // pred_check_branch
        %1727 = sbr.rel (%p1725) target = $region56
      $region55: #{generator_forward.15} parent=31 // pred_region
        _
      $region56: #{generator_forward.15} parent=31 // pred_fallthru
        _
    $region32: #{generator_forward.15} parent=5 // pred_fallthru
      _
    %p1728 = scmp.le.s32.totalorder 2, %s11
    // Predicated region
    $region57: #{generator_forward.15} parent=5 // pred_check
      %p1729 = pneg %p1728
    $region58: #{generator_forward.15} parent=5 // pred_check_branch
      %1731 = sbr.rel (%p1729) target = $region60
    $region59: #{generator_forward.15} parent=5 // pred_region
      %s1732 = ssub.s32 %s11, 2
      // Predicated region
      $region61: #{generator_forward.15} parent=59 // pred_check
        %p1733 = pneg %p140
      $region62: #{generator_forward.15} parent=59 // pred_check_branch
        %1735 = sbr.rel (%p1733) target = $region64
      $region63: #{generator_forward.15} parent=59 // pred_region
        %s1736 = smul.u32 64, %s25
        %p1737 = scmp.lt.s32.totalorder %s24, 3
        %s1738 = scalar_select %p1737, %s24, 3
        %p1739 = scmp.lt.s32.totalorder %s1736, 63
        %s1740 = scalar_select %p1739, %s1736, 63
        %s1741 = smul.addr %s1738, 64
        %s1742 = sadd.s32 %s1740, %s1741
        %s1743 = smul.addr %s1742, 8
        %s1744 = scalar_lea.vmem %s3, %s1743
      $region64: #{generator_forward.15} parent=59 // pred_fallthru
        _
    $region60: #{generator_forward.15} parent=5 // pred_fallthru
      _
  $region6: #{generator_forward.15} parent=0 // loop_footer
    %s15 = sadd.s32 1, %s11
  $region7: #{generator_forward.15} parent=0 // loop_footer_branch
    %10 = sbr.rel target = $region3
  $region8: #{generator_forward.15} parent=0 // loop_exit
    _

// kernel: generator_forward.17
$region0: #{generator_forward.17}
  #allocation0 [shape = 'u32[]', space=smem, size = 0x4, offset = 0x4, fixed_abs, tag = 'smem constant byte address 0x4 - core index']
  #allocation1 [shape = 'u32[144,128]{1,0:T(1,128)}', space=vmem, size = 0x12000, scoped, tag = 'internal scratch']
  #allocation2 [shape = 'f32[512,3]{1,0:T(8,128)}', space=vmem, size = 0x40000, scoped, tag = 'scratch operand']
  %s0 = inlined_call_operand.vmem [shape: bf16[4,2048,64], index: 0, kind: input, shape index: {}]
  %s1 = inlined_call_operand.vmem [shape: bf16[4,64,3], index: 1, kind: input, shape index: {}]
  %s2 = inlined_call_operand.vmem [shape: f32[1,3], index: 2, kind: input, shape index: {}]
  %s3 = inlined_call_operand.vmem [shape: f32[4,2048,3], index: 3, kind: output, shape index: {}]
  %s4 = sld [smem:[#allocation0]]
  $region53: #{generator_forward.17} parent=0
    _
  %s6 = ssub.s32 1, %s4
  %s7 = scalar_select 0, %s6, %s4
  loop: start=0, step=1, limit=18
  $region2: #{generator_forward.17} parent=0 // loop_pre_header
    _
  $region3: #{generator_forward.17} parent=0 // loop_header
    %s9 = sphi 0, %s13
    %p10 = scmp.ge.s32.totalorder %s9, 18
    %s16 = sphi 0, %s35
    %s17 = sphi 0, %s31
    %s18 = sphi 0, %s27
    %s19 = sphi 0, %s16
    %s20 = sphi 0, %s17
    %s21 = sphi 0, %s18
    %s22 = sphi 0, %s19
    %s23 = sphi 0, %s20
    %s24 = sphi 0, %s21
    %s42 = sphi 0, %s44
    %s45 = sphi 0, %s42
    %s46 = sphi 0, %s45
    %s62 = sphi 0, %s46
    %s70 = sphi 0, %s72
    %s73 = sphi 0, %s70
    %s74 = sphi 0, %s73
    %s90 = sphi 0, %s74
    %s94 = sphi 0, %s94
    %s96 = sphi 0, %s94
    %s97 = sphi 0, %s96
    %s111 = sphi 0, %s97
    %s119 = sphi 0, %s121
    %s122 = sphi 0, %s119
    %s123 = sphi 0, %s122
    %s139 = sphi 0, %s123
  $region4: #{generator_forward.17} parent=0 // loop_header_branch
    %12 = sbr.rel (%p10) target = $region8
  $region5: #{generator_forward.17} parent=0 // loop_body
    %s14 = ssub.s32 %s9, 1
    %s15 = ssub.s32 %s9, 2
    %s25 = sadd.s32 1, %s18
    %p26 = scmp.ge.s32.totalorder %s25, 1
    %s27 = scalar_select %p26, 0, %s25
    %s28 = sadd.s32 1, %s17
    %s29 = scalar_select %p26, %s28, %s17
    %p30 = scmp.ge.s32.totalorder %s29, 4
    %s31 = scalar_select %p30, 0, %s29
    %s32 = sadd.s32 1, %s16
    %s33 = scalar_select %p30, %s32, %s16
    %p34 = scmp.ge.s32.totalorder %s33, 4
    %s35 = scalar_select %p34, 0, %s33
    %s36 = ssub.s32 %s16, %s35
    %s37 = ssub.s32 %s17, %s31
    %s38 = sor.u32 %s36, %s37
    %s39 = ssub.s32 %s18, %s27
    %s40 = sor.u32 %s38, %s39
    %p41 = scmp.eq.s32.totalorder %s40, 0
    %s43 = sadd.s32 %s42, 1
    %s44 = scalar_select %p41, %s42, %s43
    %p47 = pneg %p41
    %p48 = scmp.eq.s32.totalorder %s9, 15
    %p49 = por %p47, %p48
    %p50 = scmp.ne.s32.totalorder %s42, %s45
    %p51 = scmp.eq.s32.totalorder %s9, 0
    %p52 = por %p50, %p51
    %p53 = scmp.ne.s32.totalorder %s42, %s45
    %p54 = scmp.eq.s32.totalorder %s14, 15
    %p55 = por %p53, %p54
    %p56 = scmp.ne.s32.totalorder %s45, %s46
    %p57 = scmp.eq.s32.totalorder %s14, 0
    %p58 = por %p56, %p57
    %p59 = scmp.ne.s32.totalorder %s45, %s46
    %p60 = scmp.eq.s32.totalorder %s15, 15
    %p61 = por %p59, %p60
    %p63 = scmp.ne.s32.totalorder %s46, %s62
    %p64 = scmp.eq.s32.totalorder %s15, 0
    %p65 = por %p63, %p64
    %s66 = ssub.s32 %s16, %s35
    %s67 = ssub.s32 %s18, %s27
    %s68 = sor.u32 %s66, %s67
    %p69 = scmp.eq.s32.totalorder %s68, 0
    %s71 = sadd.s32 %s70, 1
    %s72 = scalar_select %p69, %s70, %s71
    %p75 = pneg %p69
    %p76 = scmp.eq.s32.totalorder %s9, 15
    %p77 = por %p75, %p76
    %p78 = scmp.ne.s32.totalorder %s70, %s73
    %p79 = scmp.eq.s32.totalorder %s9, 0
    %p80 = por %p78, %p79
    %p81 = scmp.ne.s32.totalorder %s70, %s73
    %p82 = scmp.eq.s32.totalorder %s14, 15
    %p83 = por %p81, %p82
    %p84 = scmp.ne.s32.totalorder %s73, %s74
    %p85 = scmp.eq.s32.totalorder %s14, 0
    %p86 = por %p84, %p85
    %p87 = scmp.ne.s32.totalorder %s73, %s74
    %p88 = scmp.eq.s32.totalorder %s15, 15
    %p89 = por %p87, %p88
    %p91 = scmp.ne.s32.totalorder %s74, %s90
    %p92 = scmp.eq.s32.totalorder %s15, 0
    %p93 = por %p91, %p92
    %s95 = sadd.s32 %s94, 1
    %p98 = scmp.eq.s32.totalorder %s9, 15
    %p99 = scmp.ne.s32.totalorder %s94, %s96
    %p100 = scmp.eq.s32.totalorder %s9, 0
    %p101 = por %p99, %p100
    %p102 = scmp.ne.s32.totalorder %s94, %s96
    %p103 = scmp.eq.s32.totalorder %s14, 15
    %p104 = por %p102, %p103
    %p105 = scmp.ne.s32.totalorder %s96, %s97
    %p106 = scmp.eq.s32.totalorder %s14, 0
    %p107 = por %p105, %p106
    %p108 = scmp.ne.s32.totalorder %s96, %s97
    %p109 = scmp.eq.s32.totalorder %s15, 15
    %p110 = por %p108, %p109
    %p112 = scmp.ne.s32.totalorder %s97, %s111
    %p113 = scmp.eq.s32.totalorder %s15, 0
    %p114 = por %p112, %p113
    %s115 = ssub.s32 %s16, %s35
    %s116 = ssub.s32 %s17, %s31
    %s117 = sor.u32 %s115, %s116
    %p118 = scmp.eq.s32.totalorder %s117, 0
    %s120 = sadd.s32 %s119, 1
    %s121 = scalar_select %p118, %s119, %s120
    %p124 = pneg %p118
    %p125 = scmp.eq.s32.totalorder %s9, 15
    %p126 = por %p124, %p125
    %p127 = scmp.ne.s32.totalorder %s119, %s122
    %p128 = scmp.eq.s32.totalorder %s9, 0
    %p129 = por %p127, %p128
    %p130 = scmp.ne.s32.totalorder %s119, %s122
    %p131 = scmp.eq.s32.totalorder %s14, 15
    %p132 = por %p130, %p131
    %p133 = scmp.ne.s32.totalorder %s122, %s123
    %p134 = scmp.eq.s32.totalorder %s14, 0
    %p135 = por %p133, %p134
    %p136 = scmp.ne.s32.totalorder %s122, %s123
    %p137 = scmp.eq.s32.totalorder %s15, 15
    %p138 = por %p136, %p137
    %p140 = scmp.ne.s32.totalorder %s123, %s139
    %p141 = scmp.eq.s32.totalorder %s15, 0
    %p142 = por %p140, %p141
    %p143 = scmp.le.s32.totalorder 1, %s9
    %p144 = scmp.lt.s32.totalorder %s9, 17
    %p145 = pnand %p143, %p144
    %p146 = pneg %p145
    // Predicated region
    $region9: #{generator_forward.17} parent=5 // pred_check
      _
    $region10: #{generator_forward.17} parent=5 // pred_check_branch
      %148 = sbr.rel (%p145) target = $region12
    $region11: #{generator_forward.17} parent=5 // pred_region
      %s149 = ssub.s32 %s9, 1
      // Predicated region
      $region13: #{generator_forward.17} parent=11 // pred_check
        %p150 = pneg %p107
      $region14: #{generator_forward.17} parent=11 // pred_check_branch
        %152 = sbr.rel (%p150) target = $region16
      $region15: #{generator_forward.17} parent=11 // pred_region
        _
      $region16: #{generator_forward.17} parent=11 // pred_fallthru
        _
    $region12: #{generator_forward.17} parent=5 // pred_fallthru
      _
    %p153 = scmp.lt.s32.totalorder %s9, 16
    // Predicated region
    $region17: #{generator_forward.17} parent=5 // pred_check
      %p154 = pneg %p153
    $region18: #{generator_forward.17} parent=5 // pred_check_branch
      %156 = sbr.rel (%p154) target = $region20
    $region19: #{generator_forward.17} parent=5 // pred_region
      // Predicated region
      $region21: #{generator_forward.17} parent=19 // pred_check
        %p157 = pneg %p52
      $region22: #{generator_forward.17} parent=19 // pred_check_branch
        %159 = sbr.rel (%p157) target = $region24
      $region23: #{generator_forward.17} parent=19 // pred_region
        %s160 = smul.u32 64, %s17
        %p161 = scmp.lt.s32.totalorder %s16, 3
        %s162 = scalar_select %p161, %s16, 3
        %p163 = scmp.lt.s32.totalorder %s160, 255
        %s164 = scalar_select %p163, %s160, 255
        %p165 = scmp.lt.s32.totalorder %s18, 0
        %s166 = scalar_select %p165, %s18, 0
        %s167 = sadd.s32 %s166, %s164
        %s168 = smul.addr %s162, 256
        %s169 = sadd.s32 %s167, %s168
        %s170 = smul.addr %s169, 4
        %s171 = scalar_lea.vmem %s0, %s170
        %s172 = smul.u32 64, %s17
      $region24: #{generator_forward.17} parent=19 // pred_fallthru
        _
      // Predicated region
      $region25: #{generator_forward.17} parent=19 // pred_check
        %p173 = pneg %p80
      $region26: #{generator_forward.17} parent=19 // pred_check_branch
        %175 = sbr.rel (%p173) target = $region28
      $region27: #{generator_forward.17} parent=19 // pred_region
        %s176 = smul.u32 8, %s18
        %p177 = scmp.lt.s32.totalorder %s16, 3
        %s178 = scalar_select %p177, %s16, 3
        %p179 = scmp.lt.s32.totalorder %s176, 7
        %s180 = scalar_select %p179, %s176, 7
        %s181 = smul.addr %s178, 8
        %s182 = sadd.s32 %s180, %s181
        %s183 = smul.addr %s182, 4
        %s184 = scalar_lea.vmem %s1, %s183
        %s185 = smul.u32 8, %s18
      $region28: #{generator_forward.17} parent=19 // pred_fallthru
        _
    $region20: #{generator_forward.17} parent=5 // pred_fallthru
      _
    %p186 = scmp.le.s32.totalorder 1, %s9
    %p187 = scmp.lt.s32.totalorder %s9, 17
    %p188 = pnand %p186, %p187
    %p189 = pneg %p188
    // Predicated region
    $region29: #{generator_forward.17} parent=5 // pred_check
      _
    $region30: #{generator_forward.17} parent=5 // pred_check_branch
      %191 = sbr.rel (%p188) target = $region32
    $region31: #{generator_forward.17} parent=5 // pred_region
      %s192 = ssub.s32 %s9, 1
      %s193 = smul.u32 64, %s20
      %p194 = scmp.lt.s32.totalorder %s19, 3
      %s195 = scalar_select %p194, %s19, 3
      %p196 = scmp.lt.s32.totalorder %s193, 255
      %s197 = scalar_select %p196, %s193, 255
      %p198 = scmp.lt.s32.totalorder %s21, 0
      %s199 = scalar_select %p198, %s21, 0
      %s200 = sadd.s32 %s199, %s197
      %s201 = smul.addr %s195, 256
      %s202 = sadd.s32 %s200, %s201
      %s203 = smul.addr %s202, 4
      %s204 = scalar_lea.vmem %s0, %s203
      %p205 = pneg %p58
      %p206 = pneg %p55
      %s207 = smul.u32 8, %s21
      %p208 = scmp.lt.s32.totalorder %s19, 3
      %s209 = scalar_select %p208, %s19, 3
      %p210 = scmp.lt.s32.totalorder %s207, 7
      %s211 = scalar_select %p210, %s207, 7
      %s212 = smul.addr %s209, 8
      %s213 = sadd.s32 %s211, %s212
      %s214 = smul.addr %s213, 4
      %s215 = scalar_lea.vmem %s1, %s214
      %p216 = pneg %p86
      %p217 = pneg %p83
      %p218 = pneg %p107
      %p219 = pneg %p104
      %p220 = pneg %p135
      %p221 = pneg %p132
      %s222 = smul.u32 64, %s20
      %p223 = scmp.lt.s32.totalorder %s19, 3
      %s224 = scalar_select %p223, %s19, 3
      %p225 = scmp.lt.s32.totalorder %s222, 255
      %s226 = scalar_select %p225, %s222, 255
      %s227 = smul.addr %s224, 256
      %s228 = sadd.s32 %s226, %s227
      %s229 = smul.addr %s228, 8
      %s230 = scalar_lea.vmem %s3, %s229
      %s231 = smul.u32 64, %s20
      %p232 = scmp.lt.s32.totalorder %s19, 3
      %s233 = scalar_select %p232, %s19, 3
      %p234 = scmp.lt.s32.totalorder %s231, 255
      %s235 = scalar_select %p234, %s231, 255
      %p236 = scmp.lt.s32.totalorder %s21, 0
      %s237 = scalar_select %p236, %s21, 0
      %s238 = sadd.s32 %s237, %s235
      %s239 = smul.addr %s233, 256
      %s240 = sadd.s32 %s238, %s239
      %s241 = smul.addr %s240, 4
      %s242 = scalar_lea.vmem %s0, %s241
      %s243 = smul.u32 64, %s20
      %s244 = smul.u32 8, %s21
      %p245 = scmp.lt.s32.totalorder %s19, 3
      %s246 = scalar_select %p245, %s19, 3
      %p247 = scmp.lt.s32.totalorder %s244, 7
      %s248 = scalar_select %p247, %s244, 7
      %s249 = smul.addr %s246, 8
      %s250 = sadd.s32 %s248, %s249
      %s251 = smul.addr %s250, 4
      %s252 = scalar_lea.vmem %s1, %s251
      %s253 = smul.u32 8, %s21
      %s254 = smul.u32 64, %s20
      %p255 = scmp.lt.s32.totalorder %s19, 3
      %s256 = scalar_select %p255, %s19, 3
      %p257 = scmp.lt.s32.totalorder %s254, 255
      %s258 = scalar_select %p257, %s254, 255
      %s259 = smul.addr %s256, 256
      %s260 = sadd.s32 %s258, %s259
      %s261 = smul.addr %s260, 8
      %s262 = scalar_lea.vmem %s3, %s261
      %s263 = smul.u32 64, %s20
      %p265 = scmp.eq.s32.totalorder %s21, 0
      // Predicated region
      $region33: #{generator_forward.17} parent=31 // pred_check
        %p266 = pneg %p265
      $region34: #{generator_forward.17} parent=31 // pred_check_branch
        %268 = sbr.rel (%p266) target = $region36
      $region35: #{generator_forward.17} parent=31 // pred_region
        %vm269 = vcmask 23552
        %270 = vst.msk [vmem:[#allocation2] sm:$0xff] %vm269, 0.0
        %271 = vst.msk [vmem:[#allocation2 + $0x8] sm:$0xff] %vm269, 0.0
        %272 = vst.msk [vmem:[#allocation2 + $0x10] sm:$0xff] %vm269, 0.0
        %273 = vst.msk [vmem:[#allocation2 + $0x18] sm:$0xff] %vm269, 0.0
        %274 = vst.msk [vmem:[#allocation2 + $0x20] sm:$0xff] %vm269, 0.0
        %275 = vst.msk [vmem:[#allocation2 + $0x28] sm:$0xff] %vm269, 0.0
        %276 = vst.msk [vmem:[#allocation2 + $0x30] sm:$0xff] %vm269, 0.0
        %277 = vst.msk [vmem:[#allocation2 + $0x38] sm:$0xff] %vm269, 0.0
        %278 = vst.msk [vmem:[#allocation2 + $0x40] sm:$0xff] %vm269, 0.0
        %279 = vst.msk [vmem:[#allocation2 + $0x48] sm:$0xff] %vm269, 0.0
        %280 = vst.msk [vmem:[#allocation2 + $0x50] sm:$0xff] %vm269, 0.0
        %281 = vst.msk [vmem:[#allocation2 + $0x58] sm:$0xff] %vm269, 0.0
        %282 = vst.msk [vmem:[#allocation2 + $0x60] sm:$0xff] %vm269, 0.0
        %283 = vst.msk [vmem:[#allocation2 + $0x68] sm:$0xff] %vm269, 0.0
        %284 = vst.msk [vmem:[#allocation2 + $0x70] sm:$0xff] %vm269, 0.0
        %285 = vst.msk [vmem:[#allocation2 + $0x78] sm:$0xff] %vm269, 0.0
        %286 = vst.msk [vmem:[#allocation2 + $0x80] sm:$0xff] %vm269, 0.0
        %287 = vst.msk [vmem:[#allocation2 + $0x88] sm:$0xff] %vm269, 0.0
        %288 = vst.msk [vmem:[#allocation2 + $0x90] sm:$0xff] %vm269, 0.0
        %289 = vst.msk [vmem:[#allocation2 + $0x98] sm:$0xff] %vm269, 0.0
        %290 = vst.msk [vmem:[#allocation2 + $0xa0] sm:$0xff] %vm269, 0.0
        %291 = vst.msk [vmem:[#allocation2 + $0xa8] sm:$0xff] %vm269, 0.0
        %292 = vst.msk [vmem:[#allocation2 + $0xb0] sm:$0xff] %vm269, 0.0
        %293 = vst.msk [vmem:[#allocation2 + $0xb8] sm:$0xff] %vm269, 0.0
        %294 = vst.msk [vmem:[#allocation2 + $0xc0] sm:$0xff] %vm269, 0.0
        %295 = vst.msk [vmem:[#allocation2 + $0xc8] sm:$0xff] %vm269, 0.0
        %296 = vst.msk [vmem:[#allocation2 + $0xd0] sm:$0xff] %vm269, 0.0
        %297 = vst.msk [vmem:[#allocation2 + $0xd8] sm:$0xff] %vm269, 0.0
        %298 = vst.msk [vmem:[#allocation2 + $0xe0] sm:$0xff] %vm269, 0.0
        %299 = vst.msk [vmem:[#allocation2 + $0xe8] sm:$0xff] %vm269, 0.0
        %300 = vst.msk [vmem:[#allocation2 + $0xf0] sm:$0xff] %vm269, 0.0
        %301 = vst.msk [vmem:[#allocation2 + $0xf8] sm:$0xff] %vm269, 0.0
        %302 = vst.msk [vmem:[#allocation2 + $0x100] sm:$0xff] %vm269, 0.0
        %303 = vst.msk [vmem:[#allocation2 + $0x108] sm:$0xff] %vm269, 0.0
        %304 = vst.msk [vmem:[#allocation2 + $0x110] sm:$0xff] %vm269, 0.0
        %305 = vst.msk [vmem:[#allocation2 + $0x118] sm:$0xff] %vm269, 0.0
        %306 = vst.msk [vmem:[#allocation2 + $0x120] sm:$0xff] %vm269, 0.0
        %307 = vst.msk [vmem:[#allocation2 + $0x128] sm:$0xff] %vm269, 0.0
        %308 = vst.msk [vmem:[#allocation2 + $0x130] sm:$0xff] %vm269, 0.0
        %309 = vst.msk [vmem:[#allocation2 + $0x138] sm:$0xff] %vm269, 0.0
        %310 = vst.msk [vmem:[#allocation2 + $0x140] sm:$0xff] %vm269, 0.0
        %311 = vst.msk [vmem:[#allocation2 + $0x148] sm:$0xff] %vm269, 0.0
        %312 = vst.msk [vmem:[#allocation2 + $0x150] sm:$0xff] %vm269, 0.0
        %313 = vst.msk [vmem:[#allocation2 + $0x158] sm:$0xff] %vm269, 0.0
        %314 = vst.msk [vmem:[#allocation2 + $0x160] sm:$0xff] %vm269, 0.0
        %315 = vst.msk [vmem:[#allocation2 + $0x168] sm:$0xff] %vm269, 0.0
        %316 = vst.msk [vmem:[#allocation2 + $0x170] sm:$0xff] %vm269, 0.0
        %317 = vst.msk [vmem:[#allocation2 + $0x178] sm:$0xff] %vm269, 0.0
        %318 = vst.msk [vmem:[#allocation2 + $0x180] sm:$0xff] %vm269, 0.0
        %319 = vst.msk [vmem:[#allocation2 + $0x188] sm:$0xff] %vm269, 0.0
        %320 = vst.msk [vmem:[#allocation2 + $0x190] sm:$0xff] %vm269, 0.0
        %321 = vst.msk [vmem:[#allocation2 + $0x198] sm:$0xff] %vm269, 0.0
        %322 = vst.msk [vmem:[#allocation2 + $0x1a0] sm:$0xff] %vm269, 0.0
        %323 = vst.msk [vmem:[#allocation2 + $0x1a8] sm:$0xff] %vm269, 0.0
        %324 = vst.msk [vmem:[#allocation2 + $0x1b0] sm:$0xff] %vm269, 0.0
        %325 = vst.msk [vmem:[#allocation2 + $0x1b8] sm:$0xff] %vm269, 0.0
        %326 = vst.msk [vmem:[#allocation2 + $0x1c0] sm:$0xff] %vm269, 0.0
        %327 = vst.msk [vmem:[#allocation2 + $0x1c8] sm:$0xff] %vm269, 0.0
        %328 = vst.msk [vmem:[#allocation2 + $0x1d0] sm:$0xff] %vm269, 0.0
        %329 = vst.msk [vmem:[#allocation2 + $0x1d8] sm:$0xff] %vm269, 0.0
        %330 = vst.msk [vmem:[#allocation2 + $0x1e0] sm:$0xff] %vm269, 0.0
        %331 = vst.msk [vmem:[#allocation2 + $0x1e8] sm:$0xff] %vm269, 0.0
        %332 = vst.msk [vmem:[#allocation2 + $0x1f0] sm:$0xff] %vm269, 0.0
        %333 = vst.msk [vmem:[#allocation2 + $0x1f8] sm:$0xff] %vm269, 0.0
      $region36: #{generator_forward.17} parent=31 // pred_fallthru
        _
      %v334 = vld [vmem:[#allocation2] sm:$0xff]
      %v335 = vld [vmem:[#allocation2 + $0x8] sm:$0xff]
      %v336 = vld [vmem:[#allocation2 + $0x10] sm:$0xff]
      %v337 = vld [vmem:[#allocation2 + $0x18] sm:$0xff]
      %v338 = vld [vmem:[#allocation2 + $0x20] sm:$0xff]
      %v339 = vld [vmem:[#allocation2 + $0x28] sm:$0xff]
      %v340 = vld [vmem:[#allocation2 + $0x30] sm:$0xff]
      %v341 = vld [vmem:[#allocation2 + $0x38] sm:$0xff]
      %v342 = vld [vmem:[#allocation2 + $0x40] sm:$0xff]
      %v343 = vld [vmem:[#allocation2 + $0x48] sm:$0xff]
      %v344 = vld [vmem:[#allocation2 + $0x50] sm:$0xff]
      %v345 = vld [vmem:[#allocation2 + $0x58] sm:$0xff]
      %v346 = vld [vmem:[#allocation2 + $0x60] sm:$0xff]
      %v347 = vld [vmem:[#allocation2 + $0x68] sm:$0xff]
      %v348 = vld [vmem:[#allocation2 + $0x70] sm:$0xff]
      %v349 = vld [vmem:[#allocation2 + $0x78] sm:$0xff]
      %v350 = vld [vmem:[#allocation2 + $0x80] sm:$0xff]
      %v351 = vld [vmem:[#allocation2 + $0x88] sm:$0xff]
      %v352 = vld [vmem:[#allocation2 + $0x90] sm:$0xff]
      %v353 = vld [vmem:[#allocation2 + $0x98] sm:$0xff]
      %v354 = vld [vmem:[#allocation2 + $0xa0] sm:$0xff]
      %v355 = vld [vmem:[#allocation2 + $0xa8] sm:$0xff]
      %v356 = vld [vmem:[#allocation2 + $0xb0] sm:$0xff]
      %v357 = vld [vmem:[#allocation2 + $0xb8] sm:$0xff]
      %v358 = vld [vmem:[#allocation2 + $0xc0] sm:$0xff]
      %v359 = vld [vmem:[#allocation2 + $0xc8] sm:$0xff]
      %v360 = vld [vmem:[#allocation2 + $0xd0] sm:$0xff]
      %v361 = vld [vmem:[#allocation2 + $0xd8] sm:$0xff]
      %v362 = vld [vmem:[#allocation2 + $0xe0] sm:$0xff]
      %v363 = vld [vmem:[#allocation2 + $0xe8] sm:$0xff]
      %v364 = vld [vmem:[#allocation2 + $0xf0] sm:$0xff]
      %v365 = vld [vmem:[#allocation2 + $0xf8] sm:$0xff]
      %v366 = vld [vmem:[#allocation2 + $0x100] sm:$0xff]
      %v367 = vld [vmem:[#allocation2 + $0x108] sm:$0xff]
      %v368 = vld [vmem:[#allocation2 + $0x110] sm:$0xff]
      %v369 = vld [vmem:[#allocation2 + $0x118] sm:$0xff]
      %v370 = vld [vmem:[#allocation2 + $0x120] sm:$0xff]
      %v371 = vld [vmem:[#allocation2 + $0x128] sm:$0xff]
      %v372 = vld [vmem:[#allocation2 + $0x130] sm:$0xff]
      %v373 = vld [vmem:[#allocation2 + $0x138] sm:$0xff]
      %v374 = vld [vmem:[#allocation2 + $0x140] sm:$0xff]
      %v375 = vld [vmem:[#allocation2 + $0x148] sm:$0xff]
      %v376 = vld [vmem:[#allocation2 + $0x150] sm:$0xff]
      %v377 = vld [vmem:[#allocation2 + $0x158] sm:$0xff]
      %v378 = vld [vmem:[#allocation2 + $0x160] sm:$0xff]
      %v379 = vld [vmem:[#allocation2 + $0x168] sm:$0xff]
      %v380 = vld [vmem:[#allocation2 + $0x170] sm:$0xff]
      %v381 = vld [vmem:[#allocation2 + $0x178] sm:$0xff]
      %v382 = vld [vmem:[#allocation2 + $0x180] sm:$0xff]
      %v383 = vld [vmem:[#allocation2 + $0x188] sm:$0xff]
      %v384 = vld [vmem:[#allocation2 + $0x190] sm:$0xff]
      %v385 = vld [vmem:[#allocation2 + $0x198] sm:$0xff]
      %v386 = vld [vmem:[#allocation2 + $0x1a0] sm:$0xff]
      %v387 = vld [vmem:[#allocation2 + $0x1a8] sm:$0xff]
      %v388 = vld [vmem:[#allocation2 + $0x1b0] sm:$0xff]
      %v389 = vld [vmem:[#allocation2 + $0x1b8] sm:$0xff]
      %v390 = vld [vmem:[#allocation2 + $0x1c0] sm:$0xff]
      %v391 = vld [vmem:[#allocation2 + $0x1c8] sm:$0xff]
      %v392 = vld [vmem:[#allocation2 + $0x1d0] sm:$0xff]
      %v393 = vld [vmem:[#allocation2 + $0x1d8] sm:$0xff]
      %v394 = vld [vmem:[#allocation2 + $0x1e0] sm:$0xff]
      %v395 = vld [vmem:[#allocation2 + $0x1e8] sm:$0xff]
      %v396 = vld [vmem:[#allocation2 + $0x1f0] sm:$0xff]
      %v397 = vld [vmem:[#allocation2 + $0x1f8] sm:$0xff]
      %v398 = vld [vmem:[%s242] sm:$0xf]
      %v399 = vld [vmem:[%s242 + $0x4] sm:$0xf]
      %v400 = vld [vmem:[%s242 + $0x8] sm:$0xf]
      %v401 = vld [vmem:[%s242 + $0xc] sm:$0xf]
      %v402 = vld [vmem:[%s242 + $0x10] sm:$0xf]
      %v403 = vld [vmem:[%s242 + $0x14] sm:$0xf]
      %v404 = vld [vmem:[%s242 + $0x18] sm:$0xf]
      %v405 = vld [vmem:[%s242 + $0x1c] sm:$0xf]
      %v406 = vld [vmem:[%s242 + $0x20] sm:$0xf]
      %v407 = vld [vmem:[%s242 + $0x24] sm:$0xf]
      %v408 = vld [vmem:[%s242 + $0x28] sm:$0xf]
      %v409 = vld [vmem:[%s242 + $0x2c] sm:$0xf]
      %v410 = vld [vmem:[%s242 + $0x30] sm:$0xf]
      %v411 = vld [vmem:[%s242 + $0x34] sm:$0xf]
      %v412 = vld [vmem:[%s242 + $0x38] sm:$0xf]
      %v413 = vld [vmem:[%s242 + $0x3c] sm:$0xf]
      %v414 = vld [vmem:[%s242 + $0x40] sm:$0xf]
      %v415 = vld [vmem:[%s242 + $0x44] sm:$0xf]
      %v416 = vld [vmem:[%s242 + $0x48] sm:$0xf]
      %v417 = vld [vmem:[%s242 + $0x4c] sm:$0xf]
      %v418 = vld [vmem:[%s242 + $0x50] sm:$0xf]
      %v419 = vld [vmem:[%s242 + $0x54] sm:$0xf]
      %v420 = vld [vmem:[%s242 + $0x58] sm:$0xf]
      %v421 = vld [vmem:[%s242 + $0x5c] sm:$0xf]
      %v422 = vld [vmem:[%s242 + $0x60] sm:$0xf]
      %v423 = vld [vmem:[%s242 + $0x64] sm:$0xf]
      %v424 = vld [vmem:[%s242 + $0x68] sm:$0xf]
      %v425 = vld [vmem:[%s242 + $0x6c] sm:$0xf]
      %v426 = vld [vmem:[%s242 + $0x70] sm:$0xf]
      %v427 = vld [vmem:[%s242 + $0x74] sm:$0xf]
      %v428 = vld [vmem:[%s242 + $0x78] sm:$0xf]
      %v429 = vld [vmem:[%s242 + $0x7c] sm:$0xf]
      %v430 = vld [vmem:[%s242 + $0x80] sm:$0xf]
      %v431 = vld [vmem:[%s242 + $0x84] sm:$0xf]
      %v432 = vld [vmem:[%s242 + $0x88] sm:$0xf]
      %v433 = vld [vmem:[%s242 + $0x8c] sm:$0xf]
      %v434 = vld [vmem:[%s242 + $0x90] sm:$0xf]
      %v435 = vld [vmem:[%s242 + $0x94] sm:$0xf]
      %v436 = vld [vmem:[%s242 + $0x98] sm:$0xf]
      %v437 = vld [vmem:[%s242 + $0x9c] sm:$0xf]
      %v438 = vld [vmem:[%s242 + $0xa0] sm:$0xf]
      %v439 = vld [vmem:[%s242 + $0xa4] sm:$0xf]
      %v440 = vld [vmem:[%s242 + $0xa8] sm:$0xf]
      %v441 = vld [vmem:[%s242 + $0xac] sm:$0xf]
      %v442 = vld [vmem:[%s242 + $0xb0] sm:$0xf]
      %v443 = vld [vmem:[%s242 + $0xb4] sm:$0xf]
      %v444 = vld [vmem:[%s242 + $0xb8] sm:$0xf]
      %v445 = vld [vmem:[%s242 + $0xbc] sm:$0xf]
      %v446 = vld [vmem:[%s242 + $0xc0] sm:$0xf]
      %v447 = vld [vmem:[%s242 + $0xc4] sm:$0xf]
      %v448 = vld [vmem:[%s242 + $0xc8] sm:$0xf]
      %v449 = vld [vmem:[%s242 + $0xcc] sm:$0xf]
      %v450 = vld [vmem:[%s242 + $0xd0] sm:$0xf]
      %v451 = vld [vmem:[%s242 + $0xd4] sm:$0xf]
      %v452 = vld [vmem:[%s242 + $0xd8] sm:$0xf]
      %v453 = vld [vmem:[%s242 + $0xdc] sm:$0xf]
      %v454 = vld [vmem:[%s242 + $0xe0] sm:$0xf]
      %v455 = vld [vmem:[%s242 + $0xe4] sm:$0xf]
      %v456 = vld [vmem:[%s242 + $0xe8] sm:$0xf]
      %v457 = vld [vmem:[%s242 + $0xec] sm:$0xf]
      %v458 = vld [vmem:[%s242 + $0xf0] sm:$0xf]
      %v459 = vld [vmem:[%s242 + $0xf4] sm:$0xf]
      %v460 = vld [vmem:[%s242 + $0xf8] sm:$0xf]
      %v461 = vld [vmem:[%s242 + $0xfc] sm:$0xf]
      %v462 = vld [vmem:[%s252] sm:$0xf]
      %v463 = vld [vmem:[%s252 + $0x4] sm:$0xf]
      %v464 = vld [vmem:[%s252 + $0x8] sm:$0xf]
      %v465 = vld [vmem:[%s252 + $0xc] sm:$0xf]
      %v466 = vld [vmem:[%s252 + $0x10] sm:$0xf]
      %v467 = vld [vmem:[%s252 + $0x14] sm:$0xf]
      %v468 = vld [vmem:[%s252 + $0x18] sm:$0xf]
      %v469 = vld [vmem:[%s252 + $0x1c] sm:$0xf]
      %v534 = vunpack.c.l.b16 %v398
      %v535 = vunpack.c.l.b16 %v399
      %v536 = vunpack.c.l.b16 %v400
      %v537 = vunpack.c.l.b16 %v401
      %v538 = vunpack.c.l.b16 %v402
      %v539 = vunpack.c.l.b16 %v403
      %v540 = vunpack.c.l.b16 %v404
      %v541 = vunpack.c.l.b16 %v405
      %v542 = vunpack.c.l.b16 %v406
      %v543 = vunpack.c.l.b16 %v407
      %v544 = vunpack.c.l.b16 %v408
      %v545 = vunpack.c.l.b16 %v409
      %v546 = vunpack.c.l.b16 %v410
      %v547 = vunpack.c.l.b16 %v411
      %v548 = vunpack.c.l.b16 %v412
      %v549 = vunpack.c.l.b16 %v413
      %v550 = vunpack.c.l.b16 %v414
      %v551 = vunpack.c.l.b16 %v415
      %v552 = vunpack.c.l.b16 %v416
      %v553 = vunpack.c.l.b16 %v417
      %v554 = vunpack.c.l.b16 %v418
      %v555 = vunpack.c.l.b16 %v419
      %v556 = vunpack.c.l.b16 %v420
      %v557 = vunpack.c.l.b16 %v421
      %v558 = vunpack.c.l.b16 %v422
      %v559 = vunpack.c.l.b16 %v423
      %v560 = vunpack.c.l.b16 %v424
      %v561 = vunpack.c.l.b16 %v425
      %v562 = vunpack.c.l.b16 %v426
      %v563 = vunpack.c.l.b16 %v427
      %v564 = vunpack.c.l.b16 %v428
      %v565 = vunpack.c.l.b16 %v429
      %v566 = vunpack.c.l.b16 %v430
      %v567 = vunpack.c.l.b16 %v431
      %v568 = vunpack.c.l.b16 %v432
      %v569 = vunpack.c.l.b16 %v433
      %v570 = vunpack.c.l.b16 %v434
      %v571 = vunpack.c.l.b16 %v435
      %v572 = vunpack.c.l.b16 %v436
      %v573 = vunpack.c.l.b16 %v437
      %v574 = vunpack.c.l.b16 %v438
      %v575 = vunpack.c.l.b16 %v439
      %v576 = vunpack.c.l.b16 %v440
      %v577 = vunpack.c.l.b16 %v441
      %v578 = vunpack.c.l.b16 %v442
      %v579 = vunpack.c.l.b16 %v443
      %v580 = vunpack.c.l.b16 %v444
      %v581 = vunpack.c.l.b16 %v445
      %v582 = vunpack.c.l.b16 %v446
      %v583 = vunpack.c.l.b16 %v447
      %v584 = vunpack.c.l.b16 %v448
      %v585 = vunpack.c.l.b16 %v449
      %v586 = vunpack.c.l.b16 %v450
      %v587 = vunpack.c.l.b16 %v451
      %v588 = vunpack.c.l.b16 %v452
      %v589 = vunpack.c.l.b16 %v453
      %v590 = vunpack.c.l.b16 %v454
      %v591 = vunpack.c.l.b16 %v455
      %v592 = vunpack.c.l.b16 %v456
      %v593 = vunpack.c.l.b16 %v457
      %v594 = vunpack.c.l.b16 %v458
      %v595 = vunpack.c.l.b16 %v459
      %v596 = vunpack.c.l.b16 %v460
      %v597 = vunpack.c.l.b16 %v461
      %v598 = vpack.c.b16 %v535, %v534
      %v599 = vpack.c.b16 %v537, %v536
      %v600 = vpack.c.b16 %v539, %v538
      %v601 = vpack.c.b16 %v541, %v540
      %v602 = vpack.c.b16 %v543, %v542
      %v603 = vpack.c.b16 %v545, %v544
      %v604 = vpack.c.b16 %v547, %v546
      %v605 = vpack.c.b16 %v549, %v548
      %v606 = vpack.c.b16 %v551, %v550
      %v607 = vpack.c.b16 %v553, %v552
      %v608 = vpack.c.b16 %v555, %v554
      %v609 = vpack.c.b16 %v557, %v556
      %v610 = vpack.c.b16 %v559, %v558
      %v611 = vpack.c.b16 %v561, %v560
      %v612 = vpack.c.b16 %v563, %v562
      %v613 = vpack.c.b16 %v565, %v564
      %v614 = vpack.c.b16 %v567, %v566
      %v615 = vpack.c.b16 %v569, %v568
      %v616 = vpack.c.b16 %v571, %v570
      %v617 = vpack.c.b16 %v573, %v572
      %v618 = vpack.c.b16 %v575, %v574
      %v619 = vpack.c.b16 %v577, %v576
      %v620 = vpack.c.b16 %v579, %v578
      %v621 = vpack.c.b16 %v581, %v580
      %v622 = vpack.c.b16 %v583, %v582
      %v623 = vpack.c.b16 %v585, %v584
      %v624 = vpack.c.b16 %v587, %v586
      %v625 = vpack.c.b16 %v589, %v588
      %v626 = vpack.c.b16 %v591, %v590
      %v627 = vpack.c.b16 %v593, %v592
      %v628 = vpack.c.b16 %v595, %v594
      %v629 = vpack.c.b16 %v597, %v596
      %v638 = vunpack.c.l.b16 %v462
      %v639 = vunpack.c.l.b16 %v463
      %v640 = vunpack.c.l.b16 %v464
      %v641 = vunpack.c.l.b16 %v465
      %v642 = vunpack.c.l.b16 %v466
      %v643 = vunpack.c.l.b16 %v467
      %v644 = vunpack.c.l.b16 %v468
      %v645 = vunpack.c.l.b16 %v469
      %v646 = vpack.c.b16 %v639, %v638
      %v647 = vpack.c.b16 %v641, %v640
      %v648 = vpack.c.b16 %v643, %v642
      %v649 = vpack.c.b16 %v645, %v644
      %vm654 = vcmask 523264
      %v656 = vsel %vm654, %v598, 0
      %v659 = vsel %vm654, %v599, 0
      %v662 = vsel %vm654, %v600, 0
      %v665 = vsel %vm654, %v601, 0
      %v668 = vsel %vm654, %v602, 0
      %v671 = vsel %vm654, %v603, 0
      %v674 = vsel %vm654, %v604, 0
      %v677 = vsel %vm654, %v605, 0
      %v680 = vsel %vm654, %v606, 0
      %v683 = vsel %vm654, %v607, 0
      %v686 = vsel %vm654, %v608, 0
      %v689 = vsel %vm654, %v609, 0
      %v692 = vsel %vm654, %v610, 0
      %v695 = vsel %vm654, %v611, 0
      %v698 = vsel %vm654, %v612, 0
      %v701 = vsel %vm654, %v613, 0
      %v704 = vsel %vm654, %v614, 0
      %v707 = vsel %vm654, %v615, 0
      %v710 = vsel %vm654, %v616, 0
      %v713 = vsel %vm654, %v617, 0
      %v716 = vsel %vm654, %v618, 0
      %v719 = vsel %vm654, %v619, 0
      %v722 = vsel %vm654, %v620, 0
      %v725 = vsel %vm654, %v621, 0
      %v728 = vsel %vm654, %v622, 0
      %v731 = vsel %vm654, %v623, 0
      %v734 = vsel %vm654, %v624, 0
      %v737 = vsel %vm654, %v625, 0
      %v740 = vsel %vm654, %v626, 0
      %v743 = vsel %vm654, %v627, 0
      %v746 = vsel %vm654, %v628, 0
      %v749 = vsel %vm654, %v629, 0
      %751 = vmatprep.subr.bf16.mxu0 0
      %752 = vmatpush1.bf16.msra.mxu0 0
      %753 = vmatprep.subr.bf16.mxu0 0
      %754 = vmatpush1.bf16.msra.mxu0 0
      %755 = vmatprep.subr.bf16.mxu0 0
      %756 = vmatpush1.bf16.msra.mxu0 0
      %757 = vmatprep.subr.bf16.mxu0 0
      %758 = vmatpush1.bf16.msra.mxu0 0
      %759 = vmatprep.subr.bf16.mxu0 0
      %760 = vmatpush1.bf16.msra.mxu0 %v649
      %761 = vmatprep.subr.bf16.mxu0 0
      %762 = vmatpush1.bf16.msra.mxu0 %v648
      %763 = vmatprep.subr.bf16.mxu0 0
      %764 = vmatpush1.bf16.msra.mxu0 %v647
      %765 = vmatprep.subr.bf16.mxu0 0
      %766 = vmatpush1.bf16.msra.mxu0 %v646
      %767 = vmatprep.subr.bf16.mxu0 0
      %768 = vmatpush2.bf16.msra.mxu0 0
      %769 = vmatprep.subr.bf16.mxu0 0
      %770 = vmatpush2.bf16.msra.mxu0 0
      %771 = vmatprep.subr.bf16.mxu0 0
      %772 = vmatpush2.bf16.msra.mxu0 0
      %773 = vmatprep.subr.bf16.mxu0 0
      %774 = vmatpush2.bf16.msra.mxu0 0
      %775 = vmatprep.subr.bf16.mxu0 0
      %776 = vmatpush2.bf16.msra.mxu0 0
      %777 = vmatprep.subr.bf16.mxu0 0
      %778 = vmatpush2.bf16.msra.mxu0 0
      %779 = vmatprep.subr.bf16.mxu0 0
      %780 = vmatpush2.bf16.msra.mxu0 0
      %781 = vmatprep.subr.bf16.mxu0 0
      %782 = vmatpush2.bf16.msra.mxu0 0
      %783 = vmatprep.mubr.bf16.mxu0 0
      %784 = vmatmul.mubr.bf16.gmra.mxu0 %v656
      %v785 = vpop.f32.mrf.mxu0
      %v786 = vadd.f32 0.0, %v785
      %v787 = vpop.f32.mrf.mxu0
      %v788 = vpop.f32.mrf.mxu0
      %v789 = vadd.f32 0.0, %v788
      %v790 = vpop.f32.mrf.mxu0
      %791 = vmatprep.mubr.bf16.mxu0 0
      %792 = vmatmul.mubr.bf16.gmra.mxu0 %v659
      %v793 = vpop.f32.mrf.mxu0
      %v794 = vadd.f32 0.0, %v793
      %v795 = vpop.f32.mrf.mxu0
      %v796 = vpop.f32.mrf.mxu0
      %v797 = vadd.f32 0.0, %v796
      %v798 = vpop.f32.mrf.mxu0
      %799 = vmatprep.mubr.bf16.mxu0 0
      %800 = vmatmul.mubr.bf16.gmra.mxu0 %v662
      %v801 = vpop.f32.mrf.mxu0
      %v802 = vadd.f32 0.0, %v801
      %v803 = vpop.f32.mrf.mxu0
      %v804 = vpop.f32.mrf.mxu0
      %v805 = vadd.f32 0.0, %v804
      %v806 = vpop.f32.mrf.mxu0
      %807 = vmatprep.mubr.bf16.mxu0 0
      %808 = vmatmul.mubr.bf16.gmra.mxu0 %v665
      %v809 = vpop.f32.mrf.mxu0
      %v810 = vadd.f32 0.0, %v809
      %v811 = vpop.f32.mrf.mxu0
      %v812 = vpop.f32.mrf.mxu0
      %v813 = vadd.f32 0.0, %v812
      %v814 = vpop.f32.mrf.mxu0
      %815 = vmatprep.mubr.bf16.mxu0 0
      %816 = vmatmul.mubr.bf16.gmra.mxu0 %v668
      %v817 = vpop.f32.mrf.mxu0
      %v818 = vadd.f32 0.0, %v817
      %v819 = vpop.f32.mrf.mxu0
      %v820 = vpop.f32.mrf.mxu0
      %v821 = vadd.f32 0.0, %v820
      %v822 = vpop.f32.mrf.mxu0
      %823 = vmatprep.mubr.bf16.mxu0 0
      %824 = vmatmul.mubr.bf16.gmra.mxu0 %v671
      %v825 = vpop.f32.mrf.mxu0
      %v826 = vadd.f32 0.0, %v825
      %v827 = vpop.f32.mrf.mxu0
      %v828 = vpop.f32.mrf.mxu0
      %v829 = vadd.f32 0.0, %v828
      %v830 = vpop.f32.mrf.mxu0
      %831 = vmatprep.mubr.bf16.mxu0 0
      %832 = vmatmul.mubr.bf16.gmra.mxu0 %v674
      %v833 = vpop.f32.mrf.mxu0
      %v834 = vadd.f32 0.0, %v833
      %v835 = vpop.f32.mrf.mxu0
      %v836 = vpop.f32.mrf.mxu0
      %v837 = vadd.f32 0.0, %v836
      %v838 = vpop.f32.mrf.mxu0
      %839 = vmatprep.mubr.bf16.mxu0 0
      %840 = vmatmul.mubr.bf16.gmra.mxu0 %v677
      %v841 = vpop.f32.mrf.mxu0
      %v842 = vadd.f32 0.0, %v841
      %v843 = vpop.f32.mrf.mxu0
      %v844 = vpop.f32.mrf.mxu0
      %v845 = vadd.f32 0.0, %v844
      %v846 = vpop.f32.mrf.mxu0
      %847 = vmatprep.mubr.bf16.mxu0 0
      %848 = vmatmul.mubr.bf16.gmra.mxu0 %v680
      %v849 = vpop.f32.mrf.mxu0
      %v850 = vadd.f32 0.0, %v849
      %v851 = vpop.f32.mrf.mxu0
      %v852 = vpop.f32.mrf.mxu0
      %v853 = vadd.f32 0.0, %v852
      %v854 = vpop.f32.mrf.mxu0
      %855 = vmatprep.mubr.bf16.mxu0 0
      %856 = vmatmul.mubr.bf16.gmra.mxu0 %v683
      %v857 = vpop.f32.mrf.mxu0
      %v858 = vadd.f32 0.0, %v857
      %v859 = vpop.f32.mrf.mxu0
      %v860 = vpop.f32.mrf.mxu0
      %v861 = vadd.f32 0.0, %v860
      %v862 = vpop.f32.mrf.mxu0
      %863 = vmatprep.mubr.bf16.mxu0 0
      %864 = vmatmul.mubr.bf16.gmra.mxu0 %v686
      %v865 = vpop.f32.mrf.mxu0
      %v866 = vadd.f32 0.0, %v865
      %v867 = vpop.f32.mrf.mxu0
      %v868 = vpop.f32.mrf.mxu0
      %v869 = vadd.f32 0.0, %v868
      %v870 = vpop.f32.mrf.mxu0
      %871 = vmatprep.mubr.bf16.mxu0 0
      %872 = vmatmul.mubr.bf16.gmra.mxu0 %v689
      %v873 = vpop.f32.mrf.mxu0
      %v874 = vadd.f32 0.0, %v873
      %v875 = vpop.f32.mrf.mxu0
      %v876 = vpop.f32.mrf.mxu0
      %v877 = vadd.f32 0.0, %v876
      %v878 = vpop.f32.mrf.mxu0
      %879 = vmatprep.mubr.bf16.mxu0 0
      %880 = vmatmul.mubr.bf16.gmra.mxu0 %v692
      %v881 = vpop.f32.mrf.mxu0
      %v882 = vadd.f32 0.0, %v881
      %v883 = vpop.f32.mrf.mxu0
      %v884 = vpop.f32.mrf.mxu0
      %v885 = vadd.f32 0.0, %v884
      %v886 = vpop.f32.mrf.mxu0
      %887 = vmatprep.mubr.bf16.mxu0 0
      %888 = vmatmul.mubr.bf16.gmra.mxu0 %v695
      %v889 = vpop.f32.mrf.mxu0
      %v890 = vadd.f32 0.0, %v889
      %v891 = vpop.f32.mrf.mxu0
      %v892 = vpop.f32.mrf.mxu0
      %v893 = vadd.f32 0.0, %v892
      %v894 = vpop.f32.mrf.mxu0
      %895 = vmatprep.mubr.bf16.mxu0 0
      %896 = vmatmul.mubr.bf16.gmra.mxu0 %v698
      %v897 = vpop.f32.mrf.mxu0
      %v898 = vadd.f32 0.0, %v897
      %v899 = vpop.f32.mrf.mxu0
      %v900 = vpop.f32.mrf.mxu0
      %v901 = vadd.f32 0.0, %v900
      %v902 = vpop.f32.mrf.mxu0
      %903 = vmatprep.mubr.bf16.mxu0 0
      %904 = vmatmul.mubr.bf16.gmra.mxu0 %v701
      %v905 = vpop.f32.mrf.mxu0
      %v906 = vadd.f32 0.0, %v905
      %v907 = vpop.f32.mrf.mxu0
      %v908 = vpop.f32.mrf.mxu0
      %v909 = vadd.f32 0.0, %v908
      %v910 = vpop.f32.mrf.mxu0
      %911 = vmatprep.mubr.bf16.mxu0 0
      %912 = vmatmul.mubr.bf16.gmra.mxu0 %v704
      %v913 = vpop.f32.mrf.mxu0
      %v914 = vadd.f32 0.0, %v913
      %v915 = vpop.f32.mrf.mxu0
      %v916 = vpop.f32.mrf.mxu0
      %v917 = vadd.f32 0.0, %v916
      %v918 = vpop.f32.mrf.mxu0
      %919 = vmatprep.mubr.bf16.mxu0 0
      %920 = vmatmul.mubr.bf16.gmra.mxu0 %v707
      %v921 = vpop.f32.mrf.mxu0
      %v922 = vadd.f32 0.0, %v921
      %v923 = vpop.f32.mrf.mxu0
      %v924 = vpop.f32.mrf.mxu0
      %v925 = vadd.f32 0.0, %v924
      %v926 = vpop.f32.mrf.mxu0
      %927 = vmatprep.mubr.bf16.mxu0 0
      %928 = vmatmul.mubr.bf16.gmra.mxu0 %v710
      %v929 = vpop.f32.mrf.mxu0
      %v930 = vadd.f32 0.0, %v929
      %v931 = vpop.f32.mrf.mxu0
      %v932 = vpop.f32.mrf.mxu0
      %v933 = vadd.f32 0.0, %v932
      %v934 = vpop.f32.mrf.mxu0
      %935 = vmatprep.mubr.bf16.mxu0 0
      %936 = vmatmul.mubr.bf16.gmra.mxu0 %v713
      %v937 = vpop.f32.mrf.mxu0
      %v938 = vadd.f32 0.0, %v937
      %v939 = vpop.f32.mrf.mxu0
      %v940 = vpop.f32.mrf.mxu0
      %v941 = vadd.f32 0.0, %v940
      %v942 = vpop.f32.mrf.mxu0
      %943 = vmatprep.mubr.bf16.mxu0 0
      %944 = vmatmul.mubr.bf16.gmra.mxu0 %v716
      %v945 = vpop.f32.mrf.mxu0
      %v946 = vadd.f32 0.0, %v945
      %v947 = vpop.f32.mrf.mxu0
      %v948 = vpop.f32.mrf.mxu0
      %v949 = vadd.f32 0.0, %v948
      %v950 = vpop.f32.mrf.mxu0
      %951 = vmatprep.mubr.bf16.mxu0 0
      %952 = vmatmul.mubr.bf16.gmra.mxu0 %v719
      %v953 = vpop.f32.mrf.mxu0
      %v954 = vadd.f32 0.0, %v953
      %v955 = vpop.f32.mrf.mxu0
      %v956 = vpop.f32.mrf.mxu0
      %v957 = vadd.f32 0.0, %v956
      %v958 = vpop.f32.mrf.mxu0
      %959 = vmatprep.mubr.bf16.mxu0 0
      %960 = vmatmul.mubr.bf16.gmra.mxu0 %v722
      %v961 = vpop.f32.mrf.mxu0
      %v962 = vadd.f32 0.0, %v961
      %v963 = vpop.f32.mrf.mxu0
      %v964 = vpop.f32.mrf.mxu0
      %v965 = vadd.f32 0.0, %v964
      %v966 = vpop.f32.mrf.mxu0
      %967 = vmatprep.mubr.bf16.mxu0 0
      %968 = vmatmul.mubr.bf16.gmra.mxu0 %v725
      %v969 = vpop.f32.mrf.mxu0
      %v970 = vadd.f32 0.0, %v969
      %v971 = vpop.f32.mrf.mxu0
      %v972 = vpop.f32.mrf.mxu0
      %v973 = vadd.f32 0.0, %v972
      %v974 = vpop.f32.mrf.mxu0
      %975 = vmatprep.mubr.bf16.mxu0 0
      %976 = vmatmul.mubr.bf16.gmra.mxu0 %v728
      %v977 = vpop.f32.mrf.mxu0
      %v978 = vadd.f32 0.0, %v977
      %v979 = vpop.f32.mrf.mxu0
      %v980 = vpop.f32.mrf.mxu0
      %v981 = vadd.f32 0.0, %v980
      %v982 = vpop.f32.mrf.mxu0
      %983 = vmatprep.mubr.bf16.mxu0 0
      %984 = vmatmul.mubr.bf16.gmra.mxu0 %v731
      %v985 = vpop.f32.mrf.mxu0
      %v986 = vadd.f32 0.0, %v985
      %v987 = vpop.f32.mrf.mxu0
      %v988 = vpop.f32.mrf.mxu0
      %v989 = vadd.f32 0.0, %v988
      %v990 = vpop.f32.mrf.mxu0
      %991 = vmatprep.mubr.bf16.mxu0 0
      %992 = vmatmul.mubr.bf16.gmra.mxu0 %v734
      %v993 = vpop.f32.mrf.mxu0
      %v994 = vadd.f32 0.0, %v993
      %v995 = vpop.f32.mrf.mxu0
      %v996 = vpop.f32.mrf.mxu0
      %v997 = vadd.f32 0.0, %v996
      %v998 = vpop.f32.mrf.mxu0
      %999 = vmatprep.mubr.bf16.mxu0 0
      %1000 = vmatmul.mubr.bf16.gmra.mxu0 %v737
      %v1001 = vpop.f32.mrf.mxu0
      %v1002 = vadd.f32 0.0, %v1001
      %v1003 = vpop.f32.mrf.mxu0
      %v1004 = vpop.f32.mrf.mxu0
      %v1005 = vadd.f32 0.0, %v1004
      %v1006 = vpop.f32.mrf.mxu0
      %1007 = vmatprep.mubr.bf16.mxu0 0
      %1008 = vmatmul.mubr.bf16.gmra.mxu0 %v740
      %v1009 = vpop.f32.mrf.mxu0
      %v1010 = vadd.f32 0.0, %v1009
      %v1011 = vpop.f32.mrf.mxu0
      %v1012 = vpop.f32.mrf.mxu0
      %v1013 = vadd.f32 0.0, %v1012
      %v1014 = vpop.f32.mrf.mxu0
      %1015 = vmatprep.mubr.bf16.mxu0 0
      %1016 = vmatmul.mubr.bf16.gmra.mxu0 %v743
      %v1017 = vpop.f32.mrf.mxu0
      %v1018 = vadd.f32 0.0, %v1017
      %v1019 = vpop.f32.mrf.mxu0
      %v1020 = vpop.f32.mrf.mxu0
      %v1021 = vadd.f32 0.0, %v1020
      %v1022 = vpop.f32.mrf.mxu0
      %1023 = vmatprep.mubr.bf16.mxu0 0
      %1024 = vmatmul.mubr.bf16.gmra.mxu0 %v746
      %v1025 = vpop.f32.mrf.mxu0
      %v1026 = vadd.f32 0.0, %v1025
      %v1027 = vpop.f32.mrf.mxu0
      %v1028 = vpop.f32.mrf.mxu0
      %v1029 = vadd.f32 0.0, %v1028
      %v1030 = vpop.f32.mrf.mxu0
      %1031 = vmatprep.mubr.bf16.mxu0 0
      %1032 = vmatmul.mubr.bf16.gmra.mxu0 %v749
      %v1033 = vpop.f32.mrf.mxu0
      %v1034 = vadd.f32 0.0, %v1033
      %v1035 = vpop.f32.mrf.mxu0
      %v1036 = vpop.f32.mrf.mxu0
      %v1037 = vadd.f32 0.0, %v1036
      %v1038 = vpop.f32.mrf.mxu0
      %1039 = vdwg.mxu0
      %v1040 = vadd.f32 %v334, %v786
      %v1041 = vadd.f32 %v335, %v789
      %v1042 = vadd.f32 %v336, %v794
      %v1043 = vadd.f32 %v337, %v797
      %v1044 = vadd.f32 %v338, %v802
      %v1045 = vadd.f32 %v339, %v805
      %v1046 = vadd.f32 %v340, %v810
      %v1047 = vadd.f32 %v341, %v813
      %v1048 = vadd.f32 %v342, %v818
      %v1049 = vadd.f32 %v343, %v821
      %v1050 = vadd.f32 %v344, %v826
      %v1051 = vadd.f32 %v345, %v829
      %v1052 = vadd.f32 %v346, %v834
      %v1053 = vadd.f32 %v347, %v837
      %v1054 = vadd.f32 %v348, %v842
      %v1055 = vadd.f32 %v349, %v845
      %v1056 = vadd.f32 %v350, %v850
      %v1057 = vadd.f32 %v351, %v853
      %v1058 = vadd.f32 %v352, %v858
      %v1059 = vadd.f32 %v353, %v861
      %v1060 = vadd.f32 %v354, %v866
      %v1061 = vadd.f32 %v355, %v869
      %v1062 = vadd.f32 %v356, %v874
      %v1063 = vadd.f32 %v357, %v877
      %v1064 = vadd.f32 %v358, %v882
      %v1065 = vadd.f32 %v359, %v885
      %v1066 = vadd.f32 %v360, %v890
      %v1067 = vadd.f32 %v361, %v893
      %v1068 = vadd.f32 %v362, %v898
      %v1069 = vadd.f32 %v363, %v901
      %v1070 = vadd.f32 %v364, %v906
      %v1071 = vadd.f32 %v365, %v909
      %v1072 = vadd.f32 %v366, %v914
      %v1073 = vadd.f32 %v367, %v917
      %v1074 = vadd.f32 %v368, %v922
      %v1075 = vadd.f32 %v369, %v925
      %v1076 = vadd.f32 %v370, %v930
      %v1077 = vadd.f32 %v371, %v933
      %v1078 = vadd.f32 %v372, %v938
      %v1079 = vadd.f32 %v373, %v941
      %v1080 = vadd.f32 %v374, %v946
      %v1081 = vadd.f32 %v375, %v949
      %v1082 = vadd.f32 %v376, %v954
      %v1083 = vadd.f32 %v377, %v957
      %v1084 = vadd.f32 %v378, %v962
      %v1085 = vadd.f32 %v379, %v965
      %v1086 = vadd.f32 %v380, %v970
      %v1087 = vadd.f32 %v381, %v973
      %v1088 = vadd.f32 %v382, %v978
      %v1089 = vadd.f32 %v383, %v981
      %v1090 = vadd.f32 %v384, %v986
      %v1091 = vadd.f32 %v385, %v989
      %v1092 = vadd.f32 %v386, %v994
      %v1093 = vadd.f32 %v387, %v997
      %v1094 = vadd.f32 %v388, %v1002
      %v1095 = vadd.f32 %v389, %v1005
      %v1096 = vadd.f32 %v390, %v1010
      %v1097 = vadd.f32 %v391, %v1013
      %v1098 = vadd.f32 %v392, %v1018
      %v1099 = vadd.f32 %v393, %v1021
      %v1100 = vadd.f32 %v394, %v1026
      %v1101 = vadd.f32 %v395, %v1029
      %v1102 = vadd.f32 %v396, %v1034
      %v1103 = vadd.f32 %v397, %v1037
      %vm1104 = vcmask 23552
      %1105 = vst.msk [vmem:[#allocation2] sm:$0xff] %vm1104, %v1040
      %1106 = vst.msk [vmem:[#allocation2 + $0x8] sm:$0xff] %vm1104, %v1041
      %1107 = vst.msk [vmem:[#allocation2 + $0x10] sm:$0xff] %vm1104, %v1042
      %1108 = vst.msk [vmem:[#allocation2 + $0x18] sm:$0xff] %vm1104, %v1043
      %1109 = vst.msk [vmem:[#allocation2 + $0x20] sm:$0xff] %vm1104, %v1044
      %1110 = vst.msk [vmem:[#allocation2 + $0x28] sm:$0xff] %vm1104, %v1045
      %1111 = vst.msk [vmem:[#allocation2 + $0x30] sm:$0xff] %vm1104, %v1046
      %1112 = vst.msk [vmem:[#allocation2 + $0x38] sm:$0xff] %vm1104, %v1047
      %1113 = vst.msk [vmem:[#allocation2 + $0x40] sm:$0xff] %vm1104, %v1048
      %1114 = vst.msk [vmem:[#allocation2 + $0x48] sm:$0xff] %vm1104, %v1049
      %1115 = vst.msk [vmem:[#allocation2 + $0x50] sm:$0xff] %vm1104, %v1050
      %1116 = vst.msk [vmem:[#allocation2 + $0x58] sm:$0xff] %vm1104, %v1051
      %1117 = vst.msk [vmem:[#allocation2 + $0x60] sm:$0xff] %vm1104, %v1052
      %1118 = vst.msk [vmem:[#allocation2 + $0x68] sm:$0xff] %vm1104, %v1053
      %1119 = vst.msk [vmem:[#allocation2 + $0x70] sm:$0xff] %vm1104, %v1054
      %1120 = vst.msk [vmem:[#allocation2 + $0x78] sm:$0xff] %vm1104, %v1055
      %1121 = vst.msk [vmem:[#allocation2 + $0x80] sm:$0xff] %vm1104, %v1056
      %1122 = vst.msk [vmem:[#allocation2 + $0x88] sm:$0xff] %vm1104, %v1057
      %1123 = vst.msk [vmem:[#allocation2 + $0x90] sm:$0xff] %vm1104, %v1058
      %1124 = vst.msk [vmem:[#allocation2 + $0x98] sm:$0xff] %vm1104, %v1059
      %1125 = vst.msk [vmem:[#allocation2 + $0xa0] sm:$0xff] %vm1104, %v1060
      %1126 = vst.msk [vmem:[#allocation2 + $0xa8] sm:$0xff] %vm1104, %v1061
      %1127 = vst.msk [vmem:[#allocation2 + $0xb0] sm:$0xff] %vm1104, %v1062
      %1128 = vst.msk [vmem:[#allocation2 + $0xb8] sm:$0xff] %vm1104, %v1063
      %1129 = vst.msk [vmem:[#allocation2 + $0xc0] sm:$0xff] %vm1104, %v1064
      %1130 = vst.msk [vmem:[#allocation2 + $0xc8] sm:$0xff] %vm1104, %v1065
      %1131 = vst.msk [vmem:[#allocation2 + $0xd0] sm:$0xff] %vm1104, %v1066
      %1132 = vst.msk [vmem:[#allocation2 + $0xd8] sm:$0xff] %vm1104, %v1067
      %1133 = vst.msk [vmem:[#allocation2 + $0xe0] sm:$0xff] %vm1104, %v1068
      %1134 = vst.msk [vmem:[#allocation2 + $0xe8] sm:$0xff] %vm1104, %v1069
      %1135 = vst.msk [vmem:[#allocation2 + $0xf0] sm:$0xff] %vm1104, %v1070
      %1136 = vst.msk [vmem:[#allocation2 + $0xf8] sm:$0xff] %vm1104, %v1071
      %1137 = vst.msk [vmem:[#allocation2 + $0x100] sm:$0xff] %vm1104, %v1072
      %1138 = vst.msk [vmem:[#allocation2 + $0x108] sm:$0xff] %vm1104, %v1073
      %1139 = vst.msk [vmem:[#allocation2 + $0x110] sm:$0xff] %vm1104, %v1074
      %1140 = vst.msk [vmem:[#allocation2 + $0x118] sm:$0xff] %vm1104, %v1075
      %1141 = vst.msk [vmem:[#allocation2 + $0x120] sm:$0xff] %vm1104, %v1076
      %1142 = vst.msk [vmem:[#allocation2 + $0x128] sm:$0xff] %vm1104, %v1077
      %1143 = vst.msk [vmem:[#allocation2 + $0x130] sm:$0xff] %vm1104, %v1078
      %1144 = vst.msk [vmem:[#allocation2 + $0x138] sm:$0xff] %vm1104, %v1079
      %1145 = vst.msk [vmem:[#allocation2 + $0x140] sm:$0xff] %vm1104, %v1080
      %1146 = vst.msk [vmem:[#allocation2 + $0x148] sm:$0xff] %vm1104, %v1081
      %1147 = vst.msk [vmem:[#allocation2 + $0x150] sm:$0xff] %vm1104, %v1082
      %1148 = vst.msk [vmem:[#allocation2 + $0x158] sm:$0xff] %vm1104, %v1083
      %1149 = vst.msk [vmem:[#allocation2 + $0x160] sm:$0xff] %vm1104, %v1084
      %1150 = vst.msk [vmem:[#allocation2 + $0x168] sm:$0xff] %vm1104, %v1085
      %1151 = vst.msk [vmem:[#allocation2 + $0x170] sm:$0xff] %vm1104, %v1086
      %1152 = vst.msk [vmem:[#allocation2 + $0x178] sm:$0xff] %vm1104, %v1087
      %1153 = vst.msk [vmem:[#allocation2 + $0x180] sm:$0xff] %vm1104, %v1088
      %1154 = vst.msk [vmem:[#allocation2 + $0x188] sm:$0xff] %vm1104, %v1089
      %1155 = vst.msk [vmem:[#allocation2 + $0x190] sm:$0xff] %vm1104, %v1090
      %1156 = vst.msk [vmem:[#allocation2 + $0x198] sm:$0xff] %vm1104, %v1091
      %1157 = vst.msk [vmem:[#allocation2 + $0x1a0] sm:$0xff] %vm1104, %v1092
      %1158 = vst.msk [vmem:[#allocation2 + $0x1a8] sm:$0xff] %vm1104, %v1093
      %1159 = vst.msk [vmem:[#allocation2 + $0x1b0] sm:$0xff] %vm1104, %v1094
      %1160 = vst.msk [vmem:[#allocation2 + $0x1b8] sm:$0xff] %vm1104, %v1095
      %1161 = vst.msk [vmem:[#allocation2 + $0x1c0] sm:$0xff] %vm1104, %v1096
      %1162 = vst.msk [vmem:[#allocation2 + $0x1c8] sm:$0xff] %vm1104, %v1097
      %1163 = vst.msk [vmem:[#allocation2 + $0x1d0] sm:$0xff] %vm1104, %v1098
      %1164 = vst.msk [vmem:[#allocation2 + $0x1d8] sm:$0xff] %vm1104, %v1099
      %1165 = vst.msk [vmem:[#allocation2 + $0x1e0] sm:$0xff] %vm1104, %v1100
      %1166 = vst.msk [vmem:[#allocation2 + $0x1e8] sm:$0xff] %vm1104, %v1101
      %1167 = vst.msk [vmem:[#allocation2 + $0x1f0] sm:$0xff] %vm1104, %v1102
      %1168 = vst.msk [vmem:[#allocation2 + $0x1f8] sm:$0xff] %vm1104, %v1103
      // Predicated region
      $region37: #{generator_forward.17} parent=31 // pred_check
        %p1169 = pneg %p265
      $region38: #{generator_forward.17} parent=31 // pred_check_branch
        %1171 = sbr.rel (%p1169) target = $region40
      $region39: #{generator_forward.17} parent=31 // pred_region
        %v1172 = vld [vmem:[#allocation2] sm:$0xff]
        %v1173 = vld [vmem:[#allocation2 + $0x8] sm:$0xff]
        %v1174 = vld [vmem:[#allocation2 + $0x10] sm:$0xff]
        %v1175 = vld [vmem:[#allocation2 + $0x18] sm:$0xff]
        %v1176 = vld [vmem:[#allocation2 + $0x20] sm:$0xff]
        %v1177 = vld [vmem:[#allocation2 + $0x28] sm:$0xff]
        %v1178 = vld [vmem:[#allocation2 + $0x30] sm:$0xff]
        %v1179 = vld [vmem:[#allocation2 + $0x38] sm:$0xff]
        %v1180 = vld [vmem:[#allocation2 + $0x40] sm:$0xff]
        %v1181 = vld [vmem:[#allocation2 + $0x48] sm:$0xff]
        %v1182 = vld [vmem:[#allocation2 + $0x50] sm:$0xff]
        %v1183 = vld [vmem:[#allocation2 + $0x58] sm:$0xff]
        %v1184 = vld [vmem:[#allocation2 + $0x60] sm:$0xff]
        %v1185 = vld [vmem:[#allocation2 + $0x68] sm:$0xff]
        %v1186 = vld [vmem:[#allocation2 + $0x70] sm:$0xff]
        %v1187 = vld [vmem:[#allocation2 + $0x78] sm:$0xff]
        %v1188 = vld [vmem:[#allocation2 + $0x80] sm:$0xff]
        %v1189 = vld [vmem:[#allocation2 + $0x88] sm:$0xff]
        %v1190 = vld [vmem:[#allocation2 + $0x90] sm:$0xff]
        %v1191 = vld [vmem:[#allocation2 + $0x98] sm:$0xff]
        %v1192 = vld [vmem:[#allocation2 + $0xa0] sm:$0xff]
        %v1193 = vld [vmem:[#allocation2 + $0xa8] sm:$0xff]
        %v1194 = vld [vmem:[#allocation2 + $0xb0] sm:$0xff]
        %v1195 = vld [vmem:[#allocation2 + $0xb8] sm:$0xff]
        %v1196 = vld [vmem:[#allocation2 + $0xc0] sm:$0xff]
        %v1197 = vld [vmem:[#allocation2 + $0xc8] sm:$0xff]
        %v1198 = vld [vmem:[#allocation2 + $0xd0] sm:$0xff]
        %v1199 = vld [vmem:[#allocation2 + $0xd8] sm:$0xff]
        %v1200 = vld [vmem:[#allocation2 + $0xe0] sm:$0xff]
        %v1201 = vld [vmem:[#allocation2 + $0xe8] sm:$0xff]
        %v1202 = vld [vmem:[#allocation2 + $0xf0] sm:$0xff]
        %v1203 = vld [vmem:[#allocation2 + $0xf8] sm:$0xff]
        %v1204 = vld [vmem:[#allocation2 + $0x100] sm:$0xff]
        %v1205 = vld [vmem:[#allocation2 + $0x108] sm:$0xff]
        %v1206 = vld [vmem:[#allocation2 + $0x110] sm:$0xff]
        %v1207 = vld [vmem:[#allocation2 + $0x118] sm:$0xff]
        %v1208 = vld [vmem:[#allocation2 + $0x120] sm:$0xff]
        %v1209 = vld [vmem:[#allocation2 + $0x128] sm:$0xff]
        %v1210 = vld [vmem:[#allocation2 + $0x130] sm:$0xff]
        %v1211 = vld [vmem:[#allocation2 + $0x138] sm:$0xff]
        %v1212 = vld [vmem:[#allocation2 + $0x140] sm:$0xff]
        %v1213 = vld [vmem:[#allocation2 + $0x148] sm:$0xff]
        %v1214 = vld [vmem:[#allocation2 + $0x150] sm:$0xff]
        %v1215 = vld [vmem:[#allocation2 + $0x158] sm:$0xff]
        %v1216 = vld [vmem:[#allocation2 + $0x160] sm:$0xff]
        %v1217 = vld [vmem:[#allocation2 + $0x168] sm:$0xff]
        %v1218 = vld [vmem:[#allocation2 + $0x170] sm:$0xff]
        %v1219 = vld [vmem:[#allocation2 + $0x178] sm:$0xff]
        %v1220 = vld [vmem:[#allocation2 + $0x180] sm:$0xff]
        %v1221 = vld [vmem:[#allocation2 + $0x188] sm:$0xff]
        %v1222 = vld [vmem:[#allocation2 + $0x190] sm:$0xff]
        %v1223 = vld [vmem:[#allocation2 + $0x198] sm:$0xff]
        %v1224 = vld [vmem:[#allocation2 + $0x1a0] sm:$0xff]
        %v1225 = vld [vmem:[#allocation2 + $0x1a8] sm:$0xff]
        %v1226 = vld [vmem:[#allocation2 + $0x1b0] sm:$0xff]
        %v1227 = vld [vmem:[#allocation2 + $0x1b8] sm:$0xff]
        %v1228 = vld [vmem:[#allocation2 + $0x1c0] sm:$0xff]
        %v1229 = vld [vmem:[#allocation2 + $0x1c8] sm:$0xff]
        %v1230 = vld [vmem:[#allocation2 + $0x1d0] sm:$0xff]
        %v1231 = vld [vmem:[#allocation2 + $0x1d8] sm:$0xff]
        %v1232 = vld [vmem:[#allocation2 + $0x1e0] sm:$0xff]
        %v1233 = vld [vmem:[#allocation2 + $0x1e8] sm:$0xff]
        %v1234 = vld [vmem:[#allocation2 + $0x1f0] sm:$0xff]
        %v1235 = vld [vmem:[#allocation2 + $0x1f8] sm:$0xff]
        %v1236 = vld [vmem:[%s2] sm:$0x1]
        %v1238 = vlaneseq
        %v1239 = vshrl.u32 %v1238, 7
        %v1240 = vsub.s32 0, %v1239
        %v1241 = vrot.slane %v1236, %v1240
        %v1243 = vadd.f32 %v1172, %v1241
        %v1244 = vadd.f32 %v1173, %v1241
        %v1245 = vadd.f32 %v1174, %v1241
        %v1246 = vadd.f32 %v1175, %v1241
        %v1247 = vadd.f32 %v1176, %v1241
        %v1248 = vadd.f32 %v1177, %v1241
        %v1249 = vadd.f32 %v1178, %v1241
        %v1250 = vadd.f32 %v1179, %v1241
        %v1251 = vadd.f32 %v1180, %v1241
        %v1252 = vadd.f32 %v1181, %v1241
        %v1253 = vadd.f32 %v1182, %v1241
        %v1254 = vadd.f32 %v1183, %v1241
        %v1255 = vadd.f32 %v1184, %v1241
        %v1256 = vadd.f32 %v1185, %v1241
        %v1257 = vadd.f32 %v1186, %v1241
        %v1258 = vadd.f32 %v1187, %v1241
        %v1259 = vadd.f32 %v1188, %v1241
        %v1260 = vadd.f32 %v1189, %v1241
        %v1261 = vadd.f32 %v1190, %v1241
        %v1262 = vadd.f32 %v1191, %v1241
        %v1263 = vadd.f32 %v1192, %v1241
        %v1264 = vadd.f32 %v1193, %v1241
        %v1265 = vadd.f32 %v1194, %v1241
        %v1266 = vadd.f32 %v1195, %v1241
        %v1267 = vadd.f32 %v1196, %v1241
        %v1268 = vadd.f32 %v1197, %v1241
        %v1269 = vadd.f32 %v1198, %v1241
        %v1270 = vadd.f32 %v1199, %v1241
        %v1271 = vadd.f32 %v1200, %v1241
        %v1272 = vadd.f32 %v1201, %v1241
        %v1273 = vadd.f32 %v1202, %v1241
        %v1274 = vadd.f32 %v1203, %v1241
        %v1275 = vadd.f32 %v1204, %v1241
        %v1276 = vadd.f32 %v1205, %v1241
        %v1277 = vadd.f32 %v1206, %v1241
        %v1278 = vadd.f32 %v1207, %v1241
        %v1279 = vadd.f32 %v1208, %v1241
        %v1280 = vadd.f32 %v1209, %v1241
        %v1281 = vadd.f32 %v1210, %v1241
        %v1282 = vadd.f32 %v1211, %v1241
        %v1283 = vadd.f32 %v1212, %v1241
        %v1284 = vadd.f32 %v1213, %v1241
        %v1285 = vadd.f32 %v1214, %v1241
        %v1286 = vadd.f32 %v1215, %v1241
        %v1287 = vadd.f32 %v1216, %v1241
        %v1288 = vadd.f32 %v1217, %v1241
        %v1289 = vadd.f32 %v1218, %v1241
        %v1290 = vadd.f32 %v1219, %v1241
        %v1291 = vadd.f32 %v1220, %v1241
        %v1292 = vadd.f32 %v1221, %v1241
        %v1293 = vadd.f32 %v1222, %v1241
        %v1294 = vadd.f32 %v1223, %v1241
        %v1295 = vadd.f32 %v1224, %v1241
        %v1296 = vadd.f32 %v1225, %v1241
        %v1297 = vadd.f32 %v1226, %v1241
        %v1298 = vadd.f32 %v1227, %v1241
        %v1299 = vadd.f32 %v1228, %v1241
        %v1300 = vadd.f32 %v1229, %v1241
        %v1301 = vadd.f32 %v1230, %v1241
        %v1302 = vadd.f32 %v1231, %v1241
        %v1303 = vadd.f32 %v1232, %v1241
        %v1304 = vadd.f32 %v1233, %v1241
        %v1305 = vadd.f32 %v1234, %v1241
        %v1306 = vadd.f32 %v1235, %v1241
        %v1307 = vtanh.pop %v1243
        %v1308 = vtanh.pop %v1244
        %v1309 = vtanh.pop %v1245
        %v1310 = vtanh.pop %v1246
        %v1311 = vtanh.pop %v1247
        %v1312 = vtanh.pop %v1248
        %v1313 = vtanh.pop %v1249
        %v1314 = vtanh.pop %v1250
        %v1315 = vtanh.pop %v1251
        %v1316 = vtanh.pop %v1252
        %v1317 = vtanh.pop %v1253
        %v1318 = vtanh.pop %v1254
        %v1319 = vtanh.pop %v1255
        %v1320 = vtanh.pop %v1256
        %v1321 = vtanh.pop %v1257
        %v1322 = vtanh.pop %v1258
        %v1323 = vtanh.pop %v1259
        %v1324 = vtanh.pop %v1260
        %v1325 = vtanh.pop %v1261
        %v1326 = vtanh.pop %v1262
        %v1327 = vtanh.pop %v1263
        %v1328 = vtanh.pop %v1264
        %v1329 = vtanh.pop %v1265
        %v1330 = vtanh.pop %v1266
        %v1331 = vtanh.pop %v1267
        %v1332 = vtanh.pop %v1268
        %v1333 = vtanh.pop %v1269
        %v1334 = vtanh.pop %v1270
        %v1335 = vtanh.pop %v1271
        %v1336 = vtanh.pop %v1272
        %v1337 = vtanh.pop %v1273
        %v1338 = vtanh.pop %v1274
        %v1339 = vtanh.pop %v1275
        %v1340 = vtanh.pop %v1276
        %v1341 = vtanh.pop %v1277
        %v1342 = vtanh.pop %v1278
        %v1343 = vtanh.pop %v1279
        %v1344 = vtanh.pop %v1280
        %v1345 = vtanh.pop %v1281
        %v1346 = vtanh.pop %v1282
        %v1347 = vtanh.pop %v1283
        %v1348 = vtanh.pop %v1284
        %v1349 = vtanh.pop %v1285
        %v1350 = vtanh.pop %v1286
        %v1351 = vtanh.pop %v1287
        %v1352 = vtanh.pop %v1288
        %v1353 = vtanh.pop %v1289
        %v1354 = vtanh.pop %v1290
        %v1355 = vtanh.pop %v1291
        %v1356 = vtanh.pop %v1292
        %v1357 = vtanh.pop %v1293
        %v1358 = vtanh.pop %v1294
        %v1359 = vtanh.pop %v1295
        %v1360 = vtanh.pop %v1296
        %v1361 = vtanh.pop %v1297
        %v1362 = vtanh.pop %v1298
        %v1363 = vtanh.pop %v1299
        %v1364 = vtanh.pop %v1300
        %v1365 = vtanh.pop %v1301
        %v1366 = vtanh.pop %v1302
        %v1367 = vtanh.pop %v1303
        %v1368 = vtanh.pop %v1304
        %v1369 = vtanh.pop %v1305
        %v1370 = vtanh.pop %v1306
        %1371 = vst.msk [vmem:[%s262] sm:$0xff] %vm1104, %v1307
        %1372 = vst.msk [vmem:[%s262 + $0x8] sm:$0xff] %vm1104, %v1308
        %1373 = vst.msk [vmem:[%s262 + $0x10] sm:$0xff] %vm1104, %v1309
        %1374 = vst.msk [vmem:[%s262 + $0x18] sm:$0xff] %vm1104, %v1310
        %1375 = vst.msk [vmem:[%s262 + $0x20] sm:$0xff] %vm1104, %v1311
        %1376 = vst.msk [vmem:[%s262 + $0x28] sm:$0xff] %vm1104, %v1312
        %1377 = vst.msk [vmem:[%s262 + $0x30] sm:$0xff] %vm1104, %v1313
        %1378 = vst.msk [vmem:[%s262 + $0x38] sm:$0xff] %vm1104, %v1314
        %1379 = vst.msk [vmem:[%s262 + $0x40] sm:$0xff] %vm1104, %v1315
        %1380 = vst.msk [vmem:[%s262 + $0x48] sm:$0xff] %vm1104, %v1316
        %1381 = vst.msk [vmem:[%s262 + $0x50] sm:$0xff] %vm1104, %v1317
        %1382 = vst.msk [vmem:[%s262 + $0x58] sm:$0xff] %vm1104, %v1318
        %1383 = vst.msk [vmem:[%s262 + $0x60] sm:$0xff] %vm1104, %v1319
        %1384 = vst.msk [vmem:[%s262 + $0x68] sm:$0xff] %vm1104, %v1320
        %1385 = vst.msk [vmem:[%s262 + $0x70] sm:$0xff] %vm1104, %v1321
        %1386 = vst.msk [vmem:[%s262 + $0x78] sm:$0xff] %vm1104, %v1322
        %1387 = vst.msk [vmem:[%s262 + $0x80] sm:$0xff] %vm1104, %v1323
        %1388 = vst.msk [vmem:[%s262 + $0x88] sm:$0xff] %vm1104, %v1324
        %1389 = vst.msk [vmem:[%s262 + $0x90] sm:$0xff] %vm1104, %v1325
        %1390 = vst.msk [vmem:[%s262 + $0x98] sm:$0xff] %vm1104, %v1326
        %1391 = vst.msk [vmem:[%s262 + $0xa0] sm:$0xff] %vm1104, %v1327
        %1392 = vst.msk [vmem:[%s262 + $0xa8] sm:$0xff] %vm1104, %v1328
        %1393 = vst.msk [vmem:[%s262 + $0xb0] sm:$0xff] %vm1104, %v1329
        %1394 = vst.msk [vmem:[%s262 + $0xb8] sm:$0xff] %vm1104, %v1330
        %1395 = vst.msk [vmem:[%s262 + $0xc0] sm:$0xff] %vm1104, %v1331
        %1396 = vst.msk [vmem:[%s262 + $0xc8] sm:$0xff] %vm1104, %v1332
        %1397 = vst.msk [vmem:[%s262 + $0xd0] sm:$0xff] %vm1104, %v1333
        %1398 = vst.msk [vmem:[%s262 + $0xd8] sm:$0xff] %vm1104, %v1334
        %1399 = vst.msk [vmem:[%s262 + $0xe0] sm:$0xff] %vm1104, %v1335
        %1400 = vst.msk [vmem:[%s262 + $0xe8] sm:$0xff] %vm1104, %v1336
        %1401 = vst.msk [vmem:[%s262 + $0xf0] sm:$0xff] %vm1104, %v1337
        %1402 = vst.msk [vmem:[%s262 + $0xf8] sm:$0xff] %vm1104, %v1338
        %1403 = vst.msk [vmem:[%s262 + $0x100] sm:$0xff] %vm1104, %v1339
        %1404 = vst.msk [vmem:[%s262 + $0x108] sm:$0xff] %vm1104, %v1340
        %1405 = vst.msk [vmem:[%s262 + $0x110] sm:$0xff] %vm1104, %v1341
        %1406 = vst.msk [vmem:[%s262 + $0x118] sm:$0xff] %vm1104, %v1342
        %1407 = vst.msk [vmem:[%s262 + $0x120] sm:$0xff] %vm1104, %v1343
        %1408 = vst.msk [vmem:[%s262 + $0x128] sm:$0xff] %vm1104, %v1344
        %1409 = vst.msk [vmem:[%s262 + $0x130] sm:$0xff] %vm1104, %v1345
        %1410 = vst.msk [vmem:[%s262 + $0x138] sm:$0xff] %vm1104, %v1346
        %1411 = vst.msk [vmem:[%s262 + $0x140] sm:$0xff] %vm1104, %v1347
        %1412 = vst.msk [vmem:[%s262 + $0x148] sm:$0xff] %vm1104, %v1348
        %1413 = vst.msk [vmem:[%s262 + $0x150] sm:$0xff] %vm1104, %v1349
        %1414 = vst.msk [vmem:[%s262 + $0x158] sm:$0xff] %vm1104, %v1350
        %1415 = vst.msk [vmem:[%s262 + $0x160] sm:$0xff] %vm1104, %v1351
        %1416 = vst.msk [vmem:[%s262 + $0x168] sm:$0xff] %vm1104, %v1352
        %1417 = vst.msk [vmem:[%s262 + $0x170] sm:$0xff] %vm1104, %v1353
        %1418 = vst.msk [vmem:[%s262 + $0x178] sm:$0xff] %vm1104, %v1354
        %1419 = vst.msk [vmem:[%s262 + $0x180] sm:$0xff] %vm1104, %v1355
        %1420 = vst.msk [vmem:[%s262 + $0x188] sm:$0xff] %vm1104, %v1356
        %1421 = vst.msk [vmem:[%s262 + $0x190] sm:$0xff] %vm1104, %v1357
        %1422 = vst.msk [vmem:[%s262 + $0x198] sm:$0xff] %vm1104, %v1358
        %1423 = vst.msk [vmem:[%s262 + $0x1a0] sm:$0xff] %vm1104, %v1359
        %1424 = vst.msk [vmem:[%s262 + $0x1a8] sm:$0xff] %vm1104, %v1360
        %1425 = vst.msk [vmem:[%s262 + $0x1b0] sm:$0xff] %vm1104, %v1361
        %1426 = vst.msk [vmem:[%s262 + $0x1b8] sm:$0xff] %vm1104, %v1362
        %1427 = vst.msk [vmem:[%s262 + $0x1c0] sm:$0xff] %vm1104, %v1363
        %1428 = vst.msk [vmem:[%s262 + $0x1c8] sm:$0xff] %vm1104, %v1364
        %1429 = vst.msk [vmem:[%s262 + $0x1d0] sm:$0xff] %vm1104, %v1365
        %1430 = vst.msk [vmem:[%s262 + $0x1d8] sm:$0xff] %vm1104, %v1366
        %1431 = vst.msk [vmem:[%s262 + $0x1e0] sm:$0xff] %vm1104, %v1367
        %1432 = vst.msk [vmem:[%s262 + $0x1e8] sm:$0xff] %vm1104, %v1368
        %1433 = vst.msk [vmem:[%s262 + $0x1f0] sm:$0xff] %vm1104, %v1369
        %1434 = vst.msk [vmem:[%s262 + $0x1f8] sm:$0xff] %vm1104, %v1370
      $region40: #{generator_forward.17} parent=31 // pred_fallthru
        _
      %s1435 = smul.u32 64, %s20
      %p1436 = scmp.lt.s32.totalorder %s19, 3
      %s1437 = scalar_select %p1436, %s19, 3
      %p1438 = scmp.lt.s32.totalorder %s1435, 255
      %s1439 = scalar_select %p1438, %s1435, 255
      %s1440 = smul.addr %s1437, 256
      %s1441 = sadd.s32 %s1439, %s1440
      %s1442 = smul.addr %s1441, 8
      %s1443 = scalar_lea.vmem %s3, %s1442
      // Predicated region
      $region41: #{generator_forward.17} parent=31 // pred_check
        %p1444 = pneg %p132
      $region42: #{generator_forward.17} parent=31 // pred_check_branch
        %1446 = sbr.rel (%p1444) target = $region44
      $region43: #{generator_forward.17} parent=31 // pred_region
        %s1447 = smul.u32 64, %s20
      $region44: #{generator_forward.17} parent=31 // pred_fallthru
        _
    $region32: #{generator_forward.17} parent=5 // pred_fallthru
      _
    %p1448 = scmp.le.s32.totalorder 2, %s9
    // Predicated region
    $region45: #{generator_forward.17} parent=5 // pred_check
      %p1449 = pneg %p1448
    $region46: #{generator_forward.17} parent=5 // pred_check_branch
      %1451 = sbr.rel (%p1449) target = $region48
    $region47: #{generator_forward.17} parent=5 // pred_region
      %s1452 = ssub.s32 %s9, 2
      // Predicated region
      $region49: #{generator_forward.17} parent=47 // pred_check
        %p1453 = pneg %p138
      $region50: #{generator_forward.17} parent=47 // pred_check_branch
        %1455 = sbr.rel (%p1453) target = $region52
      $region51: #{generator_forward.17} parent=47 // pred_region
        %s1456 = smul.u32 64, %s23
        %p1457 = scmp.lt.s32.totalorder %s22, 3
        %s1458 = scalar_select %p1457, %s22, 3
        %p1459 = scmp.lt.s32.totalorder %s1456, 255
        %s1460 = scalar_select %p1459, %s1456, 255
        %s1461 = smul.addr %s1458, 256
        %s1462 = sadd.s32 %s1460, %s1461
        %s1463 = smul.addr %s1462, 8
        %s1464 = scalar_lea.vmem %s3, %s1463
      $region52: #{generator_forward.17} parent=47 // pred_fallthru
        _
    $region48: #{generator_forward.17} parent=5 // pred_fallthru
      _
  $region6: #{generator_forward.17} parent=0 // loop_footer
    %s13 = sadd.s32 1, %s9
  $region7: #{generator_forward.17} parent=0 // loop_footer_branch
    %8 = sbr.rel target = $region3
  $region8: #{generator_forward.17} parent=0 // loop_exit
    _

</llo_original>
